<compile_context>
chip_gen: v7x
topology: tpu7x:2x2x1
jax: 0.10.0
libtpu: 0.0.40
codegen_flags: <defaults>
</compile_context>

<pallas_src>
import jax
import jax.numpy as jnp
from jax.experimental import pallas as pl
from jax.experimental.pallas import tpu as pltpu

EPS = 1e-5   # PyTorch BatchNorm2d default eps
RD = 8       # sublane-aligned W offset at which every conv2 tap READ starts
WS = 32      # padded W extent of each y1 slab (multiple of 8, >= RD + 1 + W)


def _bn_relu(o, gamma, beta, m):
    """Training-mode BatchNorm2d (biased batch variance) + ReLU on (M, C), f32.

    Single-pass E[x^2]-E[x]^2 is adequate at these magnitudes.
    TODO(synk): switch to a two-pass / Welford tile-merge formulation when the
    kernel is tiled over a grid (large per-channel means cancel catastrophically)."""
    inv_m = 1.0 / m
    mean = jnp.sum(o, axis=0, keepdims=True) * inv_m
    var = jnp.sum(o * o, axis=0, keepdims=True) * inv_m - mean * mean
    scale = gamma * jax.lax.rsqrt(var + EPS)          # rsqrt -> EUP slot (cheap)
    shift = beta - mean * scale
    return jnp.maximum(o * scale + shift, 0.0)


def double_conv_kernel(p1_ref, w1_ref, g1_ref, be1_ref, w2_ref, g2_ref, be2_ref,
                       out_ref, acc_ref, slab0_ref, slab1_ref, slab2_ref):
    N, H, W, Cout = out_ref.shape
    Hp = H + 2
    M = N * H * W
    slabs = (slab0_ref, slab1_ref, slab2_ref)

    # ---------- conv1: single MXU matmul on the prebuilt bf16 im2col patch ----------
    # (conv biases intentionally omitted: exactly cancelled by BN mean subtraction)
    acc_ref[...] = jnp.dot(p1_ref[...], w1_ref[...],
                           preferred_element_type=jnp.float32)

    # ---------- BN1 (batch stats, f32) + ReLU ----------
    o1 = acc_ref[...]
    y1 = _bn_relu(o1, g1_ref[...], be1_ref[...], M).astype(jnp.bfloat16)
    y1 = y1.reshape(N, H, W, Cout)

    # ---------- write y1 into three dx-shifted, zero-haloed bf16 slabs ----------
    # Slab d holds the padded y1 positioned so the dx=d tap read below starts at
    # the sublane-aligned offset RD.  The whole read window [RD, RD+W) is zeroed
    # first (covers every halo cell that can be read), then the interior is stored.
    for d, slab in enumerate(slabs):
        slab[:, :, RD:RD + W, :] = jnp.zeros((N, Hp, W, Cout), jnp.bfloat16)
        off = RD + 1 - d                       # content W offset: 9, 8, 7
        slab[:, 1:H + 1, off:off + W, :] = y1

    # ---------- conv2: nine K=Cout MXU matmuls, every LHS read sublane-aligned ----------
    for t in range(9):
        dy, d = t // 3, t % 3
        lhs = slabs[d][:, dy:dy + H, RD:RD + W, :].reshape(M, Cout)
        contrib = jnp.dot(lhs, w2_ref[t], preferred_element_type=jnp.float32)
        if t == 0:
            acc_ref[...] = contrib             # reuse conv1's accumulator scratch
        else:
            acc_ref[...] += contrib

    # ---------- BN2 (batch stats, f32) + ReLU ----------
    o2 = acc_ref[...]
    y2 = _bn_relu(o2, g2_ref[...], be2_ref[...], M)
    out_ref[...] = y2.reshape(N, H, W, Cout)   # lane-dense (Cout=128) store


def double_conv(x_nchw, params):
    """x_nchw: (N, Cin, H, W) float32 -> (N, Cout, H, W) float32."""
    w1, b1, g1, be1, w2, b2, g2, be2 = params
    del b1, b2  # conv biases are exact no-ops under training-mode BN (see kernel)

    x = jnp.transpose(x_nchw, (0, 2, 3, 1)).astype(jnp.float32)   # NCHW -> NHWC
    N, H, W, Cin = x.shape
    Cout = w1.shape[-1]
    M = N * H * W

    # conv1 im2col hoisted to XLA (perf review item 1): (M, 9*Cin) bf16 patch.
    xp = jnp.pad(x, ((0, 0), (1, 1), (1, 1), (0, 0)))             # spatial pad = 1
    taps = [xp[:, dy:dy + H, dx:dx + W, :].reshape(M, Cin)
            for dy in range(3) for dx in range(3)]                # (dy, dx) major order
    patch1 = jnp.concatenate(taps, axis=1).astype(jnp.bfloat16)

    # bf16 MXU operands (row order dy, dx, cin matches patch1 columns).
    w1m = w1.reshape(9 * Cin, Cout).astype(jnp.bfloat16)
    w2m = w2.reshape(9, Cout, Cout).astype(jnp.bfloat16)

    vmem = pl.BlockSpec(memory_space=pltpu.MemorySpace.VMEM)
    flops = 2 * M * (9 * Cin) * Cout + 2 * M * (9 * Cout) * Cout + 12 * M * Cout
    bytes_accessed = (2 * (patch1.size + w1m.size + w2m.size)
                      + 4 * (4 * Cout) + 4 * M * Cout)

    out = pl.pallas_call(
        double_conv_kernel,
        out_shape=jax.ShapeDtypeStruct((N, H, W, Cout), jnp.float32),
        in_specs=[vmem] * 7,
        out_specs=vmem,
        scratch_shapes=[
            pltpu.VMEM((M, Cout), jnp.float32),                    # shared f32 conv accumulator
            pltpu.VMEM((N, H + 2, WS, Cout), jnp.bfloat16),        # y1 slab, dx = 0
            pltpu.VMEM((N, H + 2, WS, Cout), jnp.bfloat16),        # y1 slab, dx = 1
            pltpu.VMEM((N, H + 2, WS, Cout), jnp.bfloat16),        # y1 slab, dx = 2
        ],
        compiler_params=pltpu.CompilerParams(vmem_limit_bytes=32 * 1024 * 1024),
        cost_estimate=pl.CostEstimate(flops=flops, transcendentals=2 * Cout,
                                      bytes_accessed=int(bytes_accessed)),
    )(patch1, w1m,
      g1.reshape(1, Cout).astype(jnp.float32), be1.reshape(1, Cout).astype(jnp.float32),
      w2m,
      g2.reshape(1, Cout).astype(jnp.float32), be2.reshape(1, Cout).astype(jnp.float32))
    return jnp.transpose(out, (0, 3, 1, 2))                        # NHWC -> NCHW


def reference(x_nchw, params):
    """Pure-JAX f32 reference with the exact PyTorch semantics (incl. conv biases)."""
    w1, b1, g1, be1, w2, b2, g2, be2 = params
    x = jnp.transpose(x_nchw, (0, 2, 3, 1)).astype(jnp.float32)

    def block(h, w, b, g, be):
        o = jax.lax.conv_general_dilated(
            h, w, (1, 1), 'SAME',
            dimension_numbers=('NHWC', 'HWIO', 'NHWC')) + b.reshape(1, 1, 1, -1)
        mean = jnp.mean(o, axis=(0, 1, 2), keepdims=True)
        var = jnp.mean((o - mean) ** 2, axis=(0, 1, 2), keepdims=True)
        y = (o - mean) * jax.lax.rsqrt(var + EPS) * g.reshape(1, 1, 1, -1) \
            + be.reshape(1, 1, 1, -1)
        return jnp.maximum(y, 0.0)

    h = block(x, w1, b1, g1, be1)
    h = block(h, w2, b2, g2, be2)
    return jnp.transpose(h, (0, 3, 1, 2))


def init_params(key, in_channels, out_channels, k=3):
    ks = jax.random.split(key, 4)
    s1 = 1.0 / (in_channels * k * k) ** 0.5
    s2 = 1.0 / (out_channels * k * k) ** 0.5
    w1 = jax.random.uniform(ks[0], (k, k, in_channels, out_channels),
                            jnp.float32, -s1, s1)
    b1 = jax.random.uniform(ks[1], (out_channels,), jnp.float32, -s1, s1)
    w2 = jax.random.uniform(ks[2], (k, k, out_channels, out_channels),
                            jnp.float32, -s2, s2)
    b2 = jax.random.uniform(ks[3], (out_channels,), jnp.float32, -s2, s2)
    # deterministic, well-conditioned BatchNorm affine params
    c = jnp.arange(out_channels, dtype=jnp.float32) / out_channels
    g1 = 1.0 + 0.5 * c
    be1 = 0.1 * c - 0.05
    g2 = 1.0 - 0.5 * c
    be2 = 0.02 - 0.1 * c
    return (w1, b1, g1, be1, w2, b2, g2, be2)


if __name__ == "__main__":
    # Cout is a multiple of 128 (lane-dense activations / unmasked stores, per
    # perf guidance); batch / spatial / input channels kept small.
    N, Cin, Cout, H, W = 2, 4, 128, 16, 16
    key = jax.random.PRNGKey(0)
    kx, kp = jax.random.split(key)
    x = jax.random.normal(kx, (N, Cin, H, W), jnp.float32)
    params = init_params(kp, Cin, Cout)

    out = jax.block_until_ready(double_conv(x, params))
    ref = jax.block_until_ready(reference(x, params))

    assert out.shape == (N, Cout, H, W)
    err = jnp.max(jnp.abs(out - ref))
    # bf16 MXU operands with f32 accumulation => looser tolerance than pure f32.
    assert jnp.allclose(out, ref, atol=5e-2, rtol=5e-2), f"max abs err {err}"
    print("KERNEL_OK")
</pallas_src>

<mosaic_0001>
module attributes {stable_mosaic.version = 11 : i64} {
  func.func @double_conv_kernel(%arg0: memref<512x36xbf16, #tpu.memory_space<vmem>>, %arg1: memref<36x128xbf16, #tpu.memory_space<vmem>>, %arg2: memref<1x128xf32, #tpu.memory_space<vmem>>, %arg3: memref<1x128xf32, #tpu.memory_space<vmem>>, %arg4: memref<9x128x128xbf16, #tpu.memory_space<vmem>>, %arg5: memref<1x128xf32, #tpu.memory_space<vmem>>, %arg6: memref<1x128xf32, #tpu.memory_space<vmem>>, %arg7: memref<2x16x16x128xf32, #tpu.memory_space<vmem>>, %arg8: memref<512x128xf32, #tpu.memory_space<vmem>>, %arg9: memref<2x18x32x128xbf16, #tpu.memory_space<vmem>>, %arg10: memref<2x18x32x128xbf16, #tpu.memory_space<vmem>>, %arg11: memref<2x18x32x128xbf16, #tpu.memory_space<vmem>>) attributes {dimension_semantics = [], scalar_prefetch = 0 : i64, scratch_operands = 4 : i64, tpu.core_type = #tpu.core_type<tc>} {
    %c0 = arith.constant 0 : index
    %c0_0 = arith.constant 0 : index
    %0 = vector.load %arg0[%c0, %c0_0] : memref<512x36xbf16, #tpu.memory_space<vmem>>, vector<512x36xbf16>
    %c0_1 = arith.constant 0 : index
    %c0_2 = arith.constant 0 : index
    %1 = vector.load %arg1[%c0_1, %c0_2] : memref<36x128xbf16, #tpu.memory_space<vmem>>, vector<36x128xbf16>
    %cst = arith.constant dense<0.000000e+00> : vector<512x128xf32>
    %2 = tpu.matmul %0, %1, %cst {dimension_numbers = #tpu.dot_dimension_numbers<[1], [0], [0], [1], [0, 0, 1, 1], [], []>} : vector<512x36xbf16>, vector<36x128xbf16>, vector<512x128xf32> -> vector<512x128xf32>
    %c0_3 = arith.constant 0 : index
    %c0_4 = arith.constant 0 : index
    %3 = vector.load %arg8[%c0_3, %c0_4] : memref<512x128xf32, #tpu.memory_space<vmem>>, vector<512x128xf32>
    tpu.vector_store %arg8[%c0_3, %c0_4], %2 {strides = array<i32>} : memref<512x128xf32, #tpu.memory_space<vmem>>, vector<512x128xf32>,
    %c0_5 = arith.constant 0 : index
    %c0_6 = arith.constant 0 : index
    %4 = vector.load %arg8[%c0_5, %c0_6] : memref<512x128xf32, #tpu.memory_space<vmem>>, vector<512x128xf32>
    %c0_7 = arith.constant 0 : index
    %c0_8 = arith.constant 0 : index
    %5 = vector.load %arg2[%c0_7, %c0_8] : memref<1x128xf32, #tpu.memory_space<vmem>>, vector<1x128xf32>
    %c0_9 = arith.constant 0 : index
    %c0_10 = arith.constant 0 : index
    %6 = vector.load %arg3[%c0_9, %c0_10] : memref<1x128xf32, #tpu.memory_space<vmem>>, vector<1x128xf32>
    %cst_11 = arith.constant dense<0.000000e+00> : vector<128xf32>
    %7 = vector.multi_reduction <add>, %4, %cst_11 [0] : vector<512x128xf32> to vector<128xf32>
    %8 = vector.shape_cast %7 : vector<128xf32> to vector<1x128xf32>
    %cst_12 = arith.constant 0.001953125 : f32
    %9 = vector.broadcast %cst_12 : f32 to vector<1x128xf32>
    %10 = arith.mulf %8, %9 : vector<1x128xf32>
    %11 = arith.mulf %4, %4 : vector<512x128xf32>
    %cst_13 = arith.constant dense<0.000000e+00> : vector<128xf32>
    %12 = vector.multi_reduction <add>, %11, %cst_13 [0] : vector<512x128xf32> to vector<128xf32>
    %13 = vector.shape_cast %12 : vector<128xf32> to vector<1x128xf32>
    %cst_14 = arith.constant 0.001953125 : f32
    %14 = vector.broadcast %cst_14 : f32 to vector<1x128xf32>
    %15 = arith.mulf %13, %14 : vector<1x128xf32>
    %16 = arith.mulf %10, %10 : vector<1x128xf32>
    %17 = arith.subf %15, %16 : vector<1x128xf32>
    %cst_15 = arith.constant 9.99999974E-6 : f32
    %18 = vector.broadcast %cst_15 : f32 to vector<1x128xf32>
    %19 = arith.addf %17, %18 : vector<1x128xf32>
    %20 = math.rsqrt %19 : vector<1x128xf32>
    %21 = arith.mulf %5, %20 : vector<1x128xf32>
    %22 = arith.mulf %10, %21 : vector<1x128xf32>
    %23 = arith.subf %6, %22 : vector<1x128xf32>
    %24 = vector.broadcast %21 : vector<1x128xf32> to vector<512x128xf32>
    %25 = arith.mulf %4, %24 : vector<512x128xf32>
    %26 = vector.broadcast %23 : vector<1x128xf32> to vector<512x128xf32>
    %27 = arith.addf %25, %26 : vector<512x128xf32>
    %cst_16 = arith.constant 0.000000e+00 : f32
    %28 = vector.broadcast %cst_16 : f32 to vector<512x128xf32>
    %29 = arith.maximumf %27, %28 : vector<512x128xf32>
    %30 = arith.truncf %29 : vector<512x128xf32> to vector<512x128xbf16>
    %31 = vector.shape_cast %30 : vector<512x128xbf16> to vector<2x16x16x128xbf16>
    %cst_17 = arith.constant 0.000000e+00 : bf16
    %32 = vector.broadcast %cst_17 : bf16 to vector<2x18x16x128xbf16>
    %c0_18 = arith.constant 0 : index
    %c0_19 = arith.constant 0 : index
    %c8 = arith.constant 8 : index
    %c0_20 = arith.constant 0 : index
    %33 = vector.load %arg9[%c0_18, %c0_19, %c8, %c0_20] : memref<2x18x32x128xbf16, #tpu.memory_space<vmem>>, vector<2x18x16x128xbf16>
    tpu.vector_store %arg9[%c0_18, %c0_19, %c8, %c0_20], %32 {strides = array<i32>} : memref<2x18x32x128xbf16, #tpu.memory_space<vmem>>, vector<2x18x16x128xbf16>,
    %c0_21 = arith.constant 0 : index
    %c1 = arith.constant 1 : index
    %c9 = arith.constant 9 : index
    %c0_22 = arith.constant 0 : index
    %34 = vector.load %arg9[%c0_21, %c1, %c9, %c0_22] : memref<2x18x32x128xbf16, #tpu.memory_space<vmem>>, vector<2x16x16x128xbf16>
    tpu.vector_store %arg9[%c0_21, %c1, %c9, %c0_22], %31 {strides = array<i32>} : memref<2x18x32x128xbf16, #tpu.memory_space<vmem>>, vector<2x16x16x128xbf16>,
    %cst_23 = arith.constant 0.000000e+00 : bf16
    %35 = vector.broadcast %cst_23 : bf16 to vector<2x18x16x128xbf16>
    %c0_24 = arith.constant 0 : index
    %c0_25 = arith.constant 0 : index
    %c8_26 = arith.constant 8 : index
    %c0_27 = arith.constant 0 : index
    %36 = vector.load %arg10[%c0_24, %c0_25, %c8_26, %c0_27] : memref<2x18x32x128xbf16, #tpu.memory_space<vmem>>, vector<2x18x16x128xbf16>
    tpu.vector_store %arg10[%c0_24, %c0_25, %c8_26, %c0_27], %35 {strides = array<i32>} : memref<2x18x32x128xbf16, #tpu.memory_space<vmem>>, vector<2x18x16x128xbf16>,
    %c0_28 = arith.constant 0 : index
    %c1_29 = arith.constant 1 : index
    %c8_30 = arith.constant 8 : index
    %c0_31 = arith.constant 0 : index
    %37 = vector.load %arg10[%c0_28, %c1_29, %c8_30, %c0_31] : memref<2x18x32x128xbf16, #tpu.memory_space<vmem>>, vector<2x16x16x128xbf16>
    tpu.vector_store %arg10[%c0_28, %c1_29, %c8_30, %c0_31], %31 {strides = array<i32>} : memref<2x18x32x128xbf16, #tpu.memory_space<vmem>>, vector<2x16x16x128xbf16>,
    %cst_32 = arith.constant 0.000000e+00 : bf16
    %38 = vector.broadcast %cst_32 : bf16 to vector<2x18x16x128xbf16>
    %c0_33 = arith.constant 0 : index
    %c0_34 = arith.constant 0 : index
    %c8_35 = arith.constant 8 : index
    %c0_36 = arith.constant 0 : index
    %39 = vector.load %arg11[%c0_33, %c0_34, %c8_35, %c0_36] : memref<2x18x32x128xbf16, #tpu.memory_space<vmem>>, vector<2x18x16x128xbf16>
    tpu.vector_store %arg11[%c0_33, %c0_34, %c8_35, %c0_36], %38 {strides = array<i32>} : memref<2x18x32x128xbf16, #tpu.memory_space<vmem>>, vector<2x18x16x128xbf16>,
    %c0_37 = arith.constant 0 : index
    %c1_38 = arith.constant 1 : index
    %c7 = arith.constant 7 : index
    %c0_39 = arith.constant 0 : index
    %40 = vector.load %arg11[%c0_37, %c1_38, %c7, %c0_39] : memref<2x18x32x128xbf16, #tpu.memory_space<vmem>>, vector<2x16x16x128xbf16>
    tpu.vector_store %arg11[%c0_37, %c1_38, %c7, %c0_39], %31 {strides = array<i32>} : memref<2x18x32x128xbf16, #tpu.memory_space<vmem>>, vector<2x16x16x128xbf16>,
    %c0_40 = arith.constant 0 : index
    %c0_41 = arith.constant 0 : index
    %c8_42 = arith.constant 8 : index
    %c0_43 = arith.constant 0 : index
    %41 = vector.load %arg9[%c0_40, %c0_41, %c8_42, %c0_43] : memref<2x18x32x128xbf16, #tpu.memory_space<vmem>>, vector<2x16x16x128xbf16>
    %42 = vector.shape_cast %41 : vector<2x16x16x128xbf16> to vector<512x128xbf16>
    %c0_44 = arith.constant 0 : index
    %c0_45 = arith.constant 0 : index
    %c0_46 = arith.constant 0 : index
    %43 = vector.load %arg4[%c0_44, %c0_45, %c0_46] : memref<9x128x128xbf16, #tpu.memory_space<vmem>>, vector<1x128x128xbf16>
    %44 = vector.shape_cast %43 : vector<1x128x128xbf16> to vector<128x128xbf16>
    %cst_47 = arith.constant dense<0.000000e+00> : vector<512x128xf32>
    %45 = tpu.matmul %42, %44, %cst_47 {dimension_numbers = #tpu.dot_dimension_numbers<[1], [0], [0], [1], [0, 0, 1, 1], [], []>} : vector<512x128xbf16>, vector<128x128xbf16>, vector<512x128xf32> -> vector<512x128xf32>
    %c0_48 = arith.constant 0 : index
    %c0_49 = arith.constant 0 : index
    %46 = vector.load %arg8[%c0_48, %c0_49] : memref<512x128xf32, #tpu.memory_space<vmem>>, vector<512x128xf32>
    tpu.vector_store %arg8[%c0_48, %c0_49], %45 {strides = array<i32>} : memref<512x128xf32, #tpu.memory_space<vmem>>, vector<512x128xf32>,
    %c0_50 = arith.constant 0 : index
    %c0_51 = arith.constant 0 : index
    %c8_52 = arith.constant 8 : index
    %c0_53 = arith.constant 0 : index
    %47 = vector.load %arg10[%c0_50, %c0_51, %c8_52, %c0_53] : memref<2x18x32x128xbf16, #tpu.memory_space<vmem>>, vector<2x16x16x128xbf16>
    %48 = vector.shape_cast %47 : vector<2x16x16x128xbf16> to vector<512x128xbf16>
    %c1_54 = arith.constant 1 : index
    %c0_55 = arith.constant 0 : index
    %c0_56 = arith.constant 0 : index
    %49 = vector.load %arg4[%c1_54, %c0_55, %c0_56] : memref<9x128x128xbf16, #tpu.memory_space<vmem>>, vector<1x128x128xbf16>
    %50 = vector.shape_cast %49 : vector<1x128x128xbf16> to vector<128x128xbf16>
    %cst_57 = arith.constant dense<0.000000e+00> : vector<512x128xf32>
    %51 = tpu.matmul %48, %50, %cst_57 {dimension_numbers = #tpu.dot_dimension_numbers<[1], [0], [0], [1], [0, 0, 1, 1], [], []>} : vector<512x128xbf16>, vector<128x128xbf16>, vector<512x128xf32> -> vector<512x128xf32>
    %c0_58 = arith.constant 0 : index
    %c0_59 = arith.constant 0 : index
    %52 = vector.load %arg8[%c0_58, %c0_59] : memref<512x128xf32, #tpu.memory_space<vmem>>, vector<512x128xf32>
    %53 = arith.addf %52, %51 : vector<512x128xf32>
    %c0_60 = arith.constant 0 : index
    %c0_61 = arith.constant 0 : index
    %54 = vector.load %arg8[%c0_60, %c0_61] : memref<512x128xf32, #tpu.memory_space<vmem>>, vector<512x128xf32>
    tpu.vector_store %arg8[%c0_60, %c0_61], %53 {strides = array<i32>} : memref<512x128xf32, #tpu.memory_space<vmem>>, vector<512x128xf32>,
    %c0_62 = arith.constant 0 : index
    %c0_63 = arith.constant 0 : index
    %c8_64 = arith.constant 8 : index
    %c0_65 = arith.constant 0 : index
    %55 = vector.load %arg11[%c0_62, %c0_63, %c8_64, %c0_65] : memref<2x18x32x128xbf16, #tpu.memory_space<vmem>>, vector<2x16x16x128xbf16>
    %56 = vector.shape_cast %55 : vector<2x16x16x128xbf16> to vector<512x128xbf16>
    %c2 = arith.constant 2 : index
    %c0_66 = arith.constant 0 : index
    %c0_67 = arith.constant 0 : index
    %57 = vector.load %arg4[%c2, %c0_66, %c0_67] : memref<9x128x128xbf16, #tpu.memory_space<vmem>>, vector<1x128x128xbf16>
    %58 = vector.shape_cast %57 : vector<1x128x128xbf16> to vector<128x128xbf16>
    %cst_68 = arith.constant dense<0.000000e+00> : vector<512x128xf32>
    %59 = tpu.matmul %56, %58, %cst_68 {dimension_numbers = #tpu.dot_dimension_numbers<[1], [0], [0], [1], [0, 0, 1, 1], [], []>} : vector<512x128xbf16>, vector<128x128xbf16>, vector<512x128xf32> -> vector<512x128xf32>
    %c0_69 = arith.constant 0 : index
    %c0_70 = arith.constant 0 : index
    %60 = vector.load %arg8[%c0_69, %c0_70] : memref<512x128xf32, #tpu.memory_space<vmem>>, vector<512x128xf32>
    %61 = arith.addf %60, %59 : vector<512x128xf32>
    %c0_71 = arith.constant 0 : index
    %c0_72 = arith.constant 0 : index
    %62 = vector.load %arg8[%c0_71, %c0_72] : memref<512x128xf32, #tpu.memory_space<vmem>>, vector<512x128xf32>
    tpu.vector_store %arg8[%c0_71, %c0_72], %61 {strides = array<i32>} : memref<512x128xf32, #tpu.memory_space<vmem>>, vector<512x128xf32>,
    %c0_73 = arith.constant 0 : index
    %c1_74 = arith.constant 1 : index
    %c8_75 = arith.constant 8 : index
    %c0_76 = arith.constant 0 : index
    %63 = vector.load %arg9[%c0_73, %c1_74, %c8_75, %c0_76] : memref<2x18x32x128xbf16, #tpu.memory_space<vmem>>, vector<2x16x16x128xbf16>
    %64 = vector.shape_cast %63 : vector<2x16x16x128xbf16> to vector<512x128xbf16>
    %c3 = arith.constant 3 : index
    %c0_77 = arith.constant 0 : index
    %c0_78 = arith.constant 0 : index
    %65 = vector.load %arg4[%c3, %c0_77, %c0_78] : memref<9x128x128xbf16, #tpu.memory_space<vmem>>, vector<1x128x128xbf16>
    %66 = vector.shape_cast %65 : vector<1x128x128xbf16> to vector<128x128xbf16>
    %cst_79 = arith.constant dense<0.000000e+00> : vector<512x128xf32>
    %67 = tpu.matmul %64, %66, %cst_79 {dimension_numbers = #tpu.dot_dimension_numbers<[1], [0], [0], [1], [0, 0, 1, 1], [], []>} : vector<512x128xbf16>, vector<128x128xbf16>, vector<512x128xf32> -> vector<512x128xf32>
    %c0_80 = arith.constant 0 : index
    %c0_81 = arith.constant 0 : index
    %68 = vector.load %arg8[%c0_80, %c0_81] : memref<512x128xf32, #tpu.memory_space<vmem>>, vector<512x128xf32>
    %69 = arith.addf %68, %67 : vector<512x128xf32>
    %c0_82 = arith.constant 0 : index
    %c0_83 = arith.constant 0 : index
    %70 = vector.load %arg8[%c0_82, %c0_83] : memref<512x128xf32, #tpu.memory_space<vmem>>, vector<512x128xf32>
    tpu.vector_store %arg8[%c0_82, %c0_83], %69 {strides = array<i32>} : memref<512x128xf32, #tpu.memory_space<vmem>>, vector<512x128xf32>,
    %c0_84 = arith.constant 0 : index
    %c1_85 = arith.constant 1 : index
    %c8_86 = arith.constant 8 : index
    %c0_87 = arith.constant 0 : index
    %71 = vector.load %arg10[%c0_84, %c1_85, %c8_86, %c0_87] : memref<2x18x32x128xbf16, #tpu.memory_space<vmem>>, vector<2x16x16x128xbf16>
    %72 = vector.shape_cast %71 : vector<2x16x16x128xbf16> to vector<512x128xbf16>
    %c4 = arith.constant 4 : index
    %c0_88 = arith.constant 0 : index
    %c0_89 = arith.constant 0 : index
    %73 = vector.load %arg4[%c4, %c0_88, %c0_89] : memref<9x128x128xbf16, #tpu.memory_space<vmem>>, vector<1x128x128xbf16>
    %74 = vector.shape_cast %73 : vector<1x128x128xbf16> to vector<128x128xbf16>
    %cst_90 = arith.constant dense<0.000000e+00> : vector<512x128xf32>
    %75 = tpu.matmul %72, %74, %cst_90 {dimension_numbers = #tpu.dot_dimension_numbers<[1], [0], [0], [1], [0, 0, 1, 1], [], []>} : vector<512x128xbf16>, vector<128x128xbf16>, vector<512x128xf32> -> vector<512x128xf32>
    %c0_91 = arith.constant 0 : index
    %c0_92 = arith.constant 0 : index
    %76 = vector.load %arg8[%c0_91, %c0_92] : memref<512x128xf32, #tpu.memory_space<vmem>>, vector<512x128xf32>
    %77 = arith.addf %76, %75 : vector<512x128xf32>
    %c0_93 = arith.constant 0 : index
    %c0_94 = arith.constant 0 : index
    %78 = vector.load %arg8[%c0_93, %c0_94] : memref<512x128xf32, #tpu.memory_space<vmem>>, vector<512x128xf32>
    tpu.vector_store %arg8[%c0_93, %c0_94], %77 {strides = array<i32>} : memref<512x128xf32, #tpu.memory_space<vmem>>, vector<512x128xf32>,
    %c0_95 = arith.constant 0 : index
    %c1_96 = arith.constant 1 : index
    %c8_97 = arith.constant 8 : index
    %c0_98 = arith.constant 0 : index
    %79 = vector.load %arg11[%c0_95, %c1_96, %c8_97, %c0_98] : memref<2x18x32x128xbf16, #tpu.memory_space<vmem>>, vector<2x16x16x128xbf16>
    %80 = vector.shape_cast %79 : vector<2x16x16x128xbf16> to vector<512x128xbf16>
    %c5 = arith.constant 5 : index
    %c0_99 = arith.constant 0 : index
    %c0_100 = arith.constant 0 : index
    %81 = vector.load %arg4[%c5, %c0_99, %c0_100] : memref<9x128x128xbf16, #tpu.memory_space<vmem>>, vector<1x128x128xbf16>
    %82 = vector.shape_cast %81 : vector<1x128x128xbf16> to vector<128x128xbf16>
    %cst_101 = arith.constant dense<0.000000e+00> : vector<512x128xf32>
    %83 = tpu.matmul %80, %82, %cst_101 {dimension_numbers = #tpu.dot_dimension_numbers<[1], [0], [0], [1], [0, 0, 1, 1], [], []>} : vector<512x128xbf16>, vector<128x128xbf16>, vector<512x128xf32> -> vector<512x128xf32>
    %c0_102 = arith.constant 0 : index
    %c0_103 = arith.constant 0 : index
    %84 = vector.load %arg8[%c0_102, %c0_103] : memref<512x128xf32, #tpu.memory_space<vmem>>, vector<512x128xf32>
    %85 = arith.addf %84, %83 : vector<512x128xf32>
    %c0_104 = arith.constant 0 : index
    %c0_105 = arith.constant 0 : index
    %86 = vector.load %arg8[%c0_104, %c0_105] : memref<512x128xf32, #tpu.memory_space<vmem>>, vector<512x128xf32>
    tpu.vector_store %arg8[%c0_104, %c0_105], %85 {strides = array<i32>} : memref<512x128xf32, #tpu.memory_space<vmem>>, vector<512x128xf32>,
    %c0_106 = arith.constant 0 : index
    %c2_107 = arith.constant 2 : index
    %c8_108 = arith.constant 8 : index
    %c0_109 = arith.constant 0 : index
    %87 = vector.load %arg9[%c0_106, %c2_107, %c8_108, %c0_109] : memref<2x18x32x128xbf16, #tpu.memory_space<vmem>>, vector<2x16x16x128xbf16>
    %88 = vector.shape_cast %87 : vector<2x16x16x128xbf16> to vector<512x128xbf16>
    %c6 = arith.constant 6 : index
    %c0_110 = arith.constant 0 : index
    %c0_111 = arith.constant 0 : index
    %89 = vector.load %arg4[%c6, %c0_110, %c0_111] : memref<9x128x128xbf16, #tpu.memory_space<vmem>>, vector<1x128x128xbf16>
    %90 = vector.shape_cast %89 : vector<1x128x128xbf16> to vector<128x128xbf16>
    %cst_112 = arith.constant dense<0.000000e+00> : vector<512x128xf32>
    %91 = tpu.matmul %88, %90, %cst_112 {dimension_numbers = #tpu.dot_dimension_numbers<[1], [0], [0], [1], [0, 0, 1, 1], [], []>} : vector<512x128xbf16>, vector<128x128xbf16>, vector<512x128xf32> -> vector<512x128xf32>
    %c0_113 = arith.constant 0 : index
    %c0_114 = arith.constant 0 : index
    %92 = vector.load %arg8[%c0_113, %c0_114] : memref<512x128xf32, #tpu.memory_space<vmem>>, vector<512x128xf32>
    %93 = arith.addf %92, %91 : vector<512x128xf32>
    %c0_115 = arith.constant 0 : index
    %c0_116 = arith.constant 0 : index
    %94 = vector.load %arg8[%c0_115, %c0_116] : memref<512x128xf32, #tpu.memory_space<vmem>>, vector<512x128xf32>
    tpu.vector_store %arg8[%c0_115, %c0_116], %93 {strides = array<i32>} : memref<512x128xf32, #tpu.memory_space<vmem>>, vector<512x128xf32>,
    %c0_117 = arith.constant 0 : index
    %c2_118 = arith.constant 2 : index
    %c8_119 = arith.constant 8 : index
    %c0_120 = arith.constant 0 : index
    %95 = vector.load %arg10[%c0_117, %c2_118, %c8_119, %c0_120] : memref<2x18x32x128xbf16, #tpu.memory_space<vmem>>, vector<2x16x16x128xbf16>
    %96 = vector.shape_cast %95 : vector<2x16x16x128xbf16> to vector<512x128xbf16>
    %c7_121 = arith.constant 7 : index
    %c0_122 = arith.constant 0 : index
    %c0_123 = arith.constant 0 : index
    %97 = vector.load %arg4[%c7_121, %c0_122, %c0_123] : memref<9x128x128xbf16, #tpu.memory_space<vmem>>, vector<1x128x128xbf16>
    %98 = vector.shape_cast %97 : vector<1x128x128xbf16> to vector<128x128xbf16>
    %cst_124 = arith.constant dense<0.000000e+00> : vector<512x128xf32>
    %99 = tpu.matmul %96, %98, %cst_124 {dimension_numbers = #tpu.dot_dimension_numbers<[1], [0], [0], [1], [0, 0, 1, 1], [], []>} : vector<512x128xbf16>, vector<128x128xbf16>, vector<512x128xf32> -> vector<512x128xf32>
    %c0_125 = arith.constant 0 : index
    %c0_126 = arith.constant 0 : index
    %100 = vector.load %arg8[%c0_125, %c0_126] : memref<512x128xf32, #tpu.memory_space<vmem>>, vector<512x128xf32>
    %101 = arith.addf %100, %99 : vector<512x128xf32>
    %c0_127 = arith.constant 0 : index
    %c0_128 = arith.constant 0 : index
    %102 = vector.load %arg8[%c0_127, %c0_128] : memref<512x128xf32, #tpu.memory_space<vmem>>, vector<512x128xf32>
    tpu.vector_store %arg8[%c0_127, %c0_128], %101 {strides = array<i32>} : memref<512x128xf32, #tpu.memory_space<vmem>>, vector<512x128xf32>,
    %c0_129 = arith.constant 0 : index
    %c2_130 = arith.constant 2 : index
    %c8_131 = arith.constant 8 : index
    %c0_132 = arith.constant 0 : index
    %103 = vector.load %arg11[%c0_129, %c2_130, %c8_131, %c0_132] : memref<2x18x32x128xbf16, #tpu.memory_space<vmem>>, vector<2x16x16x128xbf16>
    %104 = vector.shape_cast %103 : vector<2x16x16x128xbf16> to vector<512x128xbf16>
    %c8_133 = arith.constant 8 : index
    %c0_134 = arith.constant 0 : index
    %c0_135 = arith.constant 0 : index
    %105 = vector.load %arg4[%c8_133, %c0_134, %c0_135] : memref<9x128x128xbf16, #tpu.memory_space<vmem>>, vector<1x128x128xbf16>
    %106 = vector.shape_cast %105 : vector<1x128x128xbf16> to vector<128x128xbf16>
    %cst_136 = arith.constant dense<0.000000e+00> : vector<512x128xf32>
    %107 = tpu.matmul %104, %106, %cst_136 {dimension_numbers = #tpu.dot_dimension_numbers<[1], [0], [0], [1], [0, 0, 1, 1], [], []>} : vector<512x128xbf16>, vector<128x128xbf16>, vector<512x128xf32> -> vector<512x128xf32>
    %c0_137 = arith.constant 0 : index
    %c0_138 = arith.constant 0 : index
    %108 = vector.load %arg8[%c0_137, %c0_138] : memref<512x128xf32, #tpu.memory_space<vmem>>, vector<512x128xf32>
    %109 = arith.addf %108, %107 : vector<512x128xf32>
    %c0_139 = arith.constant 0 : index
    %c0_140 = arith.constant 0 : index
    %110 = vector.load %arg8[%c0_139, %c0_140] : memref<512x128xf32, #tpu.memory_space<vmem>>, vector<512x128xf32>
    tpu.vector_store %arg8[%c0_139, %c0_140], %109 {strides = array<i32>} : memref<512x128xf32, #tpu.memory_space<vmem>>, vector<512x128xf32>,
    %c0_141 = arith.constant 0 : index
    %c0_142 = arith.constant 0 : index
    %111 = vector.load %arg8[%c0_141, %c0_142] : memref<512x128xf32, #tpu.memory_space<vmem>>, vector<512x128xf32>
    %c0_143 = arith.constant 0 : index
    %c0_144 = arith.constant 0 : index
    %112 = vector.load %arg5[%c0_143, %c0_144] : memref<1x128xf32, #tpu.memory_space<vmem>>, vector<1x128xf32>
    %c0_145 = arith.constant 0 : index
    %c0_146 = arith.constant 0 : index
    %113 = vector.load %arg6[%c0_145, %c0_146] : memref<1x128xf32, #tpu.memory_space<vmem>>, vector<1x128xf32>
    %cst_147 = arith.constant dense<0.000000e+00> : vector<128xf32>
    %114 = vector.multi_reduction <add>, %111, %cst_147 [0] : vector<512x128xf32> to vector<128xf32>
    %115 = vector.shape_cast %114 : vector<128xf32> to vector<1x128xf32>
    %cst_148 = arith.constant 0.001953125 : f32
    %116 = vector.broadcast %cst_148 : f32 to vector<1x128xf32>
    %117 = arith.mulf %115, %116 : vector<1x128xf32>
    %118 = arith.mulf %111, %111 : vector<512x128xf32>
    %cst_149 = arith.constant dense<0.000000e+00> : vector<128xf32>
    %119 = vector.multi_reduction <add>, %118, %cst_149 [0] : vector<512x128xf32> to vector<128xf32>
    %120 = vector.shape_cast %119 : vector<128xf32> to vector<1x128xf32>
    %cst_150 = arith.constant 0.001953125 : f32
    %121 = vector.broadcast %cst_150 : f32 to vector<1x128xf32>
    %122 = arith.mulf %120, %121 : vector<1x128xf32>
    %123 = arith.mulf %117, %117 : vector<1x128xf32>
    %124 = arith.subf %122, %123 : vector<1x128xf32>
    %cst_151 = arith.constant 9.99999974E-6 : f32
    %125 = vector.broadcast %cst_151 : f32 to vector<1x128xf32>
    %126 = arith.addf %124, %125 : vector<1x128xf32>
    %127 = math.rsqrt %126 : vector<1x128xf32>
    %128 = arith.mulf %112, %127 : vector<1x128xf32>
    %129 = arith.mulf %117, %128 : vector<1x128xf32>
    %130 = arith.subf %113, %129 : vector<1x128xf32>
    %131 = vector.broadcast %128 : vector<1x128xf32> to vector<512x128xf32>
    %132 = arith.mulf %111, %131 : vector<512x128xf32>
    %133 = vector.broadcast %130 : vector<1x128xf32> to vector<512x128xf32>
    %134 = arith.addf %132, %133 : vector<512x128xf32>
    %cst_152 = arith.constant 0.000000e+00 : f32
    %135 = vector.broadcast %cst_152 : f32 to vector<512x128xf32>
    %136 = arith.maximumf %134, %135 : vector<512x128xf32>
    %137 = vector.shape_cast %136 : vector<512x128xf32> to vector<2x16x16x128xf32>
    %c0_153 = arith.constant 0 : index
    %c0_154 = arith.constant 0 : index
    %c0_155 = arith.constant 0 : index
    %c0_156 = arith.constant 0 : index
    %138 = vector.load %arg7[%c0_153, %c0_154, %c0_155, %c0_156] : memref<2x16x16x128xf32, #tpu.memory_space<vmem>>, vector<2x16x16x128xf32>
    tpu.vector_store %arg7[%c0_153, %c0_154, %c0_155, %c0_156], %137 {strides = array<i32>} : memref<2x16x16x128xf32, #tpu.memory_space<vmem>>, vector<2x16x16x128xf32>,
    return
  }
}

</mosaic_0001>

<llo_original>
// kernel: tpu_custom_call.1
$region0: #{tpu_custom_call.1}
  #allocation0 [shape = 'u32[]', space=smem, size = 0x4, offset = 0x4, fixed_abs, tag = 'smem constant byte address 0x4 - core index']
  #allocation1 [shape = 'u32[144,128]{1,0:T(1,128)}', space=vmem, size = 0x12000, scoped, tag = 'internal scratch']
  #allocation2 [shape = 'f32[512,128]{1,0:T(8,128)}', space=vmem, size = 0x40000, scoped, tag = 'scratch operand']
  #allocation3 [shape = 'bf16[2,18,32,128]{3,2,1,0:T(16,128)(2,1)}', space=vmem, size = 0x48000, scoped, tag = 'scratch operand']
  #allocation4 [shape = 'bf16[2,18,32,128]{3,2,1,0:T(16,128)(2,1)}', space=vmem, size = 0x48000, scoped, tag = 'scratch operand']
  #allocation5 [shape = 'bf16[2,18,32,128]{3,2,1,0:T(16,128)(2,1)}', space=vmem, size = 0x48000, scoped, tag = 'scratch operand']
  %s0 = inlined_call_operand.vmem [shape: bf16[512,36], index: 0, kind: input, shape index: {}]
  %s1 = inlined_call_operand.vmem [shape: bf16[36,128], index: 1, kind: input, shape index: {}]
  %s2 = inlined_call_operand.vmem [shape: f32[1,128], index: 2, kind: input, shape index: {}]
  %s3 = inlined_call_operand.vmem [shape: f32[1,128], index: 3, kind: input, shape index: {}]
  %s4 = inlined_call_operand.hbm [shape: bf16[9,128,128], index: 4, kind: input, shape index: {}]
  %s5 = inlined_call_operand.vmem [shape: f32[1,128], index: 5, kind: input, shape index: {}]
  %s6 = inlined_call_operand.vmem [shape: f32[1,128], index: 6, kind: input, shape index: {}]
  %s7 = inlined_call_operand.hbm [shape: f32[2,16,16,128], index: 7, kind: output, shape index: {}]
  %s8 = sld [smem:[#allocation0]]
  $region42: #{tpu_custom_call.1} parent=0
    _
  %s10 = ssub.s32 1, %s8
  %s11 = scalar_select 0, %s10, %s8
  $region1: #{tpu_custom_call.1} parent=0
    #allocation6 [shape = 'u8[294912]{0}', space=vmem, size = 0x48000, scoped, tag = 'input window, operand 4, single buffered']
    #allocation7 [shape = 's32[1]{0}', space=sflag, size = 0x4, scoped, tag = 'scoped memory for tpu_custom_call.1']
    #allocation8 [shape = 's32[1]{0}', space=sflag, size = 0x4, scoped, tag = 'scoped memory for tpu_custom_call.1']
    #allocation9 [shape = 'u8[262144]{0}', space=vmem, size = 0x40000, scoped, tag = 'output window, operand 0, single buffered']
    %12 = vsyncpa [#allocation7], 0
    %13 = vsyncpa [#allocation8], 0
    // Predicated region
    $region2: #{tpu_custom_call.1} parent=1 // pred_check
      _
    $region3: #{tpu_custom_call.1} parent=1 // pred_check_branch
      %15 = sbr.rel (0) target = $region5
    $region4: #{tpu_custom_call.1} parent=1 // pred_region
      _
    $region5: #{tpu_custom_call.1} parent=1 // pred_fallthru
      _
    // Predicated region
    $region6: #{tpu_custom_call.1} parent=1 // pred_check
      _
    $region7: #{tpu_custom_call.1} parent=1 // pred_check_branch
      %17 = sbr.rel (0) target = $region9
    $region8: #{tpu_custom_call.1} parent=1 // pred_region
      _
    $region9: #{tpu_custom_call.1} parent=1 // pred_fallthru
      _
    // Predicated region
    $region10: #{tpu_custom_call.1} parent=1 // pred_check
      _
    $region11: #{tpu_custom_call.1} parent=1 // pred_check_branch
      %19 = sbr.rel (0) target = $region13
    $region12: #{tpu_custom_call.1} parent=1 // pred_region
      _
    $region13: #{tpu_custom_call.1} parent=1 // pred_fallthru
      _
    // Predicated region
    $region14: #{tpu_custom_call.1} parent=1 // pred_check
      _
    $region15: #{tpu_custom_call.1} parent=1 // pred_check_branch
      %21 = sbr.rel (0) target = $region17
    $region16: #{tpu_custom_call.1} parent=1 // pred_region
      _
    $region17: #{tpu_custom_call.1} parent=1 // pred_fallthru
      _
    // Predicated region
    $region18: #{tpu_custom_call.1} parent=1 // pred_check
      _
    $region19: #{tpu_custom_call.1} parent=1 // pred_check_branch
      %23 = sbr.rel (0) target = $region21
    $region20: #{tpu_custom_call.1} parent=1 // pred_region
      %s25 = ssub.s32 9216, 9216
      %26 = vsyncadd [#allocation7], %s25
      %s27 = sshll.u32 [#allocation6], 4
      %s28 = int_to_ptr.vmem [resolvable:$true] %s27
      %33 = dma.hbm_to_vmem [thread:$0]  %s4, 9216, %s28, [#allocation7], 64, 64, 4
    $region21: #{tpu_custom_call.1} parent=1 // pred_fallthru
      _
    // Predicated region
    $region22: #{tpu_custom_call.1} parent=1 // pred_check
      _
    $region23: #{tpu_custom_call.1} parent=1 // pred_check_branch
      %35 = sbr.rel (0) target = $region25
    $region24: #{tpu_custom_call.1} parent=1 // pred_region
      _
    $region25: #{tpu_custom_call.1} parent=1 // pred_fallthru
      _
    // Predicated region
    $region26: #{tpu_custom_call.1} parent=1 // pred_check
      _
    $region27: #{tpu_custom_call.1} parent=1 // pred_check_branch
      %37 = sbr.rel (0) target = $region29
    $region28: #{tpu_custom_call.1} parent=1 // pred_region
      _
    $region29: #{tpu_custom_call.1} parent=1 // pred_fallthru
      _
    // Predicated region
    $region30: #{tpu_custom_call.1} parent=1 // pred_check
      _
    $region31: #{tpu_custom_call.1} parent=1 // pred_check_branch
      %39 = sbr.rel (0) target = $region33
    $region32: #{tpu_custom_call.1} parent=1 // pred_region
      %40 = dma.done [#allocation7], 9216
    $region33: #{tpu_custom_call.1} parent=1 // pred_fallthru
      _
    %v42 = vld [vmem:[%s0] sm:$0xf]
    %v43 = vld [vmem:[%s0 + $0x4] sm:$0xf]
    %v44 = vld [vmem:[%s0 + $0x8] sm:$0xf]
    %v45 = vld [vmem:[%s0 + $0xc] sm:$0xf]
    %v46 = vld [vmem:[%s0 + $0x10] sm:$0xf]
    %v47 = vld [vmem:[%s0 + $0x14] sm:$0xf]
    %v48 = vld [vmem:[%s0 + $0x18] sm:$0xf]
    %v49 = vld [vmem:[%s0 + $0x1c] sm:$0xf]
    %v50 = vld [vmem:[%s0 + $0x20] sm:$0xf]
    %v51 = vld [vmem:[%s0 + $0x24] sm:$0xf]
    %v52 = vld [vmem:[%s0 + $0x28] sm:$0xf]
    %v53 = vld [vmem:[%s0 + $0x2c] sm:$0xf]
    %v54 = vld [vmem:[%s0 + $0x30] sm:$0xf]
    %v55 = vld [vmem:[%s0 + $0x34] sm:$0xf]
    %v56 = vld [vmem:[%s0 + $0x38] sm:$0xf]
    %v57 = vld [vmem:[%s0 + $0x3c] sm:$0xf]
    %v58 = vld [vmem:[%s0 + $0x40] sm:$0xf]
    %v59 = vld [vmem:[%s0 + $0x44] sm:$0xf]
    %v60 = vld [vmem:[%s0 + $0x48] sm:$0xf]
    %v61 = vld [vmem:[%s0 + $0x4c] sm:$0xf]
    %v62 = vld [vmem:[%s0 + $0x50] sm:$0xf]
    %v63 = vld [vmem:[%s0 + $0x54] sm:$0xf]
    %v64 = vld [vmem:[%s0 + $0x58] sm:$0xf]
    %v65 = vld [vmem:[%s0 + $0x5c] sm:$0xf]
    %v66 = vld [vmem:[%s0 + $0x60] sm:$0xf]
    %v67 = vld [vmem:[%s0 + $0x64] sm:$0xf]
    %v68 = vld [vmem:[%s0 + $0x68] sm:$0xf]
    %v69 = vld [vmem:[%s0 + $0x6c] sm:$0xf]
    %v70 = vld [vmem:[%s0 + $0x70] sm:$0xf]
    %v71 = vld [vmem:[%s0 + $0x74] sm:$0xf]
    %v72 = vld [vmem:[%s0 + $0x78] sm:$0xf]
    %v73 = vld [vmem:[%s0 + $0x7c] sm:$0xf]
    %v74 = vld [vmem:[%s0 + $0x80] sm:$0xf]
    %v75 = vld [vmem:[%s0 + $0x84] sm:$0xf]
    %v76 = vld [vmem:[%s0 + $0x88] sm:$0xf]
    %v77 = vld [vmem:[%s0 + $0x8c] sm:$0xf]
    %v78 = vld [vmem:[%s0 + $0x90] sm:$0xf]
    %v79 = vld [vmem:[%s0 + $0x94] sm:$0xf]
    %v80 = vld [vmem:[%s0 + $0x98] sm:$0xf]
    %v81 = vld [vmem:[%s0 + $0x9c] sm:$0xf]
    %v82 = vld [vmem:[%s0 + $0xa0] sm:$0xf]
    %v83 = vld [vmem:[%s0 + $0xa4] sm:$0xf]
    %v84 = vld [vmem:[%s0 + $0xa8] sm:$0xf]
    %v85 = vld [vmem:[%s0 + $0xac] sm:$0xf]
    %v86 = vld [vmem:[%s0 + $0xb0] sm:$0xf]
    %v87 = vld [vmem:[%s0 + $0xb4] sm:$0xf]
    %v88 = vld [vmem:[%s0 + $0xb8] sm:$0xf]
    %v89 = vld [vmem:[%s0 + $0xbc] sm:$0xf]
    %v90 = vld [vmem:[%s0 + $0xc0] sm:$0xf]
    %v91 = vld [vmem:[%s0 + $0xc4] sm:$0xf]
    %v92 = vld [vmem:[%s0 + $0xc8] sm:$0xf]
    %v93 = vld [vmem:[%s0 + $0xcc] sm:$0xf]
    %v94 = vld [vmem:[%s0 + $0xd0] sm:$0xf]
    %v95 = vld [vmem:[%s0 + $0xd4] sm:$0xf]
    %v96 = vld [vmem:[%s0 + $0xd8] sm:$0xf]
    %v97 = vld [vmem:[%s0 + $0xdc] sm:$0xf]
    %v98 = vld [vmem:[%s0 + $0xe0] sm:$0xf]
    %v99 = vld [vmem:[%s0 + $0xe4] sm:$0xf]
    %v100 = vld [vmem:[%s0 + $0xe8] sm:$0xf]
    %v101 = vld [vmem:[%s0 + $0xec] sm:$0xf]
    %v102 = vld [vmem:[%s0 + $0xf0] sm:$0xf]
    %v103 = vld [vmem:[%s0 + $0xf4] sm:$0xf]
    %v104 = vld [vmem:[%s0 + $0xf8] sm:$0xf]
    %v105 = vld [vmem:[%s0 + $0xfc] sm:$0xf]
    %v106 = vld [vmem:[%s1] sm:$0xf]
    %v107 = vld [vmem:[%s1 + $0x4] sm:$0xf]
    %v108 = vld [vmem:[%s1 + $0x8] sm:$0xf]
    %v109 = vld [vmem:[%s1 + $0xc] sm:$0xf]
    %v110 = vld [vmem:[%s1 + $0x10] sm:$0x3]
    %v175 = vunpack.c.l.b16 %v42
    %v176 = vunpack.c.l.b16 %v43
    %v177 = vunpack.c.l.b16 %v44
    %v178 = vunpack.c.l.b16 %v45
    %v179 = vunpack.c.l.b16 %v46
    %v180 = vunpack.c.l.b16 %v47
    %v181 = vunpack.c.l.b16 %v48
    %v182 = vunpack.c.l.b16 %v49
    %v183 = vunpack.c.l.b16 %v50
    %v184 = vunpack.c.l.b16 %v51
    %v185 = vunpack.c.l.b16 %v52
    %v186 = vunpack.c.l.b16 %v53
    %v187 = vunpack.c.l.b16 %v54
    %v188 = vunpack.c.l.b16 %v55
    %v189 = vunpack.c.l.b16 %v56
    %v190 = vunpack.c.l.b16 %v57
    %v191 = vunpack.c.l.b16 %v58
    %v192 = vunpack.c.l.b16 %v59
    %v193 = vunpack.c.l.b16 %v60
    %v194 = vunpack.c.l.b16 %v61
    %v195 = vunpack.c.l.b16 %v62
    %v196 = vunpack.c.l.b16 %v63
    %v197 = vunpack.c.l.b16 %v64
    %v198 = vunpack.c.l.b16 %v65
    %v199 = vunpack.c.l.b16 %v66
    %v200 = vunpack.c.l.b16 %v67
    %v201 = vunpack.c.l.b16 %v68
    %v202 = vunpack.c.l.b16 %v69
    %v203 = vunpack.c.l.b16 %v70
    %v204 = vunpack.c.l.b16 %v71
    %v205 = vunpack.c.l.b16 %v72
    %v206 = vunpack.c.l.b16 %v73
    %v207 = vunpack.c.l.b16 %v74
    %v208 = vunpack.c.l.b16 %v75
    %v209 = vunpack.c.l.b16 %v76
    %v210 = vunpack.c.l.b16 %v77
    %v211 = vunpack.c.l.b16 %v78
    %v212 = vunpack.c.l.b16 %v79
    %v213 = vunpack.c.l.b16 %v80
    %v214 = vunpack.c.l.b16 %v81
    %v215 = vunpack.c.l.b16 %v82
    %v216 = vunpack.c.l.b16 %v83
    %v217 = vunpack.c.l.b16 %v84
    %v218 = vunpack.c.l.b16 %v85
    %v219 = vunpack.c.l.b16 %v86
    %v220 = vunpack.c.l.b16 %v87
    %v221 = vunpack.c.l.b16 %v88
    %v222 = vunpack.c.l.b16 %v89
    %v223 = vunpack.c.l.b16 %v90
    %v224 = vunpack.c.l.b16 %v91
    %v225 = vunpack.c.l.b16 %v92
    %v226 = vunpack.c.l.b16 %v93
    %v227 = vunpack.c.l.b16 %v94
    %v228 = vunpack.c.l.b16 %v95
    %v229 = vunpack.c.l.b16 %v96
    %v230 = vunpack.c.l.b16 %v97
    %v231 = vunpack.c.l.b16 %v98
    %v232 = vunpack.c.l.b16 %v99
    %v233 = vunpack.c.l.b16 %v100
    %v234 = vunpack.c.l.b16 %v101
    %v235 = vunpack.c.l.b16 %v102
    %v236 = vunpack.c.l.b16 %v103
    %v237 = vunpack.c.l.b16 %v104
    %v238 = vunpack.c.l.b16 %v105
    %v239 = vpack.c.b16 %v176, %v175
    %v240 = vpack.c.b16 %v178, %v177
    %v241 = vpack.c.b16 %v180, %v179
    %v242 = vpack.c.b16 %v182, %v181
    %v243 = vpack.c.b16 %v184, %v183
    %v244 = vpack.c.b16 %v186, %v185
    %v245 = vpack.c.b16 %v188, %v187
    %v246 = vpack.c.b16 %v190, %v189
    %v247 = vpack.c.b16 %v192, %v191
    %v248 = vpack.c.b16 %v194, %v193
    %v249 = vpack.c.b16 %v196, %v195
    %v250 = vpack.c.b16 %v198, %v197
    %v251 = vpack.c.b16 %v200, %v199
    %v252 = vpack.c.b16 %v202, %v201
    %v253 = vpack.c.b16 %v204, %v203
    %v254 = vpack.c.b16 %v206, %v205
    %v255 = vpack.c.b16 %v208, %v207
    %v256 = vpack.c.b16 %v210, %v209
    %v257 = vpack.c.b16 %v212, %v211
    %v258 = vpack.c.b16 %v214, %v213
    %v259 = vpack.c.b16 %v216, %v215
    %v260 = vpack.c.b16 %v218, %v217
    %v261 = vpack.c.b16 %v220, %v219
    %v262 = vpack.c.b16 %v222, %v221
    %v263 = vpack.c.b16 %v224, %v223
    %v264 = vpack.c.b16 %v226, %v225
    %v265 = vpack.c.b16 %v228, %v227
    %v266 = vpack.c.b16 %v230, %v229
    %v267 = vpack.c.b16 %v232, %v231
    %v268 = vpack.c.b16 %v234, %v233
    %v269 = vpack.c.b16 %v236, %v235
    %v270 = vpack.c.b16 %v238, %v237
    %v276 = vunpack.c.l.b16 %v106
    %v277 = vunpack.c.l.b16 %v107
    %v278 = vunpack.c.l.b16 %v108
    %v279 = vunpack.c.l.b16 %v109
    %v280 = vunpack.c.l.b16 %v110
    %v281 = vpack.c.b16 %v277, %v276
    %v282 = vpack.c.b16 %v279, %v278
    %v283 = vpack.c.b16 %v280, %v280
    %vm286 = vcmask 293888
    %v288 = vsel %vm286, %v239, 0
    %v291 = vsel %vm286, %v240, 0
    %v294 = vsel %vm286, %v241, 0
    %v297 = vsel %vm286, %v242, 0
    %v300 = vsel %vm286, %v243, 0
    %v303 = vsel %vm286, %v244, 0
    %v306 = vsel %vm286, %v245, 0
    %v309 = vsel %vm286, %v246, 0
    %v312 = vsel %vm286, %v247, 0
    %v315 = vsel %vm286, %v248, 0
    %v318 = vsel %vm286, %v249, 0
    %v321 = vsel %vm286, %v250, 0
    %v324 = vsel %vm286, %v251, 0
    %v327 = vsel %vm286, %v252, 0
    %v330 = vsel %vm286, %v253, 0
    %v333 = vsel %vm286, %v254, 0
    %v336 = vsel %vm286, %v255, 0
    %v339 = vsel %vm286, %v256, 0
    %v342 = vsel %vm286, %v257, 0
    %v345 = vsel %vm286, %v258, 0
    %v348 = vsel %vm286, %v259, 0
    %v351 = vsel %vm286, %v260, 0
    %v354 = vsel %vm286, %v261, 0
    %v357 = vsel %vm286, %v262, 0
    %v360 = vsel %vm286, %v263, 0
    %v363 = vsel %vm286, %v264, 0
    %v366 = vsel %vm286, %v265, 0
    %v369 = vsel %vm286, %v266, 0
    %v372 = vsel %vm286, %v267, 0
    %v375 = vsel %vm286, %v268, 0
    %v378 = vsel %vm286, %v269, 0
    %v381 = vsel %vm286, %v270, 0
    %vm383 = vcmask 1041408
    %v385 = vsel %vm383, %v283, 0
    %387 = vmatprep.subr.bf16.mxu0 0
    %388 = vmatpush1.bf16.msra.mxu0 %v281
    %389 = vmatprep.subr.bf16.mxu0 0
    %390 = vmatpush1.bf16.msra.mxu0 %v282
    %391 = vmatprep.subr.bf16.mxu0 0
    %392 = vmatpush1.bf16.msra.mxu0 %v385
    %393 = vmatprep.subr.bf16.mxu0 0
    %394 = vmatpush1.bf16.msra.mxu0 0
    %395 = vmatprep.subr.bf16.mxu0 0
    %396 = vmatpush1.bf16.msra.mxu0 0
    %397 = vmatprep.subr.bf16.mxu0 0
    %398 = vmatpush1.bf16.msra.mxu0 0
    %399 = vmatprep.subr.bf16.mxu0 0
    %400 = vmatpush1.bf16.msra.mxu0 0
    %401 = vmatprep.subr.bf16.mxu0 0
    %402 = vmatpush1.bf16.msra.mxu0 0
    %403 = vmatprep.subr.bf16.mxu0 0
    %404 = vmatpush1.bf16.msra.mxu0 0
    %405 = vmatprep.subr.bf16.mxu0 0
    %406 = vmatpush1.bf16.msra.mxu0 0
    %407 = vmatprep.subr.bf16.mxu0 0
    %408 = vmatpush1.bf16.msra.mxu0 0
    %409 = vmatprep.subr.bf16.mxu0 0
    %410 = vmatpush1.bf16.msra.mxu0 0
    %411 = vmatprep.subr.bf16.mxu0 0
    %412 = vmatpush1.bf16.msra.mxu0 0
    %413 = vmatprep.subr.bf16.mxu0 0
    %414 = vmatpush1.bf16.msra.mxu0 0
    %415 = vmatprep.subr.bf16.mxu0 0
    %416 = vmatpush1.bf16.msra.mxu0 0
    %417 = vmatprep.subr.bf16.mxu0 0
    %418 = vmatpush1.bf16.msra.mxu0 0
    %419 = vmatprep.mubr.bf16.mxu0 0
    %420 = vmatmul.mubr.bf16.gmra.mrb[0].mxu0 %v288
    %v421 = vpop.f32.mrb[0].mxu0
    %v422 = vadd.f32 0.0, %v421
    %v423 = vpop.f32.mrb[0].mxu0
    %v424 = vpop.f32.mrb[0].mxu0
    %v425 = vadd.f32 0.0, %v424
    %v426 = vpop.f32.mrb[0].mxu0
    %427 = vmatprep.mubr.bf16.mxu0 0
    %428 = vmatmul.mubr.bf16.gmra.mrb[0].mxu0 %v291
    %v429 = vpop.f32.mrb[0].mxu0
    %v430 = vadd.f32 0.0, %v429
    %v431 = vpop.f32.mrb[0].mxu0
    %v432 = vpop.f32.mrb[0].mxu0
    %v433 = vadd.f32 0.0, %v432
    %v434 = vpop.f32.mrb[0].mxu0
    %435 = vmatprep.mubr.bf16.mxu0 0
    %436 = vmatmul.mubr.bf16.gmra.mrb[0].mxu0 %v294
    %v437 = vpop.f32.mrb[0].mxu0
    %v438 = vadd.f32 0.0, %v437
    %v439 = vpop.f32.mrb[0].mxu0
    %v440 = vpop.f32.mrb[0].mxu0
    %v441 = vadd.f32 0.0, %v440
    %v442 = vpop.f32.mrb[0].mxu0
    %443 = vmatprep.mubr.bf16.mxu0 0
    %444 = vmatmul.mubr.bf16.gmra.mrb[0].mxu0 %v297
    %v445 = vpop.f32.mrb[0].mxu0
    %v446 = vadd.f32 0.0, %v445
    %v447 = vpop.f32.mrb[0].mxu0
    %v448 = vpop.f32.mrb[0].mxu0
    %v449 = vadd.f32 0.0, %v448
    %v450 = vpop.f32.mrb[0].mxu0
    %451 = vmatprep.mubr.bf16.mxu0 0
    %452 = vmatmul.mubr.bf16.gmra.mrb[0].mxu0 %v300
    %v453 = vpop.f32.mrb[0].mxu0
    %v454 = vadd.f32 0.0, %v453
    %v455 = vpop.f32.mrb[0].mxu0
    %v456 = vpop.f32.mrb[0].mxu0
    %v457 = vadd.f32 0.0, %v456
    %v458 = vpop.f32.mrb[0].mxu0
    %459 = vmatprep.mubr.bf16.mxu0 0
    %460 = vmatmul.mubr.bf16.gmra.mrb[0].mxu0 %v303
    %v461 = vpop.f32.mrb[0].mxu0
    %v462 = vadd.f32 0.0, %v461
    %v463 = vpop.f32.mrb[0].mxu0
    %v464 = vpop.f32.mrb[0].mxu0
    %v465 = vadd.f32 0.0, %v464
    %v466 = vpop.f32.mrb[0].mxu0
    %467 = vmatprep.mubr.bf16.mxu0 0
    %468 = vmatmul.mubr.bf16.gmra.mrb[0].mxu0 %v306
    %v469 = vpop.f32.mrb[0].mxu0
    %v470 = vadd.f32 0.0, %v469
    %v471 = vpop.f32.mrb[0].mxu0
    %v472 = vpop.f32.mrb[0].mxu0
    %v473 = vadd.f32 0.0, %v472
    %v474 = vpop.f32.mrb[0].mxu0
    %475 = vmatprep.mubr.bf16.mxu0 0
    %476 = vmatmul.mubr.bf16.gmra.mrb[0].mxu0 %v309
    %v477 = vpop.f32.mrb[0].mxu0
    %v478 = vadd.f32 0.0, %v477
    %v479 = vpop.f32.mrb[0].mxu0
    %v480 = vpop.f32.mrb[0].mxu0
    %v481 = vadd.f32 0.0, %v480
    %v482 = vpop.f32.mrb[0].mxu0
    %483 = vmatprep.mubr.bf16.mxu0 0
    %484 = vmatmul.mubr.bf16.gmra.mrb[0].mxu0 %v312
    %v485 = vpop.f32.mrb[0].mxu0
    %v486 = vadd.f32 0.0, %v485
    %v487 = vpop.f32.mrb[0].mxu0
    %v488 = vpop.f32.mrb[0].mxu0
    %v489 = vadd.f32 0.0, %v488
    %v490 = vpop.f32.mrb[0].mxu0
    %491 = vmatprep.mubr.bf16.mxu0 0
    %492 = vmatmul.mubr.bf16.gmra.mrb[0].mxu0 %v315
    %v493 = vpop.f32.mrb[0].mxu0
    %v494 = vadd.f32 0.0, %v493
    %v495 = vpop.f32.mrb[0].mxu0
    %v496 = vpop.f32.mrb[0].mxu0
    %v497 = vadd.f32 0.0, %v496
    %v498 = vpop.f32.mrb[0].mxu0
    %499 = vmatprep.mubr.bf16.mxu0 0
    %500 = vmatmul.mubr.bf16.gmra.mrb[0].mxu0 %v318
    %v501 = vpop.f32.mrb[0].mxu0
    %v502 = vadd.f32 0.0, %v501
    %v503 = vpop.f32.mrb[0].mxu0
    %v504 = vpop.f32.mrb[0].mxu0
    %v505 = vadd.f32 0.0, %v504
    %v506 = vpop.f32.mrb[0].mxu0
    %507 = vmatprep.mubr.bf16.mxu0 0
    %508 = vmatmul.mubr.bf16.gmra.mrb[0].mxu0 %v321
    %v509 = vpop.f32.mrb[0].mxu0
    %v510 = vadd.f32 0.0, %v509
    %v511 = vpop.f32.mrb[0].mxu0
    %v512 = vpop.f32.mrb[0].mxu0
    %v513 = vadd.f32 0.0, %v512
    %v514 = vpop.f32.mrb[0].mxu0
    %515 = vmatprep.mubr.bf16.mxu0 0
    %516 = vmatmul.mubr.bf16.gmra.mrb[0].mxu0 %v324
    %v517 = vpop.f32.mrb[0].mxu0
    %v518 = vadd.f32 0.0, %v517
    %v519 = vpop.f32.mrb[0].mxu0
    %v520 = vpop.f32.mrb[0].mxu0
    %v521 = vadd.f32 0.0, %v520
    %v522 = vpop.f32.mrb[0].mxu0
    %523 = vmatprep.mubr.bf16.mxu0 0
    %524 = vmatmul.mubr.bf16.gmra.mrb[0].mxu0 %v327
    %v525 = vpop.f32.mrb[0].mxu0
    %v526 = vadd.f32 0.0, %v525
    %v527 = vpop.f32.mrb[0].mxu0
    %v528 = vpop.f32.mrb[0].mxu0
    %v529 = vadd.f32 0.0, %v528
    %v530 = vpop.f32.mrb[0].mxu0
    %531 = vmatprep.mubr.bf16.mxu0 0
    %532 = vmatmul.mubr.bf16.gmra.mrb[0].mxu0 %v330
    %v533 = vpop.f32.mrb[0].mxu0
    %v534 = vadd.f32 0.0, %v533
    %v535 = vpop.f32.mrb[0].mxu0
    %v536 = vpop.f32.mrb[0].mxu0
    %v537 = vadd.f32 0.0, %v536
    %v538 = vpop.f32.mrb[0].mxu0
    %539 = vmatprep.mubr.bf16.mxu0 0
    %540 = vmatmul.mubr.bf16.gmra.mrb[0].mxu0 %v333
    %v541 = vpop.f32.mrb[0].mxu0
    %v542 = vadd.f32 0.0, %v541
    %v543 = vpop.f32.mrb[0].mxu0
    %v544 = vpop.f32.mrb[0].mxu0
    %v545 = vadd.f32 0.0, %v544
    %v546 = vpop.f32.mrb[0].mxu0
    %547 = vmatprep.mubr.bf16.mxu0 0
    %548 = vmatmul.mubr.bf16.gmra.mrb[0].mxu0 %v336
    %v549 = vpop.f32.mrb[0].mxu0
    %v550 = vadd.f32 0.0, %v549
    %v551 = vpop.f32.mrb[0].mxu0
    %v552 = vpop.f32.mrb[0].mxu0
    %v553 = vadd.f32 0.0, %v552
    %v554 = vpop.f32.mrb[0].mxu0
    %555 = vmatprep.mubr.bf16.mxu0 0
    %556 = vmatmul.mubr.bf16.gmra.mrb[0].mxu0 %v339
    %v557 = vpop.f32.mrb[0].mxu0
    %v558 = vadd.f32 0.0, %v557
    %v559 = vpop.f32.mrb[0].mxu0
    %v560 = vpop.f32.mrb[0].mxu0
    %v561 = vadd.f32 0.0, %v560
    %v562 = vpop.f32.mrb[0].mxu0
    %563 = vmatprep.mubr.bf16.mxu0 0
    %564 = vmatmul.mubr.bf16.gmra.mrb[0].mxu0 %v342
    %v565 = vpop.f32.mrb[0].mxu0
    %v566 = vadd.f32 0.0, %v565
    %v567 = vpop.f32.mrb[0].mxu0
    %v568 = vpop.f32.mrb[0].mxu0
    %v569 = vadd.f32 0.0, %v568
    %v570 = vpop.f32.mrb[0].mxu0
    %571 = vmatprep.mubr.bf16.mxu0 0
    %572 = vmatmul.mubr.bf16.gmra.mrb[0].mxu0 %v345
    %v573 = vpop.f32.mrb[0].mxu0
    %v574 = vadd.f32 0.0, %v573
    %v575 = vpop.f32.mrb[0].mxu0
    %v576 = vpop.f32.mrb[0].mxu0
    %v577 = vadd.f32 0.0, %v576
    %v578 = vpop.f32.mrb[0].mxu0
    %579 = vmatprep.mubr.bf16.mxu0 0
    %580 = vmatmul.mubr.bf16.gmra.mrb[0].mxu0 %v348
    %v581 = vpop.f32.mrb[0].mxu0
    %v582 = vadd.f32 0.0, %v581
    %v583 = vpop.f32.mrb[0].mxu0
    %v584 = vpop.f32.mrb[0].mxu0
    %v585 = vadd.f32 0.0, %v584
    %v586 = vpop.f32.mrb[0].mxu0
    %587 = vmatprep.mubr.bf16.mxu0 0
    %588 = vmatmul.mubr.bf16.gmra.mrb[0].mxu0 %v351
    %v589 = vpop.f32.mrb[0].mxu0
    %v590 = vadd.f32 0.0, %v589
    %v591 = vpop.f32.mrb[0].mxu0
    %v592 = vpop.f32.mrb[0].mxu0
    %v593 = vadd.f32 0.0, %v592
    %v594 = vpop.f32.mrb[0].mxu0
    %595 = vmatprep.mubr.bf16.mxu0 0
    %596 = vmatmul.mubr.bf16.gmra.mrb[0].mxu0 %v354
    %v597 = vpop.f32.mrb[0].mxu0
    %v598 = vadd.f32 0.0, %v597
    %v599 = vpop.f32.mrb[0].mxu0
    %v600 = vpop.f32.mrb[0].mxu0
    %v601 = vadd.f32 0.0, %v600
    %v602 = vpop.f32.mrb[0].mxu0
    %603 = vmatprep.mubr.bf16.mxu0 0
    %604 = vmatmul.mubr.bf16.gmra.mrb[0].mxu0 %v357
    %v605 = vpop.f32.mrb[0].mxu0
    %v606 = vadd.f32 0.0, %v605
    %v607 = vpop.f32.mrb[0].mxu0
    %v608 = vpop.f32.mrb[0].mxu0
    %v609 = vadd.f32 0.0, %v608
    %v610 = vpop.f32.mrb[0].mxu0
    %611 = vmatprep.mubr.bf16.mxu0 0
    %612 = vmatmul.mubr.bf16.gmra.mrb[0].mxu0 %v360
    %v613 = vpop.f32.mrb[0].mxu0
    %v614 = vadd.f32 0.0, %v613
    %v615 = vpop.f32.mrb[0].mxu0
    %v616 = vpop.f32.mrb[0].mxu0
    %v617 = vadd.f32 0.0, %v616
    %v618 = vpop.f32.mrb[0].mxu0
    %619 = vmatprep.mubr.bf16.mxu0 0
    %620 = vmatmul.mubr.bf16.gmra.mrb[0].mxu0 %v363
    %v621 = vpop.f32.mrb[0].mxu0
    %v622 = vadd.f32 0.0, %v621
    %v623 = vpop.f32.mrb[0].mxu0
    %v624 = vpop.f32.mrb[0].mxu0
    %v625 = vadd.f32 0.0, %v624
    %v626 = vpop.f32.mrb[0].mxu0
    %627 = vmatprep.mubr.bf16.mxu0 0
    %628 = vmatmul.mubr.bf16.gmra.mrb[0].mxu0 %v366
    %v629 = vpop.f32.mrb[0].mxu0
    %v630 = vadd.f32 0.0, %v629
    %v631 = vpop.f32.mrb[0].mxu0
    %v632 = vpop.f32.mrb[0].mxu0
    %v633 = vadd.f32 0.0, %v632
    %v634 = vpop.f32.mrb[0].mxu0
    %635 = vmatprep.mubr.bf16.mxu0 0
    %636 = vmatmul.mubr.bf16.gmra.mrb[0].mxu0 %v369
    %v637 = vpop.f32.mrb[0].mxu0
    %v638 = vadd.f32 0.0, %v637
    %v639 = vpop.f32.mrb[0].mxu0
    %v640 = vpop.f32.mrb[0].mxu0
    %v641 = vadd.f32 0.0, %v640
    %v642 = vpop.f32.mrb[0].mxu0
    %643 = vmatprep.mubr.bf16.mxu0 0
    %644 = vmatmul.mubr.bf16.gmra.mrb[0].mxu0 %v372
    %v645 = vpop.f32.mrb[0].mxu0
    %v646 = vadd.f32 0.0, %v645
    %v647 = vpop.f32.mrb[0].mxu0
    %v648 = vpop.f32.mrb[0].mxu0
    %v649 = vadd.f32 0.0, %v648
    %v650 = vpop.f32.mrb[0].mxu0
    %651 = vmatprep.mubr.bf16.mxu0 0
    %652 = vmatmul.mubr.bf16.gmra.mrb[0].mxu0 %v375
    %v653 = vpop.f32.mrb[0].mxu0
    %v654 = vadd.f32 0.0, %v653
    %v655 = vpop.f32.mrb[0].mxu0
    %v656 = vpop.f32.mrb[0].mxu0
    %v657 = vadd.f32 0.0, %v656
    %v658 = vpop.f32.mrb[0].mxu0
    %659 = vmatprep.mubr.bf16.mxu0 0
    %660 = vmatmul.mubr.bf16.gmra.mrb[0].mxu0 %v378
    %v661 = vpop.f32.mrb[0].mxu0
    %v662 = vadd.f32 0.0, %v661
    %v663 = vpop.f32.mrb[0].mxu0
    %v664 = vpop.f32.mrb[0].mxu0
    %v665 = vadd.f32 0.0, %v664
    %v666 = vpop.f32.mrb[0].mxu0
    %667 = vmatprep.mubr.bf16.mxu0 0
    %668 = vmatmul.mubr.bf16.gmra.mrb[0].mxu0 %v381
    %v669 = vpop.f32.mrb[0].mxu0
    %v670 = vadd.f32 0.0, %v669
    %v671 = vpop.f32.mrb[0].mxu0
    %v672 = vpop.f32.mrb[0].mxu0
    %v673 = vadd.f32 0.0, %v672
    %v674 = vpop.f32.mrb[0].mxu0
    %675 = vdwg.mxu0
    %676 = vst [vmem:[#allocation2] sm:$0xff] %v422
    %677 = vst [vmem:[#allocation2 + $0x8] sm:$0xff] %v425
    %678 = vst [vmem:[#allocation2 + $0x10] sm:$0xff] %v430
    %679 = vst [vmem:[#allocation2 + $0x18] sm:$0xff] %v433
    %680 = vst [vmem:[#allocation2 + $0x20] sm:$0xff] %v438
    %681 = vst [vmem:[#allocation2 + $0x28] sm:$0xff] %v441
    %682 = vst [vmem:[#allocation2 + $0x30] sm:$0xff] %v446
    %683 = vst [vmem:[#allocation2 + $0x38] sm:$0xff] %v449
    %684 = vst [vmem:[#allocation2 + $0x40] sm:$0xff] %v454
    %685 = vst [vmem:[#allocation2 + $0x48] sm:$0xff] %v457
    %686 = vst [vmem:[#allocation2 + $0x50] sm:$0xff] %v462
    %687 = vst [vmem:[#allocation2 + $0x58] sm:$0xff] %v465
    %688 = vst [vmem:[#allocation2 + $0x60] sm:$0xff] %v470
    %689 = vst [vmem:[#allocation2 + $0x68] sm:$0xff] %v473
    %690 = vst [vmem:[#allocation2 + $0x70] sm:$0xff] %v478
    %691 = vst [vmem:[#allocation2 + $0x78] sm:$0xff] %v481
    %692 = vst [vmem:[#allocation2 + $0x80] sm:$0xff] %v486
    %693 = vst [vmem:[#allocation2 + $0x88] sm:$0xff] %v489
    %694 = vst [vmem:[#allocation2 + $0x90] sm:$0xff] %v494
    %695 = vst [vmem:[#allocation2 + $0x98] sm:$0xff] %v497
    %696 = vst [vmem:[#allocation2 + $0xa0] sm:$0xff] %v502
    %697 = vst [vmem:[#allocation2 + $0xa8] sm:$0xff] %v505
    %698 = vst [vmem:[#allocation2 + $0xb0] sm:$0xff] %v510
    %699 = vst [vmem:[#allocation2 + $0xb8] sm:$0xff] %v513
    %700 = vst [vmem:[#allocation2 + $0xc0] sm:$0xff] %v518
    %701 = vst [vmem:[#allocation2 + $0xc8] sm:$0xff] %v521
    %702 = vst [vmem:[#allocation2 + $0xd0] sm:$0xff] %v526
    %703 = vst [vmem:[#allocation2 + $0xd8] sm:$0xff] %v529
    %704 = vst [vmem:[#allocation2 + $0xe0] sm:$0xff] %v534
    %705 = vst [vmem:[#allocation2 + $0xe8] sm:$0xff] %v537
    %706 = vst [vmem:[#allocation2 + $0xf0] sm:$0xff] %v542
    %707 = vst [vmem:[#allocation2 + $0xf8] sm:$0xff] %v545
    %708 = vst [vmem:[#allocation2 + $0x100] sm:$0xff] %v550
    %709 = vst [vmem:[#allocation2 + $0x108] sm:$0xff] %v553
    %710 = vst [vmem:[#allocation2 + $0x110] sm:$0xff] %v558
    %711 = vst [vmem:[#allocation2 + $0x118] sm:$0xff] %v561
    %712 = vst [vmem:[#allocation2 + $0x120] sm:$0xff] %v566
    %713 = vst [vmem:[#allocation2 + $0x128] sm:$0xff] %v569
    %714 = vst [vmem:[#allocation2 + $0x130] sm:$0xff] %v574
    %715 = vst [vmem:[#allocation2 + $0x138] sm:$0xff] %v577
    %716 = vst [vmem:[#allocation2 + $0x140] sm:$0xff] %v582
    %717 = vst [vmem:[#allocation2 + $0x148] sm:$0xff] %v585
    %718 = vst [vmem:[#allocation2 + $0x150] sm:$0xff] %v590
    %719 = vst [vmem:[#allocation2 + $0x158] sm:$0xff] %v593
    %720 = vst [vmem:[#allocation2 + $0x160] sm:$0xff] %v598
    %721 = vst [vmem:[#allocation2 + $0x168] sm:$0xff] %v601
    %722 = vst [vmem:[#allocation2 + $0x170] sm:$0xff] %v606
    %723 = vst [vmem:[#allocation2 + $0x178] sm:$0xff] %v609
    %724 = vst [vmem:[#allocation2 + $0x180] sm:$0xff] %v614
    %725 = vst [vmem:[#allocation2 + $0x188] sm:$0xff] %v617
    %726 = vst [vmem:[#allocation2 + $0x190] sm:$0xff] %v622
    %727 = vst [vmem:[#allocation2 + $0x198] sm:$0xff] %v625
    %728 = vst [vmem:[#allocation2 + $0x1a0] sm:$0xff] %v630
    %729 = vst [vmem:[#allocation2 + $0x1a8] sm:$0xff] %v633
    %730 = vst [vmem:[#allocation2 + $0x1b0] sm:$0xff] %v638
    %731 = vst [vmem:[#allocation2 + $0x1b8] sm:$0xff] %v641
    %732 = vst [vmem:[#allocation2 + $0x1c0] sm:$0xff] %v646
    %733 = vst [vmem:[#allocation2 + $0x1c8] sm:$0xff] %v649
    %734 = vst [vmem:[#allocation2 + $0x1d0] sm:$0xff] %v654
    %735 = vst [vmem:[#allocation2 + $0x1d8] sm:$0xff] %v657
    %736 = vst [vmem:[#allocation2 + $0x1e0] sm:$0xff] %v662
    %737 = vst [vmem:[#allocation2 + $0x1e8] sm:$0xff] %v665
    %738 = vst [vmem:[#allocation2 + $0x1f0] sm:$0xff] %v670
    %739 = vst [vmem:[#allocation2 + $0x1f8] sm:$0xff] %v673
    %v740 = vld [vmem:[#allocation2] sm:$0xff]
    %v741 = vld [vmem:[#allocation2 + $0x8] sm:$0xff]
    %v742 = vld [vmem:[#allocation2 + $0x10] sm:$0xff]
    %v743 = vld [vmem:[#allocation2 + $0x18] sm:$0xff]
    %v744 = vld [vmem:[#allocation2 + $0x20] sm:$0xff]
    %v745 = vld [vmem:[#allocation2 + $0x28] sm:$0xff]
    %v746 = vld [vmem:[#allocation2 + $0x30] sm:$0xff]
    %v747 = vld [vmem:[#allocation2 + $0x38] sm:$0xff]
    %v748 = vld [vmem:[#allocation2 + $0x40] sm:$0xff]
    %v749 = vld [vmem:[#allocation2 + $0x48] sm:$0xff]
    %v750 = vld [vmem:[#allocation2 + $0x50] sm:$0xff]
    %v751 = vld [vmem:[#allocation2 + $0x58] sm:$0xff]
    %v752 = vld [vmem:[#allocation2 + $0x60] sm:$0xff]
    %v753 = vld [vmem:[#allocation2 + $0x68] sm:$0xff]
    %v754 = vld [vmem:[#allocation2 + $0x70] sm:$0xff]
    %v755 = vld [vmem:[#allocation2 + $0x78] sm:$0xff]
    %v756 = vld [vmem:[#allocation2 + $0x80] sm:$0xff]
    %v757 = vld [vmem:[#allocation2 + $0x88] sm:$0xff]
    %v758 = vld [vmem:[#allocation2 + $0x90] sm:$0xff]
    %v759 = vld [vmem:[#allocation2 + $0x98] sm:$0xff]
    %v760 = vld [vmem:[#allocation2 + $0xa0] sm:$0xff]
    %v761 = vld [vmem:[#allocation2 + $0xa8] sm:$0xff]
    %v762 = vld [vmem:[#allocation2 + $0xb0] sm:$0xff]
    %v763 = vld [vmem:[#allocation2 + $0xb8] sm:$0xff]
    %v764 = vld [vmem:[#allocation2 + $0xc0] sm:$0xff]
    %v765 = vld [vmem:[#allocation2 + $0xc8] sm:$0xff]
    %v766 = vld [vmem:[#allocation2 + $0xd0] sm:$0xff]
    %v767 = vld [vmem:[#allocation2 + $0xd8] sm:$0xff]
    %v768 = vld [vmem:[#allocation2 + $0xe0] sm:$0xff]
    %v769 = vld [vmem:[#allocation2 + $0xe8] sm:$0xff]
    %v770 = vld [vmem:[#allocation2 + $0xf0] sm:$0xff]
    %v771 = vld [vmem:[#allocation2 + $0xf8] sm:$0xff]
    %v772 = vld [vmem:[#allocation2 + $0x100] sm:$0xff]
    %v773 = vld [vmem:[#allocation2 + $0x108] sm:$0xff]
    %v774 = vld [vmem:[#allocation2 + $0x110] sm:$0xff]
    %v775 = vld [vmem:[#allocation2 + $0x118] sm:$0xff]
    %v776 = vld [vmem:[#allocation2 + $0x120] sm:$0xff]
    %v777 = vld [vmem:[#allocation2 + $0x128] sm:$0xff]
    %v778 = vld [vmem:[#allocation2 + $0x130] sm:$0xff]
    %v779 = vld [vmem:[#allocation2 + $0x138] sm:$0xff]
    %v780 = vld [vmem:[#allocation2 + $0x140] sm:$0xff]
    %v781 = vld [vmem:[#allocation2 + $0x148] sm:$0xff]
    %v782 = vld [vmem:[#allocation2 + $0x150] sm:$0xff]
    %v783 = vld [vmem:[#allocation2 + $0x158] sm:$0xff]
    %v784 = vld [vmem:[#allocation2 + $0x160] sm:$0xff]
    %v785 = vld [vmem:[#allocation2 + $0x168] sm:$0xff]
    %v786 = vld [vmem:[#allocation2 + $0x170] sm:$0xff]
    %v787 = vld [vmem:[#allocation2 + $0x178] sm:$0xff]
    %v788 = vld [vmem:[#allocation2 + $0x180] sm:$0xff]
    %v789 = vld [vmem:[#allocation2 + $0x188] sm:$0xff]
    %v790 = vld [vmem:[#allocation2 + $0x190] sm:$0xff]
    %v791 = vld [vmem:[#allocation2 + $0x198] sm:$0xff]
    %v792 = vld [vmem:[#allocation2 + $0x1a0] sm:$0xff]
    %v793 = vld [vmem:[#allocation2 + $0x1a8] sm:$0xff]
    %v794 = vld [vmem:[#allocation2 + $0x1b0] sm:$0xff]
    %v795 = vld [vmem:[#allocation2 + $0x1b8] sm:$0xff]
    %v796 = vld [vmem:[#allocation2 + $0x1c0] sm:$0xff]
    %v797 = vld [vmem:[#allocation2 + $0x1c8] sm:$0xff]
    %v798 = vld [vmem:[#allocation2 + $0x1d0] sm:$0xff]
    %v799 = vld [vmem:[#allocation2 + $0x1d8] sm:$0xff]
    %v800 = vld [vmem:[#allocation2 + $0x1e0] sm:$0xff]
    %v801 = vld [vmem:[#allocation2 + $0x1e8] sm:$0xff]
    %v802 = vld [vmem:[#allocation2 + $0x1f0] sm:$0xff]
    %v803 = vld [vmem:[#allocation2 + $0x1f8] sm:$0xff]
    %v804 = vld [vmem:[%s2] sm:$0x1]
    %v805 = vld [vmem:[%s3] sm:$0x1]
    %v806 = vadd.f32 %v740, %v741
    %v807 = vadd.f32 %v806, %v742
    %v808 = vadd.f32 %v807, %v743
    %v809 = vadd.f32 %v808, %v744
    %v810 = vadd.f32 %v809, %v745
    %v811 = vadd.f32 %v810, %v746
    %v812 = vadd.f32 %v811, %v747
    %v813 = vadd.f32 %v812, %v748
    %v814 = vadd.f32 %v813, %v749
    %v815 = vadd.f32 %v814, %v750
    %v816 = vadd.f32 %v815, %v751
    %v817 = vadd.f32 %v816, %v752
    %v818 = vadd.f32 %v817, %v753
    %v819 = vadd.f32 %v818, %v754
    %v820 = vadd.f32 %v819, %v755
    %v821 = vadd.f32 %v820, %v756
    %v822 = vadd.f32 %v821, %v757
    %v823 = vadd.f32 %v822, %v758
    %v824 = vadd.f32 %v823, %v759
    %v825 = vadd.f32 %v824, %v760
    %v826 = vadd.f32 %v825, %v761
    %v827 = vadd.f32 %v826, %v762
    %v828 = vadd.f32 %v827, %v763
    %v829 = vadd.f32 %v828, %v764
    %v830 = vadd.f32 %v829, %v765
    %v831 = vadd.f32 %v830, %v766
    %v832 = vadd.f32 %v831, %v767
    %v833 = vadd.f32 %v832, %v768
    %v834 = vadd.f32 %v833, %v769
    %v835 = vadd.f32 %v834, %v770
    %v836 = vadd.f32 %v835, %v771
    %v837 = vadd.f32 %v836, %v772
    %v838 = vadd.f32 %v837, %v773
    %v839 = vadd.f32 %v838, %v774
    %v840 = vadd.f32 %v839, %v775
    %v841 = vadd.f32 %v840, %v776
    %v842 = vadd.f32 %v841, %v777
    %v843 = vadd.f32 %v842, %v778
    %v844 = vadd.f32 %v843, %v779
    %v845 = vadd.f32 %v844, %v780
    %v846 = vadd.f32 %v845, %v781
    %v847 = vadd.f32 %v846, %v782
    %v848 = vadd.f32 %v847, %v783
    %v849 = vadd.f32 %v848, %v784
    %v850 = vadd.f32 %v849, %v785
    %v851 = vadd.f32 %v850, %v786
    %v852 = vadd.f32 %v851, %v787
    %v853 = vadd.f32 %v852, %v788
    %v854 = vadd.f32 %v853, %v789
    %v855 = vadd.f32 %v854, %v790
    %v856 = vadd.f32 %v855, %v791
    %v857 = vadd.f32 %v856, %v792
    %v858 = vadd.f32 %v857, %v793
    %v859 = vadd.f32 %v858, %v794
    %v860 = vadd.f32 %v859, %v795
    %v861 = vadd.f32 %v860, %v796
    %v862 = vadd.f32 %v861, %v797
    %v863 = vadd.f32 %v862, %v798
    %v864 = vadd.f32 %v863, %v799
    %v865 = vadd.f32 %v864, %v800
    %v866 = vadd.f32 %v865, %v801
    %v867 = vadd.f32 %v866, %v802
    %v868 = vadd.f32 %v867, %v803
    %v869 = vrot.slane %v868, 4
    %v870 = vadd.f32 %v868, %v869
    %v871 = vrot.slane %v870, 2
    %v872 = vadd.f32 %v870, %v871
    %v873 = vrot.slane %v872, 1
    %v874 = vadd.f32 %v872, %v873
    %v875 = vmul.f32 %v874, 0.001953125
    %v876 = vmul.f32 %v740, %v740
    %v877 = vmul.f32 %v741, %v741
    %v878 = vmul.f32 %v742, %v742
    %v879 = vmul.f32 %v743, %v743
    %v880 = vmul.f32 %v744, %v744
    %v881 = vmul.f32 %v745, %v745
    %v882 = vmul.f32 %v746, %v746
    %v883 = vmul.f32 %v747, %v747
    %v884 = vmul.f32 %v748, %v748
    %v885 = vmul.f32 %v749, %v749
    %v886 = vmul.f32 %v750, %v750
    %v887 = vmul.f32 %v751, %v751
    %v888 = vmul.f32 %v752, %v752
    %v889 = vmul.f32 %v753, %v753
    %v890 = vmul.f32 %v754, %v754
    %v891 = vmul.f32 %v755, %v755
    %v892 = vmul.f32 %v756, %v756
    %v893 = vmul.f32 %v757, %v757
    %v894 = vmul.f32 %v758, %v758
    %v895 = vmul.f32 %v759, %v759
    %v896 = vmul.f32 %v760, %v760
    %v897 = vmul.f32 %v761, %v761
    %v898 = vmul.f32 %v762, %v762
    %v899 = vmul.f32 %v763, %v763
    %v900 = vmul.f32 %v764, %v764
    %v901 = vmul.f32 %v765, %v765
    %v902 = vmul.f32 %v766, %v766
    %v903 = vmul.f32 %v767, %v767
    %v904 = vmul.f32 %v768, %v768
    %v905 = vmul.f32 %v769, %v769
    %v906 = vmul.f32 %v770, %v770
    %v907 = vmul.f32 %v771, %v771
    %v908 = vmul.f32 %v772, %v772
    %v909 = vmul.f32 %v773, %v773
    %v910 = vmul.f32 %v774, %v774
    %v911 = vmul.f32 %v775, %v775
    %v912 = vmul.f32 %v776, %v776
    %v913 = vmul.f32 %v777, %v777
    %v914 = vmul.f32 %v778, %v778
    %v915 = vmul.f32 %v779, %v779
    %v916 = vmul.f32 %v780, %v780
    %v917 = vmul.f32 %v781, %v781
    %v918 = vmul.f32 %v782, %v782
    %v919 = vmul.f32 %v783, %v783
    %v920 = vmul.f32 %v784, %v784
    %v921 = vmul.f32 %v785, %v785
    %v922 = vmul.f32 %v786, %v786
    %v923 = vmul.f32 %v787, %v787
    %v924 = vmul.f32 %v788, %v788
    %v925 = vmul.f32 %v789, %v789
    %v926 = vmul.f32 %v790, %v790
    %v927 = vmul.f32 %v791, %v791
    %v928 = vmul.f32 %v792, %v792
    %v929 = vmul.f32 %v793, %v793
    %v930 = vmul.f32 %v794, %v794
    %v931 = vmul.f32 %v795, %v795
    %v932 = vmul.f32 %v796, %v796
    %v933 = vmul.f32 %v797, %v797
    %v934 = vmul.f32 %v798, %v798
    %v935 = vmul.f32 %v799, %v799
    %v936 = vmul.f32 %v800, %v800
    %v937 = vmul.f32 %v801, %v801
    %v938 = vmul.f32 %v802, %v802
    %v939 = vmul.f32 %v803, %v803
    %v940 = vadd.f32 %v876, %v877
    %v941 = vadd.f32 %v940, %v878
    %v942 = vadd.f32 %v941, %v879
    %v943 = vadd.f32 %v942, %v880
    %v944 = vadd.f32 %v943, %v881
    %v945 = vadd.f32 %v944, %v882
    %v946 = vadd.f32 %v945, %v883
    %v947 = vadd.f32 %v946, %v884
    %v948 = vadd.f32 %v947, %v885
    %v949 = vadd.f32 %v948, %v886
    %v950 = vadd.f32 %v949, %v887
    %v951 = vadd.f32 %v950, %v888
    %v952 = vadd.f32 %v951, %v889
    %v953 = vadd.f32 %v952, %v890
    %v954 = vadd.f32 %v953, %v891
    %v955 = vadd.f32 %v954, %v892
    %v956 = vadd.f32 %v955, %v893
    %v957 = vadd.f32 %v956, %v894
    %v958 = vadd.f32 %v957, %v895
    %v959 = vadd.f32 %v958, %v896
    %v960 = vadd.f32 %v959, %v897
    %v961 = vadd.f32 %v960, %v898
    %v962 = vadd.f32 %v961, %v899
    %v963 = vadd.f32 %v962, %v900
    %v964 = vadd.f32 %v963, %v901
    %v965 = vadd.f32 %v964, %v902
    %v966 = vadd.f32 %v965, %v903
    %v967 = vadd.f32 %v966, %v904
    %v968 = vadd.f32 %v967, %v905
    %v969 = vadd.f32 %v968, %v906
    %v970 = vadd.f32 %v969, %v907
    %v971 = vadd.f32 %v970, %v908
    %v972 = vadd.f32 %v971, %v909
    %v973 = vadd.f32 %v972, %v910
    %v974 = vadd.f32 %v973, %v911
    %v975 = vadd.f32 %v974, %v912
    %v976 = vadd.f32 %v975, %v913
    %v977 = vadd.f32 %v976, %v914
    %v978 = vadd.f32 %v977, %v915
    %v979 = vadd.f32 %v978, %v916
    %v980 = vadd.f32 %v979, %v917
    %v981 = vadd.f32 %v980, %v918
    %v982 = vadd.f32 %v981, %v919
    %v983 = vadd.f32 %v982, %v920
    %v984 = vadd.f32 %v983, %v921
    %v985 = vadd.f32 %v984, %v922
    %v986 = vadd.f32 %v985, %v923
    %v987 = vadd.f32 %v986, %v924
    %v988 = vadd.f32 %v987, %v925
    %v989 = vadd.f32 %v988, %v926
    %v990 = vadd.f32 %v989, %v927
    %v991 = vadd.f32 %v990, %v928
    %v992 = vadd.f32 %v991, %v929
    %v993 = vadd.f32 %v992, %v930
    %v994 = vadd.f32 %v993, %v931
    %v995 = vadd.f32 %v994, %v932
    %v996 = vadd.f32 %v995, %v933
    %v997 = vadd.f32 %v996, %v934
    %v998 = vadd.f32 %v997, %v935
    %v999 = vadd.f32 %v998, %v936
    %v1000 = vadd.f32 %v999, %v937
    %v1001 = vadd.f32 %v1000, %v938
    %v1002 = vadd.f32 %v1001, %v939
    %v1003 = vrot.slane %v1002, 4
    %v1004 = vadd.f32 %v1002, %v1003
    %v1005 = vrot.slane %v1004, 2
    %v1006 = vadd.f32 %v1004, %v1005
    %v1007 = vrot.slane %v1006, 1
    %v1008 = vadd.f32 %v1006, %v1007
    %v1009 = vmul.f32 %v1008, 0.001953125
    %v1010 = vmul.f32 %v875, %v875
    %v1011 = vsub.f32 %v1009, %v1010
    %v1012 = vadd.f32 %v1011, 1e-05
    %v1013 = vrsqrt.pop %v1012
    %v1014 = vmul.f32 %v804, %v1013
    %v1015 = vmul.f32 %v875, %v1014
    %v1016 = vsub.f32 %v805, %v1015
    %v1018 = vlaneseq
    %v1019 = vshrl.u32 %v1018, 7
    %v1020 = vsub.s32 0, %v1019
    %v1021 = vrot.slane %v1014, %v1020
    %v1023 = vmul.f32 %v740, %v1021
    %v1024 = vmul.f32 %v741, %v1021
    %v1025 = vmul.f32 %v742, %v1021
    %v1026 = vmul.f32 %v743, %v1021
    %v1027 = vmul.f32 %v744, %v1021
    %v1028 = vmul.f32 %v745, %v1021
    %v1029 = vmul.f32 %v746, %v1021
    %v1030 = vmul.f32 %v747, %v1021
    %v1031 = vmul.f32 %v748, %v1021
    %v1032 = vmul.f32 %v749, %v1021
    %v1033 = vmul.f32 %v750, %v1021
    %v1034 = vmul.f32 %v751, %v1021
    %v1035 = vmul.f32 %v752, %v1021
    %v1036 = vmul.f32 %v753, %v1021
    %v1037 = vmul.f32 %v754, %v1021
    %v1038 = vmul.f32 %v755, %v1021
    %v1039 = vmul.f32 %v756, %v1021
    %v1040 = vmul.f32 %v757, %v1021
    %v1041 = vmul.f32 %v758, %v1021
    %v1042 = vmul.f32 %v759, %v1021
    %v1043 = vmul.f32 %v760, %v1021
    %v1044 = vmul.f32 %v761, %v1021
    %v1045 = vmul.f32 %v762, %v1021
    %v1046 = vmul.f32 %v763, %v1021
    %v1047 = vmul.f32 %v764, %v1021
    %v1048 = vmul.f32 %v765, %v1021
    %v1049 = vmul.f32 %v766, %v1021
    %v1050 = vmul.f32 %v767, %v1021
    %v1051 = vmul.f32 %v768, %v1021
    %v1052 = vmul.f32 %v769, %v1021
    %v1053 = vmul.f32 %v770, %v1021
    %v1054 = vmul.f32 %v771, %v1021
    %v1055 = vmul.f32 %v772, %v1021
    %v1056 = vmul.f32 %v773, %v1021
    %v1057 = vmul.f32 %v774, %v1021
    %v1058 = vmul.f32 %v775, %v1021
    %v1059 = vmul.f32 %v776, %v1021
    %v1060 = vmul.f32 %v777, %v1021
    %v1061 = vmul.f32 %v778, %v1021
    %v1062 = vmul.f32 %v779, %v1021
    %v1063 = vmul.f32 %v780, %v1021
    %v1064 = vmul.f32 %v781, %v1021
    %v1065 = vmul.f32 %v782, %v1021
    %v1066 = vmul.f32 %v783, %v1021
    %v1067 = vmul.f32 %v784, %v1021
    %v1068 = vmul.f32 %v785, %v1021
    %v1069 = vmul.f32 %v786, %v1021
    %v1070 = vmul.f32 %v787, %v1021
    %v1071 = vmul.f32 %v788, %v1021
    %v1072 = vmul.f32 %v789, %v1021
    %v1073 = vmul.f32 %v790, %v1021
    %v1074 = vmul.f32 %v791, %v1021
    %v1075 = vmul.f32 %v792, %v1021
    %v1076 = vmul.f32 %v793, %v1021
    %v1077 = vmul.f32 %v794, %v1021
    %v1078 = vmul.f32 %v795, %v1021
    %v1079 = vmul.f32 %v796, %v1021
    %v1080 = vmul.f32 %v797, %v1021
    %v1081 = vmul.f32 %v798, %v1021
    %v1082 = vmul.f32 %v799, %v1021
    %v1083 = vmul.f32 %v800, %v1021
    %v1084 = vmul.f32 %v801, %v1021
    %v1085 = vmul.f32 %v802, %v1021
    %v1086 = vmul.f32 %v803, %v1021
    %v1088 = vlaneseq
    %v1089 = vshrl.u32 %v1088, 7
    %v1090 = vsub.s32 0, %v1089
    %v1091 = vrot.slane %v1016, %v1090
    %v1093 = vadd.f32 %v1023, %v1091
    %v1094 = vadd.f32 %v1024, %v1091
    %v1095 = vadd.f32 %v1025, %v1091
    %v1096 = vadd.f32 %v1026, %v1091
    %v1097 = vadd.f32 %v1027, %v1091
    %v1098 = vadd.f32 %v1028, %v1091
    %v1099 = vadd.f32 %v1029, %v1091
    %v1100 = vadd.f32 %v1030, %v1091
    %v1101 = vadd.f32 %v1031, %v1091
    %v1102 = vadd.f32 %v1032, %v1091
    %v1103 = vadd.f32 %v1033, %v1091
    %v1104 = vadd.f32 %v1034, %v1091
    %v1105 = vadd.f32 %v1035, %v1091
    %v1106 = vadd.f32 %v1036, %v1091
    %v1107 = vadd.f32 %v1037, %v1091
    %v1108 = vadd.f32 %v1038, %v1091
    %v1109 = vadd.f32 %v1039, %v1091
    %v1110 = vadd.f32 %v1040, %v1091
    %v1111 = vadd.f32 %v1041, %v1091
    %v1112 = vadd.f32 %v1042, %v1091
    %v1113 = vadd.f32 %v1043, %v1091
    %v1114 = vadd.f32 %v1044, %v1091
    %v1115 = vadd.f32 %v1045, %v1091
    %v1116 = vadd.f32 %v1046, %v1091
    %v1117 = vadd.f32 %v1047, %v1091
    %v1118 = vadd.f32 %v1048, %v1091
    %v1119 = vadd.f32 %v1049, %v1091
    %v1120 = vadd.f32 %v1050, %v1091
    %v1121 = vadd.f32 %v1051, %v1091
    %v1122 = vadd.f32 %v1052, %v1091
    %v1123 = vadd.f32 %v1053, %v1091
    %v1124 = vadd.f32 %v1054, %v1091
    %v1125 = vadd.f32 %v1055, %v1091
    %v1126 = vadd.f32 %v1056, %v1091
    %v1127 = vadd.f32 %v1057, %v1091
    %v1128 = vadd.f32 %v1058, %v1091
    %v1129 = vadd.f32 %v1059, %v1091
    %v1130 = vadd.f32 %v1060, %v1091
    %v1131 = vadd.f32 %v1061, %v1091
    %v1132 = vadd.f32 %v1062, %v1091
    %v1133 = vadd.f32 %v1063, %v1091
    %v1134 = vadd.f32 %v1064, %v1091
    %v1135 = vadd.f32 %v1065, %v1091
    %v1136 = vadd.f32 %v1066, %v1091
    %v1137 = vadd.f32 %v1067, %v1091
    %v1138 = vadd.f32 %v1068, %v1091
    %v1139 = vadd.f32 %v1069, %v1091
    %v1140 = vadd.f32 %v1070, %v1091
    %v1141 = vadd.f32 %v1071, %v1091
    %v1142 = vadd.f32 %v1072, %v1091
    %v1143 = vadd.f32 %v1073, %v1091
    %v1144 = vadd.f32 %v1074, %v1091
    %v1145 = vadd.f32 %v1075, %v1091
    %v1146 = vadd.f32 %v1076, %v1091
    %v1147 = vadd.f32 %v1077, %v1091
    %v1148 = vadd.f32 %v1078, %v1091
    %v1149 = vadd.f32 %v1079, %v1091
    %v1150 = vadd.f32 %v1080, %v1091
    %v1151 = vadd.f32 %v1081, %v1091
    %v1152 = vadd.f32 %v1082, %v1091
    %v1153 = vadd.f32 %v1083, %v1091
    %v1154 = vadd.f32 %v1084, %v1091
    %v1155 = vadd.f32 %v1085, %v1091
    %v1156 = vadd.f32 %v1086, %v1091
    %v1157 = vmax.f32 %v1093, 0.0
    %v1158 = vmax.f32 %v1094, 0.0
    %v1159 = vmax.f32 %v1095, 0.0
    %v1160 = vmax.f32 %v1096, 0.0
    %v1161 = vmax.f32 %v1097, 0.0
    %v1162 = vmax.f32 %v1098, 0.0
    %v1163 = vmax.f32 %v1099, 0.0
    %v1164 = vmax.f32 %v1100, 0.0
    %v1165 = vmax.f32 %v1101, 0.0
    %v1166 = vmax.f32 %v1102, 0.0
    %v1167 = vmax.f32 %v1103, 0.0
    %v1168 = vmax.f32 %v1104, 0.0
    %v1169 = vmax.f32 %v1105, 0.0
    %v1170 = vmax.f32 %v1106, 0.0
    %v1171 = vmax.f32 %v1107, 0.0
    %v1172 = vmax.f32 %v1108, 0.0
    %v1173 = vmax.f32 %v1109, 0.0
    %v1174 = vmax.f32 %v1110, 0.0
    %v1175 = vmax.f32 %v1111, 0.0
    %v1176 = vmax.f32 %v1112, 0.0
    %v1177 = vmax.f32 %v1113, 0.0
    %v1178 = vmax.f32 %v1114, 0.0
    %v1179 = vmax.f32 %v1115, 0.0
    %v1180 = vmax.f32 %v1116, 0.0
    %v1181 = vmax.f32 %v1117, 0.0
    %v1182 = vmax.f32 %v1118, 0.0
    %v1183 = vmax.f32 %v1119, 0.0
    %v1184 = vmax.f32 %v1120, 0.0
    %v1185 = vmax.f32 %v1121, 0.0
    %v1186 = vmax.f32 %v1122, 0.0
    %v1187 = vmax.f32 %v1123, 0.0
    %v1188 = vmax.f32 %v1124, 0.0
    %v1189 = vmax.f32 %v1125, 0.0
    %v1190 = vmax.f32 %v1126, 0.0
    %v1191 = vmax.f32 %v1127, 0.0
    %v1192 = vmax.f32 %v1128, 0.0
    %v1193 = vmax.f32 %v1129, 0.0
    %v1194 = vmax.f32 %v1130, 0.0
    %v1195 = vmax.f32 %v1131, 0.0
    %v1196 = vmax.f32 %v1132, 0.0
    %v1197 = vmax.f32 %v1133, 0.0
    %v1198 = vmax.f32 %v1134, 0.0
    %v1199 = vmax.f32 %v1135, 0.0
    %v1200 = vmax.f32 %v1136, 0.0
    %v1201 = vmax.f32 %v1137, 0.0
    %v1202 = vmax.f32 %v1138, 0.0
    %v1203 = vmax.f32 %v1139, 0.0
    %v1204 = vmax.f32 %v1140, 0.0
    %v1205 = vmax.f32 %v1141, 0.0
    %v1206 = vmax.f32 %v1142, 0.0
    %v1207 = vmax.f32 %v1143, 0.0
    %v1208 = vmax.f32 %v1144, 0.0
    %v1209 = vmax.f32 %v1145, 0.0
    %v1210 = vmax.f32 %v1146, 0.0
    %v1211 = vmax.f32 %v1147, 0.0
    %v1212 = vmax.f32 %v1148, 0.0
    %v1213 = vmax.f32 %v1149, 0.0
    %v1214 = vmax.f32 %v1150, 0.0
    %v1215 = vmax.f32 %v1151, 0.0
    %v1216 = vmax.f32 %v1152, 0.0
    %v1217 = vmax.f32 %v1153, 0.0
    %v1218 = vmax.f32 %v1154, 0.0
    %v1219 = vmax.f32 %v1155, 0.0
    %v1220 = vmax.f32 %v1156, 0.0
    %v1221 = vpack.c.bf16 %v1158, %v1157
    %v1222 = vpack.c.bf16 %v1160, %v1159
    %v1223 = vpack.c.bf16 %v1162, %v1161
    %v1224 = vpack.c.bf16 %v1164, %v1163
    %v1225 = vpack.c.bf16 %v1166, %v1165
    %v1226 = vpack.c.bf16 %v1168, %v1167
    %v1227 = vpack.c.bf16 %v1170, %v1169
    %v1228 = vpack.c.bf16 %v1172, %v1171
    %v1229 = vpack.c.bf16 %v1174, %v1173
    %v1230 = vpack.c.bf16 %v1176, %v1175
    %v1231 = vpack.c.bf16 %v1178, %v1177
    %v1232 = vpack.c.bf16 %v1180, %v1179
    %v1233 = vpack.c.bf16 %v1182, %v1181
    %v1234 = vpack.c.bf16 %v1184, %v1183
    %v1235 = vpack.c.bf16 %v1186, %v1185
    %v1236 = vpack.c.bf16 %v1188, %v1187
    %v1237 = vpack.c.bf16 %v1190, %v1189
    %v1238 = vpack.c.bf16 %v1192, %v1191
    %v1239 = vpack.c.bf16 %v1194, %v1193
    %v1240 = vpack.c.bf16 %v1196, %v1195
    %v1241 = vpack.c.bf16 %v1198, %v1197
    %v1242 = vpack.c.bf16 %v1200, %v1199
    %v1243 = vpack.c.bf16 %v1202, %v1201
    %v1244 = vpack.c.bf16 %v1204, %v1203
    %v1245 = vpack.c.bf16 %v1206, %v1205
    %v1246 = vpack.c.bf16 %v1208, %v1207
    %v1247 = vpack.c.bf16 %v1210, %v1209
    %v1248 = vpack.c.bf16 %v1212, %v1211
    %v1249 = vpack.c.bf16 %v1214, %v1213
    %v1250 = vpack.c.bf16 %v1216, %v1215
    %v1251 = vpack.c.bf16 %v1218, %v1217
    %v1252 = vpack.c.bf16 %v1220, %v1219
    %1253 = vst [vmem:[#allocation3] sm:$0xf0] 0
    %1254 = vst [vmem:[#allocation3 + $0x8] sm:$0xf] 0
    %1255 = vst [vmem:[#allocation3 + $0x10] sm:$0xf0] 0
    %1256 = vst [vmem:[#allocation3 + $0x18] sm:$0xf] 0
    %1257 = vst [vmem:[#allocation3 + $0x20] sm:$0xf0] 0
    %1258 = vst [vmem:[#allocation3 + $0x28] sm:$0xf] 0
    %1259 = vst [vmem:[#allocation3 + $0x30] sm:$0xf0] 0
    %1260 = vst [vmem:[#allocation3 + $0x38] sm:$0xf] 0
    %1261 = vst [vmem:[#allocation3 + $0x40] sm:$0xf0] 0
    %1262 = vst [vmem:[#allocation3 + $0x48] sm:$0xf] 0
    %1263 = vst [vmem:[#allocation3 + $0x50] sm:$0xf0] 0
    %1264 = vst [vmem:[#allocation3 + $0x58] sm:$0xf] 0
    %1265 = vst [vmem:[#allocation3 + $0x60] sm:$0xf0] 0
    %1266 = vst [vmem:[#allocation3 + $0x68] sm:$0xf] 0
    %1267 = vst [vmem:[#allocation3 + $0x70] sm:$0xf0] 0
    %1268 = vst [vmem:[#allocation3 + $0x78] sm:$0xf] 0
    %1269 = vst [vmem:[#allocation3 + $0x80] sm:$0xf0] 0
    %1270 = vst [vmem:[#allocation3 + $0x88] sm:$0xf] 0
    %1271 = vst [vmem:[#allocation3 + $0x90] sm:$0xf0] 0
    %1272 = vst [vmem:[#allocation3 + $0x98] sm:$0xf] 0
    %1273 = vst [vmem:[#allocation3 + $0xa0] sm:$0xf0] 0
    %1274 = vst [vmem:[#allocation3 + $0xa8] sm:$0xf] 0
    %1275 = vst [vmem:[#allocation3 + $0xb0] sm:$0xf0] 0
    %1276 = vst [vmem:[#allocation3 + $0xb8] sm:$0xf] 0
    %1277 = vst [vmem:[#allocation3 + $0xc0] sm:$0xf0] 0
    %1278 = vst [vmem:[#allocation3 + $0xc8] sm:$0xf] 0
    %1279 = vst [vmem:[#allocation3 + $0xd0] sm:$0xf0] 0
    %1280 = vst [vmem:[#allocation3 + $0xd8] sm:$0xf] 0
    %1281 = vst [vmem:[#allocation3 + $0xe0] sm:$0xf0] 0
    %1282 = vst [vmem:[#allocation3 + $0xe8] sm:$0xf] 0
    %1283 = vst [vmem:[#allocation3 + $0xf0] sm:$0xf0] 0
    %1284 = vst [vmem:[#allocation3 + $0xf8] sm:$0xf] 0
    %1285 = vst [vmem:[#allocation3 + $0x100] sm:$0xf0] 0
    %1286 = vst [vmem:[#allocation3 + $0x108] sm:$0xf] 0
    %1287 = vst [vmem:[#allocation3 + $0x110] sm:$0xf0] 0
    %1288 = vst [vmem:[#allocation3 + $0x118] sm:$0xf] 0
    %1289 = vst [vmem:[#allocation3 + $0x120] sm:$0xf0] 0
    %1290 = vst [vmem:[#allocation3 + $0x128] sm:$0xf] 0
    %1291 = vst [vmem:[#allocation3 + $0x130] sm:$0xf0] 0
    %1292 = vst [vmem:[#allocation3 + $0x138] sm:$0xf] 0
    %1293 = vst [vmem:[#allocation3 + $0x140] sm:$0xf0] 0
    %1294 = vst [vmem:[#allocation3 + $0x148] sm:$0xf] 0
    %1295 = vst [vmem:[#allocation3 + $0x150] sm:$0xf0] 0
    %1296 = vst [vmem:[#allocation3 + $0x158] sm:$0xf] 0
    %1297 = vst [vmem:[#allocation3 + $0x160] sm:$0xf0] 0
    %1298 = vst [vmem:[#allocation3 + $0x168] sm:$0xf] 0
    %1299 = vst [vmem:[#allocation3 + $0x170] sm:$0xf0] 0
    %1300 = vst [vmem:[#allocation3 + $0x178] sm:$0xf] 0
    %1301 = vst [vmem:[#allocation3 + $0x180] sm:$0xf0] 0
    %1302 = vst [vmem:[#allocation3 + $0x188] sm:$0xf] 0
    %1303 = vst [vmem:[#allocation3 + $0x190] sm:$0xf0] 0
    %1304 = vst [vmem:[#allocation3 + $0x198] sm:$0xf] 0
    %1305 = vst [vmem:[#allocation3 + $0x1a0] sm:$0xf0] 0
    %1306 = vst [vmem:[#allocation3 + $0x1a8] sm:$0xf] 0
    %1307 = vst [vmem:[#allocation3 + $0x1b0] sm:$0xf0] 0
    %1308 = vst [vmem:[#allocation3 + $0x1b8] sm:$0xf] 0
    %1309 = vst [vmem:[#allocation3 + $0x1c0] sm:$0xf0] 0
    %1310 = vst [vmem:[#allocation3 + $0x1c8] sm:$0xf] 0
    %1311 = vst [vmem:[#allocation3 + $0x1d0] sm:$0xf0] 0
    %1312 = vst [vmem:[#allocation3 + $0x1d8] sm:$0xf] 0
    %1313 = vst [vmem:[#allocation3 + $0x1e0] sm:$0xf0] 0
    %1314 = vst [vmem:[#allocation3 + $0x1e8] sm:$0xf] 0
    %1315 = vst [vmem:[#allocation3 + $0x1f0] sm:$0xf0] 0
    %1316 = vst [vmem:[#allocation3 + $0x1f8] sm:$0xf] 0
    %1317 = vst [vmem:[#allocation3 + $0x200] sm:$0xf0] 0
    %1318 = vst [vmem:[#allocation3 + $0x208] sm:$0xf] 0
    %1319 = vst [vmem:[#allocation3 + $0x210] sm:$0xf0] 0
    %1320 = vst [vmem:[#allocation3 + $0x218] sm:$0xf] 0
    %1321 = vst [vmem:[#allocation3 + $0x220] sm:$0xf0] 0
    %1322 = vst [vmem:[#allocation3 + $0x228] sm:$0xf] 0
    %1323 = vst [vmem:[#allocation3 + $0x230] sm:$0xf0] 0
    %1324 = vst [vmem:[#allocation3 + $0x238] sm:$0xf] 0
    %v1326 = vshrl.u32 %v1221, 16
    %v1328 = vrot.slane %v1326, 3
    %v1329 = vshll.u32 %v1221, 16
    %v1331 = vrot.slane %v1329, 4
    %v1332 = vor.u32 %v1328, %v1331
    %v1334 = vshrl.u32 %v1222, 16
    %v1336 = vrot.slane %v1334, 3
    %v1337 = vshll.u32 %v1222, 16
    %v1339 = vrot.slane %v1337, 4
    %v1340 = vor.u32 %v1336, %v1339
    %v1342 = vshrl.u32 %v1223, 16
    %v1344 = vrot.slane %v1342, 3
    %v1345 = vshll.u32 %v1223, 16
    %v1347 = vrot.slane %v1345, 4
    %v1348 = vor.u32 %v1344, %v1347
    %v1350 = vshrl.u32 %v1224, 16
    %v1352 = vrot.slane %v1350, 3
    %v1353 = vshll.u32 %v1224, 16
    %v1355 = vrot.slane %v1353, 4
    %v1356 = vor.u32 %v1352, %v1355
    %v1358 = vshrl.u32 %v1225, 16
    %v1360 = vrot.slane %v1358, 3
    %v1361 = vshll.u32 %v1225, 16
    %v1363 = vrot.slane %v1361, 4
    %v1364 = vor.u32 %v1360, %v1363
    %v1366 = vshrl.u32 %v1226, 16
    %v1368 = vrot.slane %v1366, 3
    %v1369 = vshll.u32 %v1226, 16
    %v1371 = vrot.slane %v1369, 4
    %v1372 = vor.u32 %v1368, %v1371
    %v1374 = vshrl.u32 %v1227, 16
    %v1376 = vrot.slane %v1374, 3
    %v1377 = vshll.u32 %v1227, 16
    %v1379 = vrot.slane %v1377, 4
    %v1380 = vor.u32 %v1376, %v1379
    %v1382 = vshrl.u32 %v1228, 16
    %v1384 = vrot.slane %v1382, 3
    %v1385 = vshll.u32 %v1228, 16
    %v1387 = vrot.slane %v1385, 4
    %v1388 = vor.u32 %v1384, %v1387
    %v1390 = vshrl.u32 %v1229, 16
    %v1392 = vrot.slane %v1390, 3
    %v1393 = vshll.u32 %v1229, 16
    %v1395 = vrot.slane %v1393, 4
    %v1396 = vor.u32 %v1392, %v1395
    %v1398 = vshrl.u32 %v1230, 16
    %v1400 = vrot.slane %v1398, 3
    %v1401 = vshll.u32 %v1230, 16
    %v1403 = vrot.slane %v1401, 4
    %v1404 = vor.u32 %v1400, %v1403
    %v1406 = vshrl.u32 %v1231, 16
    %v1408 = vrot.slane %v1406, 3
    %v1409 = vshll.u32 %v1231, 16
    %v1411 = vrot.slane %v1409, 4
    %v1412 = vor.u32 %v1408, %v1411
    %v1414 = vshrl.u32 %v1232, 16
    %v1416 = vrot.slane %v1414, 3
    %v1417 = vshll.u32 %v1232, 16
    %v1419 = vrot.slane %v1417, 4
    %v1420 = vor.u32 %v1416, %v1419
    %v1422 = vshrl.u32 %v1233, 16
    %v1424 = vrot.slane %v1422, 3
    %v1425 = vshll.u32 %v1233, 16
    %v1427 = vrot.slane %v1425, 4
    %v1428 = vor.u32 %v1424, %v1427
    %v1430 = vshrl.u32 %v1234, 16
    %v1432 = vrot.slane %v1430, 3
    %v1433 = vshll.u32 %v1234, 16
    %v1435 = vrot.slane %v1433, 4
    %v1436 = vor.u32 %v1432, %v1435
    %v1438 = vshrl.u32 %v1235, 16
    %v1440 = vrot.slane %v1438, 3
    %v1441 = vshll.u32 %v1235, 16
    %v1443 = vrot.slane %v1441, 4
    %v1444 = vor.u32 %v1440, %v1443
    %v1446 = vshrl.u32 %v1236, 16
    %v1448 = vrot.slane %v1446, 3
    %v1449 = vshll.u32 %v1236, 16
    %v1451 = vrot.slane %v1449, 4
    %v1452 = vor.u32 %v1448, %v1451
    %v1454 = vshrl.u32 %v1237, 16
    %v1456 = vrot.slane %v1454, 3
    %v1457 = vshll.u32 %v1237, 16
    %v1459 = vrot.slane %v1457, 4
    %v1460 = vor.u32 %v1456, %v1459
    %v1462 = vshrl.u32 %v1238, 16
    %v1464 = vrot.slane %v1462, 3
    %v1465 = vshll.u32 %v1238, 16
    %v1467 = vrot.slane %v1465, 4
    %v1468 = vor.u32 %v1464, %v1467
    %v1470 = vshrl.u32 %v1239, 16
    %v1472 = vrot.slane %v1470, 3
    %v1473 = vshll.u32 %v1239, 16
    %v1475 = vrot.slane %v1473, 4
    %v1476 = vor.u32 %v1472, %v1475
    %v1478 = vshrl.u32 %v1240, 16
    %v1480 = vrot.slane %v1478, 3
    %v1481 = vshll.u32 %v1240, 16
    %v1483 = vrot.slane %v1481, 4
    %v1484 = vor.u32 %v1480, %v1483
    %v1486 = vshrl.u32 %v1241, 16
    %v1488 = vrot.slane %v1486, 3
    %v1489 = vshll.u32 %v1241, 16
    %v1491 = vrot.slane %v1489, 4
    %v1492 = vor.u32 %v1488, %v1491
    %v1494 = vshrl.u32 %v1242, 16
    %v1496 = vrot.slane %v1494, 3
    %v1497 = vshll.u32 %v1242, 16
    %v1499 = vrot.slane %v1497, 4
    %v1500 = vor.u32 %v1496, %v1499
    %v1502 = vshrl.u32 %v1243, 16
    %v1504 = vrot.slane %v1502, 3
    %v1505 = vshll.u32 %v1243, 16
    %v1507 = vrot.slane %v1505, 4
    %v1508 = vor.u32 %v1504, %v1507
    %v1510 = vshrl.u32 %v1244, 16
    %v1512 = vrot.slane %v1510, 3
    %v1513 = vshll.u32 %v1244, 16
    %v1515 = vrot.slane %v1513, 4
    %v1516 = vor.u32 %v1512, %v1515
    %v1518 = vshrl.u32 %v1245, 16
    %v1520 = vrot.slane %v1518, 3
    %v1521 = vshll.u32 %v1245, 16
    %v1523 = vrot.slane %v1521, 4
    %v1524 = vor.u32 %v1520, %v1523
    %v1526 = vshrl.u32 %v1246, 16
    %v1528 = vrot.slane %v1526, 3
    %v1529 = vshll.u32 %v1246, 16
    %v1531 = vrot.slane %v1529, 4
    %v1532 = vor.u32 %v1528, %v1531
    %v1534 = vshrl.u32 %v1247, 16
    %v1536 = vrot.slane %v1534, 3
    %v1537 = vshll.u32 %v1247, 16
    %v1539 = vrot.slane %v1537, 4
    %v1540 = vor.u32 %v1536, %v1539
    %v1542 = vshrl.u32 %v1248, 16
    %v1544 = vrot.slane %v1542, 3
    %v1545 = vshll.u32 %v1248, 16
    %v1547 = vrot.slane %v1545, 4
    %v1548 = vor.u32 %v1544, %v1547
    %v1550 = vshrl.u32 %v1249, 16
    %v1552 = vrot.slane %v1550, 3
    %v1553 = vshll.u32 %v1249, 16
    %v1555 = vrot.slane %v1553, 4
    %v1556 = vor.u32 %v1552, %v1555
    %v1558 = vshrl.u32 %v1250, 16
    %v1560 = vrot.slane %v1558, 3
    %v1561 = vshll.u32 %v1250, 16
    %v1563 = vrot.slane %v1561, 4
    %v1564 = vor.u32 %v1560, %v1563
    %v1566 = vshrl.u32 %v1251, 16
    %v1568 = vrot.slane %v1566, 3
    %v1569 = vshll.u32 %v1251, 16
    %v1571 = vrot.slane %v1569, 4
    %v1572 = vor.u32 %v1568, %v1571
    %v1574 = vshrl.u32 %v1252, 16
    %v1576 = vrot.slane %v1574, 3
    %v1577 = vshll.u32 %v1252, 16
    %v1579 = vrot.slane %v1577, 4
    %v1580 = vor.u32 %v1576, %v1579
    %s1613 = scalar_lea.vmem [#allocation3], 16
    %vm1614 = vcmask 1047556
    %vm1615 = vsmask.f32 7954
    %vm1616 = vmand %vm1614, %vm1615
    %v1617 = vld [vmem:[%s1613] sm:$0xf0]
    %v1618 = vsel %vm1616, %v1332, %v1617
    %1619 = vst [vmem:[%s1613] sm:$0xf0] %v1618
    %vm1620 = vcmask 1044480
    %vm1621 = vsmask.f32 4352
    %vm1622 = vmand %vm1620, %vm1621
    %v1623 = vld [vmem:[%s1613 + $0x8] sm:$0x1f]
    %v1624 = vsel %vm1622, %v1332, %v1623
    %1625 = vst [vmem:[%s1613 + $0x8] sm:$0x1f] %v1624
    %v1626 = vld [vmem:[%s1613 + $0x10] sm:$0xf0]
    %v1627 = vsel %vm1616, %v1340, %v1626
    %1628 = vst [vmem:[%s1613 + $0x10] sm:$0xf0] %v1627
    %v1629 = vld [vmem:[%s1613 + $0x18] sm:$0x1f]
    %v1630 = vsel %vm1622, %v1340, %v1629
    %1631 = vst [vmem:[%s1613 + $0x18] sm:$0x1f] %v1630
    %v1632 = vld [vmem:[%s1613 + $0x20] sm:$0xf0]
    %v1633 = vsel %vm1616, %v1348, %v1632
    %1634 = vst [vmem:[%s1613 + $0x20] sm:$0xf0] %v1633
    %v1635 = vld [vmem:[%s1613 + $0x28] sm:$0x1f]
    %v1636 = vsel %vm1622, %v1348, %v1635
    %1637 = vst [vmem:[%s1613 + $0x28] sm:$0x1f] %v1636
    %v1638 = vld [vmem:[%s1613 + $0x30] sm:$0xf0]
    %v1639 = vsel %vm1616, %v1356, %v1638
    %1640 = vst [vmem:[%s1613 + $0x30] sm:$0xf0] %v1639
    %v1641 = vld [vmem:[%s1613 + $0x38] sm:$0x1f]
    %v1642 = vsel %vm1622, %v1356, %v1641
    %1643 = vst [vmem:[%s1613 + $0x38] sm:$0x1f] %v1642
    %v1644 = vld [vmem:[%s1613 + $0x40] sm:$0xf0]
    %v1645 = vsel %vm1616, %v1364, %v1644
    %1646 = vst [vmem:[%s1613 + $0x40] sm:$0xf0] %v1645
    %v1647 = vld [vmem:[%s1613 + $0x48] sm:$0x1f]
    %v1648 = vsel %vm1622, %v1364, %v1647
    %1649 = vst [vmem:[%s1613 + $0x48] sm:$0x1f] %v1648
    %v1650 = vld [vmem:[%s1613 + $0x50] sm:$0xf0]
    %v1651 = vsel %vm1616, %v1372, %v1650
    %1652 = vst [vmem:[%s1613 + $0x50] sm:$0xf0] %v1651
    %v1653 = vld [vmem:[%s1613 + $0x58] sm:$0x1f]
    %v1654 = vsel %vm1622, %v1372, %v1653
    %1655 = vst [vmem:[%s1613 + $0x58] sm:$0x1f] %v1654
    %v1656 = vld [vmem:[%s1613 + $0x60] sm:$0xf0]
    %v1657 = vsel %vm1616, %v1380, %v1656
    %1658 = vst [vmem:[%s1613 + $0x60] sm:$0xf0] %v1657
    %v1659 = vld [vmem:[%s1613 + $0x68] sm:$0x1f]
    %v1660 = vsel %vm1622, %v1380, %v1659
    %1661 = vst [vmem:[%s1613 + $0x68] sm:$0x1f] %v1660
    %v1662 = vld [vmem:[%s1613 + $0x70] sm:$0xf0]
    %v1663 = vsel %vm1616, %v1388, %v1662
    %1664 = vst [vmem:[%s1613 + $0x70] sm:$0xf0] %v1663
    %v1665 = vld [vmem:[%s1613 + $0x78] sm:$0x1f]
    %v1666 = vsel %vm1622, %v1388, %v1665
    %1667 = vst [vmem:[%s1613 + $0x78] sm:$0x1f] %v1666
    %v1668 = vld [vmem:[%s1613 + $0x80] sm:$0xf0]
    %v1669 = vsel %vm1616, %v1396, %v1668
    %1670 = vst [vmem:[%s1613 + $0x80] sm:$0xf0] %v1669
    %v1671 = vld [vmem:[%s1613 + $0x88] sm:$0x1f]
    %v1672 = vsel %vm1622, %v1396, %v1671
    %1673 = vst [vmem:[%s1613 + $0x88] sm:$0x1f] %v1672
    %v1674 = vld [vmem:[%s1613 + $0x90] sm:$0xf0]
    %v1675 = vsel %vm1616, %v1404, %v1674
    %1676 = vst [vmem:[%s1613 + $0x90] sm:$0xf0] %v1675
    %v1677 = vld [vmem:[%s1613 + $0x98] sm:$0x1f]
    %v1678 = vsel %vm1622, %v1404, %v1677
    %1679 = vst [vmem:[%s1613 + $0x98] sm:$0x1f] %v1678
    %v1680 = vld [vmem:[%s1613 + $0xa0] sm:$0xf0]
    %v1681 = vsel %vm1616, %v1412, %v1680
    %1682 = vst [vmem:[%s1613 + $0xa0] sm:$0xf0] %v1681
    %v1683 = vld [vmem:[%s1613 + $0xa8] sm:$0x1f]
    %v1684 = vsel %vm1622, %v1412, %v1683
    %1685 = vst [vmem:[%s1613 + $0xa8] sm:$0x1f] %v1684
    %v1686 = vld [vmem:[%s1613 + $0xb0] sm:$0xf0]
    %v1687 = vsel %vm1616, %v1420, %v1686
    %1688 = vst [vmem:[%s1613 + $0xb0] sm:$0xf0] %v1687
    %v1689 = vld [vmem:[%s1613 + $0xb8] sm:$0x1f]
    %v1690 = vsel %vm1622, %v1420, %v1689
    %1691 = vst [vmem:[%s1613 + $0xb8] sm:$0x1f] %v1690
    %v1692 = vld [vmem:[%s1613 + $0xc0] sm:$0xf0]
    %v1693 = vsel %vm1616, %v1428, %v1692
    %1694 = vst [vmem:[%s1613 + $0xc0] sm:$0xf0] %v1693
    %v1695 = vld [vmem:[%s1613 + $0xc8] sm:$0x1f]
    %v1696 = vsel %vm1622, %v1428, %v1695
    %1697 = vst [vmem:[%s1613 + $0xc8] sm:$0x1f] %v1696
    %v1698 = vld [vmem:[%s1613 + $0xd0] sm:$0xf0]
    %v1699 = vsel %vm1616, %v1436, %v1698
    %1700 = vst [vmem:[%s1613 + $0xd0] sm:$0xf0] %v1699
    %v1701 = vld [vmem:[%s1613 + $0xd8] sm:$0x1f]
    %v1702 = vsel %vm1622, %v1436, %v1701
    %1703 = vst [vmem:[%s1613 + $0xd8] sm:$0x1f] %v1702
    %v1704 = vld [vmem:[%s1613 + $0xe0] sm:$0xf0]
    %v1705 = vsel %vm1616, %v1444, %v1704
    %1706 = vst [vmem:[%s1613 + $0xe0] sm:$0xf0] %v1705
    %v1707 = vld [vmem:[%s1613 + $0xe8] sm:$0x1f]
    %v1708 = vsel %vm1622, %v1444, %v1707
    %1709 = vst [vmem:[%s1613 + $0xe8] sm:$0x1f] %v1708
    %v1710 = vld [vmem:[%s1613 + $0xf0] sm:$0xf0]
    %v1711 = vsel %vm1616, %v1452, %v1710
    %1712 = vst [vmem:[%s1613 + $0xf0] sm:$0xf0] %v1711
    %v1713 = vld [vmem:[%s1613 + $0xf8] sm:$0x1f]
    %v1714 = vsel %vm1622, %v1452, %v1713
    %1715 = vst [vmem:[%s1613 + $0xf8] sm:$0x1f] %v1714
    %v1716 = vld [vmem:[%s1613 + $0x120] sm:$0xf0]
    %v1717 = vsel %vm1616, %v1460, %v1716
    %1718 = vst [vmem:[%s1613 + $0x120] sm:$0xf0] %v1717
    %v1719 = vld [vmem:[%s1613 + $0x128] sm:$0x1f]
    %v1720 = vsel %vm1622, %v1460, %v1719
    %1721 = vst [vmem:[%s1613 + $0x128] sm:$0x1f] %v1720
    %v1722 = vld [vmem:[%s1613 + $0x130] sm:$0xf0]
    %v1723 = vsel %vm1616, %v1468, %v1722
    %1724 = vst [vmem:[%s1613 + $0x130] sm:$0xf0] %v1723
    %v1725 = vld [vmem:[%s1613 + $0x138] sm:$0x1f]
    %v1726 = vsel %vm1622, %v1468, %v1725
    %1727 = vst [vmem:[%s1613 + $0x138] sm:$0x1f] %v1726
    %v1728 = vld [vmem:[%s1613 + $0x140] sm:$0xf0]
    %v1729 = vsel %vm1616, %v1476, %v1728
    %1730 = vst [vmem:[%s1613 + $0x140] sm:$0xf0] %v1729
    %v1731 = vld [vmem:[%s1613 + $0x148] sm:$0x1f]
    %v1732 = vsel %vm1622, %v1476, %v1731
    %1733 = vst [vmem:[%s1613 + $0x148] sm:$0x1f] %v1732
    %v1734 = vld [vmem:[%s1613 + $0x150] sm:$0xf0]
    %v1735 = vsel %vm1616, %v1484, %v1734
    %1736 = vst [vmem:[%s1613 + $0x150] sm:$0xf0] %v1735
    %v1737 = vld [vmem:[%s1613 + $0x158] sm:$0x1f]
    %v1738 = vsel %vm1622, %v1484, %v1737
    %1739 = vst [vmem:[%s1613 + $0x158] sm:$0x1f] %v1738
    %v1740 = vld [vmem:[%s1613 + $0x160] sm:$0xf0]
    %v1741 = vsel %vm1616, %v1492, %v1740
    %1742 = vst [vmem:[%s1613 + $0x160] sm:$0xf0] %v1741
    %v1743 = vld [vmem:[%s1613 + $0x168] sm:$0x1f]
    %v1744 = vsel %vm1622, %v1492, %v1743
    %1745 = vst [vmem:[%s1613 + $0x168] sm:$0x1f] %v1744
    %v1746 = vld [vmem:[%s1613 + $0x170] sm:$0xf0]
    %v1747 = vsel %vm1616, %v1500, %v1746
    %1748 = vst [vmem:[%s1613 + $0x170] sm:$0xf0] %v1747
    %v1749 = vld [vmem:[%s1613 + $0x178] sm:$0x1f]
    %v1750 = vsel %vm1622, %v1500, %v1749
    %1751 = vst [vmem:[%s1613 + $0x178] sm:$0x1f] %v1750
    %v1752 = vld [vmem:[%s1613 + $0x180] sm:$0xf0]
    %v1753 = vsel %vm1616, %v1508, %v1752
    %1754 = vst [vmem:[%s1613 + $0x180] sm:$0xf0] %v1753
    %v1755 = vld [vmem:[%s1613 + $0x188] sm:$0x1f]
    %v1756 = vsel %vm1622, %v1508, %v1755
    %1757 = vst [vmem:[%s1613 + $0x188] sm:$0x1f] %v1756
    %v1758 = vld [vmem:[%s1613 + $0x190] sm:$0xf0]
    %v1759 = vsel %vm1616, %v1516, %v1758
    %1760 = vst [vmem:[%s1613 + $0x190] sm:$0xf0] %v1759
    %v1761 = vld [vmem:[%s1613 + $0x198] sm:$0x1f]
    %v1762 = vsel %vm1622, %v1516, %v1761
    %1763 = vst [vmem:[%s1613 + $0x198] sm:$0x1f] %v1762
    %v1764 = vld [vmem:[%s1613 + $0x1a0] sm:$0xf0]
    %v1765 = vsel %vm1616, %v1524, %v1764
    %1766 = vst [vmem:[%s1613 + $0x1a0] sm:$0xf0] %v1765
    %v1767 = vld [vmem:[%s1613 + $0x1a8] sm:$0x1f]
    %v1768 = vsel %vm1622, %v1524, %v1767
    %1769 = vst [vmem:[%s1613 + $0x1a8] sm:$0x1f] %v1768
    %v1770 = vld [vmem:[%s1613 + $0x1b0] sm:$0xf0]
    %v1771 = vsel %vm1616, %v1532, %v1770
    %1772 = vst [vmem:[%s1613 + $0x1b0] sm:$0xf0] %v1771
    %v1773 = vld [vmem:[%s1613 + $0x1b8] sm:$0x1f]
    %v1774 = vsel %vm1622, %v1532, %v1773
    %1775 = vst [vmem:[%s1613 + $0x1b8] sm:$0x1f] %v1774
    %v1776 = vld [vmem:[%s1613 + $0x1c0] sm:$0xf0]
    %v1777 = vsel %vm1616, %v1540, %v1776
    %1778 = vst [vmem:[%s1613 + $0x1c0] sm:$0xf0] %v1777
    %v1779 = vld [vmem:[%s1613 + $0x1c8] sm:$0x1f]
    %v1780 = vsel %vm1622, %v1540, %v1779
    %1781 = vst [vmem:[%s1613 + $0x1c8] sm:$0x1f] %v1780
    %v1782 = vld [vmem:[%s1613 + $0x1d0] sm:$0xf0]
    %v1783 = vsel %vm1616, %v1548, %v1782
    %1784 = vst [vmem:[%s1613 + $0x1d0] sm:$0xf0] %v1783
    %v1785 = vld [vmem:[%s1613 + $0x1d8] sm:$0x1f]
    %v1786 = vsel %vm1622, %v1548, %v1785
    %1787 = vst [vmem:[%s1613 + $0x1d8] sm:$0x1f] %v1786
    %v1788 = vld [vmem:[%s1613 + $0x1e0] sm:$0xf0]
    %v1789 = vsel %vm1616, %v1556, %v1788
    %1790 = vst [vmem:[%s1613 + $0x1e0] sm:$0xf0] %v1789
    %v1791 = vld [vmem:[%s1613 + $0x1e8] sm:$0x1f]
    %v1792 = vsel %vm1622, %v1556, %v1791
    %1793 = vst [vmem:[%s1613 + $0x1e8] sm:$0x1f] %v1792
    %v1794 = vld [vmem:[%s1613 + $0x1f0] sm:$0xf0]
    %v1795 = vsel %vm1616, %v1564, %v1794
    %1796 = vst [vmem:[%s1613 + $0x1f0] sm:$0xf0] %v1795
    %v1797 = vld [vmem:[%s1613 + $0x1f8] sm:$0x1f]
    %v1798 = vsel %vm1622, %v1564, %v1797
    %1799 = vst [vmem:[%s1613 + $0x1f8] sm:$0x1f] %v1798
    %v1800 = vld [vmem:[%s1613 + $0x200] sm:$0xf0]
    %v1801 = vsel %vm1616, %v1572, %v1800
    %1802 = vst [vmem:[%s1613 + $0x200] sm:$0xf0] %v1801
    %v1803 = vld [vmem:[%s1613 + $0x208] sm:$0x1f]
    %v1804 = vsel %vm1622, %v1572, %v1803
    %1805 = vst [vmem:[%s1613 + $0x208] sm:$0x1f] %v1804
    %v1806 = vld [vmem:[%s1613 + $0x210] sm:$0xf0]
    %v1807 = vsel %vm1616, %v1580, %v1806
    %1808 = vst [vmem:[%s1613 + $0x210] sm:$0xf0] %v1807
    %v1809 = vld [vmem:[%s1613 + $0x218] sm:$0x1f]
    %v1810 = vsel %vm1622, %v1580, %v1809
    %1811 = vst [vmem:[%s1613 + $0x218] sm:$0x1f] %v1810
    %1812 = vst [vmem:[#allocation4] sm:$0xf0] 0
    %1813 = vst [vmem:[#allocation4 + $0x8] sm:$0xf] 0
    %1814 = vst [vmem:[#allocation4 + $0x10] sm:$0xf0] 0
    %1815 = vst [vmem:[#allocation4 + $0x18] sm:$0xf] 0
    %1816 = vst [vmem:[#allocation4 + $0x20] sm:$0xf0] 0
    %1817 = vst [vmem:[#allocation4 + $0x28] sm:$0xf] 0
    %1818 = vst [vmem:[#allocation4 + $0x30] sm:$0xf0] 0
    %1819 = vst [vmem:[#allocation4 + $0x38] sm:$0xf] 0
    %1820 = vst [vmem:[#allocation4 + $0x40] sm:$0xf0] 0
    %1821 = vst [vmem:[#allocation4 + $0x48] sm:$0xf] 0
    %1822 = vst [vmem:[#allocation4 + $0x50] sm:$0xf0] 0
    %1823 = vst [vmem:[#allocation4 + $0x58] sm:$0xf] 0
    %1824 = vst [vmem:[#allocation4 + $0x60] sm:$0xf0] 0
    %1825 = vst [vmem:[#allocation4 + $0x68] sm:$0xf] 0
    %1826 = vst [vmem:[#allocation4 + $0x70] sm:$0xf0] 0
    %1827 = vst [vmem:[#allocation4 + $0x78] sm:$0xf] 0
    %1828 = vst [vmem:[#allocation4 + $0x80] sm:$0xf0] 0
    %1829 = vst [vmem:[#allocation4 + $0x88] sm:$0xf] 0
    %1830 = vst [vmem:[#allocation4 + $0x90] sm:$0xf0] 0
    %1831 = vst [vmem:[#allocation4 + $0x98] sm:$0xf] 0
    %1832 = vst [vmem:[#allocation4 + $0xa0] sm:$0xf0] 0
    %1833 = vst [vmem:[#allocation4 + $0xa8] sm:$0xf] 0
    %1834 = vst [vmem:[#allocation4 + $0xb0] sm:$0xf0] 0
    %1835 = vst [vmem:[#allocation4 + $0xb8] sm:$0xf] 0
    %1836 = vst [vmem:[#allocation4 + $0xc0] sm:$0xf0] 0
    %1837 = vst [vmem:[#allocation4 + $0xc8] sm:$0xf] 0
    %1838 = vst [vmem:[#allocation4 + $0xd0] sm:$0xf0] 0
    %1839 = vst [vmem:[#allocation4 + $0xd8] sm:$0xf] 0
    %1840 = vst [vmem:[#allocation4 + $0xe0] sm:$0xf0] 0
    %1841 = vst [vmem:[#allocation4 + $0xe8] sm:$0xf] 0
    %1842 = vst [vmem:[#allocation4 + $0xf0] sm:$0xf0] 0
    %1843 = vst [vmem:[#allocation4 + $0xf8] sm:$0xf] 0
    %1844 = vst [vmem:[#allocation4 + $0x100] sm:$0xf0] 0
    %1845 = vst [vmem:[#allocation4 + $0x108] sm:$0xf] 0
    %1846 = vst [vmem:[#allocation4 + $0x110] sm:$0xf0] 0
    %1847 = vst [vmem:[#allocation4 + $0x118] sm:$0xf] 0
    %1848 = vst [vmem:[#allocation4 + $0x120] sm:$0xf0] 0
    %1849 = vst [vmem:[#allocation4 + $0x128] sm:$0xf] 0
    %1850 = vst [vmem:[#allocation4 + $0x130] sm:$0xf0] 0
    %1851 = vst [vmem:[#allocation4 + $0x138] sm:$0xf] 0
    %1852 = vst [vmem:[#allocation4 + $0x140] sm:$0xf0] 0
    %1853 = vst [vmem:[#allocation4 + $0x148] sm:$0xf] 0
    %1854 = vst [vmem:[#allocation4 + $0x150] sm:$0xf0] 0
    %1855 = vst [vmem:[#allocation4 + $0x158] sm:$0xf] 0
    %1856 = vst [vmem:[#allocation4 + $0x160] sm:$0xf0] 0
    %1857 = vst [vmem:[#allocation4 + $0x168] sm:$0xf] 0
    %1858 = vst [vmem:[#allocation4 + $0x170] sm:$0xf0] 0
    %1859 = vst [vmem:[#allocation4 + $0x178] sm:$0xf] 0
    %1860 = vst [vmem:[#allocation4 + $0x180] sm:$0xf0] 0
    %1861 = vst [vmem:[#allocation4 + $0x188] sm:$0xf] 0
    %1862 = vst [vmem:[#allocation4 + $0x190] sm:$0xf0] 0
    %1863 = vst [vmem:[#allocation4 + $0x198] sm:$0xf] 0
    %1864 = vst [vmem:[#allocation4 + $0x1a0] sm:$0xf0] 0
    %1865 = vst [vmem:[#allocation4 + $0x1a8] sm:$0xf] 0
    %1866 = vst [vmem:[#allocation4 + $0x1b0] sm:$0xf0] 0
    %1867 = vst [vmem:[#allocation4 + $0x1b8] sm:$0xf] 0
    %1868 = vst [vmem:[#allocation4 + $0x1c0] sm:$0xf0] 0
    %1869 = vst [vmem:[#allocation4 + $0x1c8] sm:$0xf] 0
    %1870 = vst [vmem:[#allocation4 + $0x1d0] sm:$0xf0] 0
    %1871 = vst [vmem:[#allocation4 + $0x1d8] sm:$0xf] 0
    %1872 = vst [vmem:[#allocation4 + $0x1e0] sm:$0xf0] 0
    %1873 = vst [vmem:[#allocation4 + $0x1e8] sm:$0xf] 0
    %1874 = vst [vmem:[#allocation4 + $0x1f0] sm:$0xf0] 0
    %1875 = vst [vmem:[#allocation4 + $0x1f8] sm:$0xf] 0
    %1876 = vst [vmem:[#allocation4 + $0x200] sm:$0xf0] 0
    %1877 = vst [vmem:[#allocation4 + $0x208] sm:$0xf] 0
    %1878 = vst [vmem:[#allocation4 + $0x210] sm:$0xf0] 0
    %1879 = vst [vmem:[#allocation4 + $0x218] sm:$0xf] 0
    %1880 = vst [vmem:[#allocation4 + $0x220] sm:$0xf0] 0
    %1881 = vst [vmem:[#allocation4 + $0x228] sm:$0xf] 0
    %1882 = vst [vmem:[#allocation4 + $0x230] sm:$0xf0] 0
    %1883 = vst [vmem:[#allocation4 + $0x238] sm:$0xf] 0
    %v1916 = vrot.slane %v1221, 4
    %v1917 = vrot.slane %v1222, 4
    %v1918 = vrot.slane %v1223, 4
    %v1919 = vrot.slane %v1224, 4
    %v1920 = vrot.slane %v1225, 4
    %v1921 = vrot.slane %v1226, 4
    %v1922 = vrot.slane %v1227, 4
    %v1923 = vrot.slane %v1228, 4
    %v1924 = vrot.slane %v1229, 4
    %v1925 = vrot.slane %v1230, 4
    %v1926 = vrot.slane %v1231, 4
    %v1927 = vrot.slane %v1232, 4
    %v1928 = vrot.slane %v1233, 4
    %v1929 = vrot.slane %v1234, 4
    %v1930 = vrot.slane %v1235, 4
    %v1931 = vrot.slane %v1236, 4
    %v1932 = vrot.slane %v1237, 4
    %v1933 = vrot.slane %v1238, 4
    %v1934 = vrot.slane %v1239, 4
    %v1935 = vrot.slane %v1240, 4
    %v1936 = vrot.slane %v1241, 4
    %v1937 = vrot.slane %v1242, 4
    %v1938 = vrot.slane %v1243, 4
    %v1939 = vrot.slane %v1244, 4
    %v1940 = vrot.slane %v1245, 4
    %v1941 = vrot.slane %v1246, 4
    %v1942 = vrot.slane %v1247, 4
    %v1943 = vrot.slane %v1248, 4
    %v1944 = vrot.slane %v1249, 4
    %v1945 = vrot.slane %v1250, 4
    %v1946 = vrot.slane %v1251, 4
    %v1947 = vrot.slane %v1252, 4
    %s1980 = scalar_lea.vmem [#allocation4], 16
    %1981 = vst [vmem:[%s1980] sm:$0xf0] %v1916
    %1982 = vst [vmem:[%s1980 + $0x8] sm:$0xf] %v1916
    %1983 = vst [vmem:[%s1980 + $0x10] sm:$0xf0] %v1917
    %1984 = vst [vmem:[%s1980 + $0x18] sm:$0xf] %v1917
    %1985 = vst [vmem:[%s1980 + $0x20] sm:$0xf0] %v1918
    %1986 = vst [vmem:[%s1980 + $0x28] sm:$0xf] %v1918
    %1987 = vst [vmem:[%s1980 + $0x30] sm:$0xf0] %v1919
    %1988 = vst [vmem:[%s1980 + $0x38] sm:$0xf] %v1919
    %1989 = vst [vmem:[%s1980 + $0x40] sm:$0xf0] %v1920
    %1990 = vst [vmem:[%s1980 + $0x48] sm:$0xf] %v1920
    %1991 = vst [vmem:[%s1980 + $0x50] sm:$0xf0] %v1921
    %1992 = vst [vmem:[%s1980 + $0x58] sm:$0xf] %v1921
    %1993 = vst [vmem:[%s1980 + $0x60] sm:$0xf0] %v1922
    %1994 = vst [vmem:[%s1980 + $0x68] sm:$0xf] %v1922
    %1995 = vst [vmem:[%s1980 + $0x70] sm:$0xf0] %v1923
    %1996 = vst [vmem:[%s1980 + $0x78] sm:$0xf] %v1923
    %1997 = vst [vmem:[%s1980 + $0x80] sm:$0xf0] %v1924
    %1998 = vst [vmem:[%s1980 + $0x88] sm:$0xf] %v1924
    %1999 = vst [vmem:[%s1980 + $0x90] sm:$0xf0] %v1925
    %2000 = vst [vmem:[%s1980 + $0x98] sm:$0xf] %v1925
    %2001 = vst [vmem:[%s1980 + $0xa0] sm:$0xf0] %v1926
    %2002 = vst [vmem:[%s1980 + $0xa8] sm:$0xf] %v1926
    %2003 = vst [vmem:[%s1980 + $0xb0] sm:$0xf0] %v1927
    %2004 = vst [vmem:[%s1980 + $0xb8] sm:$0xf] %v1927
    %2005 = vst [vmem:[%s1980 + $0xc0] sm:$0xf0] %v1928
    %2006 = vst [vmem:[%s1980 + $0xc8] sm:$0xf] %v1928
    %2007 = vst [vmem:[%s1980 + $0xd0] sm:$0xf0] %v1929
    %2008 = vst [vmem:[%s1980 + $0xd8] sm:$0xf] %v1929
    %2009 = vst [vmem:[%s1980 + $0xe0] sm:$0xf0] %v1930
    %2010 = vst [vmem:[%s1980 + $0xe8] sm:$0xf] %v1930
    %2011 = vst [vmem:[%s1980 + $0xf0] sm:$0xf0] %v1931
    %2012 = vst [vmem:[%s1980 + $0xf8] sm:$0xf] %v1931
    %2013 = vst [vmem:[%s1980 + $0x120] sm:$0xf0] %v1932
    %2014 = vst [vmem:[%s1980 + $0x128] sm:$0xf] %v1932
    %2015 = vst [vmem:[%s1980 + $0x130] sm:$0xf0] %v1933
    %2016 = vst [vmem:[%s1980 + $0x138] sm:$0xf] %v1933
    %2017 = vst [vmem:[%s1980 + $0x140] sm:$0xf0] %v1934
    %2018 = vst [vmem:[%s1980 + $0x148] sm:$0xf] %v1934
    %2019 = vst [vmem:[%s1980 + $0x150] sm:$0xf0] %v1935
    %2020 = vst [vmem:[%s1980 + $0x158] sm:$0xf] %v1935
    %2021 = vst [vmem:[%s1980 + $0x160] sm:$0xf0] %v1936
    %2022 = vst [vmem:[%s1980 + $0x168] sm:$0xf] %v1936
    %2023 = vst [vmem:[%s1980 + $0x170] sm:$0xf0] %v1937
    %2024 = vst [vmem:[%s1980 + $0x178] sm:$0xf] %v1937
    %2025 = vst [vmem:[%s1980 + $0x180] sm:$0xf0] %v1938
    %2026 = vst [vmem:[%s1980 + $0x188] sm:$0xf] %v1938
    %2027 = vst [vmem:[%s1980 + $0x190] sm:$0xf0] %v1939
    %2028 = vst [vmem:[%s1980 + $0x198] sm:$0xf] %v1939
    %2029 = vst [vmem:[%s1980 + $0x1a0] sm:$0xf0] %v1940
    %2030 = vst [vmem:[%s1980 + $0x1a8] sm:$0xf] %v1940
    %2031 = vst [vmem:[%s1980 + $0x1b0] sm:$0xf0] %v1941
    %2032 = vst [vmem:[%s1980 + $0x1b8] sm:$0xf] %v1941
    %2033 = vst [vmem:[%s1980 + $0x1c0] sm:$0xf0] %v1942
    %2034 = vst [vmem:[%s1980 + $0x1c8] sm:$0xf] %v1942
    %2035 = vst [vmem:[%s1980 + $0x1d0] sm:$0xf0] %v1943
    %2036 = vst [vmem:[%s1980 + $0x1d8] sm:$0xf] %v1943
    %2037 = vst [vmem:[%s1980 + $0x1e0] sm:$0xf0] %v1944
    %2038 = vst [vmem:[%s1980 + $0x1e8] sm:$0xf] %v1944
    %2039 = vst [vmem:[%s1980 + $0x1f0] sm:$0xf0] %v1945
    %2040 = vst [vmem:[%s1980 + $0x1f8] sm:$0xf] %v1945
    %2041 = vst [vmem:[%s1980 + $0x200] sm:$0xf0] %v1946
    %2042 = vst [vmem:[%s1980 + $0x208] sm:$0xf] %v1946
    %2043 = vst [vmem:[%s1980 + $0x210] sm:$0xf0] %v1947
    %2044 = vst [vmem:[%s1980 + $0x218] sm:$0xf] %v1947
    %2045 = vst [vmem:[#allocation5] sm:$0xf0] 0
    %2046 = vst [vmem:[#allocation5 + $0x8] sm:$0xf] 0
    %2047 = vst [vmem:[#allocation5 + $0x10] sm:$0xf0] 0
    %2048 = vst [vmem:[#allocation5 + $0x18] sm:$0xf] 0
    %2049 = vst [vmem:[#allocation5 + $0x20] sm:$0xf0] 0
    %2050 = vst [vmem:[#allocation5 + $0x28] sm:$0xf] 0
    %2051 = vst [vmem:[#allocation5 + $0x30] sm:$0xf0] 0
    %2052 = vst [vmem:[#allocation5 + $0x38] sm:$0xf] 0
    %2053 = vst [vmem:[#allocation5 + $0x40] sm:$0xf0] 0
    %2054 = vst [vmem:[#allocation5 + $0x48] sm:$0xf] 0
    %2055 = vst [vmem:[#allocation5 + $0x50] sm:$0xf0] 0
    %2056 = vst [vmem:[#allocation5 + $0x58] sm:$0xf] 0
    %2057 = vst [vmem:[#allocation5 + $0x60] sm:$0xf0] 0
    %2058 = vst [vmem:[#allocation5 + $0x68] sm:$0xf] 0
    %2059 = vst [vmem:[#allocation5 + $0x70] sm:$0xf0] 0
    %2060 = vst [vmem:[#allocation5 + $0x78] sm:$0xf] 0
    %2061 = vst [vmem:[#allocation5 + $0x80] sm:$0xf0] 0
    %2062 = vst [vmem:[#allocation5 + $0x88] sm:$0xf] 0
    %2063 = vst [vmem:[#allocation5 + $0x90] sm:$0xf0] 0
    %2064 = vst [vmem:[#allocation5 + $0x98] sm:$0xf] 0
    %2065 = vst [vmem:[#allocation5 + $0xa0] sm:$0xf0] 0
    %2066 = vst [vmem:[#allocation5 + $0xa8] sm:$0xf] 0
    %2067 = vst [vmem:[#allocation5 + $0xb0] sm:$0xf0] 0
    %2068 = vst [vmem:[#allocation5 + $0xb8] sm:$0xf] 0
    %2069 = vst [vmem:[#allocation5 + $0xc0] sm:$0xf0] 0
    %2070 = vst [vmem:[#allocation5 + $0xc8] sm:$0xf] 0
    %2071 = vst [vmem:[#allocation5 + $0xd0] sm:$0xf0] 0
    %2072 = vst [vmem:[#allocation5 + $0xd8] sm:$0xf] 0
    %2073 = vst [vmem:[#allocation5 + $0xe0] sm:$0xf0] 0
    %2074 = vst [vmem:[#allocation5 + $0xe8] sm:$0xf] 0
    %2075 = vst [vmem:[#allocation5 + $0xf0] sm:$0xf0] 0
    %2076 = vst [vmem:[#allocation5 + $0xf8] sm:$0xf] 0
    %2077 = vst [vmem:[#allocation5 + $0x100] sm:$0xf0] 0
    %2078 = vst [vmem:[#allocation5 + $0x108] sm:$0xf] 0
    %2079 = vst [vmem:[#allocation5 + $0x110] sm:$0xf0] 0
    %2080 = vst [vmem:[#allocation5 + $0x118] sm:$0xf] 0
    %2081 = vst [vmem:[#allocation5 + $0x120] sm:$0xf0] 0
    %2082 = vst [vmem:[#allocation5 + $0x128] sm:$0xf] 0
    %2083 = vst [vmem:[#allocation5 + $0x130] sm:$0xf0] 0
    %2084 = vst [vmem:[#allocation5 + $0x138] sm:$0xf] 0
    %2085 = vst [vmem:[#allocation5 + $0x140] sm:$0xf0] 0
    %2086 = vst [vmem:[#allocation5 + $0x148] sm:$0xf] 0
    %2087 = vst [vmem:[#allocation5 + $0x150] sm:$0xf0] 0
    %2088 = vst [vmem:[#allocation5 + $0x158] sm:$0xf] 0
    %2089 = vst [vmem:[#allocation5 + $0x160] sm:$0xf0] 0
    %2090 = vst [vmem:[#allocation5 + $0x168] sm:$0xf] 0
    %2091 = vst [vmem:[#allocation5 + $0x170] sm:$0xf0] 0
    %2092 = vst [vmem:[#allocation5 + $0x178] sm:$0xf] 0
    %2093 = vst [vmem:[#allocation5 + $0x180] sm:$0xf0] 0
    %2094 = vst [vmem:[#allocation5 + $0x188] sm:$0xf] 0
    %2095 = vst [vmem:[#allocation5 + $0x190] sm:$0xf0] 0
    %2096 = vst [vmem:[#allocation5 + $0x198] sm:$0xf] 0
    %2097 = vst [vmem:[#allocation5 + $0x1a0] sm:$0xf0] 0
    %2098 = vst [vmem:[#allocation5 + $0x1a8] sm:$0xf] 0
    %2099 = vst [vmem:[#allocation5 + $0x1b0] sm:$0xf0] 0
    %2100 = vst [vmem:[#allocation5 + $0x1b8] sm:$0xf] 0
    %2101 = vst [vmem:[#allocation5 + $0x1c0] sm:$0xf0] 0
    %2102 = vst [vmem:[#allocation5 + $0x1c8] sm:$0xf] 0
    %2103 = vst [vmem:[#allocation5 + $0x1d0] sm:$0xf0] 0
    %2104 = vst [vmem:[#allocation5 + $0x1d8] sm:$0xf] 0
    %2105 = vst [vmem:[#allocation5 + $0x1e0] sm:$0xf0] 0
    %2106 = vst [vmem:[#allocation5 + $0x1e8] sm:$0xf] 0
    %2107 = vst [vmem:[#allocation5 + $0x1f0] sm:$0xf0] 0
    %2108 = vst [vmem:[#allocation5 + $0x1f8] sm:$0xf] 0
    %2109 = vst [vmem:[#allocation5 + $0x200] sm:$0xf0] 0
    %2110 = vst [vmem:[#allocation5 + $0x208] sm:$0xf] 0
    %2111 = vst [vmem:[#allocation5 + $0x210] sm:$0xf0] 0
    %2112 = vst [vmem:[#allocation5 + $0x218] sm:$0xf] 0
    %2113 = vst [vmem:[#allocation5 + $0x220] sm:$0xf0] 0
    %2114 = vst [vmem:[#allocation5 + $0x228] sm:$0xf] 0
    %2115 = vst [vmem:[#allocation5 + $0x230] sm:$0xf0] 0
    %2116 = vst [vmem:[#allocation5 + $0x238] sm:$0xf] 0
    %v2117 = vrot.slane %v1326, 4
    %v2118 = vrot.slane %v1329, 5
    %v2119 = vor.u32 %v2117, %v2118
    %v2120 = vrot.slane %v1334, 4
    %v2121 = vrot.slane %v1337, 5
    %v2122 = vor.u32 %v2120, %v2121
    %v2123 = vrot.slane %v1342, 4
    %v2124 = vrot.slane %v1345, 5
    %v2125 = vor.u32 %v2123, %v2124
    %v2126 = vrot.slane %v1350, 4
    %v2127 = vrot.slane %v1353, 5
    %v2128 = vor.u32 %v2126, %v2127
    %v2129 = vrot.slane %v1358, 4
    %v2130 = vrot.slane %v1361, 5
    %v2131 = vor.u32 %v2129, %v2130
    %v2132 = vrot.slane %v1366, 4
    %v2133 = vrot.slane %v1369, 5
    %v2134 = vor.u32 %v2132, %v2133
    %v2135 = vrot.slane %v1374, 4
    %v2136 = vrot.slane %v1377, 5
    %v2137 = vor.u32 %v2135, %v2136
    %v2138 = vrot.slane %v1382, 4
    %v2139 = vrot.slane %v1385, 5
    %v2140 = vor.u32 %v2138, %v2139
    %v2141 = vrot.slane %v1390, 4
    %v2142 = vrot.slane %v1393, 5
    %v2143 = vor.u32 %v2141, %v2142
    %v2144 = vrot.slane %v1398, 4
    %v2145 = vrot.slane %v1401, 5
    %v2146 = vor.u32 %v2144, %v2145
    %v2147 = vrot.slane %v1406, 4
    %v2148 = vrot.slane %v1409, 5
    %v2149 = vor.u32 %v2147, %v2148
    %v2150 = vrot.slane %v1414, 4
    %v2151 = vrot.slane %v1417, 5
    %v2152 = vor.u32 %v2150, %v2151
    %v2153 = vrot.slane %v1422, 4
    %v2154 = vrot.slane %v1425, 5
    %v2155 = vor.u32 %v2153, %v2154
    %v2156 = vrot.slane %v1430, 4
    %v2157 = vrot.slane %v1433, 5
    %v2158 = vor.u32 %v2156, %v2157
    %v2159 = vrot.slane %v1438, 4
    %v2160 = vrot.slane %v1441, 5
    %v2161 = vor.u32 %v2159, %v2160
    %v2162 = vrot.slane %v1446, 4
    %v2163 = vrot.slane %v1449, 5
    %v2164 = vor.u32 %v2162, %v2163
    %v2165 = vrot.slane %v1454, 4
    %v2166 = vrot.slane %v1457, 5
    %v2167 = vor.u32 %v2165, %v2166
    %v2168 = vrot.slane %v1462, 4
    %v2169 = vrot.slane %v1465, 5
    %v2170 = vor.u32 %v2168, %v2169
    %v2171 = vrot.slane %v1470, 4
    %v2172 = vrot.slane %v1473, 5
    %v2173 = vor.u32 %v2171, %v2172
    %v2174 = vrot.slane %v1478, 4
    %v2175 = vrot.slane %v1481, 5
    %v2176 = vor.u32 %v2174, %v2175
    %v2177 = vrot.slane %v1486, 4
    %v2178 = vrot.slane %v1489, 5
    %v2179 = vor.u32 %v2177, %v2178
    %v2180 = vrot.slane %v1494, 4
    %v2181 = vrot.slane %v1497, 5
    %v2182 = vor.u32 %v2180, %v2181
    %v2183 = vrot.slane %v1502, 4
    %v2184 = vrot.slane %v1505, 5
    %v2185 = vor.u32 %v2183, %v2184
    %v2186 = vrot.slane %v1510, 4
    %v2187 = vrot.slane %v1513, 5
    %v2188 = vor.u32 %v2186, %v2187
    %v2189 = vrot.slane %v1518, 4
    %v2190 = vrot.slane %v1521, 5
    %v2191 = vor.u32 %v2189, %v2190
    %v2192 = vrot.slane %v1526, 4
    %v2193 = vrot.slane %v1529, 5
    %v2194 = vor.u32 %v2192, %v2193
    %v2195 = vrot.slane %v1534, 4
    %v2196 = vrot.slane %v1537, 5
    %v2197 = vor.u32 %v2195, %v2196
    %v2198 = vrot.slane %v1542, 4
    %v2199 = vrot.slane %v1545, 5
    %v2200 = vor.u32 %v2198, %v2199
    %v2201 = vrot.slane %v1550, 4
    %v2202 = vrot.slane %v1553, 5
    %v2203 = vor.u32 %v2201, %v2202
    %v2204 = vrot.slane %v1558, 4
    %v2205 = vrot.slane %v1561, 5
    %v2206 = vor.u32 %v2204, %v2205
    %v2207 = vrot.slane %v1566, 4
    %v2208 = vrot.slane %v1569, 5
    %v2209 = vor.u32 %v2207, %v2208
    %v2210 = vrot.slane %v1574, 4
    %v2211 = vrot.slane %v1577, 5
    %v2212 = vor.u32 %v2210, %v2211
    %s2245 = scalar_lea.vmem [#allocation5], 16
    %vm2246 = vcmask 1047555
    %vm2247 = vsmask.f32 7950
    %vm2248 = vmand %vm2246, %vm2247
    %v2249 = vld [vmem:[%s2245] sm:$0xf8]
    %v2250 = vsel %vm2248, %v2119, %v2249
    %2251 = vst [vmem:[%s2245] sm:$0xf8] %v2250
    %vm2252 = vcmask 1043456
    %vm2253 = vsmask.f32 3328
    %vm2254 = vmand %vm2252, %vm2253
    %v2255 = vld [vmem:[%s2245 + $0x8] sm:$0xf]
    %v2256 = vsel %vm2254, %v2119, %v2255
    %2257 = vst [vmem:[%s2245 + $0x8] sm:$0xf] %v2256
    %v2258 = vld [vmem:[%s2245 + $0x10] sm:$0xf8]
    %v2259 = vsel %vm2248, %v2122, %v2258
    %2260 = vst [vmem:[%s2245 + $0x10] sm:$0xf8] %v2259
    %v2261 = vld [vmem:[%s2245 + $0x18] sm:$0xf]
    %v2262 = vsel %vm2254, %v2122, %v2261
    %2263 = vst [vmem:[%s2245 + $0x18] sm:$0xf] %v2262
    %v2264 = vld [vmem:[%s2245 + $0x20] sm:$0xf8]
    %v2265 = vsel %vm2248, %v2125, %v2264
    %2266 = vst [vmem:[%s2245 + $0x20] sm:$0xf8] %v2265
    %v2267 = vld [vmem:[%s2245 + $0x28] sm:$0xf]
    %v2268 = vsel %vm2254, %v2125, %v2267
    %2269 = vst [vmem:[%s2245 + $0x28] sm:$0xf] %v2268
    %v2270 = vld [vmem:[%s2245 + $0x30] sm:$0xf8]
    %v2271 = vsel %vm2248, %v2128, %v2270
    %2272 = vst [vmem:[%s2245 + $0x30] sm:$0xf8] %v2271
    %v2273 = vld [vmem:[%s2245 + $0x38] sm:$0xf]
    %v2274 = vsel %vm2254, %v2128, %v2273
    %2275 = vst [vmem:[%s2245 + $0x38] sm:$0xf] %v2274
    %v2276 = vld [vmem:[%s2245 + $0x40] sm:$0xf8]
    %v2277 = vsel %vm2248, %v2131, %v2276
    %2278 = vst [vmem:[%s2245 + $0x40] sm:$0xf8] %v2277
    %v2279 = vld [vmem:[%s2245 + $0x48] sm:$0xf]
    %v2280 = vsel %vm2254, %v2131, %v2279
    %2281 = vst [vmem:[%s2245 + $0x48] sm:$0xf] %v2280
    %v2282 = vld [vmem:[%s2245 + $0x50] sm:$0xf8]
    %v2283 = vsel %vm2248, %v2134, %v2282
    %2284 = vst [vmem:[%s2245 + $0x50] sm:$0xf8] %v2283
    %v2285 = vld [vmem:[%s2245 + $0x58] sm:$0xf]
    %v2286 = vsel %vm2254, %v2134, %v2285
    %2287 = vst [vmem:[%s2245 + $0x58] sm:$0xf] %v2286
    %v2288 = vld [vmem:[%s2245 + $0x60] sm:$0xf8]
    %v2289 = vsel %vm2248, %v2137, %v2288
    %2290 = vst [vmem:[%s2245 + $0x60] sm:$0xf8] %v2289
    %v2291 = vld [vmem:[%s2245 + $0x68] sm:$0xf]
    %v2292 = vsel %vm2254, %v2137, %v2291
    %2293 = vst [vmem:[%s2245 + $0x68] sm:$0xf] %v2292
    %v2294 = vld [vmem:[%s2245 + $0x70] sm:$0xf8]
    %v2295 = vsel %vm2248, %v2140, %v2294
    %2296 = vst [vmem:[%s2245 + $0x70] sm:$0xf8] %v2295
    %v2297 = vld [vmem:[%s2245 + $0x78] sm:$0xf]
    %v2298 = vsel %vm2254, %v2140, %v2297
    %2299 = vst [vmem:[%s2245 + $0x78] sm:$0xf] %v2298
    %v2300 = vld [vmem:[%s2245 + $0x80] sm:$0xf8]
    %v2301 = vsel %vm2248, %v2143, %v2300
    %2302 = vst [vmem:[%s2245 + $0x80] sm:$0xf8] %v2301
    %v2303 = vld [vmem:[%s2245 + $0x88] sm:$0xf]
    %v2304 = vsel %vm2254, %v2143, %v2303
    %2305 = vst [vmem:[%s2245 + $0x88] sm:$0xf] %v2304
    %v2306 = vld [vmem:[%s2245 + $0x90] sm:$0xf8]
    %v2307 = vsel %vm2248, %v2146, %v2306
    %2308 = vst [vmem:[%s2245 + $0x90] sm:$0xf8] %v2307
    %v2309 = vld [vmem:[%s2245 + $0x98] sm:$0xf]
    %v2310 = vsel %vm2254, %v2146, %v2309
    %2311 = vst [vmem:[%s2245 + $0x98] sm:$0xf] %v2310
    %v2312 = vld [vmem:[%s2245 + $0xa0] sm:$0xf8]
    %v2313 = vsel %vm2248, %v2149, %v2312
    %2314 = vst [vmem:[%s2245 + $0xa0] sm:$0xf8] %v2313
    %v2315 = vld [vmem:[%s2245 + $0xa8] sm:$0xf]
    %v2316 = vsel %vm2254, %v2149, %v2315
    %2317 = vst [vmem:[%s2245 + $0xa8] sm:$0xf] %v2316
    %v2318 = vld [vmem:[%s2245 + $0xb0] sm:$0xf8]
    %v2319 = vsel %vm2248, %v2152, %v2318
    %2320 = vst [vmem:[%s2245 + $0xb0] sm:$0xf8] %v2319
    %v2321 = vld [vmem:[%s2245 + $0xb8] sm:$0xf]
    %v2322 = vsel %vm2254, %v2152, %v2321
    %2323 = vst [vmem:[%s2245 + $0xb8] sm:$0xf] %v2322
    %v2324 = vld [vmem:[%s2245 + $0xc0] sm:$0xf8]
    %v2325 = vsel %vm2248, %v2155, %v2324
    %2326 = vst [vmem:[%s2245 + $0xc0] sm:$0xf8] %v2325
    %v2327 = vld [vmem:[%s2245 + $0xc8] sm:$0xf]
    %v2328 = vsel %vm2254, %v2155, %v2327
    %2329 = vst [vmem:[%s2245 + $0xc8] sm:$0xf] %v2328
    %v2330 = vld [vmem:[%s2245 + $0xd0] sm:$0xf8]
    %v2331 = vsel %vm2248, %v2158, %v2330
    %2332 = vst [vmem:[%s2245 + $0xd0] sm:$0xf8] %v2331
    %v2333 = vld [vmem:[%s2245 + $0xd8] sm:$0xf]
    %v2334 = vsel %vm2254, %v2158, %v2333
    %2335 = vst [vmem:[%s2245 + $0xd8] sm:$0xf] %v2334
    %v2336 = vld [vmem:[%s2245 + $0xe0] sm:$0xf8]
    %v2337 = vsel %vm2248, %v2161, %v2336
    %2338 = vst [vmem:[%s2245 + $0xe0] sm:$0xf8] %v2337
    %v2339 = vld [vmem:[%s2245 + $0xe8] sm:$0xf]
    %v2340 = vsel %vm2254, %v2161, %v2339
    %2341 = vst [vmem:[%s2245 + $0xe8] sm:$0xf] %v2340
    %v2342 = vld [vmem:[%s2245 + $0xf0] sm:$0xf8]
    %v2343 = vsel %vm2248, %v2164, %v2342
    %2344 = vst [vmem:[%s2245 + $0xf0] sm:$0xf8] %v2343
    %v2345 = vld [vmem:[%s2245 + $0xf8] sm:$0xf]
    %v2346 = vsel %vm2254, %v2164, %v2345
    %2347 = vst [vmem:[%s2245 + $0xf8] sm:$0xf] %v2346
    %v2348 = vld [vmem:[%s2245 + $0x120] sm:$0xf8]
    %v2349 = vsel %vm2248, %v2167, %v2348
    %2350 = vst [vmem:[%s2245 + $0x120] sm:$0xf8] %v2349
    %v2351 = vld [vmem:[%s2245 + $0x128] sm:$0xf]
    %v2352 = vsel %vm2254, %v2167, %v2351
    %2353 = vst [vmem:[%s2245 + $0x128] sm:$0xf] %v2352
    %v2354 = vld [vmem:[%s2245 + $0x130] sm:$0xf8]
    %v2355 = vsel %vm2248, %v2170, %v2354
    %2356 = vst [vmem:[%s2245 + $0x130] sm:$0xf8] %v2355
    %v2357 = vld [vmem:[%s2245 + $0x138] sm:$0xf]
    %v2358 = vsel %vm2254, %v2170, %v2357
    %2359 = vst [vmem:[%s2245 + $0x138] sm:$0xf] %v2358
    %v2360 = vld [vmem:[%s2245 + $0x140] sm:$0xf8]
    %v2361 = vsel %vm2248, %v2173, %v2360
    %2362 = vst [vmem:[%s2245 + $0x140] sm:$0xf8] %v2361
    %v2363 = vld [vmem:[%s2245 + $0x148] sm:$0xf]
    %v2364 = vsel %vm2254, %v2173, %v2363
    %2365 = vst [vmem:[%s2245 + $0x148] sm:$0xf] %v2364
    %v2366 = vld [vmem:[%s2245 + $0x150] sm:$0xf8]
    %v2367 = vsel %vm2248, %v2176, %v2366
    %2368 = vst [vmem:[%s2245 + $0x150] sm:$0xf8] %v2367
    %v2369 = vld [vmem:[%s2245 + $0x158] sm:$0xf]
    %v2370 = vsel %vm2254, %v2176, %v2369
    %2371 = vst [vmem:[%s2245 + $0x158] sm:$0xf] %v2370
    %v2372 = vld [vmem:[%s2245 + $0x160] sm:$0xf8]
    %v2373 = vsel %vm2248, %v2179, %v2372
    %2374 = vst [vmem:[%s2245 + $0x160] sm:$0xf8] %v2373
    %v2375 = vld [vmem:[%s2245 + $0x168] sm:$0xf]
    %v2376 = vsel %vm2254, %v2179, %v2375
    %2377 = vst [vmem:[%s2245 + $0x168] sm:$0xf] %v2376
    %v2378 = vld [vmem:[%s2245 + $0x170] sm:$0xf8]
    %v2379 = vsel %vm2248, %v2182, %v2378
    %2380 = vst [vmem:[%s2245 + $0x170] sm:$0xf8] %v2379
    %v2381 = vld [vmem:[%s2245 + $0x178] sm:$0xf]
    %v2382 = vsel %vm2254, %v2182, %v2381
    %2383 = vst [vmem:[%s2245 + $0x178] sm:$0xf] %v2382
    %v2384 = vld [vmem:[%s2245 + $0x180] sm:$0xf8]
    %v2385 = vsel %vm2248, %v2185, %v2384
    %2386 = vst [vmem:[%s2245 + $0x180] sm:$0xf8] %v2385
    %v2387 = vld [vmem:[%s2245 + $0x188] sm:$0xf]
    %v2388 = vsel %vm2254, %v2185, %v2387
    %2389 = vst [vmem:[%s2245 + $0x188] sm:$0xf] %v2388
    %v2390 = vld [vmem:[%s2245 + $0x190] sm:$0xf8]
    %v2391 = vsel %vm2248, %v2188, %v2390
    %2392 = vst [vmem:[%s2245 + $0x190] sm:$0xf8] %v2391
    %v2393 = vld [vmem:[%s2245 + $0x198] sm:$0xf]
    %v2394 = vsel %vm2254, %v2188, %v2393
    %2395 = vst [vmem:[%s2245 + $0x198] sm:$0xf] %v2394
    %v2396 = vld [vmem:[%s2245 + $0x1a0] sm:$0xf8]
    %v2397 = vsel %vm2248, %v2191, %v2396
    %2398 = vst [vmem:[%s2245 + $0x1a0] sm:$0xf8] %v2397
    %v2399 = vld [vmem:[%s2245 + $0x1a8] sm:$0xf]
    %v2400 = vsel %vm2254, %v2191, %v2399
    %2401 = vst [vmem:[%s2245 + $0x1a8] sm:$0xf] %v2400
    %v2402 = vld [vmem:[%s2245 + $0x1b0] sm:$0xf8]
    %v2403 = vsel %vm2248, %v2194, %v2402
    %2404 = vst [vmem:[%s2245 + $0x1b0] sm:$0xf8] %v2403
    %v2405 = vld [vmem:[%s2245 + $0x1b8] sm:$0xf]
    %v2406 = vsel %vm2254, %v2194, %v2405
    %2407 = vst [vmem:[%s2245 + $0x1b8] sm:$0xf] %v2406
    %v2408 = vld [vmem:[%s2245 + $0x1c0] sm:$0xf8]
    %v2409 = vsel %vm2248, %v2197, %v2408
    %2410 = vst [vmem:[%s2245 + $0x1c0] sm:$0xf8] %v2409
    %v2411 = vld [vmem:[%s2245 + $0x1c8] sm:$0xf]
    %v2412 = vsel %vm2254, %v2197, %v2411
    %2413 = vst [vmem:[%s2245 + $0x1c8] sm:$0xf] %v2412
    %v2414 = vld [vmem:[%s2245 + $0x1d0] sm:$0xf8]
    %v2415 = vsel %vm2248, %v2200, %v2414
    %2416 = vst [vmem:[%s2245 + $0x1d0] sm:$0xf8] %v2415
    %v2417 = vld [vmem:[%s2245 + $0x1d8] sm:$0xf]
    %v2418 = vsel %vm2254, %v2200, %v2417
    %2419 = vst [vmem:[%s2245 + $0x1d8] sm:$0xf] %v2418
    %v2420 = vld [vmem:[%s2245 + $0x1e0] sm:$0xf8]
    %v2421 = vsel %vm2248, %v2203, %v2420
    %2422 = vst [vmem:[%s2245 + $0x1e0] sm:$0xf8] %v2421
    %v2423 = vld [vmem:[%s2245 + $0x1e8] sm:$0xf]
    %v2424 = vsel %vm2254, %v2203, %v2423
    %2425 = vst [vmem:[%s2245 + $0x1e8] sm:$0xf] %v2424
    %v2426 = vld [vmem:[%s2245 + $0x1f0] sm:$0xf8]
    %v2427 = vsel %vm2248, %v2206, %v2426
    %2428 = vst [vmem:[%s2245 + $0x1f0] sm:$0xf8] %v2427
    %v2429 = vld [vmem:[%s2245 + $0x1f8] sm:$0xf]
    %v2430 = vsel %vm2254, %v2206, %v2429
    %2431 = vst [vmem:[%s2245 + $0x1f8] sm:$0xf] %v2430
    %v2432 = vld [vmem:[%s2245 + $0x200] sm:$0xf8]
    %v2433 = vsel %vm2248, %v2209, %v2432
    %2434 = vst [vmem:[%s2245 + $0x200] sm:$0xf8] %v2433
    %v2435 = vld [vmem:[%s2245 + $0x208] sm:$0xf]
    %v2436 = vsel %vm2254, %v2209, %v2435
    %2437 = vst [vmem:[%s2245 + $0x208] sm:$0xf] %v2436
    %v2438 = vld [vmem:[%s2245 + $0x210] sm:$0xf8]
    %v2439 = vsel %vm2248, %v2212, %v2438
    %2440 = vst [vmem:[%s2245 + $0x210] sm:$0xf8] %v2439
    %v2441 = vld [vmem:[%s2245 + $0x218] sm:$0xf]
    %v2442 = vsel %vm2254, %v2212, %v2441
    %2443 = vst [vmem:[%s2245 + $0x218] sm:$0xf] %v2442
    %v2444 = vld [vmem:[#allocation3] sm:$0xf0]
    %v2445 = vld [vmem:[#allocation3 + $0x8] sm:$0xf]
    %v2446 = vld [vmem:[#allocation3 + $0x10] sm:$0xf0]
    %v2447 = vld [vmem:[#allocation3 + $0x18] sm:$0xf]
    %v2448 = vld [vmem:[#allocation3 + $0x20] sm:$0xf0]
    %v2449 = vld [vmem:[#allocation3 + $0x28] sm:$0xf]
    %v2450 = vld [vmem:[#allocation3 + $0x30] sm:$0xf0]
    %v2451 = vld [vmem:[#allocation3 + $0x38] sm:$0xf]
    %v2452 = vld [vmem:[#allocation3 + $0x40] sm:$0xf0]
    %v2453 = vld [vmem:[#allocation3 + $0x48] sm:$0xf]
    %v2454 = vld [vmem:[#allocation3 + $0x50] sm:$0xf0]
    %v2455 = vld [vmem:[#allocation3 + $0x58] sm:$0xf]
    %v2456 = vld [vmem:[#allocation3 + $0x60] sm:$0xf0]
    %v2457 = vld [vmem:[#allocation3 + $0x68] sm:$0xf]
    %v2458 = vld [vmem:[#allocation3 + $0x70] sm:$0xf0]
    %v2459 = vld [vmem:[#allocation3 + $0x78] sm:$0xf]
    %v2460 = vld [vmem:[#allocation3 + $0x80] sm:$0xf0]
    %v2461 = vld [vmem:[#allocation3 + $0x88] sm:$0xf]
    %v2462 = vld [vmem:[#allocation3 + $0x90] sm:$0xf0]
    %v2463 = vld [vmem:[#allocation3 + $0x98] sm:$0xf]
    %v2464 = vld [vmem:[#allocation3 + $0xa0] sm:$0xf0]
    %v2465 = vld [vmem:[#allocation3 + $0xa8] sm:$0xf]
    %v2466 = vld [vmem:[#allocation3 + $0xb0] sm:$0xf0]
    %v2467 = vld [vmem:[#allocation3 + $0xb8] sm:$0xf]
    %v2468 = vld [vmem:[#allocation3 + $0xc0] sm:$0xf0]
    %v2469 = vld [vmem:[#allocation3 + $0xc8] sm:$0xf]
    %v2470 = vld [vmem:[#allocation3 + $0xd0] sm:$0xf0]
    %v2471 = vld [vmem:[#allocation3 + $0xd8] sm:$0xf]
    %v2472 = vld [vmem:[#allocation3 + $0xe0] sm:$0xf0]
    %v2473 = vld [vmem:[#allocation3 + $0xe8] sm:$0xf]
    %v2474 = vld [vmem:[#allocation3 + $0xf0] sm:$0xf0]
    %v2475 = vld [vmem:[#allocation3 + $0xf8] sm:$0xf]
    %v2476 = vld [vmem:[#allocation3 + $0x120] sm:$0xf0]
    %v2477 = vld [vmem:[#allocation3 + $0x128] sm:$0xf]
    %v2478 = vld [vmem:[#allocation3 + $0x130] sm:$0xf0]
    %v2479 = vld [vmem:[#allocation3 + $0x138] sm:$0xf]
    %v2480 = vld [vmem:[#allocation3 + $0x140] sm:$0xf0]
    %v2481 = vld [vmem:[#allocation3 + $0x148] sm:$0xf]
    %v2482 = vld [vmem:[#allocation3 + $0x150] sm:$0xf0]
    %v2483 = vld [vmem:[#allocation3 + $0x158] sm:$0xf]
    %v2484 = vld [vmem:[#allocation3 + $0x160] sm:$0xf0]
    %v2485 = vld [vmem:[#allocation3 + $0x168] sm:$0xf]
    %v2486 = vld [vmem:[#allocation3 + $0x170] sm:$0xf0]
    %v2487 = vld [vmem:[#allocation3 + $0x178] sm:$0xf]
    %v2488 = vld [vmem:[#allocation3 + $0x180] sm:$0xf0]
    %v2489 = vld [vmem:[#allocation3 + $0x188] sm:$0xf]
    %v2490 = vld [vmem:[#allocation3 + $0x190] sm:$0xf0]
    %v2491 = vld [vmem:[#allocation3 + $0x198] sm:$0xf]
    %v2492 = vld [vmem:[#allocation3 + $0x1a0] sm:$0xf0]
    %v2493 = vld [vmem:[#allocation3 + $0x1a8] sm:$0xf]
    %v2494 = vld [vmem:[#allocation3 + $0x1b0] sm:$0xf0]
    %v2495 = vld [vmem:[#allocation3 + $0x1b8] sm:$0xf]
    %v2496 = vld [vmem:[#allocation3 + $0x1c0] sm:$0xf0]
    %v2497 = vld [vmem:[#allocation3 + $0x1c8] sm:$0xf]
    %v2498 = vld [vmem:[#allocation3 + $0x1d0] sm:$0xf0]
    %v2499 = vld [vmem:[#allocation3 + $0x1d8] sm:$0xf]
    %v2500 = vld [vmem:[#allocation3 + $0x1e0] sm:$0xf0]
    %v2501 = vld [vmem:[#allocation3 + $0x1e8] sm:$0xf]
    %v2502 = vld [vmem:[#allocation3 + $0x1f0] sm:$0xf0]
    %v2503 = vld [vmem:[#allocation3 + $0x1f8] sm:$0xf]
    %v2504 = vld [vmem:[#allocation3 + $0x200] sm:$0xf0]
    %v2505 = vld [vmem:[#allocation3 + $0x208] sm:$0xf]
    %v2506 = vld [vmem:[#allocation3 + $0x210] sm:$0xf0]
    %v2507 = vld [vmem:[#allocation3 + $0x218] sm:$0xf]
    %v2572 = vrot.slane %v2444, 4
    %v2573 = vrot.slane %v2445, 4
    %v2574 = vsel %vm2252, %v2572, %v2573
    %v2575 = vrot.slane %v2446, 4
    %v2576 = vrot.slane %v2447, 4
    %v2577 = vsel %vm2252, %v2575, %v2576
    %v2578 = vrot.slane %v2448, 4
    %v2579 = vrot.slane %v2449, 4
    %v2580 = vsel %vm2252, %v2578, %v2579
    %v2581 = vrot.slane %v2450, 4
    %v2582 = vrot.slane %v2451, 4
    %v2583 = vsel %vm2252, %v2581, %v2582
    %v2584 = vrot.slane %v2452, 4
    %v2585 = vrot.slane %v2453, 4
    %v2586 = vsel %vm2252, %v2584, %v2585
    %v2587 = vrot.slane %v2454, 4
    %v2588 = vrot.slane %v2455, 4
    %v2589 = vsel %vm2252, %v2587, %v2588
    %v2590 = vrot.slane %v2456, 4
    %v2591 = vrot.slane %v2457, 4
    %v2592 = vsel %vm2252, %v2590, %v2591
    %v2593 = vrot.slane %v2458, 4
    %v2594 = vrot.slane %v2459, 4
    %v2595 = vsel %vm2252, %v2593, %v2594
    %v2596 = vrot.slane %v2460, 4
    %v2597 = vrot.slane %v2461, 4
    %v2598 = vsel %vm2252, %v2596, %v2597
    %v2599 = vrot.slane %v2462, 4
    %v2600 = vrot.slane %v2463, 4
    %v2601 = vsel %vm2252, %v2599, %v2600
    %v2602 = vrot.slane %v2464, 4
    %v2603 = vrot.slane %v2465, 4
    %v2604 = vsel %vm2252, %v2602, %v2603
    %v2605 = vrot.slane %v2466, 4
    %v2606 = vrot.slane %v2467, 4
    %v2607 = vsel %vm2252, %v2605, %v2606
    %v2608 = vrot.slane %v2468, 4
    %v2609 = vrot.slane %v2469, 4
    %v2610 = vsel %vm2252, %v2608, %v2609
    %v2611 = vrot.slane %v2470, 4
    %v2612 = vrot.slane %v2471, 4
    %v2613 = vsel %vm2252, %v2611, %v2612
    %v2614 = vrot.slane %v2472, 4
    %v2615 = vrot.slane %v2473, 4
    %v2616 = vsel %vm2252, %v2614, %v2615
    %v2617 = vrot.slane %v2474, 4
    %v2618 = vrot.slane %v2475, 4
    %v2619 = vsel %vm2252, %v2617, %v2618
    %v2620 = vrot.slane %v2476, 4
    %v2621 = vrot.slane %v2477, 4
    %v2622 = vsel %vm2252, %v2620, %v2621
    %v2623 = vrot.slane %v2478, 4
    %v2624 = vrot.slane %v2479, 4
    %v2625 = vsel %vm2252, %v2623, %v2624
    %v2626 = vrot.slane %v2480, 4
    %v2627 = vrot.slane %v2481, 4
    %v2628 = vsel %vm2252, %v2626, %v2627
    %v2629 = vrot.slane %v2482, 4
    %v2630 = vrot.slane %v2483, 4
    %v2631 = vsel %vm2252, %v2629, %v2630
    %v2632 = vrot.slane %v2484, 4
    %v2633 = vrot.slane %v2485, 4
    %v2634 = vsel %vm2252, %v2632, %v2633
    %v2635 = vrot.slane %v2486, 4
    %v2636 = vrot.slane %v2487, 4
    %v2637 = vsel %vm2252, %v2635, %v2636
    %v2638 = vrot.slane %v2488, 4
    %v2639 = vrot.slane %v2489, 4
    %v2640 = vsel %vm2252, %v2638, %v2639
    %v2641 = vrot.slane %v2490, 4
    %v2642 = vrot.slane %v2491, 4
    %v2643 = vsel %vm2252, %v2641, %v2642
    %v2644 = vrot.slane %v2492, 4
    %v2645 = vrot.slane %v2493, 4
    %v2646 = vsel %vm2252, %v2644, %v2645
    %v2647 = vrot.slane %v2494, 4
    %v2648 = vrot.slane %v2495, 4
    %v2649 = vsel %vm2252, %v2647, %v2648
    %v2650 = vrot.slane %v2496, 4
    %v2651 = vrot.slane %v2497, 4
    %v2652 = vsel %vm2252, %v2650, %v2651
    %v2653 = vrot.slane %v2498, 4
    %v2654 = vrot.slane %v2499, 4
    %v2655 = vsel %vm2252, %v2653, %v2654
    %v2656 = vrot.slane %v2500, 4
    %v2657 = vrot.slane %v2501, 4
    %v2658 = vsel %vm2252, %v2656, %v2657
    %v2659 = vrot.slane %v2502, 4
    %v2660 = vrot.slane %v2503, 4
    %v2661 = vsel %vm2252, %v2659, %v2660
    %v2662 = vrot.slane %v2504, 4
    %v2663 = vrot.slane %v2505, 4
    %v2664 = vsel %vm2252, %v2662, %v2663
    %v2665 = vrot.slane %v2506, 4
    %v2666 = vrot.slane %v2507, 4
    %v2667 = vsel %vm2252, %v2665, %v2666
    %v2700 = vld [vmem:[#allocation6] sm:$0xf]
    %v2701 = vld [vmem:[#allocation6 + $0x4] sm:$0xf]
    %v2702 = vld [vmem:[#allocation6 + $0x8] sm:$0xf]
    %v2703 = vld [vmem:[#allocation6 + $0xc] sm:$0xf]
    %v2704 = vld [vmem:[#allocation6 + $0x10] sm:$0xf]
    %v2705 = vld [vmem:[#allocation6 + $0x14] sm:$0xf]
    %v2706 = vld [vmem:[#allocation6 + $0x18] sm:$0xf]
    %v2707 = vld [vmem:[#allocation6 + $0x1c] sm:$0xf]
    %v2708 = vld [vmem:[#allocation6 + $0x20] sm:$0xf]
    %v2709 = vld [vmem:[#allocation6 + $0x24] sm:$0xf]
    %v2710 = vld [vmem:[#allocation6 + $0x28] sm:$0xf]
    %v2711 = vld [vmem:[#allocation6 + $0x2c] sm:$0xf]
    %v2712 = vld [vmem:[#allocation6 + $0x30] sm:$0xf]
    %v2713 = vld [vmem:[#allocation6 + $0x34] sm:$0xf]
    %v2714 = vld [vmem:[#allocation6 + $0x38] sm:$0xf]
    %v2715 = vld [vmem:[#allocation6 + $0x3c] sm:$0xf]
    %v2732 = vunpack.c.l.b16 %v2700
    %v2733 = vunpack.c.l.b16 %v2701
    %v2734 = vunpack.c.l.b16 %v2702
    %v2735 = vunpack.c.l.b16 %v2703
    %v2736 = vunpack.c.l.b16 %v2704
    %v2737 = vunpack.c.l.b16 %v2705
    %v2738 = vunpack.c.l.b16 %v2706
    %v2739 = vunpack.c.l.b16 %v2707
    %v2740 = vunpack.c.l.b16 %v2708
    %v2741 = vunpack.c.l.b16 %v2709
    %v2742 = vunpack.c.l.b16 %v2710
    %v2743 = vunpack.c.l.b16 %v2711
    %v2744 = vunpack.c.l.b16 %v2712
    %v2745 = vunpack.c.l.b16 %v2713
    %v2746 = vunpack.c.l.b16 %v2714
    %v2747 = vunpack.c.l.b16 %v2715
    %v2748 = vpack.c.b16 %v2733, %v2732
    %v2749 = vpack.c.b16 %v2735, %v2734
    %v2750 = vpack.c.b16 %v2737, %v2736
    %v2751 = vpack.c.b16 %v2739, %v2738
    %v2752 = vpack.c.b16 %v2741, %v2740
    %v2753 = vpack.c.b16 %v2743, %v2742
    %v2754 = vpack.c.b16 %v2745, %v2744
    %v2755 = vpack.c.b16 %v2747, %v2746
    %2764 = vmatprep.subr.bf16.mxu0 0
    %2765 = vmatpush1.bf16.msra.mxu0 %v2748
    %2766 = vmatprep.subr.bf16.mxu0 0
    %2767 = vmatpush1.bf16.msra.mxu0 %v2749
    %2768 = vmatprep.subr.bf16.mxu0 0
    %2769 = vmatpush1.bf16.msra.mxu0 %v2750
    %2770 = vmatprep.subr.bf16.mxu0 0
    %2771 = vmatpush1.bf16.msra.mxu0 %v2751
    %2772 = vmatprep.subr.bf16.mxu0 0
    %2773 = vmatpush1.bf16.msra.mxu0 %v2752
    %2774 = vmatprep.subr.bf16.mxu0 0
    %2775 = vmatpush1.bf16.msra.mxu0 %v2753
    %2776 = vmatprep.subr.bf16.mxu0 0
    %2777 = vmatpush1.bf16.msra.mxu0 %v2754
    %2778 = vmatprep.subr.bf16.mxu0 0
    %2779 = vmatpush1.bf16.msra.mxu0 %v2755
    %2780 = vmatprep.subr.bf16.mxu0 0
    %2781 = vmatpush1.bf16.msra.mxu0 0
    %2782 = vmatprep.subr.bf16.mxu0 0
    %2783 = vmatpush1.bf16.msra.mxu0 0
    %2784 = vmatprep.subr.bf16.mxu0 0
    %2785 = vmatpush1.bf16.msra.mxu0 0
    %2786 = vmatprep.subr.bf16.mxu0 0
    %2787 = vmatpush1.bf16.msra.mxu0 0
    %2788 = vmatprep.subr.bf16.mxu0 0
    %2789 = vmatpush1.bf16.msra.mxu0 0
    %2790 = vmatprep.subr.bf16.mxu0 0
    %2791 = vmatpush1.bf16.msra.mxu0 0
    %2792 = vmatprep.subr.bf16.mxu0 0
    %2793 = vmatpush1.bf16.msra.mxu0 0
    %2794 = vmatprep.subr.bf16.mxu0 0
    %2795 = vmatpush1.bf16.msra.mxu0 0
    %2796 = vmatprep.mubr.bf16.mxu0 0
    %2797 = vmatmul.mubr.bf16.gmra.mrb[0].mxu0 %v2574
    %v2798 = vpop.f32.mrb[0].mxu0
    %v2799 = vadd.f32 0.0, %v2798
    %v2800 = vpop.f32.mrb[0].mxu0
    %v2801 = vpop.f32.mrb[0].mxu0
    %v2802 = vadd.f32 0.0, %v2801
    %v2803 = vpop.f32.mrb[0].mxu0
    %2804 = vmatprep.mubr.bf16.mxu0 0
    %2805 = vmatmul.mubr.bf16.gmra.mrb[0].mxu0 %v2577
    %v2806 = vpop.f32.mrb[0].mxu0
    %v2807 = vadd.f32 0.0, %v2806
    %v2808 = vpop.f32.mrb[0].mxu0
    %v2809 = vpop.f32.mrb[0].mxu0
    %v2810 = vadd.f32 0.0, %v2809
    %v2811 = vpop.f32.mrb[0].mxu0
    %2812 = vmatprep.mubr.bf16.mxu0 0
    %2813 = vmatmul.mubr.bf16.gmra.mrb[0].mxu0 %v2580
    %v2814 = vpop.f32.mrb[0].mxu0
    %v2815 = vadd.f32 0.0, %v2814
    %v2816 = vpop.f32.mrb[0].mxu0
    %v2817 = vpop.f32.mrb[0].mxu0
    %v2818 = vadd.f32 0.0, %v2817
    %v2819 = vpop.f32.mrb[0].mxu0
    %2820 = vmatprep.mubr.bf16.mxu0 0
    %2821 = vmatmul.mubr.bf16.gmra.mrb[0].mxu0 %v2583
    %v2822 = vpop.f32.mrb[0].mxu0
    %v2823 = vadd.f32 0.0, %v2822
    %v2824 = vpop.f32.mrb[0].mxu0
    %v2825 = vpop.f32.mrb[0].mxu0
    %v2826 = vadd.f32 0.0, %v2825
    %v2827 = vpop.f32.mrb[0].mxu0
    %2828 = vmatprep.mubr.bf16.mxu0 0
    %2829 = vmatmul.mubr.bf16.gmra.mrb[0].mxu0 %v2586
    %v2830 = vpop.f32.mrb[0].mxu0
    %v2831 = vadd.f32 0.0, %v2830
    %v2832 = vpop.f32.mrb[0].mxu0
    %v2833 = vpop.f32.mrb[0].mxu0
    %v2834 = vadd.f32 0.0, %v2833
    %v2835 = vpop.f32.mrb[0].mxu0
    %2836 = vmatprep.mubr.bf16.mxu0 0
    %2837 = vmatmul.mubr.bf16.gmra.mrb[0].mxu0 %v2589
    %v2838 = vpop.f32.mrb[0].mxu0
    %v2839 = vadd.f32 0.0, %v2838
    %v2840 = vpop.f32.mrb[0].mxu0
    %v2841 = vpop.f32.mrb[0].mxu0
    %v2842 = vadd.f32 0.0, %v2841
    %v2843 = vpop.f32.mrb[0].mxu0
    %2844 = vmatprep.mubr.bf16.mxu0 0
    %2845 = vmatmul.mubr.bf16.gmra.mrb[0].mxu0 %v2592
    %v2846 = vpop.f32.mrb[0].mxu0
    %v2847 = vadd.f32 0.0, %v2846
    %v2848 = vpop.f32.mrb[0].mxu0
    %v2849 = vpop.f32.mrb[0].mxu0
    %v2850 = vadd.f32 0.0, %v2849
    %v2851 = vpop.f32.mrb[0].mxu0
    %2852 = vmatprep.mubr.bf16.mxu0 0
    %2853 = vmatmul.mubr.bf16.gmra.mrb[0].mxu0 %v2595
    %v2854 = vpop.f32.mrb[0].mxu0
    %v2855 = vadd.f32 0.0, %v2854
    %v2856 = vpop.f32.mrb[0].mxu0
    %v2857 = vpop.f32.mrb[0].mxu0
    %v2858 = vadd.f32 0.0, %v2857
    %v2859 = vpop.f32.mrb[0].mxu0
    %2860 = vmatprep.mubr.bf16.mxu0 0
    %2861 = vmatmul.mubr.bf16.gmra.mrb[0].mxu0 %v2598
    %v2862 = vpop.f32.mrb[0].mxu0
    %v2863 = vadd.f32 0.0, %v2862
    %v2864 = vpop.f32.mrb[0].mxu0
    %v2865 = vpop.f32.mrb[0].mxu0
    %v2866 = vadd.f32 0.0, %v2865
    %v2867 = vpop.f32.mrb[0].mxu0
    %2868 = vmatprep.mubr.bf16.mxu0 0
    %2869 = vmatmul.mubr.bf16.gmra.mrb[0].mxu0 %v2601
    %v2870 = vpop.f32.mrb[0].mxu0
    %v2871 = vadd.f32 0.0, %v2870
    %v2872 = vpop.f32.mrb[0].mxu0
    %v2873 = vpop.f32.mrb[0].mxu0
    %v2874 = vadd.f32 0.0, %v2873
    %v2875 = vpop.f32.mrb[0].mxu0
    %2876 = vmatprep.mubr.bf16.mxu0 0
    %2877 = vmatmul.mubr.bf16.gmra.mrb[0].mxu0 %v2604
    %v2878 = vpop.f32.mrb[0].mxu0
    %v2879 = vadd.f32 0.0, %v2878
    %v2880 = vpop.f32.mrb[0].mxu0
    %v2881 = vpop.f32.mrb[0].mxu0
    %v2882 = vadd.f32 0.0, %v2881
    %v2883 = vpop.f32.mrb[0].mxu0
    %2884 = vmatprep.mubr.bf16.mxu0 0
    %2885 = vmatmul.mubr.bf16.gmra.mrb[0].mxu0 %v2607
    %v2886 = vpop.f32.mrb[0].mxu0
    %v2887 = vadd.f32 0.0, %v2886
    %v2888 = vpop.f32.mrb[0].mxu0
    %v2889 = vpop.f32.mrb[0].mxu0
    %v2890 = vadd.f32 0.0, %v2889
    %v2891 = vpop.f32.mrb[0].mxu0
    %2892 = vmatprep.mubr.bf16.mxu0 0
    %2893 = vmatmul.mubr.bf16.gmra.mrb[0].mxu0 %v2610
    %v2894 = vpop.f32.mrb[0].mxu0
    %v2895 = vadd.f32 0.0, %v2894
    %v2896 = vpop.f32.mrb[0].mxu0
    %v2897 = vpop.f32.mrb[0].mxu0
    %v2898 = vadd.f32 0.0, %v2897
    %v2899 = vpop.f32.mrb[0].mxu0
    %2900 = vmatprep.mubr.bf16.mxu0 0
    %2901 = vmatmul.mubr.bf16.gmra.mrb[0].mxu0 %v2613
    %v2902 = vpop.f32.mrb[0].mxu0
    %v2903 = vadd.f32 0.0, %v2902
    %v2904 = vpop.f32.mrb[0].mxu0
    %v2905 = vpop.f32.mrb[0].mxu0
    %v2906 = vadd.f32 0.0, %v2905
    %v2907 = vpop.f32.mrb[0].mxu0
    %2908 = vmatprep.mubr.bf16.mxu0 0
    %2909 = vmatmul.mubr.bf16.gmra.mrb[0].mxu0 %v2616
    %v2910 = vpop.f32.mrb[0].mxu0
    %v2911 = vadd.f32 0.0, %v2910
    %v2912 = vpop.f32.mrb[0].mxu0
    %v2913 = vpop.f32.mrb[0].mxu0
    %v2914 = vadd.f32 0.0, %v2913
    %v2915 = vpop.f32.mrb[0].mxu0
    %2916 = vmatprep.mubr.bf16.mxu0 0
    %2917 = vmatmul.mubr.bf16.gmra.mrb[0].mxu0 %v2619
    %v2918 = vpop.f32.mrb[0].mxu0
    %v2919 = vadd.f32 0.0, %v2918
    %v2920 = vpop.f32.mrb[0].mxu0
    %v2921 = vpop.f32.mrb[0].mxu0
    %v2922 = vadd.f32 0.0, %v2921
    %v2923 = vpop.f32.mrb[0].mxu0
    %2924 = vmatprep.mubr.bf16.mxu0 0
    %2925 = vmatmul.mubr.bf16.gmra.mrb[0].mxu0 %v2622
    %v2926 = vpop.f32.mrb[0].mxu0
    %v2927 = vadd.f32 0.0, %v2926
    %v2928 = vpop.f32.mrb[0].mxu0
    %v2929 = vpop.f32.mrb[0].mxu0
    %v2930 = vadd.f32 0.0, %v2929
    %v2931 = vpop.f32.mrb[0].mxu0
    %2932 = vmatprep.mubr.bf16.mxu0 0
    %2933 = vmatmul.mubr.bf16.gmra.mrb[0].mxu0 %v2625
    %v2934 = vpop.f32.mrb[0].mxu0
    %v2935 = vadd.f32 0.0, %v2934
    %v2936 = vpop.f32.mrb[0].mxu0
    %v2937 = vpop.f32.mrb[0].mxu0
    %v2938 = vadd.f32 0.0, %v2937
    %v2939 = vpop.f32.mrb[0].mxu0
    %2940 = vmatprep.mubr.bf16.mxu0 0
    %2941 = vmatmul.mubr.bf16.gmra.mrb[0].mxu0 %v2628
    %v2942 = vpop.f32.mrb[0].mxu0
    %v2943 = vadd.f32 0.0, %v2942
    %v2944 = vpop.f32.mrb[0].mxu0
    %v2945 = vpop.f32.mrb[0].mxu0
    %v2946 = vadd.f32 0.0, %v2945
    %v2947 = vpop.f32.mrb[0].mxu0
    %2948 = vmatprep.mubr.bf16.mxu0 0
    %2949 = vmatmul.mubr.bf16.gmra.mrb[0].mxu0 %v2631
    %v2950 = vpop.f32.mrb[0].mxu0
    %v2951 = vadd.f32 0.0, %v2950
    %v2952 = vpop.f32.mrb[0].mxu0
    %v2953 = vpop.f32.mrb[0].mxu0
    %v2954 = vadd.f32 0.0, %v2953
    %v2955 = vpop.f32.mrb[0].mxu0
    %2956 = vmatprep.mubr.bf16.mxu0 0
    %2957 = vmatmul.mubr.bf16.gmra.mrb[0].mxu0 %v2634
    %v2958 = vpop.f32.mrb[0].mxu0
    %v2959 = vadd.f32 0.0, %v2958
    %v2960 = vpop.f32.mrb[0].mxu0
    %v2961 = vpop.f32.mrb[0].mxu0
    %v2962 = vadd.f32 0.0, %v2961
    %v2963 = vpop.f32.mrb[0].mxu0
    %2964 = vmatprep.mubr.bf16.mxu0 0
    %2965 = vmatmul.mubr.bf16.gmra.mrb[0].mxu0 %v2637
    %v2966 = vpop.f32.mrb[0].mxu0
    %v2967 = vadd.f32 0.0, %v2966
    %v2968 = vpop.f32.mrb[0].mxu0
    %v2969 = vpop.f32.mrb[0].mxu0
    %v2970 = vadd.f32 0.0, %v2969
    %v2971 = vpop.f32.mrb[0].mxu0
    %2972 = vmatprep.mubr.bf16.mxu0 0
    %2973 = vmatmul.mubr.bf16.gmra.mrb[0].mxu0 %v2640
    %v2974 = vpop.f32.mrb[0].mxu0
    %v2975 = vadd.f32 0.0, %v2974
    %v2976 = vpop.f32.mrb[0].mxu0
    %v2977 = vpop.f32.mrb[0].mxu0
    %v2978 = vadd.f32 0.0, %v2977
    %v2979 = vpop.f32.mrb[0].mxu0
    %2980 = vmatprep.mubr.bf16.mxu0 0
    %2981 = vmatmul.mubr.bf16.gmra.mrb[0].mxu0 %v2643
    %v2982 = vpop.f32.mrb[0].mxu0
    %v2983 = vadd.f32 0.0, %v2982
    %v2984 = vpop.f32.mrb[0].mxu0
    %v2985 = vpop.f32.mrb[0].mxu0
    %v2986 = vadd.f32 0.0, %v2985
    %v2987 = vpop.f32.mrb[0].mxu0
    %2988 = vmatprep.mubr.bf16.mxu0 0
    %2989 = vmatmul.mubr.bf16.gmra.mrb[0].mxu0 %v2646
    %v2990 = vpop.f32.mrb[0].mxu0
    %v2991 = vadd.f32 0.0, %v2990
    %v2992 = vpop.f32.mrb[0].mxu0
    %v2993 = vpop.f32.mrb[0].mxu0
    %v2994 = vadd.f32 0.0, %v2993
    %v2995 = vpop.f32.mrb[0].mxu0
    %2996 = vmatprep.mubr.bf16.mxu0 0
    %2997 = vmatmul.mubr.bf16.gmra.mrb[0].mxu0 %v2649
    %v2998 = vpop.f32.mrb[0].mxu0
    %v2999 = vadd.f32 0.0, %v2998
    %v3000 = vpop.f32.mrb[0].mxu0
    %v3001 = vpop.f32.mrb[0].mxu0
    %v3002 = vadd.f32 0.0, %v3001
    %v3003 = vpop.f32.mrb[0].mxu0
    %3004 = vmatprep.mubr.bf16.mxu0 0
    %3005 = vmatmul.mubr.bf16.gmra.mrb[0].mxu0 %v2652
    %v3006 = vpop.f32.mrb[0].mxu0
    %v3007 = vadd.f32 0.0, %v3006
    %v3008 = vpop.f32.mrb[0].mxu0
    %v3009 = vpop.f32.mrb[0].mxu0
    %v3010 = vadd.f32 0.0, %v3009
    %v3011 = vpop.f32.mrb[0].mxu0
    %3012 = vmatprep.mubr.bf16.mxu0 0
    %3013 = vmatmul.mubr.bf16.gmra.mrb[0].mxu0 %v2655
    %v3014 = vpop.f32.mrb[0].mxu0
    %v3015 = vadd.f32 0.0, %v3014
    %v3016 = vpop.f32.mrb[0].mxu0
    %v3017 = vpop.f32.mrb[0].mxu0
    %v3018 = vadd.f32 0.0, %v3017
    %v3019 = vpop.f32.mrb[0].mxu0
    %3020 = vmatprep.mubr.bf16.mxu0 0
    %3021 = vmatmul.mubr.bf16.gmra.mrb[0].mxu0 %v2658
    %v3022 = vpop.f32.mrb[0].mxu0
    %v3023 = vadd.f32 0.0, %v3022
    %v3024 = vpop.f32.mrb[0].mxu0
    %v3025 = vpop.f32.mrb[0].mxu0
    %v3026 = vadd.f32 0.0, %v3025
    %v3027 = vpop.f32.mrb[0].mxu0
    %3028 = vmatprep.mubr.bf16.mxu0 0
    %3029 = vmatmul.mubr.bf16.gmra.mrb[0].mxu0 %v2661
    %v3030 = vpop.f32.mrb[0].mxu0
    %v3031 = vadd.f32 0.0, %v3030
    %v3032 = vpop.f32.mrb[0].mxu0
    %v3033 = vpop.f32.mrb[0].mxu0
    %v3034 = vadd.f32 0.0, %v3033
    %v3035 = vpop.f32.mrb[0].mxu0
    %3036 = vmatprep.mubr.bf16.mxu0 0
    %3037 = vmatmul.mubr.bf16.gmra.mrb[0].mxu0 %v2664
    %v3038 = vpop.f32.mrb[0].mxu0
    %v3039 = vadd.f32 0.0, %v3038
    %v3040 = vpop.f32.mrb[0].mxu0
    %v3041 = vpop.f32.mrb[0].mxu0
    %v3042 = vadd.f32 0.0, %v3041
    %v3043 = vpop.f32.mrb[0].mxu0
    %3044 = vmatprep.mubr.bf16.mxu0 0
    %3045 = vmatmul.mubr.bf16.gmra.mrb[0].mxu0 %v2667
    %v3046 = vpop.f32.mrb[0].mxu0
    %v3047 = vadd.f32 0.0, %v3046
    %v3048 = vpop.f32.mrb[0].mxu0
    %v3049 = vpop.f32.mrb[0].mxu0
    %v3050 = vadd.f32 0.0, %v3049
    %v3051 = vpop.f32.mrb[0].mxu0
    %3052 = vdwg.mxu0
    %3053 = vst [vmem:[#allocation2] sm:$0xff] %v2799
    %3054 = vst [vmem:[#allocation2 + $0x8] sm:$0xff] %v2802
    %3055 = vst [vmem:[#allocation2 + $0x10] sm:$0xff] %v2807
    %3056 = vst [vmem:[#allocation2 + $0x18] sm:$0xff] %v2810
    %3057 = vst [vmem:[#allocation2 + $0x20] sm:$0xff] %v2815
    %3058 = vst [vmem:[#allocation2 + $0x28] sm:$0xff] %v2818
    %3059 = vst [vmem:[#allocation2 + $0x30] sm:$0xff] %v2823
    %3060 = vst [vmem:[#allocation2 + $0x38] sm:$0xff] %v2826
    %3061 = vst [vmem:[#allocation2 + $0x40] sm:$0xff] %v2831
    %3062 = vst [vmem:[#allocation2 + $0x48] sm:$0xff] %v2834
    %3063 = vst [vmem:[#allocation2 + $0x50] sm:$0xff] %v2839
    %3064 = vst [vmem:[#allocation2 + $0x58] sm:$0xff] %v2842
    %3065 = vst [vmem:[#allocation2 + $0x60] sm:$0xff] %v2847
    %3066 = vst [vmem:[#allocation2 + $0x68] sm:$0xff] %v2850
    %3067 = vst [vmem:[#allocation2 + $0x70] sm:$0xff] %v2855
    %3068 = vst [vmem:[#allocation2 + $0x78] sm:$0xff] %v2858
    %3069 = vst [vmem:[#allocation2 + $0x80] sm:$0xff] %v2863
    %3070 = vst [vmem:[#allocation2 + $0x88] sm:$0xff] %v2866
    %3071 = vst [vmem:[#allocation2 + $0x90] sm:$0xff] %v2871
    %3072 = vst [vmem:[#allocation2 + $0x98] sm:$0xff] %v2874
    %3073 = vst [vmem:[#allocation2 + $0xa0] sm:$0xff] %v2879
    %3074 = vst [vmem:[#allocation2 + $0xa8] sm:$0xff] %v2882
    %3075 = vst [vmem:[#allocation2 + $0xb0] sm:$0xff] %v2887
    %3076 = vst [vmem:[#allocation2 + $0xb8] sm:$0xff] %v2890
    %3077 = vst [vmem:[#allocation2 + $0xc0] sm:$0xff] %v2895
    %3078 = vst [vmem:[#allocation2 + $0xc8] sm:$0xff] %v2898
    %3079 = vst [vmem:[#allocation2 + $0xd0] sm:$0xff] %v2903
    %3080 = vst [vmem:[#allocation2 + $0xd8] sm:$0xff] %v2906
    %3081 = vst [vmem:[#allocation2 + $0xe0] sm:$0xff] %v2911
    %3082 = vst [vmem:[#allocation2 + $0xe8] sm:$0xff] %v2914
    %3083 = vst [vmem:[#allocation2 + $0xf0] sm:$0xff] %v2919
    %3084 = vst [vmem:[#allocation2 + $0xf8] sm:$0xff] %v2922
    %3085 = vst [vmem:[#allocation2 + $0x100] sm:$0xff] %v2927
    %3086 = vst [vmem:[#allocation2 + $0x108] sm:$0xff] %v2930
    %3087 = vst [vmem:[#allocation2 + $0x110] sm:$0xff] %v2935
    %3088 = vst [vmem:[#allocation2 + $0x118] sm:$0xff] %v2938
    %3089 = vst [vmem:[#allocation2 + $0x120] sm:$0xff] %v2943
    %3090 = vst [vmem:[#allocation2 + $0x128] sm:$0xff] %v2946
    %3091 = vst [vmem:[#allocation2 + $0x130] sm:$0xff] %v2951
    %3092 = vst [vmem:[#allocation2 + $0x138] sm:$0xff] %v2954
    %3093 = vst [vmem:[#allocation2 + $0x140] sm:$0xff] %v2959
    %3094 = vst [vmem:[#allocation2 + $0x148] sm:$0xff] %v2962
    %3095 = vst [vmem:[#allocation2 + $0x150] sm:$0xff] %v2967
    %3096 = vst [vmem:[#allocation2 + $0x158] sm:$0xff] %v2970
    %3097 = vst [vmem:[#allocation2 + $0x160] sm:$0xff] %v2975
    %3098 = vst [vmem:[#allocation2 + $0x168] sm:$0xff] %v2978
    %3099 = vst [vmem:[#allocation2 + $0x170] sm:$0xff] %v2983
    %3100 = vst [vmem:[#allocation2 + $0x178] sm:$0xff] %v2986
    %3101 = vst [vmem:[#allocation2 + $0x180] sm:$0xff] %v2991
    %3102 = vst [vmem:[#allocation2 + $0x188] sm:$0xff] %v2994
    %3103 = vst [vmem:[#allocation2 + $0x190] sm:$0xff] %v2999
    %3104 = vst [vmem:[#allocation2 + $0x198] sm:$0xff] %v3002
    %3105 = vst [vmem:[#allocation2 + $0x1a0] sm:$0xff] %v3007
    %3106 = vst [vmem:[#allocation2 + $0x1a8] sm:$0xff] %v3010
    %3107 = vst [vmem:[#allocation2 + $0x1b0] sm:$0xff] %v3015
    %3108 = vst [vmem:[#allocation2 + $0x1b8] sm:$0xff] %v3018
    %3109 = vst [vmem:[#allocation2 + $0x1c0] sm:$0xff] %v3023
    %3110 = vst [vmem:[#allocation2 + $0x1c8] sm:$0xff] %v3026
    %3111 = vst [vmem:[#allocation2 + $0x1d0] sm:$0xff] %v3031
    %3112 = vst [vmem:[#allocation2 + $0x1d8] sm:$0xff] %v3034
    %3113 = vst [vmem:[#allocation2 + $0x1e0] sm:$0xff] %v3039
    %3114 = vst [vmem:[#allocation2 + $0x1e8] sm:$0xff] %v3042
    %3115 = vst [vmem:[#allocation2 + $0x1f0] sm:$0xff] %v3047
    %3116 = vst [vmem:[#allocation2 + $0x1f8] sm:$0xff] %v3050
    %v3117 = vld [vmem:[#allocation4] sm:$0xf0]
    %v3118 = vld [vmem:[#allocation4 + $0x8] sm:$0xf]
    %v3119 = vld [vmem:[#allocation4 + $0x10] sm:$0xf0]
    %v3120 = vld [vmem:[#allocation4 + $0x18] sm:$0xf]
    %v3121 = vld [vmem:[#allocation4 + $0x20] sm:$0xf0]
    %v3122 = vld [vmem:[#allocation4 + $0x28] sm:$0xf]
    %v3123 = vld [vmem:[#allocation4 + $0x30] sm:$0xf0]
    %v3124 = vld [vmem:[#allocation4 + $0x38] sm:$0xf]
    %v3125 = vld [vmem:[#allocation4 + $0x40] sm:$0xf0]
    %v3126 = vld [vmem:[#allocation4 + $0x48] sm:$0xf]
    %v3127 = vld [vmem:[#allocation4 + $0x50] sm:$0xf0]
    %v3128 = vld [vmem:[#allocation4 + $0x58] sm:$0xf]
    %v3129 = vld [vmem:[#allocation4 + $0x60] sm:$0xf0]
    %v3130 = vld [vmem:[#allocation4 + $0x68] sm:$0xf]
    %v3131 = vld [vmem:[#allocation4 + $0x70] sm:$0xf0]
    %v3132 = vld [vmem:[#allocation4 + $0x78] sm:$0xf]
    %v3133 = vld [vmem:[#allocation4 + $0x80] sm:$0xf0]
    %v3134 = vld [vmem:[#allocation4 + $0x88] sm:$0xf]
    %v3135 = vld [vmem:[#allocation4 + $0x90] sm:$0xf0]
    %v3136 = vld [vmem:[#allocation4 + $0x98] sm:$0xf]
    %v3137 = vld [vmem:[#allocation4 + $0xa0] sm:$0xf0]
    %v3138 = vld [vmem:[#allocation4 + $0xa8] sm:$0xf]
    %v3139 = vld [vmem:[#allocation4 + $0xb0] sm:$0xf0]
    %v3140 = vld [vmem:[#allocation4 + $0xb8] sm:$0xf]
    %v3141 = vld [vmem:[#allocation4 + $0xc0] sm:$0xf0]
    %v3142 = vld [vmem:[#allocation4 + $0xc8] sm:$0xf]
    %v3143 = vld [vmem:[#allocation4 + $0xd0] sm:$0xf0]
    %v3144 = vld [vmem:[#allocation4 + $0xd8] sm:$0xf]
    %v3145 = vld [vmem:[#allocation4 + $0xe0] sm:$0xf0]
    %v3146 = vld [vmem:[#allocation4 + $0xe8] sm:$0xf]
    %v3147 = vld [vmem:[#allocation4 + $0xf0] sm:$0xf0]
    %v3148 = vld [vmem:[#allocation4 + $0xf8] sm:$0xf]
    %v3149 = vld [vmem:[#allocation4 + $0x120] sm:$0xf0]
    %v3150 = vld [vmem:[#allocation4 + $0x128] sm:$0xf]
    %v3151 = vld [vmem:[#allocation4 + $0x130] sm:$0xf0]
    %v3152 = vld [vmem:[#allocation4 + $0x138] sm:$0xf]
    %v3153 = vld [vmem:[#allocation4 + $0x140] sm:$0xf0]
    %v3154 = vld [vmem:[#allocation4 + $0x148] sm:$0xf]
    %v3155 = vld [vmem:[#allocation4 + $0x150] sm:$0xf0]
    %v3156 = vld [vmem:[#allocation4 + $0x158] sm:$0xf]
    %v3157 = vld [vmem:[#allocation4 + $0x160] sm:$0xf0]
    %v3158 = vld [vmem:[#allocation4 + $0x168] sm:$0xf]
    %v3159 = vld [vmem:[#allocation4 + $0x170] sm:$0xf0]
    %v3160 = vld [vmem:[#allocation4 + $0x178] sm:$0xf]
    %v3161 = vld [vmem:[#allocation4 + $0x180] sm:$0xf0]
    %v3162 = vld [vmem:[#allocation4 + $0x188] sm:$0xf]
    %v3163 = vld [vmem:[#allocation4 + $0x190] sm:$0xf0]
    %v3164 = vld [vmem:[#allocation4 + $0x198] sm:$0xf]
    %v3165 = vld [vmem:[#allocation4 + $0x1a0] sm:$0xf0]
    %v3166 = vld [vmem:[#allocation4 + $0x1a8] sm:$0xf]
    %v3167 = vld [vmem:[#allocation4 + $0x1b0] sm:$0xf0]
    %v3168 = vld [vmem:[#allocation4 + $0x1b8] sm:$0xf]
    %v3169 = vld [vmem:[#allocation4 + $0x1c0] sm:$0xf0]
    %v3170 = vld [vmem:[#allocation4 + $0x1c8] sm:$0xf]
    %v3171 = vld [vmem:[#allocation4 + $0x1d0] sm:$0xf0]
    %v3172 = vld [vmem:[#allocation4 + $0x1d8] sm:$0xf]
    %v3173 = vld [vmem:[#allocation4 + $0x1e0] sm:$0xf0]
    %v3174 = vld [vmem:[#allocation4 + $0x1e8] sm:$0xf]
    %v3175 = vld [vmem:[#allocation4 + $0x1f0] sm:$0xf0]
    %v3176 = vld [vmem:[#allocation4 + $0x1f8] sm:$0xf]
    %v3177 = vld [vmem:[#allocation4 + $0x200] sm:$0xf0]
    %v3178 = vld [vmem:[#allocation4 + $0x208] sm:$0xf]
    %v3179 = vld [vmem:[#allocation4 + $0x210] sm:$0xf0]
    %v3180 = vld [vmem:[#allocation4 + $0x218] sm:$0xf]
    %v3245 = vrot.slane %v3117, 4
    %v3246 = vrot.slane %v3118, 4
    %v3247 = vsel %vm2252, %v3245, %v3246
    %v3248 = vrot.slane %v3119, 4
    %v3249 = vrot.slane %v3120, 4
    %v3250 = vsel %vm2252, %v3248, %v3249
    %v3251 = vrot.slane %v3121, 4
    %v3252 = vrot.slane %v3122, 4
    %v3253 = vsel %vm2252, %v3251, %v3252
    %v3254 = vrot.slane %v3123, 4
    %v3255 = vrot.slane %v3124, 4
    %v3256 = vsel %vm2252, %v3254, %v3255
    %v3257 = vrot.slane %v3125, 4
    %v3258 = vrot.slane %v3126, 4
    %v3259 = vsel %vm2252, %v3257, %v3258
    %v3260 = vrot.slane %v3127, 4
    %v3261 = vrot.slane %v3128, 4
    %v3262 = vsel %vm2252, %v3260, %v3261
    %v3263 = vrot.slane %v3129, 4
    %v3264 = vrot.slane %v3130, 4
    %v3265 = vsel %vm2252, %v3263, %v3264
    %v3266 = vrot.slane %v3131, 4
    %v3267 = vrot.slane %v3132, 4
    %v3268 = vsel %vm2252, %v3266, %v3267
    %v3269 = vrot.slane %v3133, 4
    %v3270 = vrot.slane %v3134, 4
    %v3271 = vsel %vm2252, %v3269, %v3270
    %v3272 = vrot.slane %v3135, 4
    %v3273 = vrot.slane %v3136, 4
    %v3274 = vsel %vm2252, %v3272, %v3273
    %v3275 = vrot.slane %v3137, 4
    %v3276 = vrot.slane %v3138, 4
    %v3277 = vsel %vm2252, %v3275, %v3276
    %v3278 = vrot.slane %v3139, 4
    %v3279 = vrot.slane %v3140, 4
    %v3280 = vsel %vm2252, %v3278, %v3279
    %v3281 = vrot.slane %v3141, 4
    %v3282 = vrot.slane %v3142, 4
    %v3283 = vsel %vm2252, %v3281, %v3282
    %v3284 = vrot.slane %v3143, 4
    %v3285 = vrot.slane %v3144, 4
    %v3286 = vsel %vm2252, %v3284, %v3285
    %v3287 = vrot.slane %v3145, 4
    %v3288 = vrot.slane %v3146, 4
    %v3289 = vsel %vm2252, %v3287, %v3288
    %v3290 = vrot.slane %v3147, 4
    %v3291 = vrot.slane %v3148, 4
    %v3292 = vsel %vm2252, %v3290, %v3291
    %v3293 = vrot.slane %v3149, 4
    %v3294 = vrot.slane %v3150, 4
    %v3295 = vsel %vm2252, %v3293, %v3294
    %v3296 = vrot.slane %v3151, 4
    %v3297 = vrot.slane %v3152, 4
    %v3298 = vsel %vm2252, %v3296, %v3297
    %v3299 = vrot.slane %v3153, 4
    %v3300 = vrot.slane %v3154, 4
    %v3301 = vsel %vm2252, %v3299, %v3300
    %v3302 = vrot.slane %v3155, 4
    %v3303 = vrot.slane %v3156, 4
    %v3304 = vsel %vm2252, %v3302, %v3303
    %v3305 = vrot.slane %v3157, 4
    %v3306 = vrot.slane %v3158, 4
    %v3307 = vsel %vm2252, %v3305, %v3306
    %v3308 = vrot.slane %v3159, 4
    %v3309 = vrot.slane %v3160, 4
    %v3310 = vsel %vm2252, %v3308, %v3309
    %v3311 = vrot.slane %v3161, 4
    %v3312 = vrot.slane %v3162, 4
    %v3313 = vsel %vm2252, %v3311, %v3312
    %v3314 = vrot.slane %v3163, 4
    %v3315 = vrot.slane %v3164, 4
    %v3316 = vsel %vm2252, %v3314, %v3315
    %v3317 = vrot.slane %v3165, 4
    %v3318 = vrot.slane %v3166, 4
    %v3319 = vsel %vm2252, %v3317, %v3318
    %v3320 = vrot.slane %v3167, 4
    %v3321 = vrot.slane %v3168, 4
    %v3322 = vsel %vm2252, %v3320, %v3321
    %v3323 = vrot.slane %v3169, 4
    %v3324 = vrot.slane %v3170, 4
    %v3325 = vsel %vm2252, %v3323, %v3324
    %v3326 = vrot.slane %v3171, 4
    %v3327 = vrot.slane %v3172, 4
    %v3328 = vsel %vm2252, %v3326, %v3327
    %v3329 = vrot.slane %v3173, 4
    %v3330 = vrot.slane %v3174, 4
    %v3331 = vsel %vm2252, %v3329, %v3330
    %v3332 = vrot.slane %v3175, 4
    %v3333 = vrot.slane %v3176, 4
    %v3334 = vsel %vm2252, %v3332, %v3333
    %v3335 = vrot.slane %v3177, 4
    %v3336 = vrot.slane %v3178, 4
    %v3337 = vsel %vm2252, %v3335, %v3336
    %v3338 = vrot.slane %v3179, 4
    %v3339 = vrot.slane %v3180, 4
    %v3340 = vsel %vm2252, %v3338, %v3339
    %s3373 = scalar_lea.vmem [#allocation6], 64
    %v3374 = vld [vmem:[%s3373] sm:$0xf]
    %v3375 = vld [vmem:[%s3373 + $0x4] sm:$0xf]
    %v3376 = vld [vmem:[%s3373 + $0x8] sm:$0xf]
    %v3377 = vld [vmem:[%s3373 + $0xc] sm:$0xf]
    %v3378 = vld [vmem:[%s3373 + $0x10] sm:$0xf]
    %v3379 = vld [vmem:[%s3373 + $0x14] sm:$0xf]
    %v3380 = vld [vmem:[%s3373 + $0x18] sm:$0xf]
    %v3381 = vld [vmem:[%s3373 + $0x1c] sm:$0xf]
    %v3382 = vld [vmem:[%s3373 + $0x20] sm:$0xf]
    %v3383 = vld [vmem:[%s3373 + $0x24] sm:$0xf]
    %v3384 = vld [vmem:[%s3373 + $0x28] sm:$0xf]
    %v3385 = vld [vmem:[%s3373 + $0x2c] sm:$0xf]
    %v3386 = vld [vmem:[%s3373 + $0x30] sm:$0xf]
    %v3387 = vld [vmem:[%s3373 + $0x34] sm:$0xf]
    %v3388 = vld [vmem:[%s3373 + $0x38] sm:$0xf]
    %v3389 = vld [vmem:[%s3373 + $0x3c] sm:$0xf]
    %v3406 = vunpack.c.l.b16 %v3374
    %v3407 = vunpack.c.l.b16 %v3375
    %v3408 = vunpack.c.l.b16 %v3376
    %v3409 = vunpack.c.l.b16 %v3377
    %v3410 = vunpack.c.l.b16 %v3378
    %v3411 = vunpack.c.l.b16 %v3379
    %v3412 = vunpack.c.l.b16 %v3380
    %v3413 = vunpack.c.l.b16 %v3381
    %v3414 = vunpack.c.l.b16 %v3382
    %v3415 = vunpack.c.l.b16 %v3383
    %v3416 = vunpack.c.l.b16 %v3384
    %v3417 = vunpack.c.l.b16 %v3385
    %v3418 = vunpack.c.l.b16 %v3386
    %v3419 = vunpack.c.l.b16 %v3387
    %v3420 = vunpack.c.l.b16 %v3388
    %v3421 = vunpack.c.l.b16 %v3389
    %v3422 = vpack.c.b16 %v3407, %v3406
    %v3423 = vpack.c.b16 %v3409, %v3408
    %v3424 = vpack.c.b16 %v3411, %v3410
    %v3425 = vpack.c.b16 %v3413, %v3412
    %v3426 = vpack.c.b16 %v3415, %v3414
    %v3427 = vpack.c.b16 %v3417, %v3416
    %v3428 = vpack.c.b16 %v3419, %v3418
    %v3429 = vpack.c.b16 %v3421, %v3420
    %3438 = vmatprep.subr.bf16.mxu0 0
    %3439 = vmatpush1.bf16.msra.mxu0 %v3422
    %3440 = vmatprep.subr.bf16.mxu0 0
    %3441 = vmatpush1.bf16.msra.mxu0 %v3423
    %3442 = vmatprep.subr.bf16.mxu0 0
    %3443 = vmatpush1.bf16.msra.mxu0 %v3424
    %3444 = vmatprep.subr.bf16.mxu0 0
    %3445 = vmatpush1.bf16.msra.mxu0 %v3425
    %3446 = vmatprep.subr.bf16.mxu0 0
    %3447 = vmatpush1.bf16.msra.mxu0 %v3426
    %3448 = vmatprep.subr.bf16.mxu0 0
    %3449 = vmatpush1.bf16.msra.mxu0 %v3427
    %3450 = vmatprep.subr.bf16.mxu0 0
    %3451 = vmatpush1.bf16.msra.mxu0 %v3428
    %3452 = vmatprep.subr.bf16.mxu0 0
    %3453 = vmatpush1.bf16.msra.mxu0 %v3429
    %3454 = vmatprep.subr.bf16.mxu0 0
    %3455 = vmatpush1.bf16.msra.mxu0 0
    %3456 = vmatprep.subr.bf16.mxu0 0
    %3457 = vmatpush1.bf16.msra.mxu0 0
    %3458 = vmatprep.subr.bf16.mxu0 0
    %3459 = vmatpush1.bf16.msra.mxu0 0
    %3460 = vmatprep.subr.bf16.mxu0 0
    %3461 = vmatpush1.bf16.msra.mxu0 0
    %3462 = vmatprep.subr.bf16.mxu0 0
    %3463 = vmatpush1.bf16.msra.mxu0 0
    %3464 = vmatprep.subr.bf16.mxu0 0
    %3465 = vmatpush1.bf16.msra.mxu0 0
    %3466 = vmatprep.subr.bf16.mxu0 0
    %3467 = vmatpush1.bf16.msra.mxu0 0
    %3468 = vmatprep.subr.bf16.mxu0 0
    %3469 = vmatpush1.bf16.msra.mxu0 0
    %3470 = vmatprep.mubr.bf16.mxu0 0
    %3471 = vmatmul.mubr.bf16.gmra.mrb[0].mxu0 %v3247
    %v3472 = vpop.f32.mrb[0].mxu0
    %v3473 = vadd.f32 0.0, %v3472
    %v3474 = vpop.f32.mrb[0].mxu0
    %v3475 = vpop.f32.mrb[0].mxu0
    %v3476 = vadd.f32 0.0, %v3475
    %v3477 = vpop.f32.mrb[0].mxu0
    %3478 = vmatprep.mubr.bf16.mxu0 0
    %3479 = vmatmul.mubr.bf16.gmra.mrb[0].mxu0 %v3250
    %v3480 = vpop.f32.mrb[0].mxu0
    %v3481 = vadd.f32 0.0, %v3480
    %v3482 = vpop.f32.mrb[0].mxu0
    %v3483 = vpop.f32.mrb[0].mxu0
    %v3484 = vadd.f32 0.0, %v3483
    %v3485 = vpop.f32.mrb[0].mxu0
    %3486 = vmatprep.mubr.bf16.mxu0 0
    %3487 = vmatmul.mubr.bf16.gmra.mrb[0].mxu0 %v3253
    %v3488 = vpop.f32.mrb[0].mxu0
    %v3489 = vadd.f32 0.0, %v3488
    %v3490 = vpop.f32.mrb[0].mxu0
    %v3491 = vpop.f32.mrb[0].mxu0
    %v3492 = vadd.f32 0.0, %v3491
    %v3493 = vpop.f32.mrb[0].mxu0
    %3494 = vmatprep.mubr.bf16.mxu0 0
    %3495 = vmatmul.mubr.bf16.gmra.mrb[0].mxu0 %v3256
    %v3496 = vpop.f32.mrb[0].mxu0
    %v3497 = vadd.f32 0.0, %v3496
    %v3498 = vpop.f32.mrb[0].mxu0
    %v3499 = vpop.f32.mrb[0].mxu0
    %v3500 = vadd.f32 0.0, %v3499
    %v3501 = vpop.f32.mrb[0].mxu0
    %3502 = vmatprep.mubr.bf16.mxu0 0
    %3503 = vmatmul.mubr.bf16.gmra.mrb[0].mxu0 %v3259
    %v3504 = vpop.f32.mrb[0].mxu0
    %v3505 = vadd.f32 0.0, %v3504
    %v3506 = vpop.f32.mrb[0].mxu0
    %v3507 = vpop.f32.mrb[0].mxu0
    %v3508 = vadd.f32 0.0, %v3507
    %v3509 = vpop.f32.mrb[0].mxu0
    %3510 = vmatprep.mubr.bf16.mxu0 0
    %3511 = vmatmul.mubr.bf16.gmra.mrb[0].mxu0 %v3262
    %v3512 = vpop.f32.mrb[0].mxu0
    %v3513 = vadd.f32 0.0, %v3512
    %v3514 = vpop.f32.mrb[0].mxu0
    %v3515 = vpop.f32.mrb[0].mxu0
    %v3516 = vadd.f32 0.0, %v3515
    %v3517 = vpop.f32.mrb[0].mxu0
    %3518 = vmatprep.mubr.bf16.mxu0 0
    %3519 = vmatmul.mubr.bf16.gmra.mrb[0].mxu0 %v3265
    %v3520 = vpop.f32.mrb[0].mxu0
    %v3521 = vadd.f32 0.0, %v3520
    %v3522 = vpop.f32.mrb[0].mxu0
    %v3523 = vpop.f32.mrb[0].mxu0
    %v3524 = vadd.f32 0.0, %v3523
    %v3525 = vpop.f32.mrb[0].mxu0
    %3526 = vmatprep.mubr.bf16.mxu0 0
    %3527 = vmatmul.mubr.bf16.gmra.mrb[0].mxu0 %v3268
    %v3528 = vpop.f32.mrb[0].mxu0
    %v3529 = vadd.f32 0.0, %v3528
    %v3530 = vpop.f32.mrb[0].mxu0
    %v3531 = vpop.f32.mrb[0].mxu0
    %v3532 = vadd.f32 0.0, %v3531
    %v3533 = vpop.f32.mrb[0].mxu0
    %3534 = vmatprep.mubr.bf16.mxu0 0
    %3535 = vmatmul.mubr.bf16.gmra.mrb[0].mxu0 %v3271
    %v3536 = vpop.f32.mrb[0].mxu0
    %v3537 = vadd.f32 0.0, %v3536
    %v3538 = vpop.f32.mrb[0].mxu0
    %v3539 = vpop.f32.mrb[0].mxu0
    %v3540 = vadd.f32 0.0, %v3539
    %v3541 = vpop.f32.mrb[0].mxu0
    %3542 = vmatprep.mubr.bf16.mxu0 0
    %3543 = vmatmul.mubr.bf16.gmra.mrb[0].mxu0 %v3274
    %v3544 = vpop.f32.mrb[0].mxu0
    %v3545 = vadd.f32 0.0, %v3544
    %v3546 = vpop.f32.mrb[0].mxu0
    %v3547 = vpop.f32.mrb[0].mxu0
    %v3548 = vadd.f32 0.0, %v3547
    %v3549 = vpop.f32.mrb[0].mxu0
    %3550 = vmatprep.mubr.bf16.mxu0 0
    %3551 = vmatmul.mubr.bf16.gmra.mrb[0].mxu0 %v3277
    %v3552 = vpop.f32.mrb[0].mxu0
    %v3553 = vadd.f32 0.0, %v3552
    %v3554 = vpop.f32.mrb[0].mxu0
    %v3555 = vpop.f32.mrb[0].mxu0
    %v3556 = vadd.f32 0.0, %v3555
    %v3557 = vpop.f32.mrb[0].mxu0
    %3558 = vmatprep.mubr.bf16.mxu0 0
    %3559 = vmatmul.mubr.bf16.gmra.mrb[0].mxu0 %v3280
    %v3560 = vpop.f32.mrb[0].mxu0
    %v3561 = vadd.f32 0.0, %v3560
    %v3562 = vpop.f32.mrb[0].mxu0
    %v3563 = vpop.f32.mrb[0].mxu0
    %v3564 = vadd.f32 0.0, %v3563
    %v3565 = vpop.f32.mrb[0].mxu0
    %3566 = vmatprep.mubr.bf16.mxu0 0
    %3567 = vmatmul.mubr.bf16.gmra.mrb[0].mxu0 %v3283
    %v3568 = vpop.f32.mrb[0].mxu0
    %v3569 = vadd.f32 0.0, %v3568
    %v3570 = vpop.f32.mrb[0].mxu0
    %v3571 = vpop.f32.mrb[0].mxu0
    %v3572 = vadd.f32 0.0, %v3571
    %v3573 = vpop.f32.mrb[0].mxu0
    %3574 = vmatprep.mubr.bf16.mxu0 0
    %3575 = vmatmul.mubr.bf16.gmra.mrb[0].mxu0 %v3286
    %v3576 = vpop.f32.mrb[0].mxu0
    %v3577 = vadd.f32 0.0, %v3576
    %v3578 = vpop.f32.mrb[0].mxu0
    %v3579 = vpop.f32.mrb[0].mxu0
    %v3580 = vadd.f32 0.0, %v3579
    %v3581 = vpop.f32.mrb[0].mxu0
    %3582 = vmatprep.mubr.bf16.mxu0 0
    %3583 = vmatmul.mubr.bf16.gmra.mrb[0].mxu0 %v3289
    %v3584 = vpop.f32.mrb[0].mxu0
    %v3585 = vadd.f32 0.0, %v3584
    %v3586 = vpop.f32.mrb[0].mxu0
    %v3587 = vpop.f32.mrb[0].mxu0
    %v3588 = vadd.f32 0.0, %v3587
    %v3589 = vpop.f32.mrb[0].mxu0
    %3590 = vmatprep.mubr.bf16.mxu0 0
    %3591 = vmatmul.mubr.bf16.gmra.mrb[0].mxu0 %v3292
    %v3592 = vpop.f32.mrb[0].mxu0
    %v3593 = vadd.f32 0.0, %v3592
    %v3594 = vpop.f32.mrb[0].mxu0
    %v3595 = vpop.f32.mrb[0].mxu0
    %v3596 = vadd.f32 0.0, %v3595
    %v3597 = vpop.f32.mrb[0].mxu0
    %3598 = vmatprep.mubr.bf16.mxu0 0
    %3599 = vmatmul.mubr.bf16.gmra.mrb[0].mxu0 %v3295
    %v3600 = vpop.f32.mrb[0].mxu0
    %v3601 = vadd.f32 0.0, %v3600
    %v3602 = vpop.f32.mrb[0].mxu0
    %v3603 = vpop.f32.mrb[0].mxu0
    %v3604 = vadd.f32 0.0, %v3603
    %v3605 = vpop.f32.mrb[0].mxu0
    %3606 = vmatprep.mubr.bf16.mxu0 0
    %3607 = vmatmul.mubr.bf16.gmra.mrb[0].mxu0 %v3298
    %v3608 = vpop.f32.mrb[0].mxu0
    %v3609 = vadd.f32 0.0, %v3608
    %v3610 = vpop.f32.mrb[0].mxu0
    %v3611 = vpop.f32.mrb[0].mxu0
    %v3612 = vadd.f32 0.0, %v3611
    %v3613 = vpop.f32.mrb[0].mxu0
    %3614 = vmatprep.mubr.bf16.mxu0 0
    %3615 = vmatmul.mubr.bf16.gmra.mrb[0].mxu0 %v3301
    %v3616 = vpop.f32.mrb[0].mxu0
    %v3617 = vadd.f32 0.0, %v3616
    %v3618 = vpop.f32.mrb[0].mxu0
    %v3619 = vpop.f32.mrb[0].mxu0
    %v3620 = vadd.f32 0.0, %v3619
    %v3621 = vpop.f32.mrb[0].mxu0
    %3622 = vmatprep.mubr.bf16.mxu0 0
    %3623 = vmatmul.mubr.bf16.gmra.mrb[0].mxu0 %v3304
    %v3624 = vpop.f32.mrb[0].mxu0
    %v3625 = vadd.f32 0.0, %v3624
    %v3626 = vpop.f32.mrb[0].mxu0
    %v3627 = vpop.f32.mrb[0].mxu0
    %v3628 = vadd.f32 0.0, %v3627
    %v3629 = vpop.f32.mrb[0].mxu0
    %3630 = vmatprep.mubr.bf16.mxu0 0
    %3631 = vmatmul.mubr.bf16.gmra.mrb[0].mxu0 %v3307
    %v3632 = vpop.f32.mrb[0].mxu0
    %v3633 = vadd.f32 0.0, %v3632
    %v3634 = vpop.f32.mrb[0].mxu0
    %v3635 = vpop.f32.mrb[0].mxu0
    %v3636 = vadd.f32 0.0, %v3635
    %v3637 = vpop.f32.mrb[0].mxu0
    %3638 = vmatprep.mubr.bf16.mxu0 0
    %3639 = vmatmul.mubr.bf16.gmra.mrb[0].mxu0 %v3310
    %v3640 = vpop.f32.mrb[0].mxu0
    %v3641 = vadd.f32 0.0, %v3640
    %v3642 = vpop.f32.mrb[0].mxu0
    %v3643 = vpop.f32.mrb[0].mxu0
    %v3644 = vadd.f32 0.0, %v3643
    %v3645 = vpop.f32.mrb[0].mxu0
    %3646 = vmatprep.mubr.bf16.mxu0 0
    %3647 = vmatmul.mubr.bf16.gmra.mrb[0].mxu0 %v3313
    %v3648 = vpop.f32.mrb[0].mxu0
    %v3649 = vadd.f32 0.0, %v3648
    %v3650 = vpop.f32.mrb[0].mxu0
    %v3651 = vpop.f32.mrb[0].mxu0
    %v3652 = vadd.f32 0.0, %v3651
    %v3653 = vpop.f32.mrb[0].mxu0
    %3654 = vmatprep.mubr.bf16.mxu0 0
    %3655 = vmatmul.mubr.bf16.gmra.mrb[0].mxu0 %v3316
    %v3656 = vpop.f32.mrb[0].mxu0
    %v3657 = vadd.f32 0.0, %v3656
    %v3658 = vpop.f32.mrb[0].mxu0
    %v3659 = vpop.f32.mrb[0].mxu0
    %v3660 = vadd.f32 0.0, %v3659
    %v3661 = vpop.f32.mrb[0].mxu0
    %3662 = vmatprep.mubr.bf16.mxu0 0
    %3663 = vmatmul.mubr.bf16.gmra.mrb[0].mxu0 %v3319
    %v3664 = vpop.f32.mrb[0].mxu0
    %v3665 = vadd.f32 0.0, %v3664
    %v3666 = vpop.f32.mrb[0].mxu0
    %v3667 = vpop.f32.mrb[0].mxu0
    %v3668 = vadd.f32 0.0, %v3667
    %v3669 = vpop.f32.mrb[0].mxu0
    %3670 = vmatprep.mubr.bf16.mxu0 0
    %3671 = vmatmul.mubr.bf16.gmra.mrb[0].mxu0 %v3322
    %v3672 = vpop.f32.mrb[0].mxu0
    %v3673 = vadd.f32 0.0, %v3672
    %v3674 = vpop.f32.mrb[0].mxu0
    %v3675 = vpop.f32.mrb[0].mxu0
    %v3676 = vadd.f32 0.0, %v3675
    %v3677 = vpop.f32.mrb[0].mxu0
    %3678 = vmatprep.mubr.bf16.mxu0 0
    %3679 = vmatmul.mubr.bf16.gmra.mrb[0].mxu0 %v3325
    %v3680 = vpop.f32.mrb[0].mxu0
    %v3681 = vadd.f32 0.0, %v3680
    %v3682 = vpop.f32.mrb[0].mxu0
    %v3683 = vpop.f32.mrb[0].mxu0
    %v3684 = vadd.f32 0.0, %v3683
    %v3685 = vpop.f32.mrb[0].mxu0
    %3686 = vmatprep.mubr.bf16.mxu0 0
    %3687 = vmatmul.mubr.bf16.gmra.mrb[0].mxu0 %v3328
    %v3688 = vpop.f32.mrb[0].mxu0
    %v3689 = vadd.f32 0.0, %v3688
    %v3690 = vpop.f32.mrb[0].mxu0
    %v3691 = vpop.f32.mrb[0].mxu0
    %v3692 = vadd.f32 0.0, %v3691
    %v3693 = vpop.f32.mrb[0].mxu0
    %3694 = vmatprep.mubr.bf16.mxu0 0
    %3695 = vmatmul.mubr.bf16.gmra.mrb[0].mxu0 %v3331
    %v3696 = vpop.f32.mrb[0].mxu0
    %v3697 = vadd.f32 0.0, %v3696
    %v3698 = vpop.f32.mrb[0].mxu0
    %v3699 = vpop.f32.mrb[0].mxu0
    %v3700 = vadd.f32 0.0, %v3699
    %v3701 = vpop.f32.mrb[0].mxu0
    %3702 = vmatprep.mubr.bf16.mxu0 0
    %3703 = vmatmul.mubr.bf16.gmra.mrb[0].mxu0 %v3334
    %v3704 = vpop.f32.mrb[0].mxu0
    %v3705 = vadd.f32 0.0, %v3704
    %v3706 = vpop.f32.mrb[0].mxu0
    %v3707 = vpop.f32.mrb[0].mxu0
    %v3708 = vadd.f32 0.0, %v3707
    %v3709 = vpop.f32.mrb[0].mxu0
    %3710 = vmatprep.mubr.bf16.mxu0 0
    %3711 = vmatmul.mubr.bf16.gmra.mrb[0].mxu0 %v3337
    %v3712 = vpop.f32.mrb[0].mxu0
    %v3713 = vadd.f32 0.0, %v3712
    %v3714 = vpop.f32.mrb[0].mxu0
    %v3715 = vpop.f32.mrb[0].mxu0
    %v3716 = vadd.f32 0.0, %v3715
    %v3717 = vpop.f32.mrb[0].mxu0
    %3718 = vmatprep.mubr.bf16.mxu0 0
    %3719 = vmatmul.mubr.bf16.gmra.mrb[0].mxu0 %v3340
    %v3720 = vpop.f32.mrb[0].mxu0
    %v3721 = vadd.f32 0.0, %v3720
    %v3722 = vpop.f32.mrb[0].mxu0
    %v3723 = vpop.f32.mrb[0].mxu0
    %v3724 = vadd.f32 0.0, %v3723
    %v3725 = vpop.f32.mrb[0].mxu0
    %3726 = vdwg.mxu0
    %v3727 = vld [vmem:[#allocation2] sm:$0xff]
    %v3728 = vld [vmem:[#allocation2 + $0x8] sm:$0xff]
    %v3729 = vld [vmem:[#allocation2 + $0x10] sm:$0xff]
    %v3730 = vld [vmem:[#allocation2 + $0x18] sm:$0xff]
    %v3731 = vld [vmem:[#allocation2 + $0x20] sm:$0xff]
    %v3732 = vld [vmem:[#allocation2 + $0x28] sm:$0xff]
    %v3733 = vld [vmem:[#allocation2 + $0x30] sm:$0xff]
    %v3734 = vld [vmem:[#allocation2 + $0x38] sm:$0xff]
    %v3735 = vld [vmem:[#allocation2 + $0x40] sm:$0xff]
    %v3736 = vld [vmem:[#allocation2 + $0x48] sm:$0xff]
    %v3737 = vld [vmem:[#allocation2 + $0x50] sm:$0xff]
    %v3738 = vld [vmem:[#allocation2 + $0x58] sm:$0xff]
    %v3739 = vld [vmem:[#allocation2 + $0x60] sm:$0xff]
    %v3740 = vld [vmem:[#allocation2 + $0x68] sm:$0xff]
    %v3741 = vld [vmem:[#allocation2 + $0x70] sm:$0xff]
    %v3742 = vld [vmem:[#allocation2 + $0x78] sm:$0xff]
    %v3743 = vld [vmem:[#allocation2 + $0x80] sm:$0xff]
    %v3744 = vld [vmem:[#allocation2 + $0x88] sm:$0xff]
    %v3745 = vld [vmem:[#allocation2 + $0x90] sm:$0xff]
    %v3746 = vld [vmem:[#allocation2 + $0x98] sm:$0xff]
    %v3747 = vld [vmem:[#allocation2 + $0xa0] sm:$0xff]
    %v3748 = vld [vmem:[#allocation2 + $0xa8] sm:$0xff]
    %v3749 = vld [vmem:[#allocation2 + $0xb0] sm:$0xff]
    %v3750 = vld [vmem:[#allocation2 + $0xb8] sm:$0xff]
    %v3751 = vld [vmem:[#allocation2 + $0xc0] sm:$0xff]
    %v3752 = vld [vmem:[#allocation2 + $0xc8] sm:$0xff]
    %v3753 = vld [vmem:[#allocation2 + $0xd0] sm:$0xff]
    %v3754 = vld [vmem:[#allocation2 + $0xd8] sm:$0xff]
    %v3755 = vld [vmem:[#allocation2 + $0xe0] sm:$0xff]
    %v3756 = vld [vmem:[#allocation2 + $0xe8] sm:$0xff]
    %v3757 = vld [vmem:[#allocation2 + $0xf0] sm:$0xff]
    %v3758 = vld [vmem:[#allocation2 + $0xf8] sm:$0xff]
    %v3759 = vld [vmem:[#allocation2 + $0x100] sm:$0xff]
    %v3760 = vld [vmem:[#allocation2 + $0x108] sm:$0xff]
    %v3761 = vld [vmem:[#allocation2 + $0x110] sm:$0xff]
    %v3762 = vld [vmem:[#allocation2 + $0x118] sm:$0xff]
    %v3763 = vld [vmem:[#allocation2 + $0x120] sm:$0xff]
    %v3764 = vld [vmem:[#allocation2 + $0x128] sm:$0xff]
    %v3765 = vld [vmem:[#allocation2 + $0x130] sm:$0xff]
    %v3766 = vld [vmem:[#allocation2 + $0x138] sm:$0xff]
    %v3767 = vld [vmem:[#allocation2 + $0x140] sm:$0xff]
    %v3768 = vld [vmem:[#allocation2 + $0x148] sm:$0xff]
    %v3769 = vld [vmem:[#allocation2 + $0x150] sm:$0xff]
    %v3770 = vld [vmem:[#allocation2 + $0x158] sm:$0xff]
    %v3771 = vld [vmem:[#allocation2 + $0x160] sm:$0xff]
    %v3772 = vld [vmem:[#allocation2 + $0x168] sm:$0xff]
    %v3773 = vld [vmem:[#allocation2 + $0x170] sm:$0xff]
    %v3774 = vld [vmem:[#allocation2 + $0x178] sm:$0xff]
    %v3775 = vld [vmem:[#allocation2 + $0x180] sm:$0xff]
    %v3776 = vld [vmem:[#allocation2 + $0x188] sm:$0xff]
    %v3777 = vld [vmem:[#allocation2 + $0x190] sm:$0xff]
    %v3778 = vld [vmem:[#allocation2 + $0x198] sm:$0xff]
    %v3779 = vld [vmem:[#allocation2 + $0x1a0] sm:$0xff]
    %v3780 = vld [vmem:[#allocation2 + $0x1a8] sm:$0xff]
    %v3781 = vld [vmem:[#allocation2 + $0x1b0] sm:$0xff]
    %v3782 = vld [vmem:[#allocation2 + $0x1b8] sm:$0xff]
    %v3783 = vld [vmem:[#allocation2 + $0x1c0] sm:$0xff]
    %v3784 = vld [vmem:[#allocation2 + $0x1c8] sm:$0xff]
    %v3785 = vld [vmem:[#allocation2 + $0x1d0] sm:$0xff]
    %v3786 = vld [vmem:[#allocation2 + $0x1d8] sm:$0xff]
    %v3787 = vld [vmem:[#allocation2 + $0x1e0] sm:$0xff]
    %v3788 = vld [vmem:[#allocation2 + $0x1e8] sm:$0xff]
    %v3789 = vld [vmem:[#allocation2 + $0x1f0] sm:$0xff]
    %v3790 = vld [vmem:[#allocation2 + $0x1f8] sm:$0xff]
    %v3791 = vadd.f32 %v3727, %v3473
    %v3792 = vadd.f32 %v3728, %v3476
    %v3793 = vadd.f32 %v3729, %v3481
    %v3794 = vadd.f32 %v3730, %v3484
    %v3795 = vadd.f32 %v3731, %v3489
    %v3796 = vadd.f32 %v3732, %v3492
    %v3797 = vadd.f32 %v3733, %v3497
    %v3798 = vadd.f32 %v3734, %v3500
    %v3799 = vadd.f32 %v3735, %v3505
    %v3800 = vadd.f32 %v3736, %v3508
    %v3801 = vadd.f32 %v3737, %v3513
    %v3802 = vadd.f32 %v3738, %v3516
    %v3803 = vadd.f32 %v3739, %v3521
    %v3804 = vadd.f32 %v3740, %v3524
    %v3805 = vadd.f32 %v3741, %v3529
    %v3806 = vadd.f32 %v3742, %v3532
    %v3807 = vadd.f32 %v3743, %v3537
    %v3808 = vadd.f32 %v3744, %v3540
    %v3809 = vadd.f32 %v3745, %v3545
    %v3810 = vadd.f32 %v3746, %v3548
    %v3811 = vadd.f32 %v3747, %v3553
    %v3812 = vadd.f32 %v3748, %v3556
    %v3813 = vadd.f32 %v3749, %v3561
    %v3814 = vadd.f32 %v3750, %v3564
    %v3815 = vadd.f32 %v3751, %v3569
    %v3816 = vadd.f32 %v3752, %v3572
    %v3817 = vadd.f32 %v3753, %v3577
    %v3818 = vadd.f32 %v3754, %v3580
    %v3819 = vadd.f32 %v3755, %v3585
    %v3820 = vadd.f32 %v3756, %v3588
    %v3821 = vadd.f32 %v3757, %v3593
    %v3822 = vadd.f32 %v3758, %v3596
    %v3823 = vadd.f32 %v3759, %v3601
    %v3824 = vadd.f32 %v3760, %v3604
    %v3825 = vadd.f32 %v3761, %v3609
    %v3826 = vadd.f32 %v3762, %v3612
    %v3827 = vadd.f32 %v3763, %v3617
    %v3828 = vadd.f32 %v3764, %v3620
    %v3829 = vadd.f32 %v3765, %v3625
    %v3830 = vadd.f32 %v3766, %v3628
    %v3831 = vadd.f32 %v3767, %v3633
    %v3832 = vadd.f32 %v3768, %v3636
    %v3833 = vadd.f32 %v3769, %v3641
    %v3834 = vadd.f32 %v3770, %v3644
    %v3835 = vadd.f32 %v3771, %v3649
    %v3836 = vadd.f32 %v3772, %v3652
    %v3837 = vadd.f32 %v3773, %v3657
    %v3838 = vadd.f32 %v3774, %v3660
    %v3839 = vadd.f32 %v3775, %v3665
    %v3840 = vadd.f32 %v3776, %v3668
    %v3841 = vadd.f32 %v3777, %v3673
    %v3842 = vadd.f32 %v3778, %v3676
    %v3843 = vadd.f32 %v3779, %v3681
    %v3844 = vadd.f32 %v3780, %v3684
    %v3845 = vadd.f32 %v3781, %v3689
    %v3846 = vadd.f32 %v3782, %v3692
    %v3847 = vadd.f32 %v3783, %v3697
    %v3848 = vadd.f32 %v3784, %v3700
    %v3849 = vadd.f32 %v3785, %v3705
    %v3850 = vadd.f32 %v3786, %v3708
    %v3851 = vadd.f32 %v3787, %v3713
    %v3852 = vadd.f32 %v3788, %v3716
    %v3853 = vadd.f32 %v3789, %v3721
    %v3854 = vadd.f32 %v3790, %v3724
    %3855 = vst [vmem:[#allocation2] sm:$0xff] %v3791
    %3856 = vst [vmem:[#allocation2 + $0x8] sm:$0xff] %v3792
    %3857 = vst [vmem:[#allocation2 + $0x10] sm:$0xff] %v3793
    %3858 = vst [vmem:[#allocation2 + $0x18] sm:$0xff] %v3794
    %3859 = vst [vmem:[#allocation2 + $0x20] sm:$0xff] %v3795
    %3860 = vst [vmem:[#allocation2 + $0x28] sm:$0xff] %v3796
    %3861 = vst [vmem:[#allocation2 + $0x30] sm:$0xff] %v3797
    %3862 = vst [vmem:[#allocation2 + $0x38] sm:$0xff] %v3798
    %3863 = vst [vmem:[#allocation2 + $0x40] sm:$0xff] %v3799
    %3864 = vst [vmem:[#allocation2 + $0x48] sm:$0xff] %v3800
    %3865 = vst [vmem:[#allocation2 + $0x50] sm:$0xff] %v3801
    %3866 = vst [vmem:[#allocation2 + $0x58] sm:$0xff] %v3802
    %3867 = vst [vmem:[#allocation2 + $0x60] sm:$0xff] %v3803
    %3868 = vst [vmem:[#allocation2 + $0x68] sm:$0xff] %v3804
    %3869 = vst [vmem:[#allocation2 + $0x70] sm:$0xff] %v3805
    %3870 = vst [vmem:[#allocation2 + $0x78] sm:$0xff] %v3806
    %3871 = vst [vmem:[#allocation2 + $0x80] sm:$0xff] %v3807
    %3872 = vst [vmem:[#allocation2 + $0x88] sm:$0xff] %v3808
    %3873 = vst [vmem:[#allocation2 + $0x90] sm:$0xff] %v3809
    %3874 = vst [vmem:[#allocation2 + $0x98] sm:$0xff] %v3810
    %3875 = vst [vmem:[#allocation2 + $0xa0] sm:$0xff] %v3811
    %3876 = vst [vmem:[#allocation2 + $0xa8] sm:$0xff] %v3812
    %3877 = vst [vmem:[#allocation2 + $0xb0] sm:$0xff] %v3813
    %3878 = vst [vmem:[#allocation2 + $0xb8] sm:$0xff] %v3814
    %3879 = vst [vmem:[#allocation2 + $0xc0] sm:$0xff] %v3815
    %3880 = vst [vmem:[#allocation2 + $0xc8] sm:$0xff] %v3816
    %3881 = vst [vmem:[#allocation2 + $0xd0] sm:$0xff] %v3817
    %3882 = vst [vmem:[#allocation2 + $0xd8] sm:$0xff] %v3818
    %3883 = vst [vmem:[#allocation2 + $0xe0] sm:$0xff] %v3819
    %3884 = vst [vmem:[#allocation2 + $0xe8] sm:$0xff] %v3820
    %3885 = vst [vmem:[#allocation2 + $0xf0] sm:$0xff] %v3821
    %3886 = vst [vmem:[#allocation2 + $0xf8] sm:$0xff] %v3822
    %3887 = vst [vmem:[#allocation2 + $0x100] sm:$0xff] %v3823
    %3888 = vst [vmem:[#allocation2 + $0x108] sm:$0xff] %v3824
    %3889 = vst [vmem:[#allocation2 + $0x110] sm:$0xff] %v3825
    %3890 = vst [vmem:[#allocation2 + $0x118] sm:$0xff] %v3826
    %3891 = vst [vmem:[#allocation2 + $0x120] sm:$0xff] %v3827
    %3892 = vst [vmem:[#allocation2 + $0x128] sm:$0xff] %v3828
    %3893 = vst [vmem:[#allocation2 + $0x130] sm:$0xff] %v3829
    %3894 = vst [vmem:[#allocation2 + $0x138] sm:$0xff] %v3830
    %3895 = vst [vmem:[#allocation2 + $0x140] sm:$0xff] %v3831
    %3896 = vst [vmem:[#allocation2 + $0x148] sm:$0xff] %v3832
    %3897 = vst [vmem:[#allocation2 + $0x150] sm:$0xff] %v3833
    %3898 = vst [vmem:[#allocation2 + $0x158] sm:$0xff] %v3834
    %3899 = vst [vmem:[#allocation2 + $0x160] sm:$0xff] %v3835
    %3900 = vst [vmem:[#allocation2 + $0x168] sm:$0xff] %v3836
    %3901 = vst [vmem:[#allocation2 + $0x170] sm:$0xff] %v3837
    %3902 = vst [vmem:[#allocation2 + $0x178] sm:$0xff] %v3838
    %3903 = vst [vmem:[#allocation2 + $0x180] sm:$0xff] %v3839
    %3904 = vst [vmem:[#allocation2 + $0x188] sm:$0xff] %v3840
    %3905 = vst [vmem:[#allocation2 + $0x190] sm:$0xff] %v3841
    %3906 = vst [vmem:[#allocation2 + $0x198] sm:$0xff] %v3842
    %3907 = vst [vmem:[#allocation2 + $0x1a0] sm:$0xff] %v3843
    %3908 = vst [vmem:[#allocation2 + $0x1a8] sm:$0xff] %v3844
    %3909 = vst [vmem:[#allocation2 + $0x1b0] sm:$0xff] %v3845
    %3910 = vst [vmem:[#allocation2 + $0x1b8] sm:$0xff] %v3846
    %3911 = vst [vmem:[#allocation2 + $0x1c0] sm:$0xff] %v3847
    %3912 = vst [vmem:[#allocation2 + $0x1c8] sm:$0xff] %v3848
    %3913 = vst [vmem:[#allocation2 + $0x1d0] sm:$0xff] %v3849
    %3914 = vst [vmem:[#allocation2 + $0x1d8] sm:$0xff] %v3850
    %3915 = vst [vmem:[#allocation2 + $0x1e0] sm:$0xff] %v3851
    %3916 = vst [vmem:[#allocation2 + $0x1e8] sm:$0xff] %v3852
    %3917 = vst [vmem:[#allocation2 + $0x1f0] sm:$0xff] %v3853
    %3918 = vst [vmem:[#allocation2 + $0x1f8] sm:$0xff] %v3854
    %v3919 = vld [vmem:[#allocation5] sm:$0xf0]
    %v3920 = vld [vmem:[#allocation5 + $0x8] sm:$0xf]
    %v3921 = vld [vmem:[#allocation5 + $0x10] sm:$0xf0]
    %v3922 = vld [vmem:[#allocation5 + $0x18] sm:$0xf]
    %v3923 = vld [vmem:[#allocation5 + $0x20] sm:$0xf0]
    %v3924 = vld [vmem:[#allocation5 + $0x28] sm:$0xf]
    %v3925 = vld [vmem:[#allocation5 + $0x30] sm:$0xf0]
    %v3926 = vld [vmem:[#allocation5 + $0x38] sm:$0xf]
    %v3927 = vld [vmem:[#allocation5 + $0x40] sm:$0xf0]
    %v3928 = vld [vmem:[#allocation5 + $0x48] sm:$0xf]
    %v3929 = vld [vmem:[#allocation5 + $0x50] sm:$0xf0]
    %v3930 = vld [vmem:[#allocation5 + $0x58] sm:$0xf]
    %v3931 = vld [vmem:[#allocation5 + $0x60] sm:$0xf0]
    %v3932 = vld [vmem:[#allocation5 + $0x68] sm:$0xf]
    %v3933 = vld [vmem:[#allocation5 + $0x70] sm:$0xf0]
    %v3934 = vld [vmem:[#allocation5 + $0x78] sm:$0xf]
    %v3935 = vld [vmem:[#allocation5 + $0x80] sm:$0xf0]
    %v3936 = vld [vmem:[#allocation5 + $0x88] sm:$0xf]
    %v3937 = vld [vmem:[#allocation5 + $0x90] sm:$0xf0]
    %v3938 = vld [vmem:[#allocation5 + $0x98] sm:$0xf]
    %v3939 = vld [vmem:[#allocation5 + $0xa0] sm:$0xf0]
    %v3940 = vld [vmem:[#allocation5 + $0xa8] sm:$0xf]
    %v3941 = vld [vmem:[#allocation5 + $0xb0] sm:$0xf0]
    %v3942 = vld [vmem:[#allocation5 + $0xb8] sm:$0xf]
    %v3943 = vld [vmem:[#allocation5 + $0xc0] sm:$0xf0]
    %v3944 = vld [vmem:[#allocation5 + $0xc8] sm:$0xf]
    %v3945 = vld [vmem:[#allocation5 + $0xd0] sm:$0xf0]
    %v3946 = vld [vmem:[#allocation5 + $0xd8] sm:$0xf]
    %v3947 = vld [vmem:[#allocation5 + $0xe0] sm:$0xf0]
    %v3948 = vld [vmem:[#allocation5 + $0xe8] sm:$0xf]
    %v3949 = vld [vmem:[#allocation5 + $0xf0] sm:$0xf0]
    %v3950 = vld [vmem:[#allocation5 + $0xf8] sm:$0xf]
    %v3951 = vld [vmem:[#allocation5 + $0x120] sm:$0xf0]
    %v3952 = vld [vmem:[#allocation5 + $0x128] sm:$0xf]
    %v3953 = vld [vmem:[#allocation5 + $0x130] sm:$0xf0]
    %v3954 = vld [vmem:[#allocation5 + $0x138] sm:$0xf]
    %v3955 = vld [vmem:[#allocation5 + $0x140] sm:$0xf0]
    %v3956 = vld [vmem:[#allocation5 + $0x148] sm:$0xf]
    %v3957 = vld [vmem:[#allocation5 + $0x150] sm:$0xf0]
    %v3958 = vld [vmem:[#allocation5 + $0x158] sm:$0xf]
    %v3959 = vld [vmem:[#allocation5 + $0x160] sm:$0xf0]
    %v3960 = vld [vmem:[#allocation5 + $0x168] sm:$0xf]
    %v3961 = vld [vmem:[#allocation5 + $0x170] sm:$0xf0]
    %v3962 = vld [vmem:[#allocation5 + $0x178] sm:$0xf]
    %v3963 = vld [vmem:[#allocation5 + $0x180] sm:$0xf0]
    %v3964 = vld [vmem:[#allocation5 + $0x188] sm:$0xf]
    %v3965 = vld [vmem:[#allocation5 + $0x190] sm:$0xf0]
    %v3966 = vld [vmem:[#allocation5 + $0x198] sm:$0xf]
    %v3967 = vld [vmem:[#allocation5 + $0x1a0] sm:$0xf0]
    %v3968 = vld [vmem:[#allocation5 + $0x1a8] sm:$0xf]
    %v3969 = vld [vmem:[#allocation5 + $0x1b0] sm:$0xf0]
    %v3970 = vld [vmem:[#allocation5 + $0x1b8] sm:$0xf]
    %v3971 = vld [vmem:[#allocation5 + $0x1c0] sm:$0xf0]
    %v3972 = vld [vmem:[#allocation5 + $0x1c8] sm:$0xf]
    %v3973 = vld [vmem:[#allocation5 + $0x1d0] sm:$0xf0]
    %v3974 = vld [vmem:[#allocation5 + $0x1d8] sm:$0xf]
    %v3975 = vld [vmem:[#allocation5 + $0x1e0] sm:$0xf0]
    %v3976 = vld [vmem:[#allocation5 + $0x1e8] sm:$0xf]
    %v3977 = vld [vmem:[#allocation5 + $0x1f0] sm:$0xf0]
    %v3978 = vld [vmem:[#allocation5 + $0x1f8] sm:$0xf]
    %v3979 = vld [vmem:[#allocation5 + $0x200] sm:$0xf0]
    %v3980 = vld [vmem:[#allocation5 + $0x208] sm:$0xf]
    %v3981 = vld [vmem:[#allocation5 + $0x210] sm:$0xf0]
    %v3982 = vld [vmem:[#allocation5 + $0x218] sm:$0xf]
    %v4047 = vrot.slane %v3919, 4
    %v4048 = vrot.slane %v3920, 4
    %v4049 = vsel %vm2252, %v4047, %v4048
    %v4050 = vrot.slane %v3921, 4
    %v4051 = vrot.slane %v3922, 4
    %v4052 = vsel %vm2252, %v4050, %v4051
    %v4053 = vrot.slane %v3923, 4
    %v4054 = vrot.slane %v3924, 4
    %v4055 = vsel %vm2252, %v4053, %v4054
    %v4056 = vrot.slane %v3925, 4
    %v4057 = vrot.slane %v3926, 4
    %v4058 = vsel %vm2252, %v4056, %v4057
    %v4059 = vrot.slane %v3927, 4
    %v4060 = vrot.slane %v3928, 4
    %v4061 = vsel %vm2252, %v4059, %v4060
    %v4062 = vrot.slane %v3929, 4
    %v4063 = vrot.slane %v3930, 4
    %v4064 = vsel %vm2252, %v4062, %v4063
    %v4065 = vrot.slane %v3931, 4
    %v4066 = vrot.slane %v3932, 4
    %v4067 = vsel %vm2252, %v4065, %v4066
    %v4068 = vrot.slane %v3933, 4
    %v4069 = vrot.slane %v3934, 4
    %v4070 = vsel %vm2252, %v4068, %v4069
    %v4071 = vrot.slane %v3935, 4
    %v4072 = vrot.slane %v3936, 4
    %v4073 = vsel %vm2252, %v4071, %v4072
    %v4074 = vrot.slane %v3937, 4
    %v4075 = vrot.slane %v3938, 4
    %v4076 = vsel %vm2252, %v4074, %v4075
    %v4077 = vrot.slane %v3939, 4
    %v4078 = vrot.slane %v3940, 4
    %v4079 = vsel %vm2252, %v4077, %v4078
    %v4080 = vrot.slane %v3941, 4
    %v4081 = vrot.slane %v3942, 4
    %v4082 = vsel %vm2252, %v4080, %v4081
    %v4083 = vrot.slane %v3943, 4
    %v4084 = vrot.slane %v3944, 4
    %v4085 = vsel %vm2252, %v4083, %v4084
    %v4086 = vrot.slane %v3945, 4
    %v4087 = vrot.slane %v3946, 4
    %v4088 = vsel %vm2252, %v4086, %v4087
    %v4089 = vrot.slane %v3947, 4
    %v4090 = vrot.slane %v3948, 4
    %v4091 = vsel %vm2252, %v4089, %v4090
    %v4092 = vrot.slane %v3949, 4
    %v4093 = vrot.slane %v3950, 4
    %v4094 = vsel %vm2252, %v4092, %v4093
    %v4095 = vrot.slane %v3951, 4
    %v4096 = vrot.slane %v3952, 4
    %v4097 = vsel %vm2252, %v4095, %v4096
    %v4098 = vrot.slane %v3953, 4
    %v4099 = vrot.slane %v3954, 4
    %v4100 = vsel %vm2252, %v4098, %v4099
    %v4101 = vrot.slane %v3955, 4
    %v4102 = vrot.slane %v3956, 4
    %v4103 = vsel %vm2252, %v4101, %v4102
    %v4104 = vrot.slane %v3957, 4
    %v4105 = vrot.slane %v3958, 4
    %v4106 = vsel %vm2252, %v4104, %v4105
    %v4107 = vrot.slane %v3959, 4
    %v4108 = vrot.slane %v3960, 4
    %v4109 = vsel %vm2252, %v4107, %v4108
    %v4110 = vrot.slane %v3961, 4
    %v4111 = vrot.slane %v3962, 4
    %v4112 = vsel %vm2252, %v4110, %v4111
    %v4113 = vrot.slane %v3963, 4
    %v4114 = vrot.slane %v3964, 4
    %v4115 = vsel %vm2252, %v4113, %v4114
    %v4116 = vrot.slane %v3965, 4
    %v4117 = vrot.slane %v3966, 4
    %v4118 = vsel %vm2252, %v4116, %v4117
    %v4119 = vrot.slane %v3967, 4
    %v4120 = vrot.slane %v3968, 4
    %v4121 = vsel %vm2252, %v4119, %v4120
    %v4122 = vrot.slane %v3969, 4
    %v4123 = vrot.slane %v3970, 4
    %v4124 = vsel %vm2252, %v4122, %v4123
    %v4125 = vrot.slane %v3971, 4
    %v4126 = vrot.slane %v3972, 4
    %v4127 = vsel %vm2252, %v4125, %v4126
    %v4128 = vrot.slane %v3973, 4
    %v4129 = vrot.slane %v3974, 4
    %v4130 = vsel %vm2252, %v4128, %v4129
    %v4131 = vrot.slane %v3975, 4
    %v4132 = vrot.slane %v3976, 4
    %v4133 = vsel %vm2252, %v4131, %v4132
    %v4134 = vrot.slane %v3977, 4
    %v4135 = vrot.slane %v3978, 4
    %v4136 = vsel %vm2252, %v4134, %v4135
    %v4137 = vrot.slane %v3979, 4
    %v4138 = vrot.slane %v3980, 4
    %v4139 = vsel %vm2252, %v4137, %v4138
    %v4140 = vrot.slane %v3981, 4
    %v4141 = vrot.slane %v3982, 4
    %v4142 = vsel %vm2252, %v4140, %v4141
    %s4175 = scalar_lea.vmem [#allocation6], 128
    %v4176 = vld [vmem:[%s4175] sm:$0xf]
    %v4177 = vld [vmem:[%s4175 + $0x4] sm:$0xf]
    %v4178 = vld [vmem:[%s4175 + $0x8] sm:$0xf]
    %v4179 = vld [vmem:[%s4175 + $0xc] sm:$0xf]
    %v4180 = vld [vmem:[%s4175 + $0x10] sm:$0xf]
    %v4181 = vld [vmem:[%s4175 + $0x14] sm:$0xf]
    %v4182 = vld [vmem:[%s4175 + $0x18] sm:$0xf]
    %v4183 = vld [vmem:[%s4175 + $0x1c] sm:$0xf]
    %v4184 = vld [vmem:[%s4175 + $0x20] sm:$0xf]
    %v4185 = vld [vmem:[%s4175 + $0x24] sm:$0xf]
    %v4186 = vld [vmem:[%s4175 + $0x28] sm:$0xf]
    %v4187 = vld [vmem:[%s4175 + $0x2c] sm:$0xf]
    %v4188 = vld [vmem:[%s4175 + $0x30] sm:$0xf]
    %v4189 = vld [vmem:[%s4175 + $0x34] sm:$0xf]
    %v4190 = vld [vmem:[%s4175 + $0x38] sm:$0xf]
    %v4191 = vld [vmem:[%s4175 + $0x3c] sm:$0xf]
    %v4208 = vunpack.c.l.b16 %v4176
    %v4209 = vunpack.c.l.b16 %v4177
    %v4210 = vunpack.c.l.b16 %v4178
    %v4211 = vunpack.c.l.b16 %v4179
    %v4212 = vunpack.c.l.b16 %v4180
    %v4213 = vunpack.c.l.b16 %v4181
    %v4214 = vunpack.c.l.b16 %v4182
    %v4215 = vunpack.c.l.b16 %v4183
    %v4216 = vunpack.c.l.b16 %v4184
    %v4217 = vunpack.c.l.b16 %v4185
    %v4218 = vunpack.c.l.b16 %v4186
    %v4219 = vunpack.c.l.b16 %v4187
    %v4220 = vunpack.c.l.b16 %v4188
    %v4221 = vunpack.c.l.b16 %v4189
    %v4222 = vunpack.c.l.b16 %v4190
    %v4223 = vunpack.c.l.b16 %v4191
    %v4224 = vpack.c.b16 %v4209, %v4208
    %v4225 = vpack.c.b16 %v4211, %v4210
    %v4226 = vpack.c.b16 %v4213, %v4212
    %v4227 = vpack.c.b16 %v4215, %v4214
    %v4228 = vpack.c.b16 %v4217, %v4216
    %v4229 = vpack.c.b16 %v4219, %v4218
    %v4230 = vpack.c.b16 %v4221, %v4220
    %v4231 = vpack.c.b16 %v4223, %v4222
    %4240 = vmatprep.subr.bf16.mxu0 0
    %4241 = vmatpush1.bf16.msra.mxu0 %v4224
    %4242 = vmatprep.subr.bf16.mxu0 0
    %4243 = vmatpush1.bf16.msra.mxu0 %v4225
    %4244 = vmatprep.subr.bf16.mxu0 0
    %4245 = vmatpush1.bf16.msra.mxu0 %v4226
    %4246 = vmatprep.subr.bf16.mxu0 0
    %4247 = vmatpush1.bf16.msra.mxu0 %v4227
    %4248 = vmatprep.subr.bf16.mxu0 0
    %4249 = vmatpush1.bf16.msra.mxu0 %v4228
    %4250 = vmatprep.subr.bf16.mxu0 0
    %4251 = vmatpush1.bf16.msra.mxu0 %v4229
    %4252 = vmatprep.subr.bf16.mxu0 0
    %4253 = vmatpush1.bf16.msra.mxu0 %v4230
    %4254 = vmatprep.subr.bf16.mxu0 0
    %4255 = vmatpush1.bf16.msra.mxu0 %v4231
    %4256 = vmatprep.subr.bf16.mxu0 0
    %4257 = vmatpush1.bf16.msra.mxu0 0
    %4258 = vmatprep.subr.bf16.mxu0 0
    %4259 = vmatpush1.bf16.msra.mxu0 0
    %4260 = vmatprep.subr.bf16.mxu0 0
    %4261 = vmatpush1.bf16.msra.mxu0 0
    %4262 = vmatprep.subr.bf16.mxu0 0
    %4263 = vmatpush1.bf16.msra.mxu0 0
    %4264 = vmatprep.subr.bf16.mxu0 0
    %4265 = vmatpush1.bf16.msra.mxu0 0
    %4266 = vmatprep.subr.bf16.mxu0 0
    %4267 = vmatpush1.bf16.msra.mxu0 0
    %4268 = vmatprep.subr.bf16.mxu0 0
    %4269 = vmatpush1.bf16.msra.mxu0 0
    %4270 = vmatprep.subr.bf16.mxu0 0
    %4271 = vmatpush1.bf16.msra.mxu0 0
    %4272 = vmatprep.mubr.bf16.mxu0 0
    %4273 = vmatmul.mubr.bf16.gmra.mrb[0].mxu0 %v4049
    %v4274 = vpop.f32.mrb[0].mxu0
    %v4275 = vadd.f32 0.0, %v4274
    %v4276 = vpop.f32.mrb[0].mxu0
    %v4277 = vpop.f32.mrb[0].mxu0
    %v4278 = vadd.f32 0.0, %v4277
    %v4279 = vpop.f32.mrb[0].mxu0
    %4280 = vmatprep.mubr.bf16.mxu0 0
    %4281 = vmatmul.mubr.bf16.gmra.mrb[0].mxu0 %v4052
    %v4282 = vpop.f32.mrb[0].mxu0
    %v4283 = vadd.f32 0.0, %v4282
    %v4284 = vpop.f32.mrb[0].mxu0
    %v4285 = vpop.f32.mrb[0].mxu0
    %v4286 = vadd.f32 0.0, %v4285
    %v4287 = vpop.f32.mrb[0].mxu0
    %4288 = vmatprep.mubr.bf16.mxu0 0
    %4289 = vmatmul.mubr.bf16.gmra.mrb[0].mxu0 %v4055
    %v4290 = vpop.f32.mrb[0].mxu0
    %v4291 = vadd.f32 0.0, %v4290
    %v4292 = vpop.f32.mrb[0].mxu0
    %v4293 = vpop.f32.mrb[0].mxu0
    %v4294 = vadd.f32 0.0, %v4293
    %v4295 = vpop.f32.mrb[0].mxu0
    %4296 = vmatprep.mubr.bf16.mxu0 0
    %4297 = vmatmul.mubr.bf16.gmra.mrb[0].mxu0 %v4058
    %v4298 = vpop.f32.mrb[0].mxu0
    %v4299 = vadd.f32 0.0, %v4298
    %v4300 = vpop.f32.mrb[0].mxu0
    %v4301 = vpop.f32.mrb[0].mxu0
    %v4302 = vadd.f32 0.0, %v4301
    %v4303 = vpop.f32.mrb[0].mxu0
    %4304 = vmatprep.mubr.bf16.mxu0 0
    %4305 = vmatmul.mubr.bf16.gmra.mrb[0].mxu0 %v4061
    %v4306 = vpop.f32.mrb[0].mxu0
    %v4307 = vadd.f32 0.0, %v4306
    %v4308 = vpop.f32.mrb[0].mxu0
    %v4309 = vpop.f32.mrb[0].mxu0
    %v4310 = vadd.f32 0.0, %v4309
    %v4311 = vpop.f32.mrb[0].mxu0
    %4312 = vmatprep.mubr.bf16.mxu0 0
    %4313 = vmatmul.mubr.bf16.gmra.mrb[0].mxu0 %v4064
    %v4314 = vpop.f32.mrb[0].mxu0
    %v4315 = vadd.f32 0.0, %v4314
    %v4316 = vpop.f32.mrb[0].mxu0
    %v4317 = vpop.f32.mrb[0].mxu0
    %v4318 = vadd.f32 0.0, %v4317
    %v4319 = vpop.f32.mrb[0].mxu0
    %4320 = vmatprep.mubr.bf16.mxu0 0
    %4321 = vmatmul.mubr.bf16.gmra.mrb[0].mxu0 %v4067
    %v4322 = vpop.f32.mrb[0].mxu0
    %v4323 = vadd.f32 0.0, %v4322
    %v4324 = vpop.f32.mrb[0].mxu0
    %v4325 = vpop.f32.mrb[0].mxu0
    %v4326 = vadd.f32 0.0, %v4325
    %v4327 = vpop.f32.mrb[0].mxu0
    %4328 = vmatprep.mubr.bf16.mxu0 0
    %4329 = vmatmul.mubr.bf16.gmra.mrb[0].mxu0 %v4070
    %v4330 = vpop.f32.mrb[0].mxu0
    %v4331 = vadd.f32 0.0, %v4330
    %v4332 = vpop.f32.mrb[0].mxu0
    %v4333 = vpop.f32.mrb[0].mxu0
    %v4334 = vadd.f32 0.0, %v4333
    %v4335 = vpop.f32.mrb[0].mxu0
    %4336 = vmatprep.mubr.bf16.mxu0 0
    %4337 = vmatmul.mubr.bf16.gmra.mrb[0].mxu0 %v4073
    %v4338 = vpop.f32.mrb[0].mxu0
    %v4339 = vadd.f32 0.0, %v4338
    %v4340 = vpop.f32.mrb[0].mxu0
    %v4341 = vpop.f32.mrb[0].mxu0
    %v4342 = vadd.f32 0.0, %v4341
    %v4343 = vpop.f32.mrb[0].mxu0
    %4344 = vmatprep.mubr.bf16.mxu0 0
    %4345 = vmatmul.mubr.bf16.gmra.mrb[0].mxu0 %v4076
    %v4346 = vpop.f32.mrb[0].mxu0
    %v4347 = vadd.f32 0.0, %v4346
    %v4348 = vpop.f32.mrb[0].mxu0
    %v4349 = vpop.f32.mrb[0].mxu0
    %v4350 = vadd.f32 0.0, %v4349
    %v4351 = vpop.f32.mrb[0].mxu0
    %4352 = vmatprep.mubr.bf16.mxu0 0
    %4353 = vmatmul.mubr.bf16.gmra.mrb[0].mxu0 %v4079
    %v4354 = vpop.f32.mrb[0].mxu0
    %v4355 = vadd.f32 0.0, %v4354
    %v4356 = vpop.f32.mrb[0].mxu0
    %v4357 = vpop.f32.mrb[0].mxu0
    %v4358 = vadd.f32 0.0, %v4357
    %v4359 = vpop.f32.mrb[0].mxu0
    %4360 = vmatprep.mubr.bf16.mxu0 0
    %4361 = vmatmul.mubr.bf16.gmra.mrb[0].mxu0 %v4082
    %v4362 = vpop.f32.mrb[0].mxu0
    %v4363 = vadd.f32 0.0, %v4362
    %v4364 = vpop.f32.mrb[0].mxu0
    %v4365 = vpop.f32.mrb[0].mxu0
    %v4366 = vadd.f32 0.0, %v4365
    %v4367 = vpop.f32.mrb[0].mxu0
    %4368 = vmatprep.mubr.bf16.mxu0 0
    %4369 = vmatmul.mubr.bf16.gmra.mrb[0].mxu0 %v4085
    %v4370 = vpop.f32.mrb[0].mxu0
    %v4371 = vadd.f32 0.0, %v4370
    %v4372 = vpop.f32.mrb[0].mxu0
    %v4373 = vpop.f32.mrb[0].mxu0
    %v4374 = vadd.f32 0.0, %v4373
    %v4375 = vpop.f32.mrb[0].mxu0
    %4376 = vmatprep.mubr.bf16.mxu0 0
    %4377 = vmatmul.mubr.bf16.gmra.mrb[0].mxu0 %v4088
    %v4378 = vpop.f32.mrb[0].mxu0
    %v4379 = vadd.f32 0.0, %v4378
    %v4380 = vpop.f32.mrb[0].mxu0
    %v4381 = vpop.f32.mrb[0].mxu0
    %v4382 = vadd.f32 0.0, %v4381
    %v4383 = vpop.f32.mrb[0].mxu0
    %4384 = vmatprep.mubr.bf16.mxu0 0
    %4385 = vmatmul.mubr.bf16.gmra.mrb[0].mxu0 %v4091
    %v4386 = vpop.f32.mrb[0].mxu0
    %v4387 = vadd.f32 0.0, %v4386
    %v4388 = vpop.f32.mrb[0].mxu0
    %v4389 = vpop.f32.mrb[0].mxu0
    %v4390 = vadd.f32 0.0, %v4389
    %v4391 = vpop.f32.mrb[0].mxu0
    %4392 = vmatprep.mubr.bf16.mxu0 0
    %4393 = vmatmul.mubr.bf16.gmra.mrb[0].mxu0 %v4094
    %v4394 = vpop.f32.mrb[0].mxu0
    %v4395 = vadd.f32 0.0, %v4394
    %v4396 = vpop.f32.mrb[0].mxu0
    %v4397 = vpop.f32.mrb[0].mxu0
    %v4398 = vadd.f32 0.0, %v4397
    %v4399 = vpop.f32.mrb[0].mxu0
    %4400 = vmatprep.mubr.bf16.mxu0 0
    %4401 = vmatmul.mubr.bf16.gmra.mrb[0].mxu0 %v4097
    %v4402 = vpop.f32.mrb[0].mxu0
    %v4403 = vadd.f32 0.0, %v4402
    %v4404 = vpop.f32.mrb[0].mxu0
    %v4405 = vpop.f32.mrb[0].mxu0
    %v4406 = vadd.f32 0.0, %v4405
    %v4407 = vpop.f32.mrb[0].mxu0
    %4408 = vmatprep.mubr.bf16.mxu0 0
    %4409 = vmatmul.mubr.bf16.gmra.mrb[0].mxu0 %v4100
    %v4410 = vpop.f32.mrb[0].mxu0
    %v4411 = vadd.f32 0.0, %v4410
    %v4412 = vpop.f32.mrb[0].mxu0
    %v4413 = vpop.f32.mrb[0].mxu0
    %v4414 = vadd.f32 0.0, %v4413
    %v4415 = vpop.f32.mrb[0].mxu0
    %4416 = vmatprep.mubr.bf16.mxu0 0
    %4417 = vmatmul.mubr.bf16.gmra.mrb[0].mxu0 %v4103
    %v4418 = vpop.f32.mrb[0].mxu0
    %v4419 = vadd.f32 0.0, %v4418
    %v4420 = vpop.f32.mrb[0].mxu0
    %v4421 = vpop.f32.mrb[0].mxu0
    %v4422 = vadd.f32 0.0, %v4421
    %v4423 = vpop.f32.mrb[0].mxu0
    %4424 = vmatprep.mubr.bf16.mxu0 0
    %4425 = vmatmul.mubr.bf16.gmra.mrb[0].mxu0 %v4106
    %v4426 = vpop.f32.mrb[0].mxu0
    %v4427 = vadd.f32 0.0, %v4426
    %v4428 = vpop.f32.mrb[0].mxu0
    %v4429 = vpop.f32.mrb[0].mxu0
    %v4430 = vadd.f32 0.0, %v4429
    %v4431 = vpop.f32.mrb[0].mxu0
    %4432 = vmatprep.mubr.bf16.mxu0 0
    %4433 = vmatmul.mubr.bf16.gmra.mrb[0].mxu0 %v4109
    %v4434 = vpop.f32.mrb[0].mxu0
    %v4435 = vadd.f32 0.0, %v4434
    %v4436 = vpop.f32.mrb[0].mxu0
    %v4437 = vpop.f32.mrb[0].mxu0
    %v4438 = vadd.f32 0.0, %v4437
    %v4439 = vpop.f32.mrb[0].mxu0
    %4440 = vmatprep.mubr.bf16.mxu0 0
    %4441 = vmatmul.mubr.bf16.gmra.mrb[0].mxu0 %v4112
    %v4442 = vpop.f32.mrb[0].mxu0
    %v4443 = vadd.f32 0.0, %v4442
    %v4444 = vpop.f32.mrb[0].mxu0
    %v4445 = vpop.f32.mrb[0].mxu0
    %v4446 = vadd.f32 0.0, %v4445
    %v4447 = vpop.f32.mrb[0].mxu0
    %4448 = vmatprep.mubr.bf16.mxu0 0
    %4449 = vmatmul.mubr.bf16.gmra.mrb[0].mxu0 %v4115
    %v4450 = vpop.f32.mrb[0].mxu0
    %v4451 = vadd.f32 0.0, %v4450
    %v4452 = vpop.f32.mrb[0].mxu0
    %v4453 = vpop.f32.mrb[0].mxu0
    %v4454 = vadd.f32 0.0, %v4453
    %v4455 = vpop.f32.mrb[0].mxu0
    %4456 = vmatprep.mubr.bf16.mxu0 0
    %4457 = vmatmul.mubr.bf16.gmra.mrb[0].mxu0 %v4118
    %v4458 = vpop.f32.mrb[0].mxu0
    %v4459 = vadd.f32 0.0, %v4458
    %v4460 = vpop.f32.mrb[0].mxu0
    %v4461 = vpop.f32.mrb[0].mxu0
    %v4462 = vadd.f32 0.0, %v4461
    %v4463 = vpop.f32.mrb[0].mxu0
    %4464 = vmatprep.mubr.bf16.mxu0 0
    %4465 = vmatmul.mubr.bf16.gmra.mrb[0].mxu0 %v4121
    %v4466 = vpop.f32.mrb[0].mxu0
    %v4467 = vadd.f32 0.0, %v4466
    %v4468 = vpop.f32.mrb[0].mxu0
    %v4469 = vpop.f32.mrb[0].mxu0
    %v4470 = vadd.f32 0.0, %v4469
    %v4471 = vpop.f32.mrb[0].mxu0
    %4472 = vmatprep.mubr.bf16.mxu0 0
    %4473 = vmatmul.mubr.bf16.gmra.mrb[0].mxu0 %v4124
    %v4474 = vpop.f32.mrb[0].mxu0
    %v4475 = vadd.f32 0.0, %v4474
    %v4476 = vpop.f32.mrb[0].mxu0
    %v4477 = vpop.f32.mrb[0].mxu0
    %v4478 = vadd.f32 0.0, %v4477
    %v4479 = vpop.f32.mrb[0].mxu0
    %4480 = vmatprep.mubr.bf16.mxu0 0
    %4481 = vmatmul.mubr.bf16.gmra.mrb[0].mxu0 %v4127
    %v4482 = vpop.f32.mrb[0].mxu0
    %v4483 = vadd.f32 0.0, %v4482
    %v4484 = vpop.f32.mrb[0].mxu0
    %v4485 = vpop.f32.mrb[0].mxu0
    %v4486 = vadd.f32 0.0, %v4485
    %v4487 = vpop.f32.mrb[0].mxu0
    %4488 = vmatprep.mubr.bf16.mxu0 0
    %4489 = vmatmul.mubr.bf16.gmra.mrb[0].mxu0 %v4130
    %v4490 = vpop.f32.mrb[0].mxu0
    %v4491 = vadd.f32 0.0, %v4490
    %v4492 = vpop.f32.mrb[0].mxu0
    %v4493 = vpop.f32.mrb[0].mxu0
    %v4494 = vadd.f32 0.0, %v4493
    %v4495 = vpop.f32.mrb[0].mxu0
    %4496 = vmatprep.mubr.bf16.mxu0 0
    %4497 = vmatmul.mubr.bf16.gmra.mrb[0].mxu0 %v4133
    %v4498 = vpop.f32.mrb[0].mxu0
    %v4499 = vadd.f32 0.0, %v4498
    %v4500 = vpop.f32.mrb[0].mxu0
    %v4501 = vpop.f32.mrb[0].mxu0
    %v4502 = vadd.f32 0.0, %v4501
    %v4503 = vpop.f32.mrb[0].mxu0
    %4504 = vmatprep.mubr.bf16.mxu0 0
    %4505 = vmatmul.mubr.bf16.gmra.mrb[0].mxu0 %v4136
    %v4506 = vpop.f32.mrb[0].mxu0
    %v4507 = vadd.f32 0.0, %v4506
    %v4508 = vpop.f32.mrb[0].mxu0
    %v4509 = vpop.f32.mrb[0].mxu0
    %v4510 = vadd.f32 0.0, %v4509
    %v4511 = vpop.f32.mrb[0].mxu0
    %4512 = vmatprep.mubr.bf16.mxu0 0
    %4513 = vmatmul.mubr.bf16.gmra.mrb[0].mxu0 %v4139
    %v4514 = vpop.f32.mrb[0].mxu0
    %v4515 = vadd.f32 0.0, %v4514
    %v4516 = vpop.f32.mrb[0].mxu0
    %v4517 = vpop.f32.mrb[0].mxu0
    %v4518 = vadd.f32 0.0, %v4517
    %v4519 = vpop.f32.mrb[0].mxu0
    %4520 = vmatprep.mubr.bf16.mxu0 0
    %4521 = vmatmul.mubr.bf16.gmra.mrb[0].mxu0 %v4142
    %v4522 = vpop.f32.mrb[0].mxu0
    %v4523 = vadd.f32 0.0, %v4522
    %v4524 = vpop.f32.mrb[0].mxu0
    %v4525 = vpop.f32.mrb[0].mxu0
    %v4526 = vadd.f32 0.0, %v4525
    %v4527 = vpop.f32.mrb[0].mxu0
    %4528 = vdwg.mxu0
    %v4529 = vld [vmem:[#allocation2] sm:$0xff]
    %v4530 = vld [vmem:[#allocation2 + $0x8] sm:$0xff]
    %v4531 = vld [vmem:[#allocation2 + $0x10] sm:$0xff]
    %v4532 = vld [vmem:[#allocation2 + $0x18] sm:$0xff]
    %v4533 = vld [vmem:[#allocation2 + $0x20] sm:$0xff]
    %v4534 = vld [vmem:[#allocation2 + $0x28] sm:$0xff]
    %v4535 = vld [vmem:[#allocation2 + $0x30] sm:$0xff]
    %v4536 = vld [vmem:[#allocation2 + $0x38] sm:$0xff]
    %v4537 = vld [vmem:[#allocation2 + $0x40] sm:$0xff]
    %v4538 = vld [vmem:[#allocation2 + $0x48] sm:$0xff]
    %v4539 = vld [vmem:[#allocation2 + $0x50] sm:$0xff]
    %v4540 = vld [vmem:[#allocation2 + $0x58] sm:$0xff]
    %v4541 = vld [vmem:[#allocation2 + $0x60] sm:$0xff]
    %v4542 = vld [vmem:[#allocation2 + $0x68] sm:$0xff]
    %v4543 = vld [vmem:[#allocation2 + $0x70] sm:$0xff]
    %v4544 = vld [vmem:[#allocation2 + $0x78] sm:$0xff]
    %v4545 = vld [vmem:[#allocation2 + $0x80] sm:$0xff]
    %v4546 = vld [vmem:[#allocation2 + $0x88] sm:$0xff]
    %v4547 = vld [vmem:[#allocation2 + $0x90] sm:$0xff]
    %v4548 = vld [vmem:[#allocation2 + $0x98] sm:$0xff]
    %v4549 = vld [vmem:[#allocation2 + $0xa0] sm:$0xff]
    %v4550 = vld [vmem:[#allocation2 + $0xa8] sm:$0xff]
    %v4551 = vld [vmem:[#allocation2 + $0xb0] sm:$0xff]
    %v4552 = vld [vmem:[#allocation2 + $0xb8] sm:$0xff]
    %v4553 = vld [vmem:[#allocation2 + $0xc0] sm:$0xff]
    %v4554 = vld [vmem:[#allocation2 + $0xc8] sm:$0xff]
    %v4555 = vld [vmem:[#allocation2 + $0xd0] sm:$0xff]
    %v4556 = vld [vmem:[#allocation2 + $0xd8] sm:$0xff]
    %v4557 = vld [vmem:[#allocation2 + $0xe0] sm:$0xff]
    %v4558 = vld [vmem:[#allocation2 + $0xe8] sm:$0xff]
    %v4559 = vld [vmem:[#allocation2 + $0xf0] sm:$0xff]
    %v4560 = vld [vmem:[#allocation2 + $0xf8] sm:$0xff]
    %v4561 = vld [vmem:[#allocation2 + $0x100] sm:$0xff]
    %v4562 = vld [vmem:[#allocation2 + $0x108] sm:$0xff]
    %v4563 = vld [vmem:[#allocation2 + $0x110] sm:$0xff]
    %v4564 = vld [vmem:[#allocation2 + $0x118] sm:$0xff]
    %v4565 = vld [vmem:[#allocation2 + $0x120] sm:$0xff]
    %v4566 = vld [vmem:[#allocation2 + $0x128] sm:$0xff]
    %v4567 = vld [vmem:[#allocation2 + $0x130] sm:$0xff]
    %v4568 = vld [vmem:[#allocation2 + $0x138] sm:$0xff]
    %v4569 = vld [vmem:[#allocation2 + $0x140] sm:$0xff]
    %v4570 = vld [vmem:[#allocation2 + $0x148] sm:$0xff]
    %v4571 = vld [vmem:[#allocation2 + $0x150] sm:$0xff]
    %v4572 = vld [vmem:[#allocation2 + $0x158] sm:$0xff]
    %v4573 = vld [vmem:[#allocation2 + $0x160] sm:$0xff]
    %v4574 = vld [vmem:[#allocation2 + $0x168] sm:$0xff]
    %v4575 = vld [vmem:[#allocation2 + $0x170] sm:$0xff]
    %v4576 = vld [vmem:[#allocation2 + $0x178] sm:$0xff]
    %v4577 = vld [vmem:[#allocation2 + $0x180] sm:$0xff]
    %v4578 = vld [vmem:[#allocation2 + $0x188] sm:$0xff]
    %v4579 = vld [vmem:[#allocation2 + $0x190] sm:$0xff]
    %v4580 = vld [vmem:[#allocation2 + $0x198] sm:$0xff]
    %v4581 = vld [vmem:[#allocation2 + $0x1a0] sm:$0xff]
    %v4582 = vld [vmem:[#allocation2 + $0x1a8] sm:$0xff]
    %v4583 = vld [vmem:[#allocation2 + $0x1b0] sm:$0xff]
    %v4584 = vld [vmem:[#allocation2 + $0x1b8] sm:$0xff]
    %v4585 = vld [vmem:[#allocation2 + $0x1c0] sm:$0xff]
    %v4586 = vld [vmem:[#allocation2 + $0x1c8] sm:$0xff]
    %v4587 = vld [vmem:[#allocation2 + $0x1d0] sm:$0xff]
    %v4588 = vld [vmem:[#allocation2 + $0x1d8] sm:$0xff]
    %v4589 = vld [vmem:[#allocation2 + $0x1e0] sm:$0xff]
    %v4590 = vld [vmem:[#allocation2 + $0x1e8] sm:$0xff]
    %v4591 = vld [vmem:[#allocation2 + $0x1f0] sm:$0xff]
    %v4592 = vld [vmem:[#allocation2 + $0x1f8] sm:$0xff]
    %v4593 = vadd.f32 %v4529, %v4275
    %v4594 = vadd.f32 %v4530, %v4278
    %v4595 = vadd.f32 %v4531, %v4283
    %v4596 = vadd.f32 %v4532, %v4286
    %v4597 = vadd.f32 %v4533, %v4291
    %v4598 = vadd.f32 %v4534, %v4294
    %v4599 = vadd.f32 %v4535, %v4299
    %v4600 = vadd.f32 %v4536, %v4302
    %v4601 = vadd.f32 %v4537, %v4307
    %v4602 = vadd.f32 %v4538, %v4310
    %v4603 = vadd.f32 %v4539, %v4315
    %v4604 = vadd.f32 %v4540, %v4318
    %v4605 = vadd.f32 %v4541, %v4323
    %v4606 = vadd.f32 %v4542, %v4326
    %v4607 = vadd.f32 %v4543, %v4331
    %v4608 = vadd.f32 %v4544, %v4334
    %v4609 = vadd.f32 %v4545, %v4339
    %v4610 = vadd.f32 %v4546, %v4342
    %v4611 = vadd.f32 %v4547, %v4347
    %v4612 = vadd.f32 %v4548, %v4350
    %v4613 = vadd.f32 %v4549, %v4355
    %v4614 = vadd.f32 %v4550, %v4358
    %v4615 = vadd.f32 %v4551, %v4363
    %v4616 = vadd.f32 %v4552, %v4366
    %v4617 = vadd.f32 %v4553, %v4371
    %v4618 = vadd.f32 %v4554, %v4374
    %v4619 = vadd.f32 %v4555, %v4379
    %v4620 = vadd.f32 %v4556, %v4382
    %v4621 = vadd.f32 %v4557, %v4387
    %v4622 = vadd.f32 %v4558, %v4390
    %v4623 = vadd.f32 %v4559, %v4395
    %v4624 = vadd.f32 %v4560, %v4398
    %v4625 = vadd.f32 %v4561, %v4403
    %v4626 = vadd.f32 %v4562, %v4406
    %v4627 = vadd.f32 %v4563, %v4411
    %v4628 = vadd.f32 %v4564, %v4414
    %v4629 = vadd.f32 %v4565, %v4419
    %v4630 = vadd.f32 %v4566, %v4422
    %v4631 = vadd.f32 %v4567, %v4427
    %v4632 = vadd.f32 %v4568, %v4430
    %v4633 = vadd.f32 %v4569, %v4435
    %v4634 = vadd.f32 %v4570, %v4438
    %v4635 = vadd.f32 %v4571, %v4443
    %v4636 = vadd.f32 %v4572, %v4446
    %v4637 = vadd.f32 %v4573, %v4451
    %v4638 = vadd.f32 %v4574, %v4454
    %v4639 = vadd.f32 %v4575, %v4459
    %v4640 = vadd.f32 %v4576, %v4462
    %v4641 = vadd.f32 %v4577, %v4467
    %v4642 = vadd.f32 %v4578, %v4470
    %v4643 = vadd.f32 %v4579, %v4475
    %v4644 = vadd.f32 %v4580, %v4478
    %v4645 = vadd.f32 %v4581, %v4483
    %v4646 = vadd.f32 %v4582, %v4486
    %v4647 = vadd.f32 %v4583, %v4491
    %v4648 = vadd.f32 %v4584, %v4494
    %v4649 = vadd.f32 %v4585, %v4499
    %v4650 = vadd.f32 %v4586, %v4502
    %v4651 = vadd.f32 %v4587, %v4507
    %v4652 = vadd.f32 %v4588, %v4510
    %v4653 = vadd.f32 %v4589, %v4515
    %v4654 = vadd.f32 %v4590, %v4518
    %v4655 = vadd.f32 %v4591, %v4523
    %v4656 = vadd.f32 %v4592, %v4526
    %4657 = vst [vmem:[#allocation2] sm:$0xff] %v4593
    %4658 = vst [vmem:[#allocation2 + $0x8] sm:$0xff] %v4594
    %4659 = vst [vmem:[#allocation2 + $0x10] sm:$0xff] %v4595
    %4660 = vst [vmem:[#allocation2 + $0x18] sm:$0xff] %v4596
    %4661 = vst [vmem:[#allocation2 + $0x20] sm:$0xff] %v4597
    %4662 = vst [vmem:[#allocation2 + $0x28] sm:$0xff] %v4598
    %4663 = vst [vmem:[#allocation2 + $0x30] sm:$0xff] %v4599
    %4664 = vst [vmem:[#allocation2 + $0x38] sm:$0xff] %v4600
    %4665 = vst [vmem:[#allocation2 + $0x40] sm:$0xff] %v4601
    %4666 = vst [vmem:[#allocation2 + $0x48] sm:$0xff] %v4602
    %4667 = vst [vmem:[#allocation2 + $0x50] sm:$0xff] %v4603
    %4668 = vst [vmem:[#allocation2 + $0x58] sm:$0xff] %v4604
    %4669 = vst [vmem:[#allocation2 + $0x60] sm:$0xff] %v4605
    %4670 = vst [vmem:[#allocation2 + $0x68] sm:$0xff] %v4606
    %4671 = vst [vmem:[#allocation2 + $0x70] sm:$0xff] %v4607
    %4672 = vst [vmem:[#allocation2 + $0x78] sm:$0xff] %v4608
    %4673 = vst [vmem:[#allocation2 + $0x80] sm:$0xff] %v4609
    %4674 = vst [vmem:[#allocation2 + $0x88] sm:$0xff] %v4610
    %4675 = vst [vmem:[#allocation2 + $0x90] sm:$0xff] %v4611
    %4676 = vst [vmem:[#allocation2 + $0x98] sm:$0xff] %v4612
    %4677 = vst [vmem:[#allocation2 + $0xa0] sm:$0xff] %v4613
    %4678 = vst [vmem:[#allocation2 + $0xa8] sm:$0xff] %v4614
    %4679 = vst [vmem:[#allocation2 + $0xb0] sm:$0xff] %v4615
    %4680 = vst [vmem:[#allocation2 + $0xb8] sm:$0xff] %v4616
    %4681 = vst [vmem:[#allocation2 + $0xc0] sm:$0xff] %v4617
    %4682 = vst [vmem:[#allocation2 + $0xc8] sm:$0xff] %v4618
    %4683 = vst [vmem:[#allocation2 + $0xd0] sm:$0xff] %v4619
    %4684 = vst [vmem:[#allocation2 + $0xd8] sm:$0xff] %v4620
    %4685 = vst [vmem:[#allocation2 + $0xe0] sm:$0xff] %v4621
    %4686 = vst [vmem:[#allocation2 + $0xe8] sm:$0xff] %v4622
    %4687 = vst [vmem:[#allocation2 + $0xf0] sm:$0xff] %v4623
    %4688 = vst [vmem:[#allocation2 + $0xf8] sm:$0xff] %v4624
    %4689 = vst [vmem:[#allocation2 + $0x100] sm:$0xff] %v4625
    %4690 = vst [vmem:[#allocation2 + $0x108] sm:$0xff] %v4626
    %4691 = vst [vmem:[#allocation2 + $0x110] sm:$0xff] %v4627
    %4692 = vst [vmem:[#allocation2 + $0x118] sm:$0xff] %v4628
    %4693 = vst [vmem:[#allocation2 + $0x120] sm:$0xff] %v4629
    %4694 = vst [vmem:[#allocation2 + $0x128] sm:$0xff] %v4630
    %4695 = vst [vmem:[#allocation2 + $0x130] sm:$0xff] %v4631
    %4696 = vst [vmem:[#allocation2 + $0x138] sm:$0xff] %v4632
    %4697 = vst [vmem:[#allocation2 + $0x140] sm:$0xff] %v4633
    %4698 = vst [vmem:[#allocation2 + $0x148] sm:$0xff] %v4634
    %4699 = vst [vmem:[#allocation2 + $0x150] sm:$0xff] %v4635
    %4700 = vst [vmem:[#allocation2 + $0x158] sm:$0xff] %v4636
    %4701 = vst [vmem:[#allocation2 + $0x160] sm:$0xff] %v4637
    %4702 = vst [vmem:[#allocation2 + $0x168] sm:$0xff] %v4638
    %4703 = vst [vmem:[#allocation2 + $0x170] sm:$0xff] %v4639
    %4704 = vst [vmem:[#allocation2 + $0x178] sm:$0xff] %v4640
    %4705 = vst [vmem:[#allocation2 + $0x180] sm:$0xff] %v4641
    %4706 = vst [vmem:[#allocation2 + $0x188] sm:$0xff] %v4642
    %4707 = vst [vmem:[#allocation2 + $0x190] sm:$0xff] %v4643
    %4708 = vst [vmem:[#allocation2 + $0x198] sm:$0xff] %v4644
    %4709 = vst [vmem:[#allocation2 + $0x1a0] sm:$0xff] %v4645
    %4710 = vst [vmem:[#allocation2 + $0x1a8] sm:$0xff] %v4646
    %4711 = vst [vmem:[#allocation2 + $0x1b0] sm:$0xff] %v4647
    %4712 = vst [vmem:[#allocation2 + $0x1b8] sm:$0xff] %v4648
    %4713 = vst [vmem:[#allocation2 + $0x1c0] sm:$0xff] %v4649
    %4714 = vst [vmem:[#allocation2 + $0x1c8] sm:$0xff] %v4650
    %4715 = vst [vmem:[#allocation2 + $0x1d0] sm:$0xff] %v4651
    %4716 = vst [vmem:[#allocation2 + $0x1d8] sm:$0xff] %v4652
    %4717 = vst [vmem:[#allocation2 + $0x1e0] sm:$0xff] %v4653
    %4718 = vst [vmem:[#allocation2 + $0x1e8] sm:$0xff] %v4654
    %4719 = vst [vmem:[#allocation2 + $0x1f0] sm:$0xff] %v4655
    %4720 = vst [vmem:[#allocation2 + $0x1f8] sm:$0xff] %v4656
    %v4721 = vld [vmem:[%s1613] sm:$0xf0]
    %v4722 = vld [vmem:[%s1613 + $0x8] sm:$0xf]
    %v4723 = vld [vmem:[%s1613 + $0x10] sm:$0xf0]
    %v4724 = vld [vmem:[%s1613 + $0x18] sm:$0xf]
    %v4725 = vld [vmem:[%s1613 + $0x20] sm:$0xf0]
    %v4726 = vld [vmem:[%s1613 + $0x28] sm:$0xf]
    %v4727 = vld [vmem:[%s1613 + $0x30] sm:$0xf0]
    %v4728 = vld [vmem:[%s1613 + $0x38] sm:$0xf]
    %v4729 = vld [vmem:[%s1613 + $0x40] sm:$0xf0]
    %v4730 = vld [vmem:[%s1613 + $0x48] sm:$0xf]
    %v4731 = vld [vmem:[%s1613 + $0x50] sm:$0xf0]
    %v4732 = vld [vmem:[%s1613 + $0x58] sm:$0xf]
    %v4733 = vld [vmem:[%s1613 + $0x60] sm:$0xf0]
    %v4734 = vld [vmem:[%s1613 + $0x68] sm:$0xf]
    %v4735 = vld [vmem:[%s1613 + $0x70] sm:$0xf0]
    %v4736 = vld [vmem:[%s1613 + $0x78] sm:$0xf]
    %v4737 = vld [vmem:[%s1613 + $0x80] sm:$0xf0]
    %v4738 = vld [vmem:[%s1613 + $0x88] sm:$0xf]
    %v4739 = vld [vmem:[%s1613 + $0x90] sm:$0xf0]
    %v4740 = vld [vmem:[%s1613 + $0x98] sm:$0xf]
    %v4741 = vld [vmem:[%s1613 + $0xa0] sm:$0xf0]
    %v4742 = vld [vmem:[%s1613 + $0xa8] sm:$0xf]
    %v4743 = vld [vmem:[%s1613 + $0xb0] sm:$0xf0]
    %v4744 = vld [vmem:[%s1613 + $0xb8] sm:$0xf]
    %v4745 = vld [vmem:[%s1613 + $0xc0] sm:$0xf0]
    %v4746 = vld [vmem:[%s1613 + $0xc8] sm:$0xf]
    %v4747 = vld [vmem:[%s1613 + $0xd0] sm:$0xf0]
    %v4748 = vld [vmem:[%s1613 + $0xd8] sm:$0xf]
    %v4749 = vld [vmem:[%s1613 + $0xe0] sm:$0xf0]
    %v4750 = vld [vmem:[%s1613 + $0xe8] sm:$0xf]
    %v4751 = vld [vmem:[%s1613 + $0xf0] sm:$0xf0]
    %v4752 = vld [vmem:[%s1613 + $0xf8] sm:$0xf]
    %v4753 = vld [vmem:[%s1613 + $0x120] sm:$0xf0]
    %v4754 = vld [vmem:[%s1613 + $0x128] sm:$0xf]
    %v4755 = vld [vmem:[%s1613 + $0x130] sm:$0xf0]
    %v4756 = vld [vmem:[%s1613 + $0x138] sm:$0xf]
    %v4757 = vld [vmem:[%s1613 + $0x140] sm:$0xf0]
    %v4758 = vld [vmem:[%s1613 + $0x148] sm:$0xf]
    %v4759 = vld [vmem:[%s1613 + $0x150] sm:$0xf0]
    %v4760 = vld [vmem:[%s1613 + $0x158] sm:$0xf]
    %v4761 = vld [vmem:[%s1613 + $0x160] sm:$0xf0]
    %v4762 = vld [vmem:[%s1613 + $0x168] sm:$0xf]
    %v4763 = vld [vmem:[%s1613 + $0x170] sm:$0xf0]
    %v4764 = vld [vmem:[%s1613 + $0x178] sm:$0xf]
    %v4765 = vld [vmem:[%s1613 + $0x180] sm:$0xf0]
    %v4766 = vld [vmem:[%s1613 + $0x188] sm:$0xf]
    %v4767 = vld [vmem:[%s1613 + $0x190] sm:$0xf0]
    %v4768 = vld [vmem:[%s1613 + $0x198] sm:$0xf]
    %v4769 = vld [vmem:[%s1613 + $0x1a0] sm:$0xf0]
    %v4770 = vld [vmem:[%s1613 + $0x1a8] sm:$0xf]
    %v4771 = vld [vmem:[%s1613 + $0x1b0] sm:$0xf0]
    %v4772 = vld [vmem:[%s1613 + $0x1b8] sm:$0xf]
    %v4773 = vld [vmem:[%s1613 + $0x1c0] sm:$0xf0]
    %v4774 = vld [vmem:[%s1613 + $0x1c8] sm:$0xf]
    %v4775 = vld [vmem:[%s1613 + $0x1d0] sm:$0xf0]
    %v4776 = vld [vmem:[%s1613 + $0x1d8] sm:$0xf]
    %v4777 = vld [vmem:[%s1613 + $0x1e0] sm:$0xf0]
    %v4778 = vld [vmem:[%s1613 + $0x1e8] sm:$0xf]
    %v4779 = vld [vmem:[%s1613 + $0x1f0] sm:$0xf0]
    %v4780 = vld [vmem:[%s1613 + $0x1f8] sm:$0xf]
    %v4781 = vld [vmem:[%s1613 + $0x200] sm:$0xf0]
    %v4782 = vld [vmem:[%s1613 + $0x208] sm:$0xf]
    %v4783 = vld [vmem:[%s1613 + $0x210] sm:$0xf0]
    %v4784 = vld [vmem:[%s1613 + $0x218] sm:$0xf]
    %v4849 = vrot.slane %v4721, 4
    %v4850 = vrot.slane %v4722, 4
    %v4851 = vsel %vm2252, %v4849, %v4850
    %v4852 = vrot.slane %v4723, 4
    %v4853 = vrot.slane %v4724, 4
    %v4854 = vsel %vm2252, %v4852, %v4853
    %v4855 = vrot.slane %v4725, 4
    %v4856 = vrot.slane %v4726, 4
    %v4857 = vsel %vm2252, %v4855, %v4856
    %v4858 = vrot.slane %v4727, 4
    %v4859 = vrot.slane %v4728, 4
    %v4860 = vsel %vm2252, %v4858, %v4859
    %v4861 = vrot.slane %v4729, 4
    %v4862 = vrot.slane %v4730, 4
    %v4863 = vsel %vm2252, %v4861, %v4862
    %v4864 = vrot.slane %v4731, 4
    %v4865 = vrot.slane %v4732, 4
    %v4866 = vsel %vm2252, %v4864, %v4865
    %v4867 = vrot.slane %v4733, 4
    %v4868 = vrot.slane %v4734, 4
    %v4869 = vsel %vm2252, %v4867, %v4868
    %v4870 = vrot.slane %v4735, 4
    %v4871 = vrot.slane %v4736, 4
    %v4872 = vsel %vm2252, %v4870, %v4871
    %v4873 = vrot.slane %v4737, 4
    %v4874 = vrot.slane %v4738, 4
    %v4875 = vsel %vm2252, %v4873, %v4874
    %v4876 = vrot.slane %v4739, 4
    %v4877 = vrot.slane %v4740, 4
    %v4878 = vsel %vm2252, %v4876, %v4877
    %v4879 = vrot.slane %v4741, 4
    %v4880 = vrot.slane %v4742, 4
    %v4881 = vsel %vm2252, %v4879, %v4880
    %v4882 = vrot.slane %v4743, 4
    %v4883 = vrot.slane %v4744, 4
    %v4884 = vsel %vm2252, %v4882, %v4883
    %v4885 = vrot.slane %v4745, 4
    %v4886 = vrot.slane %v4746, 4
    %v4887 = vsel %vm2252, %v4885, %v4886
    %v4888 = vrot.slane %v4747, 4
    %v4889 = vrot.slane %v4748, 4
    %v4890 = vsel %vm2252, %v4888, %v4889
    %v4891 = vrot.slane %v4749, 4
    %v4892 = vrot.slane %v4750, 4
    %v4893 = vsel %vm2252, %v4891, %v4892
    %v4894 = vrot.slane %v4751, 4
    %v4895 = vrot.slane %v4752, 4
    %v4896 = vsel %vm2252, %v4894, %v4895
    %v4897 = vrot.slane %v4753, 4
    %v4898 = vrot.slane %v4754, 4
    %v4899 = vsel %vm2252, %v4897, %v4898
    %v4900 = vrot.slane %v4755, 4
    %v4901 = vrot.slane %v4756, 4
    %v4902 = vsel %vm2252, %v4900, %v4901
    %v4903 = vrot.slane %v4757, 4
    %v4904 = vrot.slane %v4758, 4
    %v4905 = vsel %vm2252, %v4903, %v4904
    %v4906 = vrot.slane %v4759, 4
    %v4907 = vrot.slane %v4760, 4
    %v4908 = vsel %vm2252, %v4906, %v4907
    %v4909 = vrot.slane %v4761, 4
    %v4910 = vrot.slane %v4762, 4
    %v4911 = vsel %vm2252, %v4909, %v4910
    %v4912 = vrot.slane %v4763, 4
    %v4913 = vrot.slane %v4764, 4
    %v4914 = vsel %vm2252, %v4912, %v4913
    %v4915 = vrot.slane %v4765, 4
    %v4916 = vrot.slane %v4766, 4
    %v4917 = vsel %vm2252, %v4915, %v4916
    %v4918 = vrot.slane %v4767, 4
    %v4919 = vrot.slane %v4768, 4
    %v4920 = vsel %vm2252, %v4918, %v4919
    %v4921 = vrot.slane %v4769, 4
    %v4922 = vrot.slane %v4770, 4
    %v4923 = vsel %vm2252, %v4921, %v4922
    %v4924 = vrot.slane %v4771, 4
    %v4925 = vrot.slane %v4772, 4
    %v4926 = vsel %vm2252, %v4924, %v4925
    %v4927 = vrot.slane %v4773, 4
    %v4928 = vrot.slane %v4774, 4
    %v4929 = vsel %vm2252, %v4927, %v4928
    %v4930 = vrot.slane %v4775, 4
    %v4931 = vrot.slane %v4776, 4
    %v4932 = vsel %vm2252, %v4930, %v4931
    %v4933 = vrot.slane %v4777, 4
    %v4934 = vrot.slane %v4778, 4
    %v4935 = vsel %vm2252, %v4933, %v4934
    %v4936 = vrot.slane %v4779, 4
    %v4937 = vrot.slane %v4780, 4
    %v4938 = vsel %vm2252, %v4936, %v4937
    %v4939 = vrot.slane %v4781, 4
    %v4940 = vrot.slane %v4782, 4
    %v4941 = vsel %vm2252, %v4939, %v4940
    %v4942 = vrot.slane %v4783, 4
    %v4943 = vrot.slane %v4784, 4
    %v4944 = vsel %vm2252, %v4942, %v4943
    %s4977 = scalar_lea.vmem [#allocation6], 192
    %v4978 = vld [vmem:[%s4977] sm:$0xf]
    %v4979 = vld [vmem:[%s4977 + $0x4] sm:$0xf]
    %v4980 = vld [vmem:[%s4977 + $0x8] sm:$0xf]
    %v4981 = vld [vmem:[%s4977 + $0xc] sm:$0xf]
    %v4982 = vld [vmem:[%s4977 + $0x10] sm:$0xf]
    %v4983 = vld [vmem:[%s4977 + $0x14] sm:$0xf]
    %v4984 = vld [vmem:[%s4977 + $0x18] sm:$0xf]
    %v4985 = vld [vmem:[%s4977 + $0x1c] sm:$0xf]
    %v4986 = vld [vmem:[%s4977 + $0x20] sm:$0xf]
    %v4987 = vld [vmem:[%s4977 + $0x24] sm:$0xf]
    %v4988 = vld [vmem:[%s4977 + $0x28] sm:$0xf]
    %v4989 = vld [vmem:[%s4977 + $0x2c] sm:$0xf]
    %v4990 = vld [vmem:[%s4977 + $0x30] sm:$0xf]
    %v4991 = vld [vmem:[%s4977 + $0x34] sm:$0xf]
    %v4992 = vld [vmem:[%s4977 + $0x38] sm:$0xf]
    %v4993 = vld [vmem:[%s4977 + $0x3c] sm:$0xf]
    %v5010 = vunpack.c.l.b16 %v4978
    %v5011 = vunpack.c.l.b16 %v4979
    %v5012 = vunpack.c.l.b16 %v4980
    %v5013 = vunpack.c.l.b16 %v4981
    %v5014 = vunpack.c.l.b16 %v4982
    %v5015 = vunpack.c.l.b16 %v4983
    %v5016 = vunpack.c.l.b16 %v4984
    %v5017 = vunpack.c.l.b16 %v4985
    %v5018 = vunpack.c.l.b16 %v4986
    %v5019 = vunpack.c.l.b16 %v4987
    %v5020 = vunpack.c.l.b16 %v4988
    %v5021 = vunpack.c.l.b16 %v4989
    %v5022 = vunpack.c.l.b16 %v4990
    %v5023 = vunpack.c.l.b16 %v4991
    %v5024 = vunpack.c.l.b16 %v4992
    %v5025 = vunpack.c.l.b16 %v4993
    %v5026 = vpack.c.b16 %v5011, %v5010
    %v5027 = vpack.c.b16 %v5013, %v5012
    %v5028 = vpack.c.b16 %v5015, %v5014
    %v5029 = vpack.c.b16 %v5017, %v5016
    %v5030 = vpack.c.b16 %v5019, %v5018
    %v5031 = vpack.c.b16 %v5021, %v5020
    %v5032 = vpack.c.b16 %v5023, %v5022
    %v5033 = vpack.c.b16 %v5025, %v5024
    %5042 = vmatprep.subr.bf16.mxu0 0
    %5043 = vmatpush1.bf16.msra.mxu0 %v5026
    %5044 = vmatprep.subr.bf16.mxu0 0
    %5045 = vmatpush1.bf16.msra.mxu0 %v5027
    %5046 = vmatprep.subr.bf16.mxu0 0
    %5047 = vmatpush1.bf16.msra.mxu0 %v5028
    %5048 = vmatprep.subr.bf16.mxu0 0
    %5049 = vmatpush1.bf16.msra.mxu0 %v5029
    %5050 = vmatprep.subr.bf16.mxu0 0
    %5051 = vmatpush1.bf16.msra.mxu0 %v5030
    %5052 = vmatprep.subr.bf16.mxu0 0
    %5053 = vmatpush1.bf16.msra.mxu0 %v5031
    %5054 = vmatprep.subr.bf16.mxu0 0
    %5055 = vmatpush1.bf16.msra.mxu0 %v5032
    %5056 = vmatprep.subr.bf16.mxu0 0
    %5057 = vmatpush1.bf16.msra.mxu0 %v5033
    %5058 = vmatprep.subr.bf16.mxu0 0
    %5059 = vmatpush1.bf16.msra.mxu0 0
    %5060 = vmatprep.subr.bf16.mxu0 0
    %5061 = vmatpush1.bf16.msra.mxu0 0
    %5062 = vmatprep.subr.bf16.mxu0 0
    %5063 = vmatpush1.bf16.msra.mxu0 0
    %5064 = vmatprep.subr.bf16.mxu0 0
    %5065 = vmatpush1.bf16.msra.mxu0 0
    %5066 = vmatprep.subr.bf16.mxu0 0
    %5067 = vmatpush1.bf16.msra.mxu0 0
    %5068 = vmatprep.subr.bf16.mxu0 0
    %5069 = vmatpush1.bf16.msra.mxu0 0
    %5070 = vmatprep.subr.bf16.mxu0 0
    %5071 = vmatpush1.bf16.msra.mxu0 0
    %5072 = vmatprep.subr.bf16.mxu0 0
    %5073 = vmatpush1.bf16.msra.mxu0 0
    %5074 = vmatprep.mubr.bf16.mxu0 0
    %5075 = vmatmul.mubr.bf16.gmra.mrb[0].mxu0 %v4851
    %v5076 = vpop.f32.mrb[0].mxu0
    %v5077 = vadd.f32 0.0, %v5076
    %v5078 = vpop.f32.mrb[0].mxu0
    %v5079 = vpop.f32.mrb[0].mxu0
    %v5080 = vadd.f32 0.0, %v5079
    %v5081 = vpop.f32.mrb[0].mxu0
    %5082 = vmatprep.mubr.bf16.mxu0 0
    %5083 = vmatmul.mubr.bf16.gmra.mrb[0].mxu0 %v4854
    %v5084 = vpop.f32.mrb[0].mxu0
    %v5085 = vadd.f32 0.0, %v5084
    %v5086 = vpop.f32.mrb[0].mxu0
    %v5087 = vpop.f32.mrb[0].mxu0
    %v5088 = vadd.f32 0.0, %v5087
    %v5089 = vpop.f32.mrb[0].mxu0
    %5090 = vmatprep.mubr.bf16.mxu0 0
    %5091 = vmatmul.mubr.bf16.gmra.mrb[0].mxu0 %v4857
    %v5092 = vpop.f32.mrb[0].mxu0
    %v5093 = vadd.f32 0.0, %v5092
    %v5094 = vpop.f32.mrb[0].mxu0
    %v5095 = vpop.f32.mrb[0].mxu0
    %v5096 = vadd.f32 0.0, %v5095
    %v5097 = vpop.f32.mrb[0].mxu0
    %5098 = vmatprep.mubr.bf16.mxu0 0
    %5099 = vmatmul.mubr.bf16.gmra.mrb[0].mxu0 %v4860
    %v5100 = vpop.f32.mrb[0].mxu0
    %v5101 = vadd.f32 0.0, %v5100
    %v5102 = vpop.f32.mrb[0].mxu0
    %v5103 = vpop.f32.mrb[0].mxu0
    %v5104 = vadd.f32 0.0, %v5103
    %v5105 = vpop.f32.mrb[0].mxu0
    %5106 = vmatprep.mubr.bf16.mxu0 0
    %5107 = vmatmul.mubr.bf16.gmra.mrb[0].mxu0 %v4863
    %v5108 = vpop.f32.mrb[0].mxu0
    %v5109 = vadd.f32 0.0, %v5108
    %v5110 = vpop.f32.mrb[0].mxu0
    %v5111 = vpop.f32.mrb[0].mxu0
    %v5112 = vadd.f32 0.0, %v5111
    %v5113 = vpop.f32.mrb[0].mxu0
    %5114 = vmatprep.mubr.bf16.mxu0 0
    %5115 = vmatmul.mubr.bf16.gmra.mrb[0].mxu0 %v4866
    %v5116 = vpop.f32.mrb[0].mxu0
    %v5117 = vadd.f32 0.0, %v5116
    %v5118 = vpop.f32.mrb[0].mxu0
    %v5119 = vpop.f32.mrb[0].mxu0
    %v5120 = vadd.f32 0.0, %v5119
    %v5121 = vpop.f32.mrb[0].mxu0
    %5122 = vmatprep.mubr.bf16.mxu0 0
    %5123 = vmatmul.mubr.bf16.gmra.mrb[0].mxu0 %v4869
    %v5124 = vpop.f32.mrb[0].mxu0
    %v5125 = vadd.f32 0.0, %v5124
    %v5126 = vpop.f32.mrb[0].mxu0
    %v5127 = vpop.f32.mrb[0].mxu0
    %v5128 = vadd.f32 0.0, %v5127
    %v5129 = vpop.f32.mrb[0].mxu0
    %5130 = vmatprep.mubr.bf16.mxu0 0
    %5131 = vmatmul.mubr.bf16.gmra.mrb[0].mxu0 %v4872
    %v5132 = vpop.f32.mrb[0].mxu0
    %v5133 = vadd.f32 0.0, %v5132
    %v5134 = vpop.f32.mrb[0].mxu0
    %v5135 = vpop.f32.mrb[0].mxu0
    %v5136 = vadd.f32 0.0, %v5135
    %v5137 = vpop.f32.mrb[0].mxu0
    %5138 = vmatprep.mubr.bf16.mxu0 0
    %5139 = vmatmul.mubr.bf16.gmra.mrb[0].mxu0 %v4875
    %v5140 = vpop.f32.mrb[0].mxu0
    %v5141 = vadd.f32 0.0, %v5140
    %v5142 = vpop.f32.mrb[0].mxu0
    %v5143 = vpop.f32.mrb[0].mxu0
    %v5144 = vadd.f32 0.0, %v5143
    %v5145 = vpop.f32.mrb[0].mxu0
    %5146 = vmatprep.mubr.bf16.mxu0 0
    %5147 = vmatmul.mubr.bf16.gmra.mrb[0].mxu0 %v4878
    %v5148 = vpop.f32.mrb[0].mxu0
    %v5149 = vadd.f32 0.0, %v5148
    %v5150 = vpop.f32.mrb[0].mxu0
    %v5151 = vpop.f32.mrb[0].mxu0
    %v5152 = vadd.f32 0.0, %v5151
    %v5153 = vpop.f32.mrb[0].mxu0
    %5154 = vmatprep.mubr.bf16.mxu0 0
    %5155 = vmatmul.mubr.bf16.gmra.mrb[0].mxu0 %v4881
    %v5156 = vpop.f32.mrb[0].mxu0
    %v5157 = vadd.f32 0.0, %v5156
    %v5158 = vpop.f32.mrb[0].mxu0
    %v5159 = vpop.f32.mrb[0].mxu0
    %v5160 = vadd.f32 0.0, %v5159
    %v5161 = vpop.f32.mrb[0].mxu0
    %5162 = vmatprep.mubr.bf16.mxu0 0
    %5163 = vmatmul.mubr.bf16.gmra.mrb[0].mxu0 %v4884
    %v5164 = vpop.f32.mrb[0].mxu0
    %v5165 = vadd.f32 0.0, %v5164
    %v5166 = vpop.f32.mrb[0].mxu0
    %v5167 = vpop.f32.mrb[0].mxu0
    %v5168 = vadd.f32 0.0, %v5167
    %v5169 = vpop.f32.mrb[0].mxu0
    %5170 = vmatprep.mubr.bf16.mxu0 0
    %5171 = vmatmul.mubr.bf16.gmra.mrb[0].mxu0 %v4887
    %v5172 = vpop.f32.mrb[0].mxu0
    %v5173 = vadd.f32 0.0, %v5172
    %v5174 = vpop.f32.mrb[0].mxu0
    %v5175 = vpop.f32.mrb[0].mxu0
    %v5176 = vadd.f32 0.0, %v5175
    %v5177 = vpop.f32.mrb[0].mxu0
    %5178 = vmatprep.mubr.bf16.mxu0 0
    %5179 = vmatmul.mubr.bf16.gmra.mrb[0].mxu0 %v4890
    %v5180 = vpop.f32.mrb[0].mxu0
    %v5181 = vadd.f32 0.0, %v5180
    %v5182 = vpop.f32.mrb[0].mxu0
    %v5183 = vpop.f32.mrb[0].mxu0
    %v5184 = vadd.f32 0.0, %v5183
    %v5185 = vpop.f32.mrb[0].mxu0
    %5186 = vmatprep.mubr.bf16.mxu0 0
    %5187 = vmatmul.mubr.bf16.gmra.mrb[0].mxu0 %v4893
    %v5188 = vpop.f32.mrb[0].mxu0
    %v5189 = vadd.f32 0.0, %v5188
    %v5190 = vpop.f32.mrb[0].mxu0
    %v5191 = vpop.f32.mrb[0].mxu0
    %v5192 = vadd.f32 0.0, %v5191
    %v5193 = vpop.f32.mrb[0].mxu0
    %5194 = vmatprep.mubr.bf16.mxu0 0
    %5195 = vmatmul.mubr.bf16.gmra.mrb[0].mxu0 %v4896
    %v5196 = vpop.f32.mrb[0].mxu0
    %v5197 = vadd.f32 0.0, %v5196
    %v5198 = vpop.f32.mrb[0].mxu0
    %v5199 = vpop.f32.mrb[0].mxu0
    %v5200 = vadd.f32 0.0, %v5199
    %v5201 = vpop.f32.mrb[0].mxu0
    %5202 = vmatprep.mubr.bf16.mxu0 0
    %5203 = vmatmul.mubr.bf16.gmra.mrb[0].mxu0 %v4899
    %v5204 = vpop.f32.mrb[0].mxu0
    %v5205 = vadd.f32 0.0, %v5204
    %v5206 = vpop.f32.mrb[0].mxu0
    %v5207 = vpop.f32.mrb[0].mxu0
    %v5208 = vadd.f32 0.0, %v5207
    %v5209 = vpop.f32.mrb[0].mxu0
    %5210 = vmatprep.mubr.bf16.mxu0 0
    %5211 = vmatmul.mubr.bf16.gmra.mrb[0].mxu0 %v4902
    %v5212 = vpop.f32.mrb[0].mxu0
    %v5213 = vadd.f32 0.0, %v5212
    %v5214 = vpop.f32.mrb[0].mxu0
    %v5215 = vpop.f32.mrb[0].mxu0
    %v5216 = vadd.f32 0.0, %v5215
    %v5217 = vpop.f32.mrb[0].mxu0
    %5218 = vmatprep.mubr.bf16.mxu0 0
    %5219 = vmatmul.mubr.bf16.gmra.mrb[0].mxu0 %v4905
    %v5220 = vpop.f32.mrb[0].mxu0
    %v5221 = vadd.f32 0.0, %v5220
    %v5222 = vpop.f32.mrb[0].mxu0
    %v5223 = vpop.f32.mrb[0].mxu0
    %v5224 = vadd.f32 0.0, %v5223
    %v5225 = vpop.f32.mrb[0].mxu0
    %5226 = vmatprep.mubr.bf16.mxu0 0
    %5227 = vmatmul.mubr.bf16.gmra.mrb[0].mxu0 %v4908
    %v5228 = vpop.f32.mrb[0].mxu0
    %v5229 = vadd.f32 0.0, %v5228
    %v5230 = vpop.f32.mrb[0].mxu0
    %v5231 = vpop.f32.mrb[0].mxu0
    %v5232 = vadd.f32 0.0, %v5231
    %v5233 = vpop.f32.mrb[0].mxu0
    %5234 = vmatprep.mubr.bf16.mxu0 0
    %5235 = vmatmul.mubr.bf16.gmra.mrb[0].mxu0 %v4911
    %v5236 = vpop.f32.mrb[0].mxu0
    %v5237 = vadd.f32 0.0, %v5236
    %v5238 = vpop.f32.mrb[0].mxu0
    %v5239 = vpop.f32.mrb[0].mxu0
    %v5240 = vadd.f32 0.0, %v5239
    %v5241 = vpop.f32.mrb[0].mxu0
    %5242 = vmatprep.mubr.bf16.mxu0 0
    %5243 = vmatmul.mubr.bf16.gmra.mrb[0].mxu0 %v4914
    %v5244 = vpop.f32.mrb[0].mxu0
    %v5245 = vadd.f32 0.0, %v5244
    %v5246 = vpop.f32.mrb[0].mxu0
    %v5247 = vpop.f32.mrb[0].mxu0
    %v5248 = vadd.f32 0.0, %v5247
    %v5249 = vpop.f32.mrb[0].mxu0
    %5250 = vmatprep.mubr.bf16.mxu0 0
    %5251 = vmatmul.mubr.bf16.gmra.mrb[0].mxu0 %v4917
    %v5252 = vpop.f32.mrb[0].mxu0
    %v5253 = vadd.f32 0.0, %v5252
    %v5254 = vpop.f32.mrb[0].mxu0
    %v5255 = vpop.f32.mrb[0].mxu0
    %v5256 = vadd.f32 0.0, %v5255
    %v5257 = vpop.f32.mrb[0].mxu0
    %5258 = vmatprep.mubr.bf16.mxu0 0
    %5259 = vmatmul.mubr.bf16.gmra.mrb[0].mxu0 %v4920
    %v5260 = vpop.f32.mrb[0].mxu0
    %v5261 = vadd.f32 0.0, %v5260
    %v5262 = vpop.f32.mrb[0].mxu0
    %v5263 = vpop.f32.mrb[0].mxu0
    %v5264 = vadd.f32 0.0, %v5263
    %v5265 = vpop.f32.mrb[0].mxu0
    %5266 = vmatprep.mubr.bf16.mxu0 0
    %5267 = vmatmul.mubr.bf16.gmra.mrb[0].mxu0 %v4923
    %v5268 = vpop.f32.mrb[0].mxu0
    %v5269 = vadd.f32 0.0, %v5268
    %v5270 = vpop.f32.mrb[0].mxu0
    %v5271 = vpop.f32.mrb[0].mxu0
    %v5272 = vadd.f32 0.0, %v5271
    %v5273 = vpop.f32.mrb[0].mxu0
    %5274 = vmatprep.mubr.bf16.mxu0 0
    %5275 = vmatmul.mubr.bf16.gmra.mrb[0].mxu0 %v4926
    %v5276 = vpop.f32.mrb[0].mxu0
    %v5277 = vadd.f32 0.0, %v5276
    %v5278 = vpop.f32.mrb[0].mxu0
    %v5279 = vpop.f32.mrb[0].mxu0
    %v5280 = vadd.f32 0.0, %v5279
    %v5281 = vpop.f32.mrb[0].mxu0
    %5282 = vmatprep.mubr.bf16.mxu0 0
    %5283 = vmatmul.mubr.bf16.gmra.mrb[0].mxu0 %v4929
    %v5284 = vpop.f32.mrb[0].mxu0
    %v5285 = vadd.f32 0.0, %v5284
    %v5286 = vpop.f32.mrb[0].mxu0
    %v5287 = vpop.f32.mrb[0].mxu0
    %v5288 = vadd.f32 0.0, %v5287
    %v5289 = vpop.f32.mrb[0].mxu0
    %5290 = vmatprep.mubr.bf16.mxu0 0
    %5291 = vmatmul.mubr.bf16.gmra.mrb[0].mxu0 %v4932
    %v5292 = vpop.f32.mrb[0].mxu0
    %v5293 = vadd.f32 0.0, %v5292
    %v5294 = vpop.f32.mrb[0].mxu0
    %v5295 = vpop.f32.mrb[0].mxu0
    %v5296 = vadd.f32 0.0, %v5295
    %v5297 = vpop.f32.mrb[0].mxu0
    %5298 = vmatprep.mubr.bf16.mxu0 0
    %5299 = vmatmul.mubr.bf16.gmra.mrb[0].mxu0 %v4935
    %v5300 = vpop.f32.mrb[0].mxu0
    %v5301 = vadd.f32 0.0, %v5300
    %v5302 = vpop.f32.mrb[0].mxu0
    %v5303 = vpop.f32.mrb[0].mxu0
    %v5304 = vadd.f32 0.0, %v5303
    %v5305 = vpop.f32.mrb[0].mxu0
    %5306 = vmatprep.mubr.bf16.mxu0 0
    %5307 = vmatmul.mubr.bf16.gmra.mrb[0].mxu0 %v4938
    %v5308 = vpop.f32.mrb[0].mxu0
    %v5309 = vadd.f32 0.0, %v5308
    %v5310 = vpop.f32.mrb[0].mxu0
    %v5311 = vpop.f32.mrb[0].mxu0
    %v5312 = vadd.f32 0.0, %v5311
    %v5313 = vpop.f32.mrb[0].mxu0
    %5314 = vmatprep.mubr.bf16.mxu0 0
    %5315 = vmatmul.mubr.bf16.gmra.mrb[0].mxu0 %v4941
    %v5316 = vpop.f32.mrb[0].mxu0
    %v5317 = vadd.f32 0.0, %v5316
    %v5318 = vpop.f32.mrb[0].mxu0
    %v5319 = vpop.f32.mrb[0].mxu0
    %v5320 = vadd.f32 0.0, %v5319
    %v5321 = vpop.f32.mrb[0].mxu0
    %5322 = vmatprep.mubr.bf16.mxu0 0
    %5323 = vmatmul.mubr.bf16.gmra.mrb[0].mxu0 %v4944
    %v5324 = vpop.f32.mrb[0].mxu0
    %v5325 = vadd.f32 0.0, %v5324
    %v5326 = vpop.f32.mrb[0].mxu0
    %v5327 = vpop.f32.mrb[0].mxu0
    %v5328 = vadd.f32 0.0, %v5327
    %v5329 = vpop.f32.mrb[0].mxu0
    %5330 = vdwg.mxu0
    %v5331 = vld [vmem:[#allocation2] sm:$0xff]
    %v5332 = vld [vmem:[#allocation2 + $0x8] sm:$0xff]
    %v5333 = vld [vmem:[#allocation2 + $0x10] sm:$0xff]
    %v5334 = vld [vmem:[#allocation2 + $0x18] sm:$0xff]
    %v5335 = vld [vmem:[#allocation2 + $0x20] sm:$0xff]
    %v5336 = vld [vmem:[#allocation2 + $0x28] sm:$0xff]
    %v5337 = vld [vmem:[#allocation2 + $0x30] sm:$0xff]
    %v5338 = vld [vmem:[#allocation2 + $0x38] sm:$0xff]
    %v5339 = vld [vmem:[#allocation2 + $0x40] sm:$0xff]
    %v5340 = vld [vmem:[#allocation2 + $0x48] sm:$0xff]
    %v5341 = vld [vmem:[#allocation2 + $0x50] sm:$0xff]
    %v5342 = vld [vmem:[#allocation2 + $0x58] sm:$0xff]
    %v5343 = vld [vmem:[#allocation2 + $0x60] sm:$0xff]
    %v5344 = vld [vmem:[#allocation2 + $0x68] sm:$0xff]
    %v5345 = vld [vmem:[#allocation2 + $0x70] sm:$0xff]
    %v5346 = vld [vmem:[#allocation2 + $0x78] sm:$0xff]
    %v5347 = vld [vmem:[#allocation2 + $0x80] sm:$0xff]
    %v5348 = vld [vmem:[#allocation2 + $0x88] sm:$0xff]
    %v5349 = vld [vmem:[#allocation2 + $0x90] sm:$0xff]
    %v5350 = vld [vmem:[#allocation2 + $0x98] sm:$0xff]
    %v5351 = vld [vmem:[#allocation2 + $0xa0] sm:$0xff]
    %v5352 = vld [vmem:[#allocation2 + $0xa8] sm:$0xff]
    %v5353 = vld [vmem:[#allocation2 + $0xb0] sm:$0xff]
    %v5354 = vld [vmem:[#allocation2 + $0xb8] sm:$0xff]
    %v5355 = vld [vmem:[#allocation2 + $0xc0] sm:$0xff]
    %v5356 = vld [vmem:[#allocation2 + $0xc8] sm:$0xff]
    %v5357 = vld [vmem:[#allocation2 + $0xd0] sm:$0xff]
    %v5358 = vld [vmem:[#allocation2 + $0xd8] sm:$0xff]
    %v5359 = vld [vmem:[#allocation2 + $0xe0] sm:$0xff]
    %v5360 = vld [vmem:[#allocation2 + $0xe8] sm:$0xff]
    %v5361 = vld [vmem:[#allocation2 + $0xf0] sm:$0xff]
    %v5362 = vld [vmem:[#allocation2 + $0xf8] sm:$0xff]
    %v5363 = vld [vmem:[#allocation2 + $0x100] sm:$0xff]
    %v5364 = vld [vmem:[#allocation2 + $0x108] sm:$0xff]
    %v5365 = vld [vmem:[#allocation2 + $0x110] sm:$0xff]
    %v5366 = vld [vmem:[#allocation2 + $0x118] sm:$0xff]
    %v5367 = vld [vmem:[#allocation2 + $0x120] sm:$0xff]
    %v5368 = vld [vmem:[#allocation2 + $0x128] sm:$0xff]
    %v5369 = vld [vmem:[#allocation2 + $0x130] sm:$0xff]
    %v5370 = vld [vmem:[#allocation2 + $0x138] sm:$0xff]
    %v5371 = vld [vmem:[#allocation2 + $0x140] sm:$0xff]
    %v5372 = vld [vmem:[#allocation2 + $0x148] sm:$0xff]
    %v5373 = vld [vmem:[#allocation2 + $0x150] sm:$0xff]
    %v5374 = vld [vmem:[#allocation2 + $0x158] sm:$0xff]
    %v5375 = vld [vmem:[#allocation2 + $0x160] sm:$0xff]
    %v5376 = vld [vmem:[#allocation2 + $0x168] sm:$0xff]
    %v5377 = vld [vmem:[#allocation2 + $0x170] sm:$0xff]
    %v5378 = vld [vmem:[#allocation2 + $0x178] sm:$0xff]
    %v5379 = vld [vmem:[#allocation2 + $0x180] sm:$0xff]
    %v5380 = vld [vmem:[#allocation2 + $0x188] sm:$0xff]
    %v5381 = vld [vmem:[#allocation2 + $0x190] sm:$0xff]
    %v5382 = vld [vmem:[#allocation2 + $0x198] sm:$0xff]
    %v5383 = vld [vmem:[#allocation2 + $0x1a0] sm:$0xff]
    %v5384 = vld [vmem:[#allocation2 + $0x1a8] sm:$0xff]
    %v5385 = vld [vmem:[#allocation2 + $0x1b0] sm:$0xff]
    %v5386 = vld [vmem:[#allocation2 + $0x1b8] sm:$0xff]
    %v5387 = vld [vmem:[#allocation2 + $0x1c0] sm:$0xff]
    %v5388 = vld [vmem:[#allocation2 + $0x1c8] sm:$0xff]
    %v5389 = vld [vmem:[#allocation2 + $0x1d0] sm:$0xff]
    %v5390 = vld [vmem:[#allocation2 + $0x1d8] sm:$0xff]
    %v5391 = vld [vmem:[#allocation2 + $0x1e0] sm:$0xff]
    %v5392 = vld [vmem:[#allocation2 + $0x1e8] sm:$0xff]
    %v5393 = vld [vmem:[#allocation2 + $0x1f0] sm:$0xff]
    %v5394 = vld [vmem:[#allocation2 + $0x1f8] sm:$0xff]
    %v5395 = vadd.f32 %v5331, %v5077
    %v5396 = vadd.f32 %v5332, %v5080
    %v5397 = vadd.f32 %v5333, %v5085
    %v5398 = vadd.f32 %v5334, %v5088
    %v5399 = vadd.f32 %v5335, %v5093
    %v5400 = vadd.f32 %v5336, %v5096
    %v5401 = vadd.f32 %v5337, %v5101
    %v5402 = vadd.f32 %v5338, %v5104
    %v5403 = vadd.f32 %v5339, %v5109
    %v5404 = vadd.f32 %v5340, %v5112
    %v5405 = vadd.f32 %v5341, %v5117
    %v5406 = vadd.f32 %v5342, %v5120
    %v5407 = vadd.f32 %v5343, %v5125
    %v5408 = vadd.f32 %v5344, %v5128
    %v5409 = vadd.f32 %v5345, %v5133
    %v5410 = vadd.f32 %v5346, %v5136
    %v5411 = vadd.f32 %v5347, %v5141
    %v5412 = vadd.f32 %v5348, %v5144
    %v5413 = vadd.f32 %v5349, %v5149
    %v5414 = vadd.f32 %v5350, %v5152
    %v5415 = vadd.f32 %v5351, %v5157
    %v5416 = vadd.f32 %v5352, %v5160
    %v5417 = vadd.f32 %v5353, %v5165
    %v5418 = vadd.f32 %v5354, %v5168
    %v5419 = vadd.f32 %v5355, %v5173
    %v5420 = vadd.f32 %v5356, %v5176
    %v5421 = vadd.f32 %v5357, %v5181
    %v5422 = vadd.f32 %v5358, %v5184
    %v5423 = vadd.f32 %v5359, %v5189
    %v5424 = vadd.f32 %v5360, %v5192
    %v5425 = vadd.f32 %v5361, %v5197
    %v5426 = vadd.f32 %v5362, %v5200
    %v5427 = vadd.f32 %v5363, %v5205
    %v5428 = vadd.f32 %v5364, %v5208
    %v5429 = vadd.f32 %v5365, %v5213
    %v5430 = vadd.f32 %v5366, %v5216
    %v5431 = vadd.f32 %v5367, %v5221
    %v5432 = vadd.f32 %v5368, %v5224
    %v5433 = vadd.f32 %v5369, %v5229
    %v5434 = vadd.f32 %v5370, %v5232
    %v5435 = vadd.f32 %v5371, %v5237
    %v5436 = vadd.f32 %v5372, %v5240
    %v5437 = vadd.f32 %v5373, %v5245
    %v5438 = vadd.f32 %v5374, %v5248
    %v5439 = vadd.f32 %v5375, %v5253
    %v5440 = vadd.f32 %v5376, %v5256
    %v5441 = vadd.f32 %v5377, %v5261
    %v5442 = vadd.f32 %v5378, %v5264
    %v5443 = vadd.f32 %v5379, %v5269
    %v5444 = vadd.f32 %v5380, %v5272
    %v5445 = vadd.f32 %v5381, %v5277
    %v5446 = vadd.f32 %v5382, %v5280
    %v5447 = vadd.f32 %v5383, %v5285
    %v5448 = vadd.f32 %v5384, %v5288
    %v5449 = vadd.f32 %v5385, %v5293
    %v5450 = vadd.f32 %v5386, %v5296
    %v5451 = vadd.f32 %v5387, %v5301
    %v5452 = vadd.f32 %v5388, %v5304
    %v5453 = vadd.f32 %v5389, %v5309
    %v5454 = vadd.f32 %v5390, %v5312
    %v5455 = vadd.f32 %v5391, %v5317
    %v5456 = vadd.f32 %v5392, %v5320
    %v5457 = vadd.f32 %v5393, %v5325
    %v5458 = vadd.f32 %v5394, %v5328
    %5459 = vst [vmem:[#allocation2] sm:$0xff] %v5395
    %5460 = vst [vmem:[#allocation2 + $0x8] sm:$0xff] %v5396
    %5461 = vst [vmem:[#allocation2 + $0x10] sm:$0xff] %v5397
    %5462 = vst [vmem:[#allocation2 + $0x18] sm:$0xff] %v5398
    %5463 = vst [vmem:[#allocation2 + $0x20] sm:$0xff] %v5399
    %5464 = vst [vmem:[#allocation2 + $0x28] sm:$0xff] %v5400
    %5465 = vst [vmem:[#allocation2 + $0x30] sm:$0xff] %v5401
    %5466 = vst [vmem:[#allocation2 + $0x38] sm:$0xff] %v5402
    %5467 = vst [vmem:[#allocation2 + $0x40] sm:$0xff] %v5403
    %5468 = vst [vmem:[#allocation2 + $0x48] sm:$0xff] %v5404
    %5469 = vst [vmem:[#allocation2 + $0x50] sm:$0xff] %v5405
    %5470 = vst [vmem:[#allocation2 + $0x58] sm:$0xff] %v5406
    %5471 = vst [vmem:[#allocation2 + $0x60] sm:$0xff] %v5407
    %5472 = vst [vmem:[#allocation2 + $0x68] sm:$0xff] %v5408
    %5473 = vst [vmem:[#allocation2 + $0x70] sm:$0xff] %v5409
    %5474 = vst [vmem:[#allocation2 + $0x78] sm:$0xff] %v5410
    %5475 = vst [vmem:[#allocation2 + $0x80] sm:$0xff] %v5411
    %5476 = vst [vmem:[#allocation2 + $0x88] sm:$0xff] %v5412
    %5477 = vst [vmem:[#allocation2 + $0x90] sm:$0xff] %v5413
    %5478 = vst [vmem:[#allocation2 + $0x98] sm:$0xff] %v5414
    %5479 = vst [vmem:[#allocation2 + $0xa0] sm:$0xff] %v5415
    %5480 = vst [vmem:[#allocation2 + $0xa8] sm:$0xff] %v5416
    %5481 = vst [vmem:[#allocation2 + $0xb0] sm:$0xff] %v5417
    %5482 = vst [vmem:[#allocation2 + $0xb8] sm:$0xff] %v5418
    %5483 = vst [vmem:[#allocation2 + $0xc0] sm:$0xff] %v5419
    %5484 = vst [vmem:[#allocation2 + $0xc8] sm:$0xff] %v5420
    %5485 = vst [vmem:[#allocation2 + $0xd0] sm:$0xff] %v5421
    %5486 = vst [vmem:[#allocation2 + $0xd8] sm:$0xff] %v5422
    %5487 = vst [vmem:[#allocation2 + $0xe0] sm:$0xff] %v5423
    %5488 = vst [vmem:[#allocation2 + $0xe8] sm:$0xff] %v5424
    %5489 = vst [vmem:[#allocation2 + $0xf0] sm:$0xff] %v5425
    %5490 = vst [vmem:[#allocation2 + $0xf8] sm:$0xff] %v5426
    %5491 = vst [vmem:[#allocation2 + $0x100] sm:$0xff] %v5427
    %5492 = vst [vmem:[#allocation2 + $0x108] sm:$0xff] %v5428
    %5493 = vst [vmem:[#allocation2 + $0x110] sm:$0xff] %v5429
    %5494 = vst [vmem:[#allocation2 + $0x118] sm:$0xff] %v5430
    %5495 = vst [vmem:[#allocation2 + $0x120] sm:$0xff] %v5431
    %5496 = vst [vmem:[#allocation2 + $0x128] sm:$0xff] %v5432
    %5497 = vst [vmem:[#allocation2 + $0x130] sm:$0xff] %v5433
    %5498 = vst [vmem:[#allocation2 + $0x138] sm:$0xff] %v5434
    %5499 = vst [vmem:[#allocation2 + $0x140] sm:$0xff] %v5435
    %5500 = vst [vmem:[#allocation2 + $0x148] sm:$0xff] %v5436
    %5501 = vst [vmem:[#allocation2 + $0x150] sm:$0xff] %v5437
    %5502 = vst [vmem:[#allocation2 + $0x158] sm:$0xff] %v5438
    %5503 = vst [vmem:[#allocation2 + $0x160] sm:$0xff] %v5439
    %5504 = vst [vmem:[#allocation2 + $0x168] sm:$0xff] %v5440
    %5505 = vst [vmem:[#allocation2 + $0x170] sm:$0xff] %v5441
    %5506 = vst [vmem:[#allocation2 + $0x178] sm:$0xff] %v5442
    %5507 = vst [vmem:[#allocation2 + $0x180] sm:$0xff] %v5443
    %5508 = vst [vmem:[#allocation2 + $0x188] sm:$0xff] %v5444
    %5509 = vst [vmem:[#allocation2 + $0x190] sm:$0xff] %v5445
    %5510 = vst [vmem:[#allocation2 + $0x198] sm:$0xff] %v5446
    %5511 = vst [vmem:[#allocation2 + $0x1a0] sm:$0xff] %v5447
    %5512 = vst [vmem:[#allocation2 + $0x1a8] sm:$0xff] %v5448
    %5513 = vst [vmem:[#allocation2 + $0x1b0] sm:$0xff] %v5449
    %5514 = vst [vmem:[#allocation2 + $0x1b8] sm:$0xff] %v5450
    %5515 = vst [vmem:[#allocation2 + $0x1c0] sm:$0xff] %v5451
    %5516 = vst [vmem:[#allocation2 + $0x1c8] sm:$0xff] %v5452
    %5517 = vst [vmem:[#allocation2 + $0x1d0] sm:$0xff] %v5453
    %5518 = vst [vmem:[#allocation2 + $0x1d8] sm:$0xff] %v5454
    %5519 = vst [vmem:[#allocation2 + $0x1e0] sm:$0xff] %v5455
    %5520 = vst [vmem:[#allocation2 + $0x1e8] sm:$0xff] %v5456
    %5521 = vst [vmem:[#allocation2 + $0x1f0] sm:$0xff] %v5457
    %5522 = vst [vmem:[#allocation2 + $0x1f8] sm:$0xff] %v5458
    %v5523 = vld [vmem:[%s1980] sm:$0xf0]
    %v5524 = vld [vmem:[%s1980 + $0x8] sm:$0xf]
    %v5525 = vld [vmem:[%s1980 + $0x10] sm:$0xf0]
    %v5526 = vld [vmem:[%s1980 + $0x18] sm:$0xf]
    %v5527 = vld [vmem:[%s1980 + $0x20] sm:$0xf0]
    %v5528 = vld [vmem:[%s1980 + $0x28] sm:$0xf]
    %v5529 = vld [vmem:[%s1980 + $0x30] sm:$0xf0]
    %v5530 = vld [vmem:[%s1980 + $0x38] sm:$0xf]
    %v5531 = vld [vmem:[%s1980 + $0x40] sm:$0xf0]
    %v5532 = vld [vmem:[%s1980 + $0x48] sm:$0xf]
    %v5533 = vld [vmem:[%s1980 + $0x50] sm:$0xf0]
    %v5534 = vld [vmem:[%s1980 + $0x58] sm:$0xf]
    %v5535 = vld [vmem:[%s1980 + $0x60] sm:$0xf0]
    %v5536 = vld [vmem:[%s1980 + $0x68] sm:$0xf]
    %v5537 = vld [vmem:[%s1980 + $0x70] sm:$0xf0]
    %v5538 = vld [vmem:[%s1980 + $0x78] sm:$0xf]
    %v5539 = vld [vmem:[%s1980 + $0x80] sm:$0xf0]
    %v5540 = vld [vmem:[%s1980 + $0x88] sm:$0xf]
    %v5541 = vld [vmem:[%s1980 + $0x90] sm:$0xf0]
    %v5542 = vld [vmem:[%s1980 + $0x98] sm:$0xf]
    %v5543 = vld [vmem:[%s1980 + $0xa0] sm:$0xf0]
    %v5544 = vld [vmem:[%s1980 + $0xa8] sm:$0xf]
    %v5545 = vld [vmem:[%s1980 + $0xb0] sm:$0xf0]
    %v5546 = vld [vmem:[%s1980 + $0xb8] sm:$0xf]
    %v5547 = vld [vmem:[%s1980 + $0xc0] sm:$0xf0]
    %v5548 = vld [vmem:[%s1980 + $0xc8] sm:$0xf]
    %v5549 = vld [vmem:[%s1980 + $0xd0] sm:$0xf0]
    %v5550 = vld [vmem:[%s1980 + $0xd8] sm:$0xf]
    %v5551 = vld [vmem:[%s1980 + $0xe0] sm:$0xf0]
    %v5552 = vld [vmem:[%s1980 + $0xe8] sm:$0xf]
    %v5553 = vld [vmem:[%s1980 + $0xf0] sm:$0xf0]
    %v5554 = vld [vmem:[%s1980 + $0xf8] sm:$0xf]
    %v5555 = vld [vmem:[%s1980 + $0x120] sm:$0xf0]
    %v5556 = vld [vmem:[%s1980 + $0x128] sm:$0xf]
    %v5557 = vld [vmem:[%s1980 + $0x130] sm:$0xf0]
    %v5558 = vld [vmem:[%s1980 + $0x138] sm:$0xf]
    %v5559 = vld [vmem:[%s1980 + $0x140] sm:$0xf0]
    %v5560 = vld [vmem:[%s1980 + $0x148] sm:$0xf]
    %v5561 = vld [vmem:[%s1980 + $0x150] sm:$0xf0]
    %v5562 = vld [vmem:[%s1980 + $0x158] sm:$0xf]
    %v5563 = vld [vmem:[%s1980 + $0x160] sm:$0xf0]
    %v5564 = vld [vmem:[%s1980 + $0x168] sm:$0xf]
    %v5565 = vld [vmem:[%s1980 + $0x170] sm:$0xf0]
    %v5566 = vld [vmem:[%s1980 + $0x178] sm:$0xf]
    %v5567 = vld [vmem:[%s1980 + $0x180] sm:$0xf0]
    %v5568 = vld [vmem:[%s1980 + $0x188] sm:$0xf]
    %v5569 = vld [vmem:[%s1980 + $0x190] sm:$0xf0]
    %v5570 = vld [vmem:[%s1980 + $0x198] sm:$0xf]
    %v5571 = vld [vmem:[%s1980 + $0x1a0] sm:$0xf0]
    %v5572 = vld [vmem:[%s1980 + $0x1a8] sm:$0xf]
    %v5573 = vld [vmem:[%s1980 + $0x1b0] sm:$0xf0]
    %v5574 = vld [vmem:[%s1980 + $0x1b8] sm:$0xf]
    %v5575 = vld [vmem:[%s1980 + $0x1c0] sm:$0xf0]
    %v5576 = vld [vmem:[%s1980 + $0x1c8] sm:$0xf]
    %v5577 = vld [vmem:[%s1980 + $0x1d0] sm:$0xf0]
    %v5578 = vld [vmem:[%s1980 + $0x1d8] sm:$0xf]
    %v5579 = vld [vmem:[%s1980 + $0x1e0] sm:$0xf0]
    %v5580 = vld [vmem:[%s1980 + $0x1e8] sm:$0xf]
    %v5581 = vld [vmem:[%s1980 + $0x1f0] sm:$0xf0]
    %v5582 = vld [vmem:[%s1980 + $0x1f8] sm:$0xf]
    %v5583 = vld [vmem:[%s1980 + $0x200] sm:$0xf0]
    %v5584 = vld [vmem:[%s1980 + $0x208] sm:$0xf]
    %v5585 = vld [vmem:[%s1980 + $0x210] sm:$0xf0]
    %v5586 = vld [vmem:[%s1980 + $0x218] sm:$0xf]
    %v5651 = vrot.slane %v5523, 4
    %v5652 = vrot.slane %v5524, 4
    %v5653 = vsel %vm2252, %v5651, %v5652
    %v5654 = vrot.slane %v5525, 4
    %v5655 = vrot.slane %v5526, 4
    %v5656 = vsel %vm2252, %v5654, %v5655
    %v5657 = vrot.slane %v5527, 4
    %v5658 = vrot.slane %v5528, 4
    %v5659 = vsel %vm2252, %v5657, %v5658
    %v5660 = vrot.slane %v5529, 4
    %v5661 = vrot.slane %v5530, 4
    %v5662 = vsel %vm2252, %v5660, %v5661
    %v5663 = vrot.slane %v5531, 4
    %v5664 = vrot.slane %v5532, 4
    %v5665 = vsel %vm2252, %v5663, %v5664
    %v5666 = vrot.slane %v5533, 4
    %v5667 = vrot.slane %v5534, 4
    %v5668 = vsel %vm2252, %v5666, %v5667
    %v5669 = vrot.slane %v5535, 4
    %v5670 = vrot.slane %v5536, 4
    %v5671 = vsel %vm2252, %v5669, %v5670
    %v5672 = vrot.slane %v5537, 4
    %v5673 = vrot.slane %v5538, 4
    %v5674 = vsel %vm2252, %v5672, %v5673
    %v5675 = vrot.slane %v5539, 4
    %v5676 = vrot.slane %v5540, 4
    %v5677 = vsel %vm2252, %v5675, %v5676
    %v5678 = vrot.slane %v5541, 4
    %v5679 = vrot.slane %v5542, 4
    %v5680 = vsel %vm2252, %v5678, %v5679
    %v5681 = vrot.slane %v5543, 4
    %v5682 = vrot.slane %v5544, 4
    %v5683 = vsel %vm2252, %v5681, %v5682
    %v5684 = vrot.slane %v5545, 4
    %v5685 = vrot.slane %v5546, 4
    %v5686 = vsel %vm2252, %v5684, %v5685
    %v5687 = vrot.slane %v5547, 4
    %v5688 = vrot.slane %v5548, 4
    %v5689 = vsel %vm2252, %v5687, %v5688
    %v5690 = vrot.slane %v5549, 4
    %v5691 = vrot.slane %v5550, 4
    %v5692 = vsel %vm2252, %v5690, %v5691
    %v5693 = vrot.slane %v5551, 4
    %v5694 = vrot.slane %v5552, 4
    %v5695 = vsel %vm2252, %v5693, %v5694
    %v5696 = vrot.slane %v5553, 4
    %v5697 = vrot.slane %v5554, 4
    %v5698 = vsel %vm2252, %v5696, %v5697
    %v5699 = vrot.slane %v5555, 4
    %v5700 = vrot.slane %v5556, 4
    %v5701 = vsel %vm2252, %v5699, %v5700
    %v5702 = vrot.slane %v5557, 4
    %v5703 = vrot.slane %v5558, 4
    %v5704 = vsel %vm2252, %v5702, %v5703
    %v5705 = vrot.slane %v5559, 4
    %v5706 = vrot.slane %v5560, 4
    %v5707 = vsel %vm2252, %v5705, %v5706
    %v5708 = vrot.slane %v5561, 4
    %v5709 = vrot.slane %v5562, 4
    %v5710 = vsel %vm2252, %v5708, %v5709
    %v5711 = vrot.slane %v5563, 4
    %v5712 = vrot.slane %v5564, 4
    %v5713 = vsel %vm2252, %v5711, %v5712
    %v5714 = vrot.slane %v5565, 4
    %v5715 = vrot.slane %v5566, 4
    %v5716 = vsel %vm2252, %v5714, %v5715
    %v5717 = vrot.slane %v5567, 4
    %v5718 = vrot.slane %v5568, 4
    %v5719 = vsel %vm2252, %v5717, %v5718
    %v5720 = vrot.slane %v5569, 4
    %v5721 = vrot.slane %v5570, 4
    %v5722 = vsel %vm2252, %v5720, %v5721
    %v5723 = vrot.slane %v5571, 4
    %v5724 = vrot.slane %v5572, 4
    %v5725 = vsel %vm2252, %v5723, %v5724
    %v5726 = vrot.slane %v5573, 4
    %v5727 = vrot.slane %v5574, 4
    %v5728 = vsel %vm2252, %v5726, %v5727
    %v5729 = vrot.slane %v5575, 4
    %v5730 = vrot.slane %v5576, 4
    %v5731 = vsel %vm2252, %v5729, %v5730
    %v5732 = vrot.slane %v5577, 4
    %v5733 = vrot.slane %v5578, 4
    %v5734 = vsel %vm2252, %v5732, %v5733
    %v5735 = vrot.slane %v5579, 4
    %v5736 = vrot.slane %v5580, 4
    %v5737 = vsel %vm2252, %v5735, %v5736
    %v5738 = vrot.slane %v5581, 4
    %v5739 = vrot.slane %v5582, 4
    %v5740 = vsel %vm2252, %v5738, %v5739
    %v5741 = vrot.slane %v5583, 4
    %v5742 = vrot.slane %v5584, 4
    %v5743 = vsel %vm2252, %v5741, %v5742
    %v5744 = vrot.slane %v5585, 4
    %v5745 = vrot.slane %v5586, 4
    %v5746 = vsel %vm2252, %v5744, %v5745
    %s5779 = scalar_lea.vmem [#allocation6], 256
    %v5780 = vld [vmem:[%s5779] sm:$0xf]
    %v5781 = vld [vmem:[%s5779 + $0x4] sm:$0xf]
    %v5782 = vld [vmem:[%s5779 + $0x8] sm:$0xf]
    %v5783 = vld [vmem:[%s5779 + $0xc] sm:$0xf]
    %v5784 = vld [vmem:[%s5779 + $0x10] sm:$0xf]
    %v5785 = vld [vmem:[%s5779 + $0x14] sm:$0xf]
    %v5786 = vld [vmem:[%s5779 + $0x18] sm:$0xf]
    %v5787 = vld [vmem:[%s5779 + $0x1c] sm:$0xf]
    %v5788 = vld [vmem:[%s5779 + $0x20] sm:$0xf]
    %v5789 = vld [vmem:[%s5779 + $0x24] sm:$0xf]
    %v5790 = vld [vmem:[%s5779 + $0x28] sm:$0xf]
    %v5791 = vld [vmem:[%s5779 + $0x2c] sm:$0xf]
    %v5792 = vld [vmem:[%s5779 + $0x30] sm:$0xf]
    %v5793 = vld [vmem:[%s5779 + $0x34] sm:$0xf]
    %v5794 = vld [vmem:[%s5779 + $0x38] sm:$0xf]
    %v5795 = vld [vmem:[%s5779 + $0x3c] sm:$0xf]
    %v5812 = vunpack.c.l.b16 %v5780
    %v5813 = vunpack.c.l.b16 %v5781
    %v5814 = vunpack.c.l.b16 %v5782
    %v5815 = vunpack.c.l.b16 %v5783
    %v5816 = vunpack.c.l.b16 %v5784
    %v5817 = vunpack.c.l.b16 %v5785
    %v5818 = vunpack.c.l.b16 %v5786
    %v5819 = vunpack.c.l.b16 %v5787
    %v5820 = vunpack.c.l.b16 %v5788
    %v5821 = vunpack.c.l.b16 %v5789
    %v5822 = vunpack.c.l.b16 %v5790
    %v5823 = vunpack.c.l.b16 %v5791
    %v5824 = vunpack.c.l.b16 %v5792
    %v5825 = vunpack.c.l.b16 %v5793
    %v5826 = vunpack.c.l.b16 %v5794
    %v5827 = vunpack.c.l.b16 %v5795
    %v5828 = vpack.c.b16 %v5813, %v5812
    %v5829 = vpack.c.b16 %v5815, %v5814
    %v5830 = vpack.c.b16 %v5817, %v5816
    %v5831 = vpack.c.b16 %v5819, %v5818
    %v5832 = vpack.c.b16 %v5821, %v5820
    %v5833 = vpack.c.b16 %v5823, %v5822
    %v5834 = vpack.c.b16 %v5825, %v5824
    %v5835 = vpack.c.b16 %v5827, %v5826
    %5844 = vmatprep.subr.bf16.mxu0 0
    %5845 = vmatpush1.bf16.msra.mxu0 %v5828
    %5846 = vmatprep.subr.bf16.mxu0 0
    %5847 = vmatpush1.bf16.msra.mxu0 %v5829
    %5848 = vmatprep.subr.bf16.mxu0 0
    %5849 = vmatpush1.bf16.msra.mxu0 %v5830
    %5850 = vmatprep.subr.bf16.mxu0 0
    %5851 = vmatpush1.bf16.msra.mxu0 %v5831
    %5852 = vmatprep.subr.bf16.mxu0 0
    %5853 = vmatpush1.bf16.msra.mxu0 %v5832
    %5854 = vmatprep.subr.bf16.mxu0 0
    %5855 = vmatpush1.bf16.msra.mxu0 %v5833
    %5856 = vmatprep.subr.bf16.mxu0 0
    %5857 = vmatpush1.bf16.msra.mxu0 %v5834
    %5858 = vmatprep.subr.bf16.mxu0 0
    %5859 = vmatpush1.bf16.msra.mxu0 %v5835
    %5860 = vmatprep.subr.bf16.mxu0 0
    %5861 = vmatpush1.bf16.msra.mxu0 0
    %5862 = vmatprep.subr.bf16.mxu0 0
    %5863 = vmatpush1.bf16.msra.mxu0 0
    %5864 = vmatprep.subr.bf16.mxu0 0
    %5865 = vmatpush1.bf16.msra.mxu0 0
    %5866 = vmatprep.subr.bf16.mxu0 0
    %5867 = vmatpush1.bf16.msra.mxu0 0
    %5868 = vmatprep.subr.bf16.mxu0 0
    %5869 = vmatpush1.bf16.msra.mxu0 0
    %5870 = vmatprep.subr.bf16.mxu0 0
    %5871 = vmatpush1.bf16.msra.mxu0 0
    %5872 = vmatprep.subr.bf16.mxu0 0
    %5873 = vmatpush1.bf16.msra.mxu0 0
    %5874 = vmatprep.subr.bf16.mxu0 0
    %5875 = vmatpush1.bf16.msra.mxu0 0
    %5876 = vmatprep.mubr.bf16.mxu0 0
    %5877 = vmatmul.mubr.bf16.gmra.mrb[0].mxu0 %v5653
    %v5878 = vpop.f32.mrb[0].mxu0
    %v5879 = vadd.f32 0.0, %v5878
    %v5880 = vpop.f32.mrb[0].mxu0
    %v5881 = vpop.f32.mrb[0].mxu0
    %v5882 = vadd.f32 0.0, %v5881
    %v5883 = vpop.f32.mrb[0].mxu0
    %5884 = vmatprep.mubr.bf16.mxu0 0
    %5885 = vmatmul.mubr.bf16.gmra.mrb[0].mxu0 %v5656
    %v5886 = vpop.f32.mrb[0].mxu0
    %v5887 = vadd.f32 0.0, %v5886
    %v5888 = vpop.f32.mrb[0].mxu0
    %v5889 = vpop.f32.mrb[0].mxu0
    %v5890 = vadd.f32 0.0, %v5889
    %v5891 = vpop.f32.mrb[0].mxu0
    %5892 = vmatprep.mubr.bf16.mxu0 0
    %5893 = vmatmul.mubr.bf16.gmra.mrb[0].mxu0 %v5659
    %v5894 = vpop.f32.mrb[0].mxu0
    %v5895 = vadd.f32 0.0, %v5894
    %v5896 = vpop.f32.mrb[0].mxu0
    %v5897 = vpop.f32.mrb[0].mxu0
    %v5898 = vadd.f32 0.0, %v5897
    %v5899 = vpop.f32.mrb[0].mxu0
    %5900 = vmatprep.mubr.bf16.mxu0 0
    %5901 = vmatmul.mubr.bf16.gmra.mrb[0].mxu0 %v5662
    %v5902 = vpop.f32.mrb[0].mxu0
    %v5903 = vadd.f32 0.0, %v5902
    %v5904 = vpop.f32.mrb[0].mxu0
    %v5905 = vpop.f32.mrb[0].mxu0
    %v5906 = vadd.f32 0.0, %v5905
    %v5907 = vpop.f32.mrb[0].mxu0
    %5908 = vmatprep.mubr.bf16.mxu0 0
    %5909 = vmatmul.mubr.bf16.gmra.mrb[0].mxu0 %v5665
    %v5910 = vpop.f32.mrb[0].mxu0
    %v5911 = vadd.f32 0.0, %v5910
    %v5912 = vpop.f32.mrb[0].mxu0
    %v5913 = vpop.f32.mrb[0].mxu0
    %v5914 = vadd.f32 0.0, %v5913
    %v5915 = vpop.f32.mrb[0].mxu0
    %5916 = vmatprep.mubr.bf16.mxu0 0
    %5917 = vmatmul.mubr.bf16.gmra.mrb[0].mxu0 %v5668
    %v5918 = vpop.f32.mrb[0].mxu0
    %v5919 = vadd.f32 0.0, %v5918
    %v5920 = vpop.f32.mrb[0].mxu0
    %v5921 = vpop.f32.mrb[0].mxu0
    %v5922 = vadd.f32 0.0, %v5921
    %v5923 = vpop.f32.mrb[0].mxu0
    %5924 = vmatprep.mubr.bf16.mxu0 0
    %5925 = vmatmul.mubr.bf16.gmra.mrb[0].mxu0 %v5671
    %v5926 = vpop.f32.mrb[0].mxu0
    %v5927 = vadd.f32 0.0, %v5926
    %v5928 = vpop.f32.mrb[0].mxu0
    %v5929 = vpop.f32.mrb[0].mxu0
    %v5930 = vadd.f32 0.0, %v5929
    %v5931 = vpop.f32.mrb[0].mxu0
    %5932 = vmatprep.mubr.bf16.mxu0 0
    %5933 = vmatmul.mubr.bf16.gmra.mrb[0].mxu0 %v5674
    %v5934 = vpop.f32.mrb[0].mxu0
    %v5935 = vadd.f32 0.0, %v5934
    %v5936 = vpop.f32.mrb[0].mxu0
    %v5937 = vpop.f32.mrb[0].mxu0
    %v5938 = vadd.f32 0.0, %v5937
    %v5939 = vpop.f32.mrb[0].mxu0
    %5940 = vmatprep.mubr.bf16.mxu0 0
    %5941 = vmatmul.mubr.bf16.gmra.mrb[0].mxu0 %v5677
    %v5942 = vpop.f32.mrb[0].mxu0
    %v5943 = vadd.f32 0.0, %v5942
    %v5944 = vpop.f32.mrb[0].mxu0
    %v5945 = vpop.f32.mrb[0].mxu0
    %v5946 = vadd.f32 0.0, %v5945
    %v5947 = vpop.f32.mrb[0].mxu0
    %5948 = vmatprep.mubr.bf16.mxu0 0
    %5949 = vmatmul.mubr.bf16.gmra.mrb[0].mxu0 %v5680
    %v5950 = vpop.f32.mrb[0].mxu0
    %v5951 = vadd.f32 0.0, %v5950
    %v5952 = vpop.f32.mrb[0].mxu0
    %v5953 = vpop.f32.mrb[0].mxu0
    %v5954 = vadd.f32 0.0, %v5953
    %v5955 = vpop.f32.mrb[0].mxu0
    %5956 = vmatprep.mubr.bf16.mxu0 0
    %5957 = vmatmul.mubr.bf16.gmra.mrb[0].mxu0 %v5683
    %v5958 = vpop.f32.mrb[0].mxu0
    %v5959 = vadd.f32 0.0, %v5958
    %v5960 = vpop.f32.mrb[0].mxu0
    %v5961 = vpop.f32.mrb[0].mxu0
    %v5962 = vadd.f32 0.0, %v5961
    %v5963 = vpop.f32.mrb[0].mxu0
    %5964 = vmatprep.mubr.bf16.mxu0 0
    %5965 = vmatmul.mubr.bf16.gmra.mrb[0].mxu0 %v5686
    %v5966 = vpop.f32.mrb[0].mxu0
    %v5967 = vadd.f32 0.0, %v5966
    %v5968 = vpop.f32.mrb[0].mxu0
    %v5969 = vpop.f32.mrb[0].mxu0
    %v5970 = vadd.f32 0.0, %v5969
    %v5971 = vpop.f32.mrb[0].mxu0
    %5972 = vmatprep.mubr.bf16.mxu0 0
    %5973 = vmatmul.mubr.bf16.gmra.mrb[0].mxu0 %v5689
    %v5974 = vpop.f32.mrb[0].mxu0
    %v5975 = vadd.f32 0.0, %v5974
    %v5976 = vpop.f32.mrb[0].mxu0
    %v5977 = vpop.f32.mrb[0].mxu0
    %v5978 = vadd.f32 0.0, %v5977
    %v5979 = vpop.f32.mrb[0].mxu0
    %5980 = vmatprep.mubr.bf16.mxu0 0
    %5981 = vmatmul.mubr.bf16.gmra.mrb[0].mxu0 %v5692
    %v5982 = vpop.f32.mrb[0].mxu0
    %v5983 = vadd.f32 0.0, %v5982
    %v5984 = vpop.f32.mrb[0].mxu0
    %v5985 = vpop.f32.mrb[0].mxu0
    %v5986 = vadd.f32 0.0, %v5985
    %v5987 = vpop.f32.mrb[0].mxu0
    %5988 = vmatprep.mubr.bf16.mxu0 0
    %5989 = vmatmul.mubr.bf16.gmra.mrb[0].mxu0 %v5695
    %v5990 = vpop.f32.mrb[0].mxu0
    %v5991 = vadd.f32 0.0, %v5990
    %v5992 = vpop.f32.mrb[0].mxu0
    %v5993 = vpop.f32.mrb[0].mxu0
    %v5994 = vadd.f32 0.0, %v5993
    %v5995 = vpop.f32.mrb[0].mxu0
    %5996 = vmatprep.mubr.bf16.mxu0 0
    %5997 = vmatmul.mubr.bf16.gmra.mrb[0].mxu0 %v5698
    %v5998 = vpop.f32.mrb[0].mxu0
    %v5999 = vadd.f32 0.0, %v5998
    %v6000 = vpop.f32.mrb[0].mxu0
    %v6001 = vpop.f32.mrb[0].mxu0
    %v6002 = vadd.f32 0.0, %v6001
    %v6003 = vpop.f32.mrb[0].mxu0
    %6004 = vmatprep.mubr.bf16.mxu0 0
    %6005 = vmatmul.mubr.bf16.gmra.mrb[0].mxu0 %v5701
    %v6006 = vpop.f32.mrb[0].mxu0
    %v6007 = vadd.f32 0.0, %v6006
    %v6008 = vpop.f32.mrb[0].mxu0
    %v6009 = vpop.f32.mrb[0].mxu0
    %v6010 = vadd.f32 0.0, %v6009
    %v6011 = vpop.f32.mrb[0].mxu0
    %6012 = vmatprep.mubr.bf16.mxu0 0
    %6013 = vmatmul.mubr.bf16.gmra.mrb[0].mxu0 %v5704
    %v6014 = vpop.f32.mrb[0].mxu0
    %v6015 = vadd.f32 0.0, %v6014
    %v6016 = vpop.f32.mrb[0].mxu0
    %v6017 = vpop.f32.mrb[0].mxu0
    %v6018 = vadd.f32 0.0, %v6017
    %v6019 = vpop.f32.mrb[0].mxu0
    %6020 = vmatprep.mubr.bf16.mxu0 0
    %6021 = vmatmul.mubr.bf16.gmra.mrb[0].mxu0 %v5707
    %v6022 = vpop.f32.mrb[0].mxu0
    %v6023 = vadd.f32 0.0, %v6022
    %v6024 = vpop.f32.mrb[0].mxu0
    %v6025 = vpop.f32.mrb[0].mxu0
    %v6026 = vadd.f32 0.0, %v6025
    %v6027 = vpop.f32.mrb[0].mxu0
    %6028 = vmatprep.mubr.bf16.mxu0 0
    %6029 = vmatmul.mubr.bf16.gmra.mrb[0].mxu0 %v5710
    %v6030 = vpop.f32.mrb[0].mxu0
    %v6031 = vadd.f32 0.0, %v6030
    %v6032 = vpop.f32.mrb[0].mxu0
    %v6033 = vpop.f32.mrb[0].mxu0
    %v6034 = vadd.f32 0.0, %v6033
    %v6035 = vpop.f32.mrb[0].mxu0
    %6036 = vmatprep.mubr.bf16.mxu0 0
    %6037 = vmatmul.mubr.bf16.gmra.mrb[0].mxu0 %v5713
    %v6038 = vpop.f32.mrb[0].mxu0
    %v6039 = vadd.f32 0.0, %v6038
    %v6040 = vpop.f32.mrb[0].mxu0
    %v6041 = vpop.f32.mrb[0].mxu0
    %v6042 = vadd.f32 0.0, %v6041
    %v6043 = vpop.f32.mrb[0].mxu0
    %6044 = vmatprep.mubr.bf16.mxu0 0
    %6045 = vmatmul.mubr.bf16.gmra.mrb[0].mxu0 %v5716
    %v6046 = vpop.f32.mrb[0].mxu0
    %v6047 = vadd.f32 0.0, %v6046
    %v6048 = vpop.f32.mrb[0].mxu0
    %v6049 = vpop.f32.mrb[0].mxu0
    %v6050 = vadd.f32 0.0, %v6049
    %v6051 = vpop.f32.mrb[0].mxu0
    %6052 = vmatprep.mubr.bf16.mxu0 0
    %6053 = vmatmul.mubr.bf16.gmra.mrb[0].mxu0 %v5719
    %v6054 = vpop.f32.mrb[0].mxu0
    %v6055 = vadd.f32 0.0, %v6054
    %v6056 = vpop.f32.mrb[0].mxu0
    %v6057 = vpop.f32.mrb[0].mxu0
    %v6058 = vadd.f32 0.0, %v6057
    %v6059 = vpop.f32.mrb[0].mxu0
    %6060 = vmatprep.mubr.bf16.mxu0 0
    %6061 = vmatmul.mubr.bf16.gmra.mrb[0].mxu0 %v5722
    %v6062 = vpop.f32.mrb[0].mxu0
    %v6063 = vadd.f32 0.0, %v6062
    %v6064 = vpop.f32.mrb[0].mxu0
    %v6065 = vpop.f32.mrb[0].mxu0
    %v6066 = vadd.f32 0.0, %v6065
    %v6067 = vpop.f32.mrb[0].mxu0
    %6068 = vmatprep.mubr.bf16.mxu0 0
    %6069 = vmatmul.mubr.bf16.gmra.mrb[0].mxu0 %v5725
    %v6070 = vpop.f32.mrb[0].mxu0
    %v6071 = vadd.f32 0.0, %v6070
    %v6072 = vpop.f32.mrb[0].mxu0
    %v6073 = vpop.f32.mrb[0].mxu0
    %v6074 = vadd.f32 0.0, %v6073
    %v6075 = vpop.f32.mrb[0].mxu0
    %6076 = vmatprep.mubr.bf16.mxu0 0
    %6077 = vmatmul.mubr.bf16.gmra.mrb[0].mxu0 %v5728
    %v6078 = vpop.f32.mrb[0].mxu0
    %v6079 = vadd.f32 0.0, %v6078
    %v6080 = vpop.f32.mrb[0].mxu0
    %v6081 = vpop.f32.mrb[0].mxu0
    %v6082 = vadd.f32 0.0, %v6081
    %v6083 = vpop.f32.mrb[0].mxu0
    %6084 = vmatprep.mubr.bf16.mxu0 0
    %6085 = vmatmul.mubr.bf16.gmra.mrb[0].mxu0 %v5731
    %v6086 = vpop.f32.mrb[0].mxu0
    %v6087 = vadd.f32 0.0, %v6086
    %v6088 = vpop.f32.mrb[0].mxu0
    %v6089 = vpop.f32.mrb[0].mxu0
    %v6090 = vadd.f32 0.0, %v6089
    %v6091 = vpop.f32.mrb[0].mxu0
    %6092 = vmatprep.mubr.bf16.mxu0 0
    %6093 = vmatmul.mubr.bf16.gmra.mrb[0].mxu0 %v5734
    %v6094 = vpop.f32.mrb[0].mxu0
    %v6095 = vadd.f32 0.0, %v6094
    %v6096 = vpop.f32.mrb[0].mxu0
    %v6097 = vpop.f32.mrb[0].mxu0
    %v6098 = vadd.f32 0.0, %v6097
    %v6099 = vpop.f32.mrb[0].mxu0
    %6100 = vmatprep.mubr.bf16.mxu0 0
    %6101 = vmatmul.mubr.bf16.gmra.mrb[0].mxu0 %v5737
    %v6102 = vpop.f32.mrb[0].mxu0
    %v6103 = vadd.f32 0.0, %v6102
    %v6104 = vpop.f32.mrb[0].mxu0
    %v6105 = vpop.f32.mrb[0].mxu0
    %v6106 = vadd.f32 0.0, %v6105
    %v6107 = vpop.f32.mrb[0].mxu0
    %6108 = vmatprep.mubr.bf16.mxu0 0
    %6109 = vmatmul.mubr.bf16.gmra.mrb[0].mxu0 %v5740
    %v6110 = vpop.f32.mrb[0].mxu0
    %v6111 = vadd.f32 0.0, %v6110
    %v6112 = vpop.f32.mrb[0].mxu0
    %v6113 = vpop.f32.mrb[0].mxu0
    %v6114 = vadd.f32 0.0, %v6113
    %v6115 = vpop.f32.mrb[0].mxu0
    %6116 = vmatprep.mubr.bf16.mxu0 0
    %6117 = vmatmul.mubr.bf16.gmra.mrb[0].mxu0 %v5743
    %v6118 = vpop.f32.mrb[0].mxu0
    %v6119 = vadd.f32 0.0, %v6118
    %v6120 = vpop.f32.mrb[0].mxu0
    %v6121 = vpop.f32.mrb[0].mxu0
    %v6122 = vadd.f32 0.0, %v6121
    %v6123 = vpop.f32.mrb[0].mxu0
    %6124 = vmatprep.mubr.bf16.mxu0 0
    %6125 = vmatmul.mubr.bf16.gmra.mrb[0].mxu0 %v5746
    %v6126 = vpop.f32.mrb[0].mxu0
    %v6127 = vadd.f32 0.0, %v6126
    %v6128 = vpop.f32.mrb[0].mxu0
    %v6129 = vpop.f32.mrb[0].mxu0
    %v6130 = vadd.f32 0.0, %v6129
    %v6131 = vpop.f32.mrb[0].mxu0
    %6132 = vdwg.mxu0
    %v6133 = vld [vmem:[#allocation2] sm:$0xff]
    %v6134 = vld [vmem:[#allocation2 + $0x8] sm:$0xff]
    %v6135 = vld [vmem:[#allocation2 + $0x10] sm:$0xff]
    %v6136 = vld [vmem:[#allocation2 + $0x18] sm:$0xff]
    %v6137 = vld [vmem:[#allocation2 + $0x20] sm:$0xff]
    %v6138 = vld [vmem:[#allocation2 + $0x28] sm:$0xff]
    %v6139 = vld [vmem:[#allocation2 + $0x30] sm:$0xff]
    %v6140 = vld [vmem:[#allocation2 + $0x38] sm:$0xff]
    %v6141 = vld [vmem:[#allocation2 + $0x40] sm:$0xff]
    %v6142 = vld [vmem:[#allocation2 + $0x48] sm:$0xff]
    %v6143 = vld [vmem:[#allocation2 + $0x50] sm:$0xff]
    %v6144 = vld [vmem:[#allocation2 + $0x58] sm:$0xff]
    %v6145 = vld [vmem:[#allocation2 + $0x60] sm:$0xff]
    %v6146 = vld [vmem:[#allocation2 + $0x68] sm:$0xff]
    %v6147 = vld [vmem:[#allocation2 + $0x70] sm:$0xff]
    %v6148 = vld [vmem:[#allocation2 + $0x78] sm:$0xff]
    %v6149 = vld [vmem:[#allocation2 + $0x80] sm:$0xff]
    %v6150 = vld [vmem:[#allocation2 + $0x88] sm:$0xff]
    %v6151 = vld [vmem:[#allocation2 + $0x90] sm:$0xff]
    %v6152 = vld [vmem:[#allocation2 + $0x98] sm:$0xff]
    %v6153 = vld [vmem:[#allocation2 + $0xa0] sm:$0xff]
    %v6154 = vld [vmem:[#allocation2 + $0xa8] sm:$0xff]
    %v6155 = vld [vmem:[#allocation2 + $0xb0] sm:$0xff]
    %v6156 = vld [vmem:[#allocation2 + $0xb8] sm:$0xff]
    %v6157 = vld [vmem:[#allocation2 + $0xc0] sm:$0xff]
    %v6158 = vld [vmem:[#allocation2 + $0xc8] sm:$0xff]
    %v6159 = vld [vmem:[#allocation2 + $0xd0] sm:$0xff]
    %v6160 = vld [vmem:[#allocation2 + $0xd8] sm:$0xff]
    %v6161 = vld [vmem:[#allocation2 + $0xe0] sm:$0xff]
    %v6162 = vld [vmem:[#allocation2 + $0xe8] sm:$0xff]
    %v6163 = vld [vmem:[#allocation2 + $0xf0] sm:$0xff]
    %v6164 = vld [vmem:[#allocation2 + $0xf8] sm:$0xff]
    %v6165 = vld [vmem:[#allocation2 + $0x100] sm:$0xff]
    %v6166 = vld [vmem:[#allocation2 + $0x108] sm:$0xff]
    %v6167 = vld [vmem:[#allocation2 + $0x110] sm:$0xff]
    %v6168 = vld [vmem:[#allocation2 + $0x118] sm:$0xff]
    %v6169 = vld [vmem:[#allocation2 + $0x120] sm:$0xff]
    %v6170 = vld [vmem:[#allocation2 + $0x128] sm:$0xff]
    %v6171 = vld [vmem:[#allocation2 + $0x130] sm:$0xff]
    %v6172 = vld [vmem:[#allocation2 + $0x138] sm:$0xff]
    %v6173 = vld [vmem:[#allocation2 + $0x140] sm:$0xff]
    %v6174 = vld [vmem:[#allocation2 + $0x148] sm:$0xff]
    %v6175 = vld [vmem:[#allocation2 + $0x150] sm:$0xff]
    %v6176 = vld [vmem:[#allocation2 + $0x158] sm:$0xff]
    %v6177 = vld [vmem:[#allocation2 + $0x160] sm:$0xff]
    %v6178 = vld [vmem:[#allocation2 + $0x168] sm:$0xff]
    %v6179 = vld [vmem:[#allocation2 + $0x170] sm:$0xff]
    %v6180 = vld [vmem:[#allocation2 + $0x178] sm:$0xff]
    %v6181 = vld [vmem:[#allocation2 + $0x180] sm:$0xff]
    %v6182 = vld [vmem:[#allocation2 + $0x188] sm:$0xff]
    %v6183 = vld [vmem:[#allocation2 + $0x190] sm:$0xff]
    %v6184 = vld [vmem:[#allocation2 + $0x198] sm:$0xff]
    %v6185 = vld [vmem:[#allocation2 + $0x1a0] sm:$0xff]
    %v6186 = vld [vmem:[#allocation2 + $0x1a8] sm:$0xff]
    %v6187 = vld [vmem:[#allocation2 + $0x1b0] sm:$0xff]
    %v6188 = vld [vmem:[#allocation2 + $0x1b8] sm:$0xff]
    %v6189 = vld [vmem:[#allocation2 + $0x1c0] sm:$0xff]
    %v6190 = vld [vmem:[#allocation2 + $0x1c8] sm:$0xff]
    %v6191 = vld [vmem:[#allocation2 + $0x1d0] sm:$0xff]
    %v6192 = vld [vmem:[#allocation2 + $0x1d8] sm:$0xff]
    %v6193 = vld [vmem:[#allocation2 + $0x1e0] sm:$0xff]
    %v6194 = vld [vmem:[#allocation2 + $0x1e8] sm:$0xff]
    %v6195 = vld [vmem:[#allocation2 + $0x1f0] sm:$0xff]
    %v6196 = vld [vmem:[#allocation2 + $0x1f8] sm:$0xff]
    %v6197 = vadd.f32 %v6133, %v5879
    %v6198 = vadd.f32 %v6134, %v5882
    %v6199 = vadd.f32 %v6135, %v5887
    %v6200 = vadd.f32 %v6136, %v5890
    %v6201 = vadd.f32 %v6137, %v5895
    %v6202 = vadd.f32 %v6138, %v5898
    %v6203 = vadd.f32 %v6139, %v5903
    %v6204 = vadd.f32 %v6140, %v5906
    %v6205 = vadd.f32 %v6141, %v5911
    %v6206 = vadd.f32 %v6142, %v5914
    %v6207 = vadd.f32 %v6143, %v5919
    %v6208 = vadd.f32 %v6144, %v5922
    %v6209 = vadd.f32 %v6145, %v5927
    %v6210 = vadd.f32 %v6146, %v5930
    %v6211 = vadd.f32 %v6147, %v5935
    %v6212 = vadd.f32 %v6148, %v5938
    %v6213 = vadd.f32 %v6149, %v5943
    %v6214 = vadd.f32 %v6150, %v5946
    %v6215 = vadd.f32 %v6151, %v5951
    %v6216 = vadd.f32 %v6152, %v5954
    %v6217 = vadd.f32 %v6153, %v5959
    %v6218 = vadd.f32 %v6154, %v5962
    %v6219 = vadd.f32 %v6155, %v5967
    %v6220 = vadd.f32 %v6156, %v5970
    %v6221 = vadd.f32 %v6157, %v5975
    %v6222 = vadd.f32 %v6158, %v5978
    %v6223 = vadd.f32 %v6159, %v5983
    %v6224 = vadd.f32 %v6160, %v5986
    %v6225 = vadd.f32 %v6161, %v5991
    %v6226 = vadd.f32 %v6162, %v5994
    %v6227 = vadd.f32 %v6163, %v5999
    %v6228 = vadd.f32 %v6164, %v6002
    %v6229 = vadd.f32 %v6165, %v6007
    %v6230 = vadd.f32 %v6166, %v6010
    %v6231 = vadd.f32 %v6167, %v6015
    %v6232 = vadd.f32 %v6168, %v6018
    %v6233 = vadd.f32 %v6169, %v6023
    %v6234 = vadd.f32 %v6170, %v6026
    %v6235 = vadd.f32 %v6171, %v6031
    %v6236 = vadd.f32 %v6172, %v6034
    %v6237 = vadd.f32 %v6173, %v6039
    %v6238 = vadd.f32 %v6174, %v6042
    %v6239 = vadd.f32 %v6175, %v6047
    %v6240 = vadd.f32 %v6176, %v6050
    %v6241 = vadd.f32 %v6177, %v6055
    %v6242 = vadd.f32 %v6178, %v6058
    %v6243 = vadd.f32 %v6179, %v6063
    %v6244 = vadd.f32 %v6180, %v6066
    %v6245 = vadd.f32 %v6181, %v6071
    %v6246 = vadd.f32 %v6182, %v6074
    %v6247 = vadd.f32 %v6183, %v6079
    %v6248 = vadd.f32 %v6184, %v6082
    %v6249 = vadd.f32 %v6185, %v6087
    %v6250 = vadd.f32 %v6186, %v6090
    %v6251 = vadd.f32 %v6187, %v6095
    %v6252 = vadd.f32 %v6188, %v6098
    %v6253 = vadd.f32 %v6189, %v6103
    %v6254 = vadd.f32 %v6190, %v6106
    %v6255 = vadd.f32 %v6191, %v6111
    %v6256 = vadd.f32 %v6192, %v6114
    %v6257 = vadd.f32 %v6193, %v6119
    %v6258 = vadd.f32 %v6194, %v6122
    %v6259 = vadd.f32 %v6195, %v6127
    %v6260 = vadd.f32 %v6196, %v6130
    %6261 = vst [vmem:[#allocation2] sm:$0xff] %v6197
    %6262 = vst [vmem:[#allocation2 + $0x8] sm:$0xff] %v6198
    %6263 = vst [vmem:[#allocation2 + $0x10] sm:$0xff] %v6199
    %6264 = vst [vmem:[#allocation2 + $0x18] sm:$0xff] %v6200
    %6265 = vst [vmem:[#allocation2 + $0x20] sm:$0xff] %v6201
    %6266 = vst [vmem:[#allocation2 + $0x28] sm:$0xff] %v6202
    %6267 = vst [vmem:[#allocation2 + $0x30] sm:$0xff] %v6203
    %6268 = vst [vmem:[#allocation2 + $0x38] sm:$0xff] %v6204
    %6269 = vst [vmem:[#allocation2 + $0x40] sm:$0xff] %v6205
    %6270 = vst [vmem:[#allocation2 + $0x48] sm:$0xff] %v6206
    %6271 = vst [vmem:[#allocation2 + $0x50] sm:$0xff] %v6207
    %6272 = vst [vmem:[#allocation2 + $0x58] sm:$0xff] %v6208
    %6273 = vst [vmem:[#allocation2 + $0x60] sm:$0xff] %v6209
    %6274 = vst [vmem:[#allocation2 + $0x68] sm:$0xff] %v6210
    %6275 = vst [vmem:[#allocation2 + $0x70] sm:$0xff] %v6211
    %6276 = vst [vmem:[#allocation2 + $0x78] sm:$0xff] %v6212
    %6277 = vst [vmem:[#allocation2 + $0x80] sm:$0xff] %v6213
    %6278 = vst [vmem:[#allocation2 + $0x88] sm:$0xff] %v6214
    %6279 = vst [vmem:[#allocation2 + $0x90] sm:$0xff] %v6215
    %6280 = vst [vmem:[#allocation2 + $0x98] sm:$0xff] %v6216
    %6281 = vst [vmem:[#allocation2 + $0xa0] sm:$0xff] %v6217
    %6282 = vst [vmem:[#allocation2 + $0xa8] sm:$0xff] %v6218
    %6283 = vst [vmem:[#allocation2 + $0xb0] sm:$0xff] %v6219
    %6284 = vst [vmem:[#allocation2 + $0xb8] sm:$0xff] %v6220
    %6285 = vst [vmem:[#allocation2 + $0xc0] sm:$0xff] %v6221
    %6286 = vst [vmem:[#allocation2 + $0xc8] sm:$0xff] %v6222
    %6287 = vst [vmem:[#allocation2 + $0xd0] sm:$0xff] %v6223
    %6288 = vst [vmem:[#allocation2 + $0xd8] sm:$0xff] %v6224
    %6289 = vst [vmem:[#allocation2 + $0xe0] sm:$0xff] %v6225
    %6290 = vst [vmem:[#allocation2 + $0xe8] sm:$0xff] %v6226
    %6291 = vst [vmem:[#allocation2 + $0xf0] sm:$0xff] %v6227
    %6292 = vst [vmem:[#allocation2 + $0xf8] sm:$0xff] %v6228
    %6293 = vst [vmem:[#allocation2 + $0x100] sm:$0xff] %v6229
    %6294 = vst [vmem:[#allocation2 + $0x108] sm:$0xff] %v6230
    %6295 = vst [vmem:[#allocation2 + $0x110] sm:$0xff] %v6231
    %6296 = vst [vmem:[#allocation2 + $0x118] sm:$0xff] %v6232
    %6297 = vst [vmem:[#allocation2 + $0x120] sm:$0xff] %v6233
    %6298 = vst [vmem:[#allocation2 + $0x128] sm:$0xff] %v6234
    %6299 = vst [vmem:[#allocation2 + $0x130] sm:$0xff] %v6235
    %6300 = vst [vmem:[#allocation2 + $0x138] sm:$0xff] %v6236
    %6301 = vst [vmem:[#allocation2 + $0x140] sm:$0xff] %v6237
    %6302 = vst [vmem:[#allocation2 + $0x148] sm:$0xff] %v6238
    %6303 = vst [vmem:[#allocation2 + $0x150] sm:$0xff] %v6239
    %6304 = vst [vmem:[#allocation2 + $0x158] sm:$0xff] %v6240
    %6305 = vst [vmem:[#allocation2 + $0x160] sm:$0xff] %v6241
    %6306 = vst [vmem:[#allocation2 + $0x168] sm:$0xff] %v6242
    %6307 = vst [vmem:[#allocation2 + $0x170] sm:$0xff] %v6243
    %6308 = vst [vmem:[#allocation2 + $0x178] sm:$0xff] %v6244
    %6309 = vst [vmem:[#allocation2 + $0x180] sm:$0xff] %v6245
    %6310 = vst [vmem:[#allocation2 + $0x188] sm:$0xff] %v6246
    %6311 = vst [vmem:[#allocation2 + $0x190] sm:$0xff] %v6247
    %6312 = vst [vmem:[#allocation2 + $0x198] sm:$0xff] %v6248
    %6313 = vst [vmem:[#allocation2 + $0x1a0] sm:$0xff] %v6249
    %6314 = vst [vmem:[#allocation2 + $0x1a8] sm:$0xff] %v6250
    %6315 = vst [vmem:[#allocation2 + $0x1b0] sm:$0xff] %v6251
    %6316 = vst [vmem:[#allocation2 + $0x1b8] sm:$0xff] %v6252
    %6317 = vst [vmem:[#allocation2 + $0x1c0] sm:$0xff] %v6253
    %6318 = vst [vmem:[#allocation2 + $0x1c8] sm:$0xff] %v6254
    %6319 = vst [vmem:[#allocation2 + $0x1d0] sm:$0xff] %v6255
    %6320 = vst [vmem:[#allocation2 + $0x1d8] sm:$0xff] %v6256
    %6321 = vst [vmem:[#allocation2 + $0x1e0] sm:$0xff] %v6257
    %6322 = vst [vmem:[#allocation2 + $0x1e8] sm:$0xff] %v6258
    %6323 = vst [vmem:[#allocation2 + $0x1f0] sm:$0xff] %v6259
    %6324 = vst [vmem:[#allocation2 + $0x1f8] sm:$0xff] %v6260
    %v6325 = vld [vmem:[%s2245] sm:$0xf0]
    %v6326 = vld [vmem:[%s2245 + $0x8] sm:$0xf]
    %v6327 = vld [vmem:[%s2245 + $0x10] sm:$0xf0]
    %v6328 = vld [vmem:[%s2245 + $0x18] sm:$0xf]
    %v6329 = vld [vmem:[%s2245 + $0x20] sm:$0xf0]
    %v6330 = vld [vmem:[%s2245 + $0x28] sm:$0xf]
    %v6331 = vld [vmem:[%s2245 + $0x30] sm:$0xf0]
    %v6332 = vld [vmem:[%s2245 + $0x38] sm:$0xf]
    %v6333 = vld [vmem:[%s2245 + $0x40] sm:$0xf0]
    %v6334 = vld [vmem:[%s2245 + $0x48] sm:$0xf]
    %v6335 = vld [vmem:[%s2245 + $0x50] sm:$0xf0]
    %v6336 = vld [vmem:[%s2245 + $0x58] sm:$0xf]
    %v6337 = vld [vmem:[%s2245 + $0x60] sm:$0xf0]
    %v6338 = vld [vmem:[%s2245 + $0x68] sm:$0xf]
    %v6339 = vld [vmem:[%s2245 + $0x70] sm:$0xf0]
    %v6340 = vld [vmem:[%s2245 + $0x78] sm:$0xf]
    %v6341 = vld [vmem:[%s2245 + $0x80] sm:$0xf0]
    %v6342 = vld [vmem:[%s2245 + $0x88] sm:$0xf]
    %v6343 = vld [vmem:[%s2245 + $0x90] sm:$0xf0]
    %v6344 = vld [vmem:[%s2245 + $0x98] sm:$0xf]
    %v6345 = vld [vmem:[%s2245 + $0xa0] sm:$0xf0]
    %v6346 = vld [vmem:[%s2245 + $0xa8] sm:$0xf]
    %v6347 = vld [vmem:[%s2245 + $0xb0] sm:$0xf0]
    %v6348 = vld [vmem:[%s2245 + $0xb8] sm:$0xf]
    %v6349 = vld [vmem:[%s2245 + $0xc0] sm:$0xf0]
    %v6350 = vld [vmem:[%s2245 + $0xc8] sm:$0xf]
    %v6351 = vld [vmem:[%s2245 + $0xd0] sm:$0xf0]
    %v6352 = vld [vmem:[%s2245 + $0xd8] sm:$0xf]
    %v6353 = vld [vmem:[%s2245 + $0xe0] sm:$0xf0]
    %v6354 = vld [vmem:[%s2245 + $0xe8] sm:$0xf]
    %v6355 = vld [vmem:[%s2245 + $0xf0] sm:$0xf0]
    %v6356 = vld [vmem:[%s2245 + $0xf8] sm:$0xf]
    %v6357 = vld [vmem:[%s2245 + $0x120] sm:$0xf0]
    %v6358 = vld [vmem:[%s2245 + $0x128] sm:$0xf]
    %v6359 = vld [vmem:[%s2245 + $0x130] sm:$0xf0]
    %v6360 = vld [vmem:[%s2245 + $0x138] sm:$0xf]
    %v6361 = vld [vmem:[%s2245 + $0x140] sm:$0xf0]
    %v6362 = vld [vmem:[%s2245 + $0x148] sm:$0xf]
    %v6363 = vld [vmem:[%s2245 + $0x150] sm:$0xf0]
    %v6364 = vld [vmem:[%s2245 + $0x158] sm:$0xf]
    %v6365 = vld [vmem:[%s2245 + $0x160] sm:$0xf0]
    %v6366 = vld [vmem:[%s2245 + $0x168] sm:$0xf]
    %v6367 = vld [vmem:[%s2245 + $0x170] sm:$0xf0]
    %v6368 = vld [vmem:[%s2245 + $0x178] sm:$0xf]
    %v6369 = vld [vmem:[%s2245 + $0x180] sm:$0xf0]
    %v6370 = vld [vmem:[%s2245 + $0x188] sm:$0xf]
    %v6371 = vld [vmem:[%s2245 + $0x190] sm:$0xf0]
    %v6372 = vld [vmem:[%s2245 + $0x198] sm:$0xf]
    %v6373 = vld [vmem:[%s2245 + $0x1a0] sm:$0xf0]
    %v6374 = vld [vmem:[%s2245 + $0x1a8] sm:$0xf]
    %v6375 = vld [vmem:[%s2245 + $0x1b0] sm:$0xf0]
    %v6376 = vld [vmem:[%s2245 + $0x1b8] sm:$0xf]
    %v6377 = vld [vmem:[%s2245 + $0x1c0] sm:$0xf0]
    %v6378 = vld [vmem:[%s2245 + $0x1c8] sm:$0xf]
    %v6379 = vld [vmem:[%s2245 + $0x1d0] sm:$0xf0]
    %v6380 = vld [vmem:[%s2245 + $0x1d8] sm:$0xf]
    %v6381 = vld [vmem:[%s2245 + $0x1e0] sm:$0xf0]
    %v6382 = vld [vmem:[%s2245 + $0x1e8] sm:$0xf]
    %v6383 = vld [vmem:[%s2245 + $0x1f0] sm:$0xf0]
    %v6384 = vld [vmem:[%s2245 + $0x1f8] sm:$0xf]
    %v6385 = vld [vmem:[%s2245 + $0x200] sm:$0xf0]
    %v6386 = vld [vmem:[%s2245 + $0x208] sm:$0xf]
    %v6387 = vld [vmem:[%s2245 + $0x210] sm:$0xf0]
    %v6388 = vld [vmem:[%s2245 + $0x218] sm:$0xf]
    %v6453 = vrot.slane %v6325, 4
    %v6454 = vrot.slane %v6326, 4
    %v6455 = vsel %vm2252, %v6453, %v6454
    %v6456 = vrot.slane %v6327, 4
    %v6457 = vrot.slane %v6328, 4
    %v6458 = vsel %vm2252, %v6456, %v6457
    %v6459 = vrot.slane %v6329, 4
    %v6460 = vrot.slane %v6330, 4
    %v6461 = vsel %vm2252, %v6459, %v6460
    %v6462 = vrot.slane %v6331, 4
    %v6463 = vrot.slane %v6332, 4
    %v6464 = vsel %vm2252, %v6462, %v6463
    %v6465 = vrot.slane %v6333, 4
    %v6466 = vrot.slane %v6334, 4
    %v6467 = vsel %vm2252, %v6465, %v6466
    %v6468 = vrot.slane %v6335, 4
    %v6469 = vrot.slane %v6336, 4
    %v6470 = vsel %vm2252, %v6468, %v6469
    %v6471 = vrot.slane %v6337, 4
    %v6472 = vrot.slane %v6338, 4
    %v6473 = vsel %vm2252, %v6471, %v6472
    %v6474 = vrot.slane %v6339, 4
    %v6475 = vrot.slane %v6340, 4
    %v6476 = vsel %vm2252, %v6474, %v6475
    %v6477 = vrot.slane %v6341, 4
    %v6478 = vrot.slane %v6342, 4
    %v6479 = vsel %vm2252, %v6477, %v6478
    %v6480 = vrot.slane %v6343, 4
    %v6481 = vrot.slane %v6344, 4
    %v6482 = vsel %vm2252, %v6480, %v6481
    %v6483 = vrot.slane %v6345, 4
    %v6484 = vrot.slane %v6346, 4
    %v6485 = vsel %vm2252, %v6483, %v6484
    %v6486 = vrot.slane %v6347, 4
    %v6487 = vrot.slane %v6348, 4
    %v6488 = vsel %vm2252, %v6486, %v6487
    %v6489 = vrot.slane %v6349, 4
    %v6490 = vrot.slane %v6350, 4
    %v6491 = vsel %vm2252, %v6489, %v6490
    %v6492 = vrot.slane %v6351, 4
    %v6493 = vrot.slane %v6352, 4
    %v6494 = vsel %vm2252, %v6492, %v6493
    %v6495 = vrot.slane %v6353, 4
    %v6496 = vrot.slane %v6354, 4
    %v6497 = vsel %vm2252, %v6495, %v6496
    %v6498 = vrot.slane %v6355, 4
    %v6499 = vrot.slane %v6356, 4
    %v6500 = vsel %vm2252, %v6498, %v6499
    %v6501 = vrot.slane %v6357, 4
    %v6502 = vrot.slane %v6358, 4
    %v6503 = vsel %vm2252, %v6501, %v6502
    %v6504 = vrot.slane %v6359, 4
    %v6505 = vrot.slane %v6360, 4
    %v6506 = vsel %vm2252, %v6504, %v6505
    %v6507 = vrot.slane %v6361, 4
    %v6508 = vrot.slane %v6362, 4
    %v6509 = vsel %vm2252, %v6507, %v6508
    %v6510 = vrot.slane %v6363, 4
    %v6511 = vrot.slane %v6364, 4
    %v6512 = vsel %vm2252, %v6510, %v6511
    %v6513 = vrot.slane %v6365, 4
    %v6514 = vrot.slane %v6366, 4
    %v6515 = vsel %vm2252, %v6513, %v6514
    %v6516 = vrot.slane %v6367, 4
    %v6517 = vrot.slane %v6368, 4
    %v6518 = vsel %vm2252, %v6516, %v6517
    %v6519 = vrot.slane %v6369, 4
    %v6520 = vrot.slane %v6370, 4
    %v6521 = vsel %vm2252, %v6519, %v6520
    %v6522 = vrot.slane %v6371, 4
    %v6523 = vrot.slane %v6372, 4
    %v6524 = vsel %vm2252, %v6522, %v6523
    %v6525 = vrot.slane %v6373, 4
    %v6526 = vrot.slane %v6374, 4
    %v6527 = vsel %vm2252, %v6525, %v6526
    %v6528 = vrot.slane %v6375, 4
    %v6529 = vrot.slane %v6376, 4
    %v6530 = vsel %vm2252, %v6528, %v6529
    %v6531 = vrot.slane %v6377, 4
    %v6532 = vrot.slane %v6378, 4
    %v6533 = vsel %vm2252, %v6531, %v6532
    %v6534 = vrot.slane %v6379, 4
    %v6535 = vrot.slane %v6380, 4
    %v6536 = vsel %vm2252, %v6534, %v6535
    %v6537 = vrot.slane %v6381, 4
    %v6538 = vrot.slane %v6382, 4
    %v6539 = vsel %vm2252, %v6537, %v6538
    %v6540 = vrot.slane %v6383, 4
    %v6541 = vrot.slane %v6384, 4
    %v6542 = vsel %vm2252, %v6540, %v6541
    %v6543 = vrot.slane %v6385, 4
    %v6544 = vrot.slane %v6386, 4
    %v6545 = vsel %vm2252, %v6543, %v6544
    %v6546 = vrot.slane %v6387, 4
    %v6547 = vrot.slane %v6388, 4
    %v6548 = vsel %vm2252, %v6546, %v6547
    %s6581 = scalar_lea.vmem [#allocation6], 320
    %v6582 = vld [vmem:[%s6581] sm:$0xf]
    %v6583 = vld [vmem:[%s6581 + $0x4] sm:$0xf]
    %v6584 = vld [vmem:[%s6581 + $0x8] sm:$0xf]
    %v6585 = vld [vmem:[%s6581 + $0xc] sm:$0xf]
    %v6586 = vld [vmem:[%s6581 + $0x10] sm:$0xf]
    %v6587 = vld [vmem:[%s6581 + $0x14] sm:$0xf]
    %v6588 = vld [vmem:[%s6581 + $0x18] sm:$0xf]
    %v6589 = vld [vmem:[%s6581 + $0x1c] sm:$0xf]
    %v6590 = vld [vmem:[%s6581 + $0x20] sm:$0xf]
    %v6591 = vld [vmem:[%s6581 + $0x24] sm:$0xf]
    %v6592 = vld [vmem:[%s6581 + $0x28] sm:$0xf]
    %v6593 = vld [vmem:[%s6581 + $0x2c] sm:$0xf]
    %v6594 = vld [vmem:[%s6581 + $0x30] sm:$0xf]
    %v6595 = vld [vmem:[%s6581 + $0x34] sm:$0xf]
    %v6596 = vld [vmem:[%s6581 + $0x38] sm:$0xf]
    %v6597 = vld [vmem:[%s6581 + $0x3c] sm:$0xf]
    %v6614 = vunpack.c.l.b16 %v6582
    %v6615 = vunpack.c.l.b16 %v6583
    %v6616 = vunpack.c.l.b16 %v6584
    %v6617 = vunpack.c.l.b16 %v6585
    %v6618 = vunpack.c.l.b16 %v6586
    %v6619 = vunpack.c.l.b16 %v6587
    %v6620 = vunpack.c.l.b16 %v6588
    %v6621 = vunpack.c.l.b16 %v6589
    %v6622 = vunpack.c.l.b16 %v6590
    %v6623 = vunpack.c.l.b16 %v6591
    %v6624 = vunpack.c.l.b16 %v6592
    %v6625 = vunpack.c.l.b16 %v6593
    %v6626 = vunpack.c.l.b16 %v6594
    %v6627 = vunpack.c.l.b16 %v6595
    %v6628 = vunpack.c.l.b16 %v6596
    %v6629 = vunpack.c.l.b16 %v6597
    %v6630 = vpack.c.b16 %v6615, %v6614
    %v6631 = vpack.c.b16 %v6617, %v6616
    %v6632 = vpack.c.b16 %v6619, %v6618
    %v6633 = vpack.c.b16 %v6621, %v6620
    %v6634 = vpack.c.b16 %v6623, %v6622
    %v6635 = vpack.c.b16 %v6625, %v6624
    %v6636 = vpack.c.b16 %v6627, %v6626
    %v6637 = vpack.c.b16 %v6629, %v6628
    %6646 = vmatprep.subr.bf16.mxu0 0
    %6647 = vmatpush1.bf16.msra.mxu0 %v6630
    %6648 = vmatprep.subr.bf16.mxu0 0
    %6649 = vmatpush1.bf16.msra.mxu0 %v6631
    %6650 = vmatprep.subr.bf16.mxu0 0
    %6651 = vmatpush1.bf16.msra.mxu0 %v6632
    %6652 = vmatprep.subr.bf16.mxu0 0
    %6653 = vmatpush1.bf16.msra.mxu0 %v6633
    %6654 = vmatprep.subr.bf16.mxu0 0
    %6655 = vmatpush1.bf16.msra.mxu0 %v6634
    %6656 = vmatprep.subr.bf16.mxu0 0
    %6657 = vmatpush1.bf16.msra.mxu0 %v6635
    %6658 = vmatprep.subr.bf16.mxu0 0
    %6659 = vmatpush1.bf16.msra.mxu0 %v6636
    %6660 = vmatprep.subr.bf16.mxu0 0
    %6661 = vmatpush1.bf16.msra.mxu0 %v6637
    %6662 = vmatprep.subr.bf16.mxu0 0
    %6663 = vmatpush1.bf16.msra.mxu0 0
    %6664 = vmatprep.subr.bf16.mxu0 0
    %6665 = vmatpush1.bf16.msra.mxu0 0
    %6666 = vmatprep.subr.bf16.mxu0 0
    %6667 = vmatpush1.bf16.msra.mxu0 0
    %6668 = vmatprep.subr.bf16.mxu0 0
    %6669 = vmatpush1.bf16.msra.mxu0 0
    %6670 = vmatprep.subr.bf16.mxu0 0
    %6671 = vmatpush1.bf16.msra.mxu0 0
    %6672 = vmatprep.subr.bf16.mxu0 0
    %6673 = vmatpush1.bf16.msra.mxu0 0
    %6674 = vmatprep.subr.bf16.mxu0 0
    %6675 = vmatpush1.bf16.msra.mxu0 0
    %6676 = vmatprep.subr.bf16.mxu0 0
    %6677 = vmatpush1.bf16.msra.mxu0 0
    %6678 = vmatprep.mubr.bf16.mxu0 0
    %6679 = vmatmul.mubr.bf16.gmra.mrb[0].mxu0 %v6455
    %v6680 = vpop.f32.mrb[0].mxu0
    %v6681 = vadd.f32 0.0, %v6680
    %v6682 = vpop.f32.mrb[0].mxu0
    %v6683 = vpop.f32.mrb[0].mxu0
    %v6684 = vadd.f32 0.0, %v6683
    %v6685 = vpop.f32.mrb[0].mxu0
    %6686 = vmatprep.mubr.bf16.mxu0 0
    %6687 = vmatmul.mubr.bf16.gmra.mrb[0].mxu0 %v6458
    %v6688 = vpop.f32.mrb[0].mxu0
    %v6689 = vadd.f32 0.0, %v6688
    %v6690 = vpop.f32.mrb[0].mxu0
    %v6691 = vpop.f32.mrb[0].mxu0
    %v6692 = vadd.f32 0.0, %v6691
    %v6693 = vpop.f32.mrb[0].mxu0
    %6694 = vmatprep.mubr.bf16.mxu0 0
    %6695 = vmatmul.mubr.bf16.gmra.mrb[0].mxu0 %v6461
    %v6696 = vpop.f32.mrb[0].mxu0
    %v6697 = vadd.f32 0.0, %v6696
    %v6698 = vpop.f32.mrb[0].mxu0
    %v6699 = vpop.f32.mrb[0].mxu0
    %v6700 = vadd.f32 0.0, %v6699
    %v6701 = vpop.f32.mrb[0].mxu0
    %6702 = vmatprep.mubr.bf16.mxu0 0
    %6703 = vmatmul.mubr.bf16.gmra.mrb[0].mxu0 %v6464
    %v6704 = vpop.f32.mrb[0].mxu0
    %v6705 = vadd.f32 0.0, %v6704
    %v6706 = vpop.f32.mrb[0].mxu0
    %v6707 = vpop.f32.mrb[0].mxu0
    %v6708 = vadd.f32 0.0, %v6707
    %v6709 = vpop.f32.mrb[0].mxu0
    %6710 = vmatprep.mubr.bf16.mxu0 0
    %6711 = vmatmul.mubr.bf16.gmra.mrb[0].mxu0 %v6467
    %v6712 = vpop.f32.mrb[0].mxu0
    %v6713 = vadd.f32 0.0, %v6712
    %v6714 = vpop.f32.mrb[0].mxu0
    %v6715 = vpop.f32.mrb[0].mxu0
    %v6716 = vadd.f32 0.0, %v6715
    %v6717 = vpop.f32.mrb[0].mxu0
    %6718 = vmatprep.mubr.bf16.mxu0 0
    %6719 = vmatmul.mubr.bf16.gmra.mrb[0].mxu0 %v6470
    %v6720 = vpop.f32.mrb[0].mxu0
    %v6721 = vadd.f32 0.0, %v6720
    %v6722 = vpop.f32.mrb[0].mxu0
    %v6723 = vpop.f32.mrb[0].mxu0
    %v6724 = vadd.f32 0.0, %v6723
    %v6725 = vpop.f32.mrb[0].mxu0
    %6726 = vmatprep.mubr.bf16.mxu0 0
    %6727 = vmatmul.mubr.bf16.gmra.mrb[0].mxu0 %v6473
    %v6728 = vpop.f32.mrb[0].mxu0
    %v6729 = vadd.f32 0.0, %v6728
    %v6730 = vpop.f32.mrb[0].mxu0
    %v6731 = vpop.f32.mrb[0].mxu0
    %v6732 = vadd.f32 0.0, %v6731
    %v6733 = vpop.f32.mrb[0].mxu0
    %6734 = vmatprep.mubr.bf16.mxu0 0
    %6735 = vmatmul.mubr.bf16.gmra.mrb[0].mxu0 %v6476
    %v6736 = vpop.f32.mrb[0].mxu0
    %v6737 = vadd.f32 0.0, %v6736
    %v6738 = vpop.f32.mrb[0].mxu0
    %v6739 = vpop.f32.mrb[0].mxu0
    %v6740 = vadd.f32 0.0, %v6739
    %v6741 = vpop.f32.mrb[0].mxu0
    %6742 = vmatprep.mubr.bf16.mxu0 0
    %6743 = vmatmul.mubr.bf16.gmra.mrb[0].mxu0 %v6479
    %v6744 = vpop.f32.mrb[0].mxu0
    %v6745 = vadd.f32 0.0, %v6744
    %v6746 = vpop.f32.mrb[0].mxu0
    %v6747 = vpop.f32.mrb[0].mxu0
    %v6748 = vadd.f32 0.0, %v6747
    %v6749 = vpop.f32.mrb[0].mxu0
    %6750 = vmatprep.mubr.bf16.mxu0 0
    %6751 = vmatmul.mubr.bf16.gmra.mrb[0].mxu0 %v6482
    %v6752 = vpop.f32.mrb[0].mxu0
    %v6753 = vadd.f32 0.0, %v6752
    %v6754 = vpop.f32.mrb[0].mxu0
    %v6755 = vpop.f32.mrb[0].mxu0
    %v6756 = vadd.f32 0.0, %v6755
    %v6757 = vpop.f32.mrb[0].mxu0
    %6758 = vmatprep.mubr.bf16.mxu0 0
    %6759 = vmatmul.mubr.bf16.gmra.mrb[0].mxu0 %v6485
    %v6760 = vpop.f32.mrb[0].mxu0
    %v6761 = vadd.f32 0.0, %v6760
    %v6762 = vpop.f32.mrb[0].mxu0
    %v6763 = vpop.f32.mrb[0].mxu0
    %v6764 = vadd.f32 0.0, %v6763
    %v6765 = vpop.f32.mrb[0].mxu0
    %6766 = vmatprep.mubr.bf16.mxu0 0
    %6767 = vmatmul.mubr.bf16.gmra.mrb[0].mxu0 %v6488
    %v6768 = vpop.f32.mrb[0].mxu0
    %v6769 = vadd.f32 0.0, %v6768
    %v6770 = vpop.f32.mrb[0].mxu0
    %v6771 = vpop.f32.mrb[0].mxu0
    %v6772 = vadd.f32 0.0, %v6771
    %v6773 = vpop.f32.mrb[0].mxu0
    %6774 = vmatprep.mubr.bf16.mxu0 0
    %6775 = vmatmul.mubr.bf16.gmra.mrb[0].mxu0 %v6491
    %v6776 = vpop.f32.mrb[0].mxu0
    %v6777 = vadd.f32 0.0, %v6776
    %v6778 = vpop.f32.mrb[0].mxu0
    %v6779 = vpop.f32.mrb[0].mxu0
    %v6780 = vadd.f32 0.0, %v6779
    %v6781 = vpop.f32.mrb[0].mxu0
    %6782 = vmatprep.mubr.bf16.mxu0 0
    %6783 = vmatmul.mubr.bf16.gmra.mrb[0].mxu0 %v6494
    %v6784 = vpop.f32.mrb[0].mxu0
    %v6785 = vadd.f32 0.0, %v6784
    %v6786 = vpop.f32.mrb[0].mxu0
    %v6787 = vpop.f32.mrb[0].mxu0
    %v6788 = vadd.f32 0.0, %v6787
    %v6789 = vpop.f32.mrb[0].mxu0
    %6790 = vmatprep.mubr.bf16.mxu0 0
    %6791 = vmatmul.mubr.bf16.gmra.mrb[0].mxu0 %v6497
    %v6792 = vpop.f32.mrb[0].mxu0
    %v6793 = vadd.f32 0.0, %v6792
    %v6794 = vpop.f32.mrb[0].mxu0
    %v6795 = vpop.f32.mrb[0].mxu0
    %v6796 = vadd.f32 0.0, %v6795
    %v6797 = vpop.f32.mrb[0].mxu0
    %6798 = vmatprep.mubr.bf16.mxu0 0
    %6799 = vmatmul.mubr.bf16.gmra.mrb[0].mxu0 %v6500
    %v6800 = vpop.f32.mrb[0].mxu0
    %v6801 = vadd.f32 0.0, %v6800
    %v6802 = vpop.f32.mrb[0].mxu0
    %v6803 = vpop.f32.mrb[0].mxu0
    %v6804 = vadd.f32 0.0, %v6803
    %v6805 = vpop.f32.mrb[0].mxu0
    %6806 = vmatprep.mubr.bf16.mxu0 0
    %6807 = vmatmul.mubr.bf16.gmra.mrb[0].mxu0 %v6503
    %v6808 = vpop.f32.mrb[0].mxu0
    %v6809 = vadd.f32 0.0, %v6808
    %v6810 = vpop.f32.mrb[0].mxu0
    %v6811 = vpop.f32.mrb[0].mxu0
    %v6812 = vadd.f32 0.0, %v6811
    %v6813 = vpop.f32.mrb[0].mxu0
    %6814 = vmatprep.mubr.bf16.mxu0 0
    %6815 = vmatmul.mubr.bf16.gmra.mrb[0].mxu0 %v6506
    %v6816 = vpop.f32.mrb[0].mxu0
    %v6817 = vadd.f32 0.0, %v6816
    %v6818 = vpop.f32.mrb[0].mxu0
    %v6819 = vpop.f32.mrb[0].mxu0
    %v6820 = vadd.f32 0.0, %v6819
    %v6821 = vpop.f32.mrb[0].mxu0
    %6822 = vmatprep.mubr.bf16.mxu0 0
    %6823 = vmatmul.mubr.bf16.gmra.mrb[0].mxu0 %v6509
    %v6824 = vpop.f32.mrb[0].mxu0
    %v6825 = vadd.f32 0.0, %v6824
    %v6826 = vpop.f32.mrb[0].mxu0
    %v6827 = vpop.f32.mrb[0].mxu0
    %v6828 = vadd.f32 0.0, %v6827
    %v6829 = vpop.f32.mrb[0].mxu0
    %6830 = vmatprep.mubr.bf16.mxu0 0
    %6831 = vmatmul.mubr.bf16.gmra.mrb[0].mxu0 %v6512
    %v6832 = vpop.f32.mrb[0].mxu0
    %v6833 = vadd.f32 0.0, %v6832
    %v6834 = vpop.f32.mrb[0].mxu0
    %v6835 = vpop.f32.mrb[0].mxu0
    %v6836 = vadd.f32 0.0, %v6835
    %v6837 = vpop.f32.mrb[0].mxu0
    %6838 = vmatprep.mubr.bf16.mxu0 0
    %6839 = vmatmul.mubr.bf16.gmra.mrb[0].mxu0 %v6515
    %v6840 = vpop.f32.mrb[0].mxu0
    %v6841 = vadd.f32 0.0, %v6840
    %v6842 = vpop.f32.mrb[0].mxu0
    %v6843 = vpop.f32.mrb[0].mxu0
    %v6844 = vadd.f32 0.0, %v6843
    %v6845 = vpop.f32.mrb[0].mxu0
    %6846 = vmatprep.mubr.bf16.mxu0 0
    %6847 = vmatmul.mubr.bf16.gmra.mrb[0].mxu0 %v6518
    %v6848 = vpop.f32.mrb[0].mxu0
    %v6849 = vadd.f32 0.0, %v6848
    %v6850 = vpop.f32.mrb[0].mxu0
    %v6851 = vpop.f32.mrb[0].mxu0
    %v6852 = vadd.f32 0.0, %v6851
    %v6853 = vpop.f32.mrb[0].mxu0
    %6854 = vmatprep.mubr.bf16.mxu0 0
    %6855 = vmatmul.mubr.bf16.gmra.mrb[0].mxu0 %v6521
    %v6856 = vpop.f32.mrb[0].mxu0
    %v6857 = vadd.f32 0.0, %v6856
    %v6858 = vpop.f32.mrb[0].mxu0
    %v6859 = vpop.f32.mrb[0].mxu0
    %v6860 = vadd.f32 0.0, %v6859
    %v6861 = vpop.f32.mrb[0].mxu0
    %6862 = vmatprep.mubr.bf16.mxu0 0
    %6863 = vmatmul.mubr.bf16.gmra.mrb[0].mxu0 %v6524
    %v6864 = vpop.f32.mrb[0].mxu0
    %v6865 = vadd.f32 0.0, %v6864
    %v6866 = vpop.f32.mrb[0].mxu0
    %v6867 = vpop.f32.mrb[0].mxu0
    %v6868 = vadd.f32 0.0, %v6867
    %v6869 = vpop.f32.mrb[0].mxu0
    %6870 = vmatprep.mubr.bf16.mxu0 0
    %6871 = vmatmul.mubr.bf16.gmra.mrb[0].mxu0 %v6527
    %v6872 = vpop.f32.mrb[0].mxu0
    %v6873 = vadd.f32 0.0, %v6872
    %v6874 = vpop.f32.mrb[0].mxu0
    %v6875 = vpop.f32.mrb[0].mxu0
    %v6876 = vadd.f32 0.0, %v6875
    %v6877 = vpop.f32.mrb[0].mxu0
    %6878 = vmatprep.mubr.bf16.mxu0 0
    %6879 = vmatmul.mubr.bf16.gmra.mrb[0].mxu0 %v6530
    %v6880 = vpop.f32.mrb[0].mxu0
    %v6881 = vadd.f32 0.0, %v6880
    %v6882 = vpop.f32.mrb[0].mxu0
    %v6883 = vpop.f32.mrb[0].mxu0
    %v6884 = vadd.f32 0.0, %v6883
    %v6885 = vpop.f32.mrb[0].mxu0
    %6886 = vmatprep.mubr.bf16.mxu0 0
    %6887 = vmatmul.mubr.bf16.gmra.mrb[0].mxu0 %v6533
    %v6888 = vpop.f32.mrb[0].mxu0
    %v6889 = vadd.f32 0.0, %v6888
    %v6890 = vpop.f32.mrb[0].mxu0
    %v6891 = vpop.f32.mrb[0].mxu0
    %v6892 = vadd.f32 0.0, %v6891
    %v6893 = vpop.f32.mrb[0].mxu0
    %6894 = vmatprep.mubr.bf16.mxu0 0
    %6895 = vmatmul.mubr.bf16.gmra.mrb[0].mxu0 %v6536
    %v6896 = vpop.f32.mrb[0].mxu0
    %v6897 = vadd.f32 0.0, %v6896
    %v6898 = vpop.f32.mrb[0].mxu0
    %v6899 = vpop.f32.mrb[0].mxu0
    %v6900 = vadd.f32 0.0, %v6899
    %v6901 = vpop.f32.mrb[0].mxu0
    %6902 = vmatprep.mubr.bf16.mxu0 0
    %6903 = vmatmul.mubr.bf16.gmra.mrb[0].mxu0 %v6539
    %v6904 = vpop.f32.mrb[0].mxu0
    %v6905 = vadd.f32 0.0, %v6904
    %v6906 = vpop.f32.mrb[0].mxu0
    %v6907 = vpop.f32.mrb[0].mxu0
    %v6908 = vadd.f32 0.0, %v6907
    %v6909 = vpop.f32.mrb[0].mxu0
    %6910 = vmatprep.mubr.bf16.mxu0 0
    %6911 = vmatmul.mubr.bf16.gmra.mrb[0].mxu0 %v6542
    %v6912 = vpop.f32.mrb[0].mxu0
    %v6913 = vadd.f32 0.0, %v6912
    %v6914 = vpop.f32.mrb[0].mxu0
    %v6915 = vpop.f32.mrb[0].mxu0
    %v6916 = vadd.f32 0.0, %v6915
    %v6917 = vpop.f32.mrb[0].mxu0
    %6918 = vmatprep.mubr.bf16.mxu0 0
    %6919 = vmatmul.mubr.bf16.gmra.mrb[0].mxu0 %v6545
    %v6920 = vpop.f32.mrb[0].mxu0
    %v6921 = vadd.f32 0.0, %v6920
    %v6922 = vpop.f32.mrb[0].mxu0
    %v6923 = vpop.f32.mrb[0].mxu0
    %v6924 = vadd.f32 0.0, %v6923
    %v6925 = vpop.f32.mrb[0].mxu0
    %6926 = vmatprep.mubr.bf16.mxu0 0
    %6927 = vmatmul.mubr.bf16.gmra.mrb[0].mxu0 %v6548
    %v6928 = vpop.f32.mrb[0].mxu0
    %v6929 = vadd.f32 0.0, %v6928
    %v6930 = vpop.f32.mrb[0].mxu0
    %v6931 = vpop.f32.mrb[0].mxu0
    %v6932 = vadd.f32 0.0, %v6931
    %v6933 = vpop.f32.mrb[0].mxu0
    %6934 = vdwg.mxu0
    %v6935 = vld [vmem:[#allocation2] sm:$0xff]
    %v6936 = vld [vmem:[#allocation2 + $0x8] sm:$0xff]
    %v6937 = vld [vmem:[#allocation2 + $0x10] sm:$0xff]
    %v6938 = vld [vmem:[#allocation2 + $0x18] sm:$0xff]
    %v6939 = vld [vmem:[#allocation2 + $0x20] sm:$0xff]
    %v6940 = vld [vmem:[#allocation2 + $0x28] sm:$0xff]
    %v6941 = vld [vmem:[#allocation2 + $0x30] sm:$0xff]
    %v6942 = vld [vmem:[#allocation2 + $0x38] sm:$0xff]
    %v6943 = vld [vmem:[#allocation2 + $0x40] sm:$0xff]
    %v6944 = vld [vmem:[#allocation2 + $0x48] sm:$0xff]
    %v6945 = vld [vmem:[#allocation2 + $0x50] sm:$0xff]
    %v6946 = vld [vmem:[#allocation2 + $0x58] sm:$0xff]
    %v6947 = vld [vmem:[#allocation2 + $0x60] sm:$0xff]
    %v6948 = vld [vmem:[#allocation2 + $0x68] sm:$0xff]
    %v6949 = vld [vmem:[#allocation2 + $0x70] sm:$0xff]
    %v6950 = vld [vmem:[#allocation2 + $0x78] sm:$0xff]
    %v6951 = vld [vmem:[#allocation2 + $0x80] sm:$0xff]
    %v6952 = vld [vmem:[#allocation2 + $0x88] sm:$0xff]
    %v6953 = vld [vmem:[#allocation2 + $0x90] sm:$0xff]
    %v6954 = vld [vmem:[#allocation2 + $0x98] sm:$0xff]
    %v6955 = vld [vmem:[#allocation2 + $0xa0] sm:$0xff]
    %v6956 = vld [vmem:[#allocation2 + $0xa8] sm:$0xff]
    %v6957 = vld [vmem:[#allocation2 + $0xb0] sm:$0xff]
    %v6958 = vld [vmem:[#allocation2 + $0xb8] sm:$0xff]
    %v6959 = vld [vmem:[#allocation2 + $0xc0] sm:$0xff]
    %v6960 = vld [vmem:[#allocation2 + $0xc8] sm:$0xff]
    %v6961 = vld [vmem:[#allocation2 + $0xd0] sm:$0xff]
    %v6962 = vld [vmem:[#allocation2 + $0xd8] sm:$0xff]
    %v6963 = vld [vmem:[#allocation2 + $0xe0] sm:$0xff]
    %v6964 = vld [vmem:[#allocation2 + $0xe8] sm:$0xff]
    %v6965 = vld [vmem:[#allocation2 + $0xf0] sm:$0xff]
    %v6966 = vld [vmem:[#allocation2 + $0xf8] sm:$0xff]
    %v6967 = vld [vmem:[#allocation2 + $0x100] sm:$0xff]
    %v6968 = vld [vmem:[#allocation2 + $0x108] sm:$0xff]
    %v6969 = vld [vmem:[#allocation2 + $0x110] sm:$0xff]
    %v6970 = vld [vmem:[#allocation2 + $0x118] sm:$0xff]
    %v6971 = vld [vmem:[#allocation2 + $0x120] sm:$0xff]
    %v6972 = vld [vmem:[#allocation2 + $0x128] sm:$0xff]
    %v6973 = vld [vmem:[#allocation2 + $0x130] sm:$0xff]
    %v6974 = vld [vmem:[#allocation2 + $0x138] sm:$0xff]
    %v6975 = vld [vmem:[#allocation2 + $0x140] sm:$0xff]
    %v6976 = vld [vmem:[#allocation2 + $0x148] sm:$0xff]
    %v6977 = vld [vmem:[#allocation2 + $0x150] sm:$0xff]
    %v6978 = vld [vmem:[#allocation2 + $0x158] sm:$0xff]
    %v6979 = vld [vmem:[#allocation2 + $0x160] sm:$0xff]
    %v6980 = vld [vmem:[#allocation2 + $0x168] sm:$0xff]
    %v6981 = vld [vmem:[#allocation2 + $0x170] sm:$0xff]
    %v6982 = vld [vmem:[#allocation2 + $0x178] sm:$0xff]
    %v6983 = vld [vmem:[#allocation2 + $0x180] sm:$0xff]
    %v6984 = vld [vmem:[#allocation2 + $0x188] sm:$0xff]
    %v6985 = vld [vmem:[#allocation2 + $0x190] sm:$0xff]
    %v6986 = vld [vmem:[#allocation2 + $0x198] sm:$0xff]
    %v6987 = vld [vmem:[#allocation2 + $0x1a0] sm:$0xff]
    %v6988 = vld [vmem:[#allocation2 + $0x1a8] sm:$0xff]
    %v6989 = vld [vmem:[#allocation2 + $0x1b0] sm:$0xff]
    %v6990 = vld [vmem:[#allocation2 + $0x1b8] sm:$0xff]
    %v6991 = vld [vmem:[#allocation2 + $0x1c0] sm:$0xff]
    %v6992 = vld [vmem:[#allocation2 + $0x1c8] sm:$0xff]
    %v6993 = vld [vmem:[#allocation2 + $0x1d0] sm:$0xff]
    %v6994 = vld [vmem:[#allocation2 + $0x1d8] sm:$0xff]
    %v6995 = vld [vmem:[#allocation2 + $0x1e0] sm:$0xff]
    %v6996 = vld [vmem:[#allocation2 + $0x1e8] sm:$0xff]
    %v6997 = vld [vmem:[#allocation2 + $0x1f0] sm:$0xff]
    %v6998 = vld [vmem:[#allocation2 + $0x1f8] sm:$0xff]
    %v6999 = vadd.f32 %v6935, %v6681
    %v7000 = vadd.f32 %v6936, %v6684
    %v7001 = vadd.f32 %v6937, %v6689
    %v7002 = vadd.f32 %v6938, %v6692
    %v7003 = vadd.f32 %v6939, %v6697
    %v7004 = vadd.f32 %v6940, %v6700
    %v7005 = vadd.f32 %v6941, %v6705
    %v7006 = vadd.f32 %v6942, %v6708
    %v7007 = vadd.f32 %v6943, %v6713
    %v7008 = vadd.f32 %v6944, %v6716
    %v7009 = vadd.f32 %v6945, %v6721
    %v7010 = vadd.f32 %v6946, %v6724
    %v7011 = vadd.f32 %v6947, %v6729
    %v7012 = vadd.f32 %v6948, %v6732
    %v7013 = vadd.f32 %v6949, %v6737
    %v7014 = vadd.f32 %v6950, %v6740
    %v7015 = vadd.f32 %v6951, %v6745
    %v7016 = vadd.f32 %v6952, %v6748
    %v7017 = vadd.f32 %v6953, %v6753
    %v7018 = vadd.f32 %v6954, %v6756
    %v7019 = vadd.f32 %v6955, %v6761
    %v7020 = vadd.f32 %v6956, %v6764
    %v7021 = vadd.f32 %v6957, %v6769
    %v7022 = vadd.f32 %v6958, %v6772
    %v7023 = vadd.f32 %v6959, %v6777
    %v7024 = vadd.f32 %v6960, %v6780
    %v7025 = vadd.f32 %v6961, %v6785
    %v7026 = vadd.f32 %v6962, %v6788
    %v7027 = vadd.f32 %v6963, %v6793
    %v7028 = vadd.f32 %v6964, %v6796
    %v7029 = vadd.f32 %v6965, %v6801
    %v7030 = vadd.f32 %v6966, %v6804
    %v7031 = vadd.f32 %v6967, %v6809
    %v7032 = vadd.f32 %v6968, %v6812
    %v7033 = vadd.f32 %v6969, %v6817
    %v7034 = vadd.f32 %v6970, %v6820
    %v7035 = vadd.f32 %v6971, %v6825
    %v7036 = vadd.f32 %v6972, %v6828
    %v7037 = vadd.f32 %v6973, %v6833
    %v7038 = vadd.f32 %v6974, %v6836
    %v7039 = vadd.f32 %v6975, %v6841
    %v7040 = vadd.f32 %v6976, %v6844
    %v7041 = vadd.f32 %v6977, %v6849
    %v7042 = vadd.f32 %v6978, %v6852
    %v7043 = vadd.f32 %v6979, %v6857
    %v7044 = vadd.f32 %v6980, %v6860
    %v7045 = vadd.f32 %v6981, %v6865
    %v7046 = vadd.f32 %v6982, %v6868
    %v7047 = vadd.f32 %v6983, %v6873
    %v7048 = vadd.f32 %v6984, %v6876
    %v7049 = vadd.f32 %v6985, %v6881
    %v7050 = vadd.f32 %v6986, %v6884
    %v7051 = vadd.f32 %v6987, %v6889
    %v7052 = vadd.f32 %v6988, %v6892
    %v7053 = vadd.f32 %v6989, %v6897
    %v7054 = vadd.f32 %v6990, %v6900
    %v7055 = vadd.f32 %v6991, %v6905
    %v7056 = vadd.f32 %v6992, %v6908
    %v7057 = vadd.f32 %v6993, %v6913
    %v7058 = vadd.f32 %v6994, %v6916
    %v7059 = vadd.f32 %v6995, %v6921
    %v7060 = vadd.f32 %v6996, %v6924
    %v7061 = vadd.f32 %v6997, %v6929
    %v7062 = vadd.f32 %v6998, %v6932
    %7063 = vst [vmem:[#allocation2] sm:$0xff] %v6999
    %7064 = vst [vmem:[#allocation2 + $0x8] sm:$0xff] %v7000
    %7065 = vst [vmem:[#allocation2 + $0x10] sm:$0xff] %v7001
    %7066 = vst [vmem:[#allocation2 + $0x18] sm:$0xff] %v7002
    %7067 = vst [vmem:[#allocation2 + $0x20] sm:$0xff] %v7003
    %7068 = vst [vmem:[#allocation2 + $0x28] sm:$0xff] %v7004
    %7069 = vst [vmem:[#allocation2 + $0x30] sm:$0xff] %v7005
    %7070 = vst [vmem:[#allocation2 + $0x38] sm:$0xff] %v7006
    %7071 = vst [vmem:[#allocation2 + $0x40] sm:$0xff] %v7007
    %7072 = vst [vmem:[#allocation2 + $0x48] sm:$0xff] %v7008
    %7073 = vst [vmem:[#allocation2 + $0x50] sm:$0xff] %v7009
    %7074 = vst [vmem:[#allocation2 + $0x58] sm:$0xff] %v7010
    %7075 = vst [vmem:[#allocation2 + $0x60] sm:$0xff] %v7011
    %7076 = vst [vmem:[#allocation2 + $0x68] sm:$0xff] %v7012
    %7077 = vst [vmem:[#allocation2 + $0x70] sm:$0xff] %v7013
    %7078 = vst [vmem:[#allocation2 + $0x78] sm:$0xff] %v7014
    %7079 = vst [vmem:[#allocation2 + $0x80] sm:$0xff] %v7015
    %7080 = vst [vmem:[#allocation2 + $0x88] sm:$0xff] %v7016
    %7081 = vst [vmem:[#allocation2 + $0x90] sm:$0xff] %v7017
    %7082 = vst [vmem:[#allocation2 + $0x98] sm:$0xff] %v7018
    %7083 = vst [vmem:[#allocation2 + $0xa0] sm:$0xff] %v7019
    %7084 = vst [vmem:[#allocation2 + $0xa8] sm:$0xff] %v7020
    %7085 = vst [vmem:[#allocation2 + $0xb0] sm:$0xff] %v7021
    %7086 = vst [vmem:[#allocation2 + $0xb8] sm:$0xff] %v7022
    %7087 = vst [vmem:[#allocation2 + $0xc0] sm:$0xff] %v7023
    %7088 = vst [vmem:[#allocation2 + $0xc8] sm:$0xff] %v7024
    %7089 = vst [vmem:[#allocation2 + $0xd0] sm:$0xff] %v7025
    %7090 = vst [vmem:[#allocation2 + $0xd8] sm:$0xff] %v7026
    %7091 = vst [vmem:[#allocation2 + $0xe0] sm:$0xff] %v7027
    %7092 = vst [vmem:[#allocation2 + $0xe8] sm:$0xff] %v7028
    %7093 = vst [vmem:[#allocation2 + $0xf0] sm:$0xff] %v7029
    %7094 = vst [vmem:[#allocation2 + $0xf8] sm:$0xff] %v7030
    %7095 = vst [vmem:[#allocation2 + $0x100] sm:$0xff] %v7031
    %7096 = vst [vmem:[#allocation2 + $0x108] sm:$0xff] %v7032
    %7097 = vst [vmem:[#allocation2 + $0x110] sm:$0xff] %v7033
    %7098 = vst [vmem:[#allocation2 + $0x118] sm:$0xff] %v7034
    %7099 = vst [vmem:[#allocation2 + $0x120] sm:$0xff] %v7035
    %7100 = vst [vmem:[#allocation2 + $0x128] sm:$0xff] %v7036
    %7101 = vst [vmem:[#allocation2 + $0x130] sm:$0xff] %v7037
    %7102 = vst [vmem:[#allocation2 + $0x138] sm:$0xff] %v7038
    %7103 = vst [vmem:[#allocation2 + $0x140] sm:$0xff] %v7039
    %7104 = vst [vmem:[#allocation2 + $0x148] sm:$0xff] %v7040
    %7105 = vst [vmem:[#allocation2 + $0x150] sm:$0xff] %v7041
    %7106 = vst [vmem:[#allocation2 + $0x158] sm:$0xff] %v7042
    %7107 = vst [vmem:[#allocation2 + $0x160] sm:$0xff] %v7043
    %7108 = vst [vmem:[#allocation2 + $0x168] sm:$0xff] %v7044
    %7109 = vst [vmem:[#allocation2 + $0x170] sm:$0xff] %v7045
    %7110 = vst [vmem:[#allocation2 + $0x178] sm:$0xff] %v7046
    %7111 = vst [vmem:[#allocation2 + $0x180] sm:$0xff] %v7047
    %7112 = vst [vmem:[#allocation2 + $0x188] sm:$0xff] %v7048
    %7113 = vst [vmem:[#allocation2 + $0x190] sm:$0xff] %v7049
    %7114 = vst [vmem:[#allocation2 + $0x198] sm:$0xff] %v7050
    %7115 = vst [vmem:[#allocation2 + $0x1a0] sm:$0xff] %v7051
    %7116 = vst [vmem:[#allocation2 + $0x1a8] sm:$0xff] %v7052
    %7117 = vst [vmem:[#allocation2 + $0x1b0] sm:$0xff] %v7053
    %7118 = vst [vmem:[#allocation2 + $0x1b8] sm:$0xff] %v7054
    %7119 = vst [vmem:[#allocation2 + $0x1c0] sm:$0xff] %v7055
    %7120 = vst [vmem:[#allocation2 + $0x1c8] sm:$0xff] %v7056
    %7121 = vst [vmem:[#allocation2 + $0x1d0] sm:$0xff] %v7057
    %7122 = vst [vmem:[#allocation2 + $0x1d8] sm:$0xff] %v7058
    %7123 = vst [vmem:[#allocation2 + $0x1e0] sm:$0xff] %v7059
    %7124 = vst [vmem:[#allocation2 + $0x1e8] sm:$0xff] %v7060
    %7125 = vst [vmem:[#allocation2 + $0x1f0] sm:$0xff] %v7061
    %7126 = vst [vmem:[#allocation2 + $0x1f8] sm:$0xff] %v7062
    %s7127 = scalar_lea.vmem [#allocation3], 32
    %v7128 = vld [vmem:[%s7127] sm:$0xf0]
    %v7129 = vld [vmem:[%s7127 + $0x8] sm:$0xf]
    %v7130 = vld [vmem:[%s7127 + $0x10] sm:$0xf0]
    %v7131 = vld [vmem:[%s7127 + $0x18] sm:$0xf]
    %v7132 = vld [vmem:[%s7127 + $0x20] sm:$0xf0]
    %v7133 = vld [vmem:[%s7127 + $0x28] sm:$0xf]
    %v7134 = vld [vmem:[%s7127 + $0x30] sm:$0xf0]
    %v7135 = vld [vmem:[%s7127 + $0x38] sm:$0xf]
    %v7136 = vld [vmem:[%s7127 + $0x40] sm:$0xf0]
    %v7137 = vld [vmem:[%s7127 + $0x48] sm:$0xf]
    %v7138 = vld [vmem:[%s7127 + $0x50] sm:$0xf0]
    %v7139 = vld [vmem:[%s7127 + $0x58] sm:$0xf]
    %v7140 = vld [vmem:[%s7127 + $0x60] sm:$0xf0]
    %v7141 = vld [vmem:[%s7127 + $0x68] sm:$0xf]
    %v7142 = vld [vmem:[%s7127 + $0x70] sm:$0xf0]
    %v7143 = vld [vmem:[%s7127 + $0x78] sm:$0xf]
    %v7144 = vld [vmem:[%s7127 + $0x80] sm:$0xf0]
    %v7145 = vld [vmem:[%s7127 + $0x88] sm:$0xf]
    %v7146 = vld [vmem:[%s7127 + $0x90] sm:$0xf0]
    %v7147 = vld [vmem:[%s7127 + $0x98] sm:$0xf]
    %v7148 = vld [vmem:[%s7127 + $0xa0] sm:$0xf0]
    %v7149 = vld [vmem:[%s7127 + $0xa8] sm:$0xf]
    %v7150 = vld [vmem:[%s7127 + $0xb0] sm:$0xf0]
    %v7151 = vld [vmem:[%s7127 + $0xb8] sm:$0xf]
    %v7152 = vld [vmem:[%s7127 + $0xc0] sm:$0xf0]
    %v7153 = vld [vmem:[%s7127 + $0xc8] sm:$0xf]
    %v7154 = vld [vmem:[%s7127 + $0xd0] sm:$0xf0]
    %v7155 = vld [vmem:[%s7127 + $0xd8] sm:$0xf]
    %v7156 = vld [vmem:[%s7127 + $0xe0] sm:$0xf0]
    %v7157 = vld [vmem:[%s7127 + $0xe8] sm:$0xf]
    %v7158 = vld [vmem:[%s7127 + $0xf0] sm:$0xf0]
    %v7159 = vld [vmem:[%s7127 + $0xf8] sm:$0xf]
    %v7160 = vld [vmem:[%s7127 + $0x120] sm:$0xf0]
    %v7161 = vld [vmem:[%s7127 + $0x128] sm:$0xf]
    %v7162 = vld [vmem:[%s7127 + $0x130] sm:$0xf0]
    %v7163 = vld [vmem:[%s7127 + $0x138] sm:$0xf]
    %v7164 = vld [vmem:[%s7127 + $0x140] sm:$0xf0]
    %v7165 = vld [vmem:[%s7127 + $0x148] sm:$0xf]
    %v7166 = vld [vmem:[%s7127 + $0x150] sm:$0xf0]
    %v7167 = vld [vmem:[%s7127 + $0x158] sm:$0xf]
    %v7168 = vld [vmem:[%s7127 + $0x160] sm:$0xf0]
    %v7169 = vld [vmem:[%s7127 + $0x168] sm:$0xf]
    %v7170 = vld [vmem:[%s7127 + $0x170] sm:$0xf0]
    %v7171 = vld [vmem:[%s7127 + $0x178] sm:$0xf]
    %v7172 = vld [vmem:[%s7127 + $0x180] sm:$0xf0]
    %v7173 = vld [vmem:[%s7127 + $0x188] sm:$0xf]
    %v7174 = vld [vmem:[%s7127 + $0x190] sm:$0xf0]
    %v7175 = vld [vmem:[%s7127 + $0x198] sm:$0xf]
    %v7176 = vld [vmem:[%s7127 + $0x1a0] sm:$0xf0]
    %v7177 = vld [vmem:[%s7127 + $0x1a8] sm:$0xf]
    %v7178 = vld [vmem:[%s7127 + $0x1b0] sm:$0xf0]
    %v7179 = vld [vmem:[%s7127 + $0x1b8] sm:$0xf]
    %v7180 = vld [vmem:[%s7127 + $0x1c0] sm:$0xf0]
    %v7181 = vld [vmem:[%s7127 + $0x1c8] sm:$0xf]
    %v7182 = vld [vmem:[%s7127 + $0x1d0] sm:$0xf0]
    %v7183 = vld [vmem:[%s7127 + $0x1d8] sm:$0xf]
    %v7184 = vld [vmem:[%s7127 + $0x1e0] sm:$0xf0]
    %v7185 = vld [vmem:[%s7127 + $0x1e8] sm:$0xf]
    %v7186 = vld [vmem:[%s7127 + $0x1f0] sm:$0xf0]
    %v7187 = vld [vmem:[%s7127 + $0x1f8] sm:$0xf]
    %v7188 = vld [vmem:[%s7127 + $0x200] sm:$0xf0]
    %v7189 = vld [vmem:[%s7127 + $0x208] sm:$0xf]
    %v7190 = vld [vmem:[%s7127 + $0x210] sm:$0xf0]
    %v7191 = vld [vmem:[%s7127 + $0x218] sm:$0xf]
    %v7256 = vrot.slane %v7128, 4
    %v7257 = vrot.slane %v7129, 4
    %v7258 = vsel %vm2252, %v7256, %v7257
    %v7259 = vrot.slane %v7130, 4
    %v7260 = vrot.slane %v7131, 4
    %v7261 = vsel %vm2252, %v7259, %v7260
    %v7262 = vrot.slane %v7132, 4
    %v7263 = vrot.slane %v7133, 4
    %v7264 = vsel %vm2252, %v7262, %v7263
    %v7265 = vrot.slane %v7134, 4
    %v7266 = vrot.slane %v7135, 4
    %v7267 = vsel %vm2252, %v7265, %v7266
    %v7268 = vrot.slane %v7136, 4
    %v7269 = vrot.slane %v7137, 4
    %v7270 = vsel %vm2252, %v7268, %v7269
    %v7271 = vrot.slane %v7138, 4
    %v7272 = vrot.slane %v7139, 4
    %v7273 = vsel %vm2252, %v7271, %v7272
    %v7274 = vrot.slane %v7140, 4
    %v7275 = vrot.slane %v7141, 4
    %v7276 = vsel %vm2252, %v7274, %v7275
    %v7277 = vrot.slane %v7142, 4
    %v7278 = vrot.slane %v7143, 4
    %v7279 = vsel %vm2252, %v7277, %v7278
    %v7280 = vrot.slane %v7144, 4
    %v7281 = vrot.slane %v7145, 4
    %v7282 = vsel %vm2252, %v7280, %v7281
    %v7283 = vrot.slane %v7146, 4
    %v7284 = vrot.slane %v7147, 4
    %v7285 = vsel %vm2252, %v7283, %v7284
    %v7286 = vrot.slane %v7148, 4
    %v7287 = vrot.slane %v7149, 4
    %v7288 = vsel %vm2252, %v7286, %v7287
    %v7289 = vrot.slane %v7150, 4
    %v7290 = vrot.slane %v7151, 4
    %v7291 = vsel %vm2252, %v7289, %v7290
    %v7292 = vrot.slane %v7152, 4
    %v7293 = vrot.slane %v7153, 4
    %v7294 = vsel %vm2252, %v7292, %v7293
    %v7295 = vrot.slane %v7154, 4
    %v7296 = vrot.slane %v7155, 4
    %v7297 = vsel %vm2252, %v7295, %v7296
    %v7298 = vrot.slane %v7156, 4
    %v7299 = vrot.slane %v7157, 4
    %v7300 = vsel %vm2252, %v7298, %v7299
    %v7301 = vrot.slane %v7158, 4
    %v7302 = vrot.slane %v7159, 4
    %v7303 = vsel %vm2252, %v7301, %v7302
    %v7304 = vrot.slane %v7160, 4
    %v7305 = vrot.slane %v7161, 4
    %v7306 = vsel %vm2252, %v7304, %v7305
    %v7307 = vrot.slane %v7162, 4
    %v7308 = vrot.slane %v7163, 4
    %v7309 = vsel %vm2252, %v7307, %v7308
    %v7310 = vrot.slane %v7164, 4
    %v7311 = vrot.slane %v7165, 4
    %v7312 = vsel %vm2252, %v7310, %v7311
    %v7313 = vrot.slane %v7166, 4
    %v7314 = vrot.slane %v7167, 4
    %v7315 = vsel %vm2252, %v7313, %v7314
    %v7316 = vrot.slane %v7168, 4
    %v7317 = vrot.slane %v7169, 4
    %v7318 = vsel %vm2252, %v7316, %v7317
    %v7319 = vrot.slane %v7170, 4
    %v7320 = vrot.slane %v7171, 4
    %v7321 = vsel %vm2252, %v7319, %v7320
    %v7322 = vrot.slane %v7172, 4
    %v7323 = vrot.slane %v7173, 4
    %v7324 = vsel %vm2252, %v7322, %v7323
    %v7325 = vrot.slane %v7174, 4
    %v7326 = vrot.slane %v7175, 4
    %v7327 = vsel %vm2252, %v7325, %v7326
    %v7328 = vrot.slane %v7176, 4
    %v7329 = vrot.slane %v7177, 4
    %v7330 = vsel %vm2252, %v7328, %v7329
    %v7331 = vrot.slane %v7178, 4
    %v7332 = vrot.slane %v7179, 4
    %v7333 = vsel %vm2252, %v7331, %v7332
    %v7334 = vrot.slane %v7180, 4
    %v7335 = vrot.slane %v7181, 4
    %v7336 = vsel %vm2252, %v7334, %v7335
    %v7337 = vrot.slane %v7182, 4
    %v7338 = vrot.slane %v7183, 4
    %v7339 = vsel %vm2252, %v7337, %v7338
    %v7340 = vrot.slane %v7184, 4
    %v7341 = vrot.slane %v7185, 4
    %v7342 = vsel %vm2252, %v7340, %v7341
    %v7343 = vrot.slane %v7186, 4
    %v7344 = vrot.slane %v7187, 4
    %v7345 = vsel %vm2252, %v7343, %v7344
    %v7346 = vrot.slane %v7188, 4
    %v7347 = vrot.slane %v7189, 4
    %v7348 = vsel %vm2252, %v7346, %v7347
    %v7349 = vrot.slane %v7190, 4
    %v7350 = vrot.slane %v7191, 4
    %v7351 = vsel %vm2252, %v7349, %v7350
    %s7384 = scalar_lea.vmem [#allocation6], 384
    %v7385 = vld [vmem:[%s7384] sm:$0xf]
    %v7386 = vld [vmem:[%s7384 + $0x4] sm:$0xf]
    %v7387 = vld [vmem:[%s7384 + $0x8] sm:$0xf]
    %v7388 = vld [vmem:[%s7384 + $0xc] sm:$0xf]
    %v7389 = vld [vmem:[%s7384 + $0x10] sm:$0xf]
    %v7390 = vld [vmem:[%s7384 + $0x14] sm:$0xf]
    %v7391 = vld [vmem:[%s7384 + $0x18] sm:$0xf]
    %v7392 = vld [vmem:[%s7384 + $0x1c] sm:$0xf]
    %v7393 = vld [vmem:[%s7384 + $0x20] sm:$0xf]
    %v7394 = vld [vmem:[%s7384 + $0x24] sm:$0xf]
    %v7395 = vld [vmem:[%s7384 + $0x28] sm:$0xf]
    %v7396 = vld [vmem:[%s7384 + $0x2c] sm:$0xf]
    %v7397 = vld [vmem:[%s7384 + $0x30] sm:$0xf]
    %v7398 = vld [vmem:[%s7384 + $0x34] sm:$0xf]
    %v7399 = vld [vmem:[%s7384 + $0x38] sm:$0xf]
    %v7400 = vld [vmem:[%s7384 + $0x3c] sm:$0xf]
    %v7417 = vunpack.c.l.b16 %v7385
    %v7418 = vunpack.c.l.b16 %v7386
    %v7419 = vunpack.c.l.b16 %v7387
    %v7420 = vunpack.c.l.b16 %v7388
    %v7421 = vunpack.c.l.b16 %v7389
    %v7422 = vunpack.c.l.b16 %v7390
    %v7423 = vunpack.c.l.b16 %v7391
    %v7424 = vunpack.c.l.b16 %v7392
    %v7425 = vunpack.c.l.b16 %v7393
    %v7426 = vunpack.c.l.b16 %v7394
    %v7427 = vunpack.c.l.b16 %v7395
    %v7428 = vunpack.c.l.b16 %v7396
    %v7429 = vunpack.c.l.b16 %v7397
    %v7430 = vunpack.c.l.b16 %v7398
    %v7431 = vunpack.c.l.b16 %v7399
    %v7432 = vunpack.c.l.b16 %v7400
    %v7433 = vpack.c.b16 %v7418, %v7417
    %v7434 = vpack.c.b16 %v7420, %v7419
    %v7435 = vpack.c.b16 %v7422, %v7421
    %v7436 = vpack.c.b16 %v7424, %v7423
    %v7437 = vpack.c.b16 %v7426, %v7425
    %v7438 = vpack.c.b16 %v7428, %v7427
    %v7439 = vpack.c.b16 %v7430, %v7429
    %v7440 = vpack.c.b16 %v7432, %v7431
    %7449 = vmatprep.subr.bf16.mxu0 0
    %7450 = vmatpush1.bf16.msra.mxu0 %v7433
    %7451 = vmatprep.subr.bf16.mxu0 0
    %7452 = vmatpush1.bf16.msra.mxu0 %v7434
    %7453 = vmatprep.subr.bf16.mxu0 0
    %7454 = vmatpush1.bf16.msra.mxu0 %v7435
    %7455 = vmatprep.subr.bf16.mxu0 0
    %7456 = vmatpush1.bf16.msra.mxu0 %v7436
    %7457 = vmatprep.subr.bf16.mxu0 0
    %7458 = vmatpush1.bf16.msra.mxu0 %v7437
    %7459 = vmatprep.subr.bf16.mxu0 0
    %7460 = vmatpush1.bf16.msra.mxu0 %v7438
    %7461 = vmatprep.subr.bf16.mxu0 0
    %7462 = vmatpush1.bf16.msra.mxu0 %v7439
    %7463 = vmatprep.subr.bf16.mxu0 0
    %7464 = vmatpush1.bf16.msra.mxu0 %v7440
    %7465 = vmatprep.subr.bf16.mxu0 0
    %7466 = vmatpush1.bf16.msra.mxu0 0
    %7467 = vmatprep.subr.bf16.mxu0 0
    %7468 = vmatpush1.bf16.msra.mxu0 0
    %7469 = vmatprep.subr.bf16.mxu0 0
    %7470 = vmatpush1.bf16.msra.mxu0 0
    %7471 = vmatprep.subr.bf16.mxu0 0
    %7472 = vmatpush1.bf16.msra.mxu0 0
    %7473 = vmatprep.subr.bf16.mxu0 0
    %7474 = vmatpush1.bf16.msra.mxu0 0
    %7475 = vmatprep.subr.bf16.mxu0 0
    %7476 = vmatpush1.bf16.msra.mxu0 0
    %7477 = vmatprep.subr.bf16.mxu0 0
    %7478 = vmatpush1.bf16.msra.mxu0 0
    %7479 = vmatprep.subr.bf16.mxu0 0
    %7480 = vmatpush1.bf16.msra.mxu0 0
    %7481 = vmatprep.mubr.bf16.mxu0 0
    %7482 = vmatmul.mubr.bf16.gmra.mrb[0].mxu0 %v7258
    %v7483 = vpop.f32.mrb[0].mxu0
    %v7484 = vadd.f32 0.0, %v7483
    %v7485 = vpop.f32.mrb[0].mxu0
    %v7486 = vpop.f32.mrb[0].mxu0
    %v7487 = vadd.f32 0.0, %v7486
    %v7488 = vpop.f32.mrb[0].mxu0
    %7489 = vmatprep.mubr.bf16.mxu0 0
    %7490 = vmatmul.mubr.bf16.gmra.mrb[0].mxu0 %v7261
    %v7491 = vpop.f32.mrb[0].mxu0
    %v7492 = vadd.f32 0.0, %v7491
    %v7493 = vpop.f32.mrb[0].mxu0
    %v7494 = vpop.f32.mrb[0].mxu0
    %v7495 = vadd.f32 0.0, %v7494
    %v7496 = vpop.f32.mrb[0].mxu0
    %7497 = vmatprep.mubr.bf16.mxu0 0
    %7498 = vmatmul.mubr.bf16.gmra.mrb[0].mxu0 %v7264
    %v7499 = vpop.f32.mrb[0].mxu0
    %v7500 = vadd.f32 0.0, %v7499
    %v7501 = vpop.f32.mrb[0].mxu0
    %v7502 = vpop.f32.mrb[0].mxu0
    %v7503 = vadd.f32 0.0, %v7502
    %v7504 = vpop.f32.mrb[0].mxu0
    %7505 = vmatprep.mubr.bf16.mxu0 0
    %7506 = vmatmul.mubr.bf16.gmra.mrb[0].mxu0 %v7267
    %v7507 = vpop.f32.mrb[0].mxu0
    %v7508 = vadd.f32 0.0, %v7507
    %v7509 = vpop.f32.mrb[0].mxu0
    %v7510 = vpop.f32.mrb[0].mxu0
    %v7511 = vadd.f32 0.0, %v7510
    %v7512 = vpop.f32.mrb[0].mxu0
    %7513 = vmatprep.mubr.bf16.mxu0 0
    %7514 = vmatmul.mubr.bf16.gmra.mrb[0].mxu0 %v7270
    %v7515 = vpop.f32.mrb[0].mxu0
    %v7516 = vadd.f32 0.0, %v7515
    %v7517 = vpop.f32.mrb[0].mxu0
    %v7518 = vpop.f32.mrb[0].mxu0
    %v7519 = vadd.f32 0.0, %v7518
    %v7520 = vpop.f32.mrb[0].mxu0
    %7521 = vmatprep.mubr.bf16.mxu0 0
    %7522 = vmatmul.mubr.bf16.gmra.mrb[0].mxu0 %v7273
    %v7523 = vpop.f32.mrb[0].mxu0
    %v7524 = vadd.f32 0.0, %v7523
    %v7525 = vpop.f32.mrb[0].mxu0
    %v7526 = vpop.f32.mrb[0].mxu0
    %v7527 = vadd.f32 0.0, %v7526
    %v7528 = vpop.f32.mrb[0].mxu0
    %7529 = vmatprep.mubr.bf16.mxu0 0
    %7530 = vmatmul.mubr.bf16.gmra.mrb[0].mxu0 %v7276
    %v7531 = vpop.f32.mrb[0].mxu0
    %v7532 = vadd.f32 0.0, %v7531
    %v7533 = vpop.f32.mrb[0].mxu0
    %v7534 = vpop.f32.mrb[0].mxu0
    %v7535 = vadd.f32 0.0, %v7534
    %v7536 = vpop.f32.mrb[0].mxu0
    %7537 = vmatprep.mubr.bf16.mxu0 0
    %7538 = vmatmul.mubr.bf16.gmra.mrb[0].mxu0 %v7279
    %v7539 = vpop.f32.mrb[0].mxu0
    %v7540 = vadd.f32 0.0, %v7539
    %v7541 = vpop.f32.mrb[0].mxu0
    %v7542 = vpop.f32.mrb[0].mxu0
    %v7543 = vadd.f32 0.0, %v7542
    %v7544 = vpop.f32.mrb[0].mxu0
    %7545 = vmatprep.mubr.bf16.mxu0 0
    %7546 = vmatmul.mubr.bf16.gmra.mrb[0].mxu0 %v7282
    %v7547 = vpop.f32.mrb[0].mxu0
    %v7548 = vadd.f32 0.0, %v7547
    %v7549 = vpop.f32.mrb[0].mxu0
    %v7550 = vpop.f32.mrb[0].mxu0
    %v7551 = vadd.f32 0.0, %v7550
    %v7552 = vpop.f32.mrb[0].mxu0
    %7553 = vmatprep.mubr.bf16.mxu0 0
    %7554 = vmatmul.mubr.bf16.gmra.mrb[0].mxu0 %v7285
    %v7555 = vpop.f32.mrb[0].mxu0
    %v7556 = vadd.f32 0.0, %v7555
    %v7557 = vpop.f32.mrb[0].mxu0
    %v7558 = vpop.f32.mrb[0].mxu0
    %v7559 = vadd.f32 0.0, %v7558
    %v7560 = vpop.f32.mrb[0].mxu0
    %7561 = vmatprep.mubr.bf16.mxu0 0
    %7562 = vmatmul.mubr.bf16.gmra.mrb[0].mxu0 %v7288
    %v7563 = vpop.f32.mrb[0].mxu0
    %v7564 = vadd.f32 0.0, %v7563
    %v7565 = vpop.f32.mrb[0].mxu0
    %v7566 = vpop.f32.mrb[0].mxu0
    %v7567 = vadd.f32 0.0, %v7566
    %v7568 = vpop.f32.mrb[0].mxu0
    %7569 = vmatprep.mubr.bf16.mxu0 0
    %7570 = vmatmul.mubr.bf16.gmra.mrb[0].mxu0 %v7291
    %v7571 = vpop.f32.mrb[0].mxu0
    %v7572 = vadd.f32 0.0, %v7571
    %v7573 = vpop.f32.mrb[0].mxu0
    %v7574 = vpop.f32.mrb[0].mxu0
    %v7575 = vadd.f32 0.0, %v7574
    %v7576 = vpop.f32.mrb[0].mxu0
    %7577 = vmatprep.mubr.bf16.mxu0 0
    %7578 = vmatmul.mubr.bf16.gmra.mrb[0].mxu0 %v7294
    %v7579 = vpop.f32.mrb[0].mxu0
    %v7580 = vadd.f32 0.0, %v7579
    %v7581 = vpop.f32.mrb[0].mxu0
    %v7582 = vpop.f32.mrb[0].mxu0
    %v7583 = vadd.f32 0.0, %v7582
    %v7584 = vpop.f32.mrb[0].mxu0
    %7585 = vmatprep.mubr.bf16.mxu0 0
    %7586 = vmatmul.mubr.bf16.gmra.mrb[0].mxu0 %v7297
    %v7587 = vpop.f32.mrb[0].mxu0
    %v7588 = vadd.f32 0.0, %v7587
    %v7589 = vpop.f32.mrb[0].mxu0
    %v7590 = vpop.f32.mrb[0].mxu0
    %v7591 = vadd.f32 0.0, %v7590
    %v7592 = vpop.f32.mrb[0].mxu0
    %7593 = vmatprep.mubr.bf16.mxu0 0
    %7594 = vmatmul.mubr.bf16.gmra.mrb[0].mxu0 %v7300
    %v7595 = vpop.f32.mrb[0].mxu0
    %v7596 = vadd.f32 0.0, %v7595
    %v7597 = vpop.f32.mrb[0].mxu0
    %v7598 = vpop.f32.mrb[0].mxu0
    %v7599 = vadd.f32 0.0, %v7598
    %v7600 = vpop.f32.mrb[0].mxu0
    %7601 = vmatprep.mubr.bf16.mxu0 0
    %7602 = vmatmul.mubr.bf16.gmra.mrb[0].mxu0 %v7303
    %v7603 = vpop.f32.mrb[0].mxu0
    %v7604 = vadd.f32 0.0, %v7603
    %v7605 = vpop.f32.mrb[0].mxu0
    %v7606 = vpop.f32.mrb[0].mxu0
    %v7607 = vadd.f32 0.0, %v7606
    %v7608 = vpop.f32.mrb[0].mxu0
    %7609 = vmatprep.mubr.bf16.mxu0 0
    %7610 = vmatmul.mubr.bf16.gmra.mrb[0].mxu0 %v7306
    %v7611 = vpop.f32.mrb[0].mxu0
    %v7612 = vadd.f32 0.0, %v7611
    %v7613 = vpop.f32.mrb[0].mxu0
    %v7614 = vpop.f32.mrb[0].mxu0
    %v7615 = vadd.f32 0.0, %v7614
    %v7616 = vpop.f32.mrb[0].mxu0
    %7617 = vmatprep.mubr.bf16.mxu0 0
    %7618 = vmatmul.mubr.bf16.gmra.mrb[0].mxu0 %v7309
    %v7619 = vpop.f32.mrb[0].mxu0
    %v7620 = vadd.f32 0.0, %v7619
    %v7621 = vpop.f32.mrb[0].mxu0
    %v7622 = vpop.f32.mrb[0].mxu0
    %v7623 = vadd.f32 0.0, %v7622
    %v7624 = vpop.f32.mrb[0].mxu0
    %7625 = vmatprep.mubr.bf16.mxu0 0
    %7626 = vmatmul.mubr.bf16.gmra.mrb[0].mxu0 %v7312
    %v7627 = vpop.f32.mrb[0].mxu0
    %v7628 = vadd.f32 0.0, %v7627
    %v7629 = vpop.f32.mrb[0].mxu0
    %v7630 = vpop.f32.mrb[0].mxu0
    %v7631 = vadd.f32 0.0, %v7630
    %v7632 = vpop.f32.mrb[0].mxu0
    %7633 = vmatprep.mubr.bf16.mxu0 0
    %7634 = vmatmul.mubr.bf16.gmra.mrb[0].mxu0 %v7315
    %v7635 = vpop.f32.mrb[0].mxu0
    %v7636 = vadd.f32 0.0, %v7635
    %v7637 = vpop.f32.mrb[0].mxu0
    %v7638 = vpop.f32.mrb[0].mxu0
    %v7639 = vadd.f32 0.0, %v7638
    %v7640 = vpop.f32.mrb[0].mxu0
    %7641 = vmatprep.mubr.bf16.mxu0 0
    %7642 = vmatmul.mubr.bf16.gmra.mrb[0].mxu0 %v7318
    %v7643 = vpop.f32.mrb[0].mxu0
    %v7644 = vadd.f32 0.0, %v7643
    %v7645 = vpop.f32.mrb[0].mxu0
    %v7646 = vpop.f32.mrb[0].mxu0
    %v7647 = vadd.f32 0.0, %v7646
    %v7648 = vpop.f32.mrb[0].mxu0
    %7649 = vmatprep.mubr.bf16.mxu0 0
    %7650 = vmatmul.mubr.bf16.gmra.mrb[0].mxu0 %v7321
    %v7651 = vpop.f32.mrb[0].mxu0
    %v7652 = vadd.f32 0.0, %v7651
    %v7653 = vpop.f32.mrb[0].mxu0
    %v7654 = vpop.f32.mrb[0].mxu0
    %v7655 = vadd.f32 0.0, %v7654
    %v7656 = vpop.f32.mrb[0].mxu0
    %7657 = vmatprep.mubr.bf16.mxu0 0
    %7658 = vmatmul.mubr.bf16.gmra.mrb[0].mxu0 %v7324
    %v7659 = vpop.f32.mrb[0].mxu0
    %v7660 = vadd.f32 0.0, %v7659
    %v7661 = vpop.f32.mrb[0].mxu0
    %v7662 = vpop.f32.mrb[0].mxu0
    %v7663 = vadd.f32 0.0, %v7662
    %v7664 = vpop.f32.mrb[0].mxu0
    %7665 = vmatprep.mubr.bf16.mxu0 0
    %7666 = vmatmul.mubr.bf16.gmra.mrb[0].mxu0 %v7327
    %v7667 = vpop.f32.mrb[0].mxu0
    %v7668 = vadd.f32 0.0, %v7667
    %v7669 = vpop.f32.mrb[0].mxu0
    %v7670 = vpop.f32.mrb[0].mxu0
    %v7671 = vadd.f32 0.0, %v7670
    %v7672 = vpop.f32.mrb[0].mxu0
    %7673 = vmatprep.mubr.bf16.mxu0 0
    %7674 = vmatmul.mubr.bf16.gmra.mrb[0].mxu0 %v7330
    %v7675 = vpop.f32.mrb[0].mxu0
    %v7676 = vadd.f32 0.0, %v7675
    %v7677 = vpop.f32.mrb[0].mxu0
    %v7678 = vpop.f32.mrb[0].mxu0
    %v7679 = vadd.f32 0.0, %v7678
    %v7680 = vpop.f32.mrb[0].mxu0
    %7681 = vmatprep.mubr.bf16.mxu0 0
    %7682 = vmatmul.mubr.bf16.gmra.mrb[0].mxu0 %v7333
    %v7683 = vpop.f32.mrb[0].mxu0
    %v7684 = vadd.f32 0.0, %v7683
    %v7685 = vpop.f32.mrb[0].mxu0
    %v7686 = vpop.f32.mrb[0].mxu0
    %v7687 = vadd.f32 0.0, %v7686
    %v7688 = vpop.f32.mrb[0].mxu0
    %7689 = vmatprep.mubr.bf16.mxu0 0
    %7690 = vmatmul.mubr.bf16.gmra.mrb[0].mxu0 %v7336
    %v7691 = vpop.f32.mrb[0].mxu0
    %v7692 = vadd.f32 0.0, %v7691
    %v7693 = vpop.f32.mrb[0].mxu0
    %v7694 = vpop.f32.mrb[0].mxu0
    %v7695 = vadd.f32 0.0, %v7694
    %v7696 = vpop.f32.mrb[0].mxu0
    %7697 = vmatprep.mubr.bf16.mxu0 0
    %7698 = vmatmul.mubr.bf16.gmra.mrb[0].mxu0 %v7339
    %v7699 = vpop.f32.mrb[0].mxu0
    %v7700 = vadd.f32 0.0, %v7699
    %v7701 = vpop.f32.mrb[0].mxu0
    %v7702 = vpop.f32.mrb[0].mxu0
    %v7703 = vadd.f32 0.0, %v7702
    %v7704 = vpop.f32.mrb[0].mxu0
    %7705 = vmatprep.mubr.bf16.mxu0 0
    %7706 = vmatmul.mubr.bf16.gmra.mrb[0].mxu0 %v7342
    %v7707 = vpop.f32.mrb[0].mxu0
    %v7708 = vadd.f32 0.0, %v7707
    %v7709 = vpop.f32.mrb[0].mxu0
    %v7710 = vpop.f32.mrb[0].mxu0
    %v7711 = vadd.f32 0.0, %v7710
    %v7712 = vpop.f32.mrb[0].mxu0
    %7713 = vmatprep.mubr.bf16.mxu0 0
    %7714 = vmatmul.mubr.bf16.gmra.mrb[0].mxu0 %v7345
    %v7715 = vpop.f32.mrb[0].mxu0
    %v7716 = vadd.f32 0.0, %v7715
    %v7717 = vpop.f32.mrb[0].mxu0
    %v7718 = vpop.f32.mrb[0].mxu0
    %v7719 = vadd.f32 0.0, %v7718
    %v7720 = vpop.f32.mrb[0].mxu0
    %7721 = vmatprep.mubr.bf16.mxu0 0
    %7722 = vmatmul.mubr.bf16.gmra.mrb[0].mxu0 %v7348
    %v7723 = vpop.f32.mrb[0].mxu0
    %v7724 = vadd.f32 0.0, %v7723
    %v7725 = vpop.f32.mrb[0].mxu0
    %v7726 = vpop.f32.mrb[0].mxu0
    %v7727 = vadd.f32 0.0, %v7726
    %v7728 = vpop.f32.mrb[0].mxu0
    %7729 = vmatprep.mubr.bf16.mxu0 0
    %7730 = vmatmul.mubr.bf16.gmra.mrb[0].mxu0 %v7351
    %v7731 = vpop.f32.mrb[0].mxu0
    %v7732 = vadd.f32 0.0, %v7731
    %v7733 = vpop.f32.mrb[0].mxu0
    %v7734 = vpop.f32.mrb[0].mxu0
    %v7735 = vadd.f32 0.0, %v7734
    %v7736 = vpop.f32.mrb[0].mxu0
    %7737 = vdwg.mxu0
    %v7738 = vld [vmem:[#allocation2] sm:$0xff]
    %v7739 = vld [vmem:[#allocation2 + $0x8] sm:$0xff]
    %v7740 = vld [vmem:[#allocation2 + $0x10] sm:$0xff]
    %v7741 = vld [vmem:[#allocation2 + $0x18] sm:$0xff]
    %v7742 = vld [vmem:[#allocation2 + $0x20] sm:$0xff]
    %v7743 = vld [vmem:[#allocation2 + $0x28] sm:$0xff]
    %v7744 = vld [vmem:[#allocation2 + $0x30] sm:$0xff]
    %v7745 = vld [vmem:[#allocation2 + $0x38] sm:$0xff]
    %v7746 = vld [vmem:[#allocation2 + $0x40] sm:$0xff]
    %v7747 = vld [vmem:[#allocation2 + $0x48] sm:$0xff]
    %v7748 = vld [vmem:[#allocation2 + $0x50] sm:$0xff]
    %v7749 = vld [vmem:[#allocation2 + $0x58] sm:$0xff]
    %v7750 = vld [vmem:[#allocation2 + $0x60] sm:$0xff]
    %v7751 = vld [vmem:[#allocation2 + $0x68] sm:$0xff]
    %v7752 = vld [vmem:[#allocation2 + $0x70] sm:$0xff]
    %v7753 = vld [vmem:[#allocation2 + $0x78] sm:$0xff]
    %v7754 = vld [vmem:[#allocation2 + $0x80] sm:$0xff]
    %v7755 = vld [vmem:[#allocation2 + $0x88] sm:$0xff]
    %v7756 = vld [vmem:[#allocation2 + $0x90] sm:$0xff]
    %v7757 = vld [vmem:[#allocation2 + $0x98] sm:$0xff]
    %v7758 = vld [vmem:[#allocation2 + $0xa0] sm:$0xff]
    %v7759 = vld [vmem:[#allocation2 + $0xa8] sm:$0xff]
    %v7760 = vld [vmem:[#allocation2 + $0xb0] sm:$0xff]
    %v7761 = vld [vmem:[#allocation2 + $0xb8] sm:$0xff]
    %v7762 = vld [vmem:[#allocation2 + $0xc0] sm:$0xff]
    %v7763 = vld [vmem:[#allocation2 + $0xc8] sm:$0xff]
    %v7764 = vld [vmem:[#allocation2 + $0xd0] sm:$0xff]
    %v7765 = vld [vmem:[#allocation2 + $0xd8] sm:$0xff]
    %v7766 = vld [vmem:[#allocation2 + $0xe0] sm:$0xff]
    %v7767 = vld [vmem:[#allocation2 + $0xe8] sm:$0xff]
    %v7768 = vld [vmem:[#allocation2 + $0xf0] sm:$0xff]
    %v7769 = vld [vmem:[#allocation2 + $0xf8] sm:$0xff]
    %v7770 = vld [vmem:[#allocation2 + $0x100] sm:$0xff]
    %v7771 = vld [vmem:[#allocation2 + $0x108] sm:$0xff]
    %v7772 = vld [vmem:[#allocation2 + $0x110] sm:$0xff]
    %v7773 = vld [vmem:[#allocation2 + $0x118] sm:$0xff]
    %v7774 = vld [vmem:[#allocation2 + $0x120] sm:$0xff]
    %v7775 = vld [vmem:[#allocation2 + $0x128] sm:$0xff]
    %v7776 = vld [vmem:[#allocation2 + $0x130] sm:$0xff]
    %v7777 = vld [vmem:[#allocation2 + $0x138] sm:$0xff]
    %v7778 = vld [vmem:[#allocation2 + $0x140] sm:$0xff]
    %v7779 = vld [vmem:[#allocation2 + $0x148] sm:$0xff]
    %v7780 = vld [vmem:[#allocation2 + $0x150] sm:$0xff]
    %v7781 = vld [vmem:[#allocation2 + $0x158] sm:$0xff]
    %v7782 = vld [vmem:[#allocation2 + $0x160] sm:$0xff]
    %v7783 = vld [vmem:[#allocation2 + $0x168] sm:$0xff]
    %v7784 = vld [vmem:[#allocation2 + $0x170] sm:$0xff]
    %v7785 = vld [vmem:[#allocation2 + $0x178] sm:$0xff]
    %v7786 = vld [vmem:[#allocation2 + $0x180] sm:$0xff]
    %v7787 = vld [vmem:[#allocation2 + $0x188] sm:$0xff]
    %v7788 = vld [vmem:[#allocation2 + $0x190] sm:$0xff]
    %v7789 = vld [vmem:[#allocation2 + $0x198] sm:$0xff]
    %v7790 = vld [vmem:[#allocation2 + $0x1a0] sm:$0xff]
    %v7791 = vld [vmem:[#allocation2 + $0x1a8] sm:$0xff]
    %v7792 = vld [vmem:[#allocation2 + $0x1b0] sm:$0xff]
    %v7793 = vld [vmem:[#allocation2 + $0x1b8] sm:$0xff]
    %v7794 = vld [vmem:[#allocation2 + $0x1c0] sm:$0xff]
    %v7795 = vld [vmem:[#allocation2 + $0x1c8] sm:$0xff]
    %v7796 = vld [vmem:[#allocation2 + $0x1d0] sm:$0xff]
    %v7797 = vld [vmem:[#allocation2 + $0x1d8] sm:$0xff]
    %v7798 = vld [vmem:[#allocation2 + $0x1e0] sm:$0xff]
    %v7799 = vld [vmem:[#allocation2 + $0x1e8] sm:$0xff]
    %v7800 = vld [vmem:[#allocation2 + $0x1f0] sm:$0xff]
    %v7801 = vld [vmem:[#allocation2 + $0x1f8] sm:$0xff]
    %v7802 = vadd.f32 %v7738, %v7484
    %v7803 = vadd.f32 %v7739, %v7487
    %v7804 = vadd.f32 %v7740, %v7492
    %v7805 = vadd.f32 %v7741, %v7495
    %v7806 = vadd.f32 %v7742, %v7500
    %v7807 = vadd.f32 %v7743, %v7503
    %v7808 = vadd.f32 %v7744, %v7508
    %v7809 = vadd.f32 %v7745, %v7511
    %v7810 = vadd.f32 %v7746, %v7516
    %v7811 = vadd.f32 %v7747, %v7519
    %v7812 = vadd.f32 %v7748, %v7524
    %v7813 = vadd.f32 %v7749, %v7527
    %v7814 = vadd.f32 %v7750, %v7532
    %v7815 = vadd.f32 %v7751, %v7535
    %v7816 = vadd.f32 %v7752, %v7540
    %v7817 = vadd.f32 %v7753, %v7543
    %v7818 = vadd.f32 %v7754, %v7548
    %v7819 = vadd.f32 %v7755, %v7551
    %v7820 = vadd.f32 %v7756, %v7556
    %v7821 = vadd.f32 %v7757, %v7559
    %v7822 = vadd.f32 %v7758, %v7564
    %v7823 = vadd.f32 %v7759, %v7567
    %v7824 = vadd.f32 %v7760, %v7572
    %v7825 = vadd.f32 %v7761, %v7575
    %v7826 = vadd.f32 %v7762, %v7580
    %v7827 = vadd.f32 %v7763, %v7583
    %v7828 = vadd.f32 %v7764, %v7588
    %v7829 = vadd.f32 %v7765, %v7591
    %v7830 = vadd.f32 %v7766, %v7596
    %v7831 = vadd.f32 %v7767, %v7599
    %v7832 = vadd.f32 %v7768, %v7604
    %v7833 = vadd.f32 %v7769, %v7607
    %v7834 = vadd.f32 %v7770, %v7612
    %v7835 = vadd.f32 %v7771, %v7615
    %v7836 = vadd.f32 %v7772, %v7620
    %v7837 = vadd.f32 %v7773, %v7623
    %v7838 = vadd.f32 %v7774, %v7628
    %v7839 = vadd.f32 %v7775, %v7631
    %v7840 = vadd.f32 %v7776, %v7636
    %v7841 = vadd.f32 %v7777, %v7639
    %v7842 = vadd.f32 %v7778, %v7644
    %v7843 = vadd.f32 %v7779, %v7647
    %v7844 = vadd.f32 %v7780, %v7652
    %v7845 = vadd.f32 %v7781, %v7655
    %v7846 = vadd.f32 %v7782, %v7660
    %v7847 = vadd.f32 %v7783, %v7663
    %v7848 = vadd.f32 %v7784, %v7668
    %v7849 = vadd.f32 %v7785, %v7671
    %v7850 = vadd.f32 %v7786, %v7676
    %v7851 = vadd.f32 %v7787, %v7679
    %v7852 = vadd.f32 %v7788, %v7684
    %v7853 = vadd.f32 %v7789, %v7687
    %v7854 = vadd.f32 %v7790, %v7692
    %v7855 = vadd.f32 %v7791, %v7695
    %v7856 = vadd.f32 %v7792, %v7700
    %v7857 = vadd.f32 %v7793, %v7703
    %v7858 = vadd.f32 %v7794, %v7708
    %v7859 = vadd.f32 %v7795, %v7711
    %v7860 = vadd.f32 %v7796, %v7716
    %v7861 = vadd.f32 %v7797, %v7719
    %v7862 = vadd.f32 %v7798, %v7724
    %v7863 = vadd.f32 %v7799, %v7727
    %v7864 = vadd.f32 %v7800, %v7732
    %v7865 = vadd.f32 %v7801, %v7735
    %7866 = vst [vmem:[#allocation2] sm:$0xff] %v7802
    %7867 = vst [vmem:[#allocation2 + $0x8] sm:$0xff] %v7803
    %7868 = vst [vmem:[#allocation2 + $0x10] sm:$0xff] %v7804
    %7869 = vst [vmem:[#allocation2 + $0x18] sm:$0xff] %v7805
    %7870 = vst [vmem:[#allocation2 + $0x20] sm:$0xff] %v7806
    %7871 = vst [vmem:[#allocation2 + $0x28] sm:$0xff] %v7807
    %7872 = vst [vmem:[#allocation2 + $0x30] sm:$0xff] %v7808
    %7873 = vst [vmem:[#allocation2 + $0x38] sm:$0xff] %v7809
    %7874 = vst [vmem:[#allocation2 + $0x40] sm:$0xff] %v7810
    %7875 = vst [vmem:[#allocation2 + $0x48] sm:$0xff] %v7811
    %7876 = vst [vmem:[#allocation2 + $0x50] sm:$0xff] %v7812
    %7877 = vst [vmem:[#allocation2 + $0x58] sm:$0xff] %v7813
    %7878 = vst [vmem:[#allocation2 + $0x60] sm:$0xff] %v7814
    %7879 = vst [vmem:[#allocation2 + $0x68] sm:$0xff] %v7815
    %7880 = vst [vmem:[#allocation2 + $0x70] sm:$0xff] %v7816
    %7881 = vst [vmem:[#allocation2 + $0x78] sm:$0xff] %v7817
    %7882 = vst [vmem:[#allocation2 + $0x80] sm:$0xff] %v7818
    %7883 = vst [vmem:[#allocation2 + $0x88] sm:$0xff] %v7819
    %7884 = vst [vmem:[#allocation2 + $0x90] sm:$0xff] %v7820
    %7885 = vst [vmem:[#allocation2 + $0x98] sm:$0xff] %v7821
    %7886 = vst [vmem:[#allocation2 + $0xa0] sm:$0xff] %v7822
    %7887 = vst [vmem:[#allocation2 + $0xa8] sm:$0xff] %v7823
    %7888 = vst [vmem:[#allocation2 + $0xb0] sm:$0xff] %v7824
    %7889 = vst [vmem:[#allocation2 + $0xb8] sm:$0xff] %v7825
    %7890 = vst [vmem:[#allocation2 + $0xc0] sm:$0xff] %v7826
    %7891 = vst [vmem:[#allocation2 + $0xc8] sm:$0xff] %v7827
    %7892 = vst [vmem:[#allocation2 + $0xd0] sm:$0xff] %v7828
    %7893 = vst [vmem:[#allocation2 + $0xd8] sm:$0xff] %v7829
    %7894 = vst [vmem:[#allocation2 + $0xe0] sm:$0xff] %v7830
    %7895 = vst [vmem:[#allocation2 + $0xe8] sm:$0xff] %v7831
    %7896 = vst [vmem:[#allocation2 + $0xf0] sm:$0xff] %v7832
    %7897 = vst [vmem:[#allocation2 + $0xf8] sm:$0xff] %v7833
    %7898 = vst [vmem:[#allocation2 + $0x100] sm:$0xff] %v7834
    %7899 = vst [vmem:[#allocation2 + $0x108] sm:$0xff] %v7835
    %7900 = vst [vmem:[#allocation2 + $0x110] sm:$0xff] %v7836
    %7901 = vst [vmem:[#allocation2 + $0x118] sm:$0xff] %v7837
    %7902 = vst [vmem:[#allocation2 + $0x120] sm:$0xff] %v7838
    %7903 = vst [vmem:[#allocation2 + $0x128] sm:$0xff] %v7839
    %7904 = vst [vmem:[#allocation2 + $0x130] sm:$0xff] %v7840
    %7905 = vst [vmem:[#allocation2 + $0x138] sm:$0xff] %v7841
    %7906 = vst [vmem:[#allocation2 + $0x140] sm:$0xff] %v7842
    %7907 = vst [vmem:[#allocation2 + $0x148] sm:$0xff] %v7843
    %7908 = vst [vmem:[#allocation2 + $0x150] sm:$0xff] %v7844
    %7909 = vst [vmem:[#allocation2 + $0x158] sm:$0xff] %v7845
    %7910 = vst [vmem:[#allocation2 + $0x160] sm:$0xff] %v7846
    %7911 = vst [vmem:[#allocation2 + $0x168] sm:$0xff] %v7847
    %7912 = vst [vmem:[#allocation2 + $0x170] sm:$0xff] %v7848
    %7913 = vst [vmem:[#allocation2 + $0x178] sm:$0xff] %v7849
    %7914 = vst [vmem:[#allocation2 + $0x180] sm:$0xff] %v7850
    %7915 = vst [vmem:[#allocation2 + $0x188] sm:$0xff] %v7851
    %7916 = vst [vmem:[#allocation2 + $0x190] sm:$0xff] %v7852
    %7917 = vst [vmem:[#allocation2 + $0x198] sm:$0xff] %v7853
    %7918 = vst [vmem:[#allocation2 + $0x1a0] sm:$0xff] %v7854
    %7919 = vst [vmem:[#allocation2 + $0x1a8] sm:$0xff] %v7855
    %7920 = vst [vmem:[#allocation2 + $0x1b0] sm:$0xff] %v7856
    %7921 = vst [vmem:[#allocation2 + $0x1b8] sm:$0xff] %v7857
    %7922 = vst [vmem:[#allocation2 + $0x1c0] sm:$0xff] %v7858
    %7923 = vst [vmem:[#allocation2 + $0x1c8] sm:$0xff] %v7859
    %7924 = vst [vmem:[#allocation2 + $0x1d0] sm:$0xff] %v7860
    %7925 = vst [vmem:[#allocation2 + $0x1d8] sm:$0xff] %v7861
    %7926 = vst [vmem:[#allocation2 + $0x1e0] sm:$0xff] %v7862
    %7927 = vst [vmem:[#allocation2 + $0x1e8] sm:$0xff] %v7863
    %7928 = vst [vmem:[#allocation2 + $0x1f0] sm:$0xff] %v7864
    %7929 = vst [vmem:[#allocation2 + $0x1f8] sm:$0xff] %v7865
    %s7930 = scalar_lea.vmem [#allocation4], 32
    %v7931 = vld [vmem:[%s7930] sm:$0xf0]
    %v7932 = vld [vmem:[%s7930 + $0x8] sm:$0xf]
    %v7933 = vld [vmem:[%s7930 + $0x10] sm:$0xf0]
    %v7934 = vld [vmem:[%s7930 + $0x18] sm:$0xf]
    %v7935 = vld [vmem:[%s7930 + $0x20] sm:$0xf0]
    %v7936 = vld [vmem:[%s7930 + $0x28] sm:$0xf]
    %v7937 = vld [vmem:[%s7930 + $0x30] sm:$0xf0]
    %v7938 = vld [vmem:[%s7930 + $0x38] sm:$0xf]
    %v7939 = vld [vmem:[%s7930 + $0x40] sm:$0xf0]
    %v7940 = vld [vmem:[%s7930 + $0x48] sm:$0xf]
    %v7941 = vld [vmem:[%s7930 + $0x50] sm:$0xf0]
    %v7942 = vld [vmem:[%s7930 + $0x58] sm:$0xf]
    %v7943 = vld [vmem:[%s7930 + $0x60] sm:$0xf0]
    %v7944 = vld [vmem:[%s7930 + $0x68] sm:$0xf]
    %v7945 = vld [vmem:[%s7930 + $0x70] sm:$0xf0]
    %v7946 = vld [vmem:[%s7930 + $0x78] sm:$0xf]
    %v7947 = vld [vmem:[%s7930 + $0x80] sm:$0xf0]
    %v7948 = vld [vmem:[%s7930 + $0x88] sm:$0xf]
    %v7949 = vld [vmem:[%s7930 + $0x90] sm:$0xf0]
    %v7950 = vld [vmem:[%s7930 + $0x98] sm:$0xf]
    %v7951 = vld [vmem:[%s7930 + $0xa0] sm:$0xf0]
    %v7952 = vld [vmem:[%s7930 + $0xa8] sm:$0xf]
    %v7953 = vld [vmem:[%s7930 + $0xb0] sm:$0xf0]
    %v7954 = vld [vmem:[%s7930 + $0xb8] sm:$0xf]
    %v7955 = vld [vmem:[%s7930 + $0xc0] sm:$0xf0]
    %v7956 = vld [vmem:[%s7930 + $0xc8] sm:$0xf]
    %v7957 = vld [vmem:[%s7930 + $0xd0] sm:$0xf0]
    %v7958 = vld [vmem:[%s7930 + $0xd8] sm:$0xf]
    %v7959 = vld [vmem:[%s7930 + $0xe0] sm:$0xf0]
    %v7960 = vld [vmem:[%s7930 + $0xe8] sm:$0xf]
    %v7961 = vld [vmem:[%s7930 + $0xf0] sm:$0xf0]
    %v7962 = vld [vmem:[%s7930 + $0xf8] sm:$0xf]
    %v7963 = vld [vmem:[%s7930 + $0x120] sm:$0xf0]
    %v7964 = vld [vmem:[%s7930 + $0x128] sm:$0xf]
    %v7965 = vld [vmem:[%s7930 + $0x130] sm:$0xf0]
    %v7966 = vld [vmem:[%s7930 + $0x138] sm:$0xf]
    %v7967 = vld [vmem:[%s7930 + $0x140] sm:$0xf0]
    %v7968 = vld [vmem:[%s7930 + $0x148] sm:$0xf]
    %v7969 = vld [vmem:[%s7930 + $0x150] sm:$0xf0]
    %v7970 = vld [vmem:[%s7930 + $0x158] sm:$0xf]
    %v7971 = vld [vmem:[%s7930 + $0x160] sm:$0xf0]
    %v7972 = vld [vmem:[%s7930 + $0x168] sm:$0xf]
    %v7973 = vld [vmem:[%s7930 + $0x170] sm:$0xf0]
    %v7974 = vld [vmem:[%s7930 + $0x178] sm:$0xf]
    %v7975 = vld [vmem:[%s7930 + $0x180] sm:$0xf0]
    %v7976 = vld [vmem:[%s7930 + $0x188] sm:$0xf]
    %v7977 = vld [vmem:[%s7930 + $0x190] sm:$0xf0]
    %v7978 = vld [vmem:[%s7930 + $0x198] sm:$0xf]
    %v7979 = vld [vmem:[%s7930 + $0x1a0] sm:$0xf0]
    %v7980 = vld [vmem:[%s7930 + $0x1a8] sm:$0xf]
    %v7981 = vld [vmem:[%s7930 + $0x1b0] sm:$0xf0]
    %v7982 = vld [vmem:[%s7930 + $0x1b8] sm:$0xf]
    %v7983 = vld [vmem:[%s7930 + $0x1c0] sm:$0xf0]
    %v7984 = vld [vmem:[%s7930 + $0x1c8] sm:$0xf]
    %v7985 = vld [vmem:[%s7930 + $0x1d0] sm:$0xf0]
    %v7986 = vld [vmem:[%s7930 + $0x1d8] sm:$0xf]
    %v7987 = vld [vmem:[%s7930 + $0x1e0] sm:$0xf0]
    %v7988 = vld [vmem:[%s7930 + $0x1e8] sm:$0xf]
    %v7989 = vld [vmem:[%s7930 + $0x1f0] sm:$0xf0]
    %v7990 = vld [vmem:[%s7930 + $0x1f8] sm:$0xf]
    %v7991 = vld [vmem:[%s7930 + $0x200] sm:$0xf0]
    %v7992 = vld [vmem:[%s7930 + $0x208] sm:$0xf]
    %v7993 = vld [vmem:[%s7930 + $0x210] sm:$0xf0]
    %v7994 = vld [vmem:[%s7930 + $0x218] sm:$0xf]
    %v8059 = vrot.slane %v7931, 4
    %v8060 = vrot.slane %v7932, 4
    %v8061 = vsel %vm2252, %v8059, %v8060
    %v8062 = vrot.slane %v7933, 4
    %v8063 = vrot.slane %v7934, 4
    %v8064 = vsel %vm2252, %v8062, %v8063
    %v8065 = vrot.slane %v7935, 4
    %v8066 = vrot.slane %v7936, 4
    %v8067 = vsel %vm2252, %v8065, %v8066
    %v8068 = vrot.slane %v7937, 4
    %v8069 = vrot.slane %v7938, 4
    %v8070 = vsel %vm2252, %v8068, %v8069
    %v8071 = vrot.slane %v7939, 4
    %v8072 = vrot.slane %v7940, 4
    %v8073 = vsel %vm2252, %v8071, %v8072
    %v8074 = vrot.slane %v7941, 4
    %v8075 = vrot.slane %v7942, 4
    %v8076 = vsel %vm2252, %v8074, %v8075
    %v8077 = vrot.slane %v7943, 4
    %v8078 = vrot.slane %v7944, 4
    %v8079 = vsel %vm2252, %v8077, %v8078
    %v8080 = vrot.slane %v7945, 4
    %v8081 = vrot.slane %v7946, 4
    %v8082 = vsel %vm2252, %v8080, %v8081
    %v8083 = vrot.slane %v7947, 4
    %v8084 = vrot.slane %v7948, 4
    %v8085 = vsel %vm2252, %v8083, %v8084
    %v8086 = vrot.slane %v7949, 4
    %v8087 = vrot.slane %v7950, 4
    %v8088 = vsel %vm2252, %v8086, %v8087
    %v8089 = vrot.slane %v7951, 4
    %v8090 = vrot.slane %v7952, 4
    %v8091 = vsel %vm2252, %v8089, %v8090
    %v8092 = vrot.slane %v7953, 4
    %v8093 = vrot.slane %v7954, 4
    %v8094 = vsel %vm2252, %v8092, %v8093
    %v8095 = vrot.slane %v7955, 4
    %v8096 = vrot.slane %v7956, 4
    %v8097 = vsel %vm2252, %v8095, %v8096
    %v8098 = vrot.slane %v7957, 4
    %v8099 = vrot.slane %v7958, 4
    %v8100 = vsel %vm2252, %v8098, %v8099
    %v8101 = vrot.slane %v7959, 4
    %v8102 = vrot.slane %v7960, 4
    %v8103 = vsel %vm2252, %v8101, %v8102
    %v8104 = vrot.slane %v7961, 4
    %v8105 = vrot.slane %v7962, 4
    %v8106 = vsel %vm2252, %v8104, %v8105
    %v8107 = vrot.slane %v7963, 4
    %v8108 = vrot.slane %v7964, 4
    %v8109 = vsel %vm2252, %v8107, %v8108
    %v8110 = vrot.slane %v7965, 4
    %v8111 = vrot.slane %v7966, 4
    %v8112 = vsel %vm2252, %v8110, %v8111
    %v8113 = vrot.slane %v7967, 4
    %v8114 = vrot.slane %v7968, 4
    %v8115 = vsel %vm2252, %v8113, %v8114
    %v8116 = vrot.slane %v7969, 4
    %v8117 = vrot.slane %v7970, 4
    %v8118 = vsel %vm2252, %v8116, %v8117
    %v8119 = vrot.slane %v7971, 4
    %v8120 = vrot.slane %v7972, 4
    %v8121 = vsel %vm2252, %v8119, %v8120
    %v8122 = vrot.slane %v7973, 4
    %v8123 = vrot.slane %v7974, 4
    %v8124 = vsel %vm2252, %v8122, %v8123
    %v8125 = vrot.slane %v7975, 4
    %v8126 = vrot.slane %v7976, 4
    %v8127 = vsel %vm2252, %v8125, %v8126
    %v8128 = vrot.slane %v7977, 4
    %v8129 = vrot.slane %v7978, 4
    %v8130 = vsel %vm2252, %v8128, %v8129
    %v8131 = vrot.slane %v7979, 4
    %v8132 = vrot.slane %v7980, 4
    %v8133 = vsel %vm2252, %v8131, %v8132
    %v8134 = vrot.slane %v7981, 4
    %v8135 = vrot.slane %v7982, 4
    %v8136 = vsel %vm2252, %v8134, %v8135
    %v8137 = vrot.slane %v7983, 4
    %v8138 = vrot.slane %v7984, 4
    %v8139 = vsel %vm2252, %v8137, %v8138
    %v8140 = vrot.slane %v7985, 4
    %v8141 = vrot.slane %v7986, 4
    %v8142 = vsel %vm2252, %v8140, %v8141
    %v8143 = vrot.slane %v7987, 4
    %v8144 = vrot.slane %v7988, 4
    %v8145 = vsel %vm2252, %v8143, %v8144
    %v8146 = vrot.slane %v7989, 4
    %v8147 = vrot.slane %v7990, 4
    %v8148 = vsel %vm2252, %v8146, %v8147
    %v8149 = vrot.slane %v7991, 4
    %v8150 = vrot.slane %v7992, 4
    %v8151 = vsel %vm2252, %v8149, %v8150
    %v8152 = vrot.slane %v7993, 4
    %v8153 = vrot.slane %v7994, 4
    %v8154 = vsel %vm2252, %v8152, %v8153
    %s8187 = scalar_lea.vmem [#allocation6], 448
    %v8188 = vld [vmem:[%s8187] sm:$0xf]
    %v8189 = vld [vmem:[%s8187 + $0x4] sm:$0xf]
    %v8190 = vld [vmem:[%s8187 + $0x8] sm:$0xf]
    %v8191 = vld [vmem:[%s8187 + $0xc] sm:$0xf]
    %v8192 = vld [vmem:[%s8187 + $0x10] sm:$0xf]
    %v8193 = vld [vmem:[%s8187 + $0x14] sm:$0xf]
    %v8194 = vld [vmem:[%s8187 + $0x18] sm:$0xf]
    %v8195 = vld [vmem:[%s8187 + $0x1c] sm:$0xf]
    %v8196 = vld [vmem:[%s8187 + $0x20] sm:$0xf]
    %v8197 = vld [vmem:[%s8187 + $0x24] sm:$0xf]
    %v8198 = vld [vmem:[%s8187 + $0x28] sm:$0xf]
    %v8199 = vld [vmem:[%s8187 + $0x2c] sm:$0xf]
    %v8200 = vld [vmem:[%s8187 + $0x30] sm:$0xf]
    %v8201 = vld [vmem:[%s8187 + $0x34] sm:$0xf]
    %v8202 = vld [vmem:[%s8187 + $0x38] sm:$0xf]
    %v8203 = vld [vmem:[%s8187 + $0x3c] sm:$0xf]
    %v8220 = vunpack.c.l.b16 %v8188
    %v8221 = vunpack.c.l.b16 %v8189
    %v8222 = vunpack.c.l.b16 %v8190
    %v8223 = vunpack.c.l.b16 %v8191
    %v8224 = vunpack.c.l.b16 %v8192
    %v8225 = vunpack.c.l.b16 %v8193
    %v8226 = vunpack.c.l.b16 %v8194
    %v8227 = vunpack.c.l.b16 %v8195
    %v8228 = vunpack.c.l.b16 %v8196
    %v8229 = vunpack.c.l.b16 %v8197
    %v8230 = vunpack.c.l.b16 %v8198
    %v8231 = vunpack.c.l.b16 %v8199
    %v8232 = vunpack.c.l.b16 %v8200
    %v8233 = vunpack.c.l.b16 %v8201
    %v8234 = vunpack.c.l.b16 %v8202
    %v8235 = vunpack.c.l.b16 %v8203
    %v8236 = vpack.c.b16 %v8221, %v8220
    %v8237 = vpack.c.b16 %v8223, %v8222
    %v8238 = vpack.c.b16 %v8225, %v8224
    %v8239 = vpack.c.b16 %v8227, %v8226
    %v8240 = vpack.c.b16 %v8229, %v8228
    %v8241 = vpack.c.b16 %v8231, %v8230
    %v8242 = vpack.c.b16 %v8233, %v8232
    %v8243 = vpack.c.b16 %v8235, %v8234
    %8252 = vmatprep.subr.bf16.mxu0 0
    %8253 = vmatpush1.bf16.msra.mxu0 %v8236
    %8254 = vmatprep.subr.bf16.mxu0 0
    %8255 = vmatpush1.bf16.msra.mxu0 %v8237
    %8256 = vmatprep.subr.bf16.mxu0 0
    %8257 = vmatpush1.bf16.msra.mxu0 %v8238
    %8258 = vmatprep.subr.bf16.mxu0 0
    %8259 = vmatpush1.bf16.msra.mxu0 %v8239
    %8260 = vmatprep.subr.bf16.mxu0 0
    %8261 = vmatpush1.bf16.msra.mxu0 %v8240
    %8262 = vmatprep.subr.bf16.mxu0 0
    %8263 = vmatpush1.bf16.msra.mxu0 %v8241
    %8264 = vmatprep.subr.bf16.mxu0 0
    %8265 = vmatpush1.bf16.msra.mxu0 %v8242
    %8266 = vmatprep.subr.bf16.mxu0 0
    %8267 = vmatpush1.bf16.msra.mxu0 %v8243
    %8268 = vmatprep.subr.bf16.mxu0 0
    %8269 = vmatpush1.bf16.msra.mxu0 0
    %8270 = vmatprep.subr.bf16.mxu0 0
    %8271 = vmatpush1.bf16.msra.mxu0 0
    %8272 = vmatprep.subr.bf16.mxu0 0
    %8273 = vmatpush1.bf16.msra.mxu0 0
    %8274 = vmatprep.subr.bf16.mxu0 0
    %8275 = vmatpush1.bf16.msra.mxu0 0
    %8276 = vmatprep.subr.bf16.mxu0 0
    %8277 = vmatpush1.bf16.msra.mxu0 0
    %8278 = vmatprep.subr.bf16.mxu0 0
    %8279 = vmatpush1.bf16.msra.mxu0 0
    %8280 = vmatprep.subr.bf16.mxu0 0
    %8281 = vmatpush1.bf16.msra.mxu0 0
    %8282 = vmatprep.subr.bf16.mxu0 0
    %8283 = vmatpush1.bf16.msra.mxu0 0
    %8284 = vmatprep.mubr.bf16.mxu0 0
    %8285 = vmatmul.mubr.bf16.gmra.mrb[0].mxu0 %v8061
    %v8286 = vpop.f32.mrb[0].mxu0
    %v8287 = vadd.f32 0.0, %v8286
    %v8288 = vpop.f32.mrb[0].mxu0
    %v8289 = vpop.f32.mrb[0].mxu0
    %v8290 = vadd.f32 0.0, %v8289
    %v8291 = vpop.f32.mrb[0].mxu0
    %8292 = vmatprep.mubr.bf16.mxu0 0
    %8293 = vmatmul.mubr.bf16.gmra.mrb[0].mxu0 %v8064
    %v8294 = vpop.f32.mrb[0].mxu0
    %v8295 = vadd.f32 0.0, %v8294
    %v8296 = vpop.f32.mrb[0].mxu0
    %v8297 = vpop.f32.mrb[0].mxu0
    %v8298 = vadd.f32 0.0, %v8297
    %v8299 = vpop.f32.mrb[0].mxu0
    %8300 = vmatprep.mubr.bf16.mxu0 0
    %8301 = vmatmul.mubr.bf16.gmra.mrb[0].mxu0 %v8067
    %v8302 = vpop.f32.mrb[0].mxu0
    %v8303 = vadd.f32 0.0, %v8302
    %v8304 = vpop.f32.mrb[0].mxu0
    %v8305 = vpop.f32.mrb[0].mxu0
    %v8306 = vadd.f32 0.0, %v8305
    %v8307 = vpop.f32.mrb[0].mxu0
    %8308 = vmatprep.mubr.bf16.mxu0 0
    %8309 = vmatmul.mubr.bf16.gmra.mrb[0].mxu0 %v8070
    %v8310 = vpop.f32.mrb[0].mxu0
    %v8311 = vadd.f32 0.0, %v8310
    %v8312 = vpop.f32.mrb[0].mxu0
    %v8313 = vpop.f32.mrb[0].mxu0
    %v8314 = vadd.f32 0.0, %v8313
    %v8315 = vpop.f32.mrb[0].mxu0
    %8316 = vmatprep.mubr.bf16.mxu0 0
    %8317 = vmatmul.mubr.bf16.gmra.mrb[0].mxu0 %v8073
    %v8318 = vpop.f32.mrb[0].mxu0
    %v8319 = vadd.f32 0.0, %v8318
    %v8320 = vpop.f32.mrb[0].mxu0
    %v8321 = vpop.f32.mrb[0].mxu0
    %v8322 = vadd.f32 0.0, %v8321
    %v8323 = vpop.f32.mrb[0].mxu0
    %8324 = vmatprep.mubr.bf16.mxu0 0
    %8325 = vmatmul.mubr.bf16.gmra.mrb[0].mxu0 %v8076
    %v8326 = vpop.f32.mrb[0].mxu0
    %v8327 = vadd.f32 0.0, %v8326
    %v8328 = vpop.f32.mrb[0].mxu0
    %v8329 = vpop.f32.mrb[0].mxu0
    %v8330 = vadd.f32 0.0, %v8329
    %v8331 = vpop.f32.mrb[0].mxu0
    %8332 = vmatprep.mubr.bf16.mxu0 0
    %8333 = vmatmul.mubr.bf16.gmra.mrb[0].mxu0 %v8079
    %v8334 = vpop.f32.mrb[0].mxu0
    %v8335 = vadd.f32 0.0, %v8334
    %v8336 = vpop.f32.mrb[0].mxu0
    %v8337 = vpop.f32.mrb[0].mxu0
    %v8338 = vadd.f32 0.0, %v8337
    %v8339 = vpop.f32.mrb[0].mxu0
    %8340 = vmatprep.mubr.bf16.mxu0 0
    %8341 = vmatmul.mubr.bf16.gmra.mrb[0].mxu0 %v8082
    %v8342 = vpop.f32.mrb[0].mxu0
    %v8343 = vadd.f32 0.0, %v8342
    %v8344 = vpop.f32.mrb[0].mxu0
    %v8345 = vpop.f32.mrb[0].mxu0
    %v8346 = vadd.f32 0.0, %v8345
    %v8347 = vpop.f32.mrb[0].mxu0
    %8348 = vmatprep.mubr.bf16.mxu0 0
    %8349 = vmatmul.mubr.bf16.gmra.mrb[0].mxu0 %v8085
    %v8350 = vpop.f32.mrb[0].mxu0
    %v8351 = vadd.f32 0.0, %v8350
    %v8352 = vpop.f32.mrb[0].mxu0
    %v8353 = vpop.f32.mrb[0].mxu0
    %v8354 = vadd.f32 0.0, %v8353
    %v8355 = vpop.f32.mrb[0].mxu0
    %8356 = vmatprep.mubr.bf16.mxu0 0
    %8357 = vmatmul.mubr.bf16.gmra.mrb[0].mxu0 %v8088
    %v8358 = vpop.f32.mrb[0].mxu0
    %v8359 = vadd.f32 0.0, %v8358
    %v8360 = vpop.f32.mrb[0].mxu0
    %v8361 = vpop.f32.mrb[0].mxu0
    %v8362 = vadd.f32 0.0, %v8361
    %v8363 = vpop.f32.mrb[0].mxu0
    %8364 = vmatprep.mubr.bf16.mxu0 0
    %8365 = vmatmul.mubr.bf16.gmra.mrb[0].mxu0 %v8091
    %v8366 = vpop.f32.mrb[0].mxu0
    %v8367 = vadd.f32 0.0, %v8366
    %v8368 = vpop.f32.mrb[0].mxu0
    %v8369 = vpop.f32.mrb[0].mxu0
    %v8370 = vadd.f32 0.0, %v8369
    %v8371 = vpop.f32.mrb[0].mxu0
    %8372 = vmatprep.mubr.bf16.mxu0 0
    %8373 = vmatmul.mubr.bf16.gmra.mrb[0].mxu0 %v8094
    %v8374 = vpop.f32.mrb[0].mxu0
    %v8375 = vadd.f32 0.0, %v8374
    %v8376 = vpop.f32.mrb[0].mxu0
    %v8377 = vpop.f32.mrb[0].mxu0
    %v8378 = vadd.f32 0.0, %v8377
    %v8379 = vpop.f32.mrb[0].mxu0
    %8380 = vmatprep.mubr.bf16.mxu0 0
    %8381 = vmatmul.mubr.bf16.gmra.mrb[0].mxu0 %v8097
    %v8382 = vpop.f32.mrb[0].mxu0
    %v8383 = vadd.f32 0.0, %v8382
    %v8384 = vpop.f32.mrb[0].mxu0
    %v8385 = vpop.f32.mrb[0].mxu0
    %v8386 = vadd.f32 0.0, %v8385
    %v8387 = vpop.f32.mrb[0].mxu0
    %8388 = vmatprep.mubr.bf16.mxu0 0
    %8389 = vmatmul.mubr.bf16.gmra.mrb[0].mxu0 %v8100
    %v8390 = vpop.f32.mrb[0].mxu0
    %v8391 = vadd.f32 0.0, %v8390
    %v8392 = vpop.f32.mrb[0].mxu0
    %v8393 = vpop.f32.mrb[0].mxu0
    %v8394 = vadd.f32 0.0, %v8393
    %v8395 = vpop.f32.mrb[0].mxu0
    %8396 = vmatprep.mubr.bf16.mxu0 0
    %8397 = vmatmul.mubr.bf16.gmra.mrb[0].mxu0 %v8103
    %v8398 = vpop.f32.mrb[0].mxu0
    %v8399 = vadd.f32 0.0, %v8398
    %v8400 = vpop.f32.mrb[0].mxu0
    %v8401 = vpop.f32.mrb[0].mxu0
    %v8402 = vadd.f32 0.0, %v8401
    %v8403 = vpop.f32.mrb[0].mxu0
    %8404 = vmatprep.mubr.bf16.mxu0 0
    %8405 = vmatmul.mubr.bf16.gmra.mrb[0].mxu0 %v8106
    %v8406 = vpop.f32.mrb[0].mxu0
    %v8407 = vadd.f32 0.0, %v8406
    %v8408 = vpop.f32.mrb[0].mxu0
    %v8409 = vpop.f32.mrb[0].mxu0
    %v8410 = vadd.f32 0.0, %v8409
    %v8411 = vpop.f32.mrb[0].mxu0
    %8412 = vmatprep.mubr.bf16.mxu0 0
    %8413 = vmatmul.mubr.bf16.gmra.mrb[0].mxu0 %v8109
    %v8414 = vpop.f32.mrb[0].mxu0
    %v8415 = vadd.f32 0.0, %v8414
    %v8416 = vpop.f32.mrb[0].mxu0
    %v8417 = vpop.f32.mrb[0].mxu0
    %v8418 = vadd.f32 0.0, %v8417
    %v8419 = vpop.f32.mrb[0].mxu0
    %8420 = vmatprep.mubr.bf16.mxu0 0
    %8421 = vmatmul.mubr.bf16.gmra.mrb[0].mxu0 %v8112
    %v8422 = vpop.f32.mrb[0].mxu0
    %v8423 = vadd.f32 0.0, %v8422
    %v8424 = vpop.f32.mrb[0].mxu0
    %v8425 = vpop.f32.mrb[0].mxu0
    %v8426 = vadd.f32 0.0, %v8425
    %v8427 = vpop.f32.mrb[0].mxu0
    %8428 = vmatprep.mubr.bf16.mxu0 0
    %8429 = vmatmul.mubr.bf16.gmra.mrb[0].mxu0 %v8115
    %v8430 = vpop.f32.mrb[0].mxu0
    %v8431 = vadd.f32 0.0, %v8430
    %v8432 = vpop.f32.mrb[0].mxu0
    %v8433 = vpop.f32.mrb[0].mxu0
    %v8434 = vadd.f32 0.0, %v8433
    %v8435 = vpop.f32.mrb[0].mxu0
    %8436 = vmatprep.mubr.bf16.mxu0 0
    %8437 = vmatmul.mubr.bf16.gmra.mrb[0].mxu0 %v8118
    %v8438 = vpop.f32.mrb[0].mxu0
    %v8439 = vadd.f32 0.0, %v8438
    %v8440 = vpop.f32.mrb[0].mxu0
    %v8441 = vpop.f32.mrb[0].mxu0
    %v8442 = vadd.f32 0.0, %v8441
    %v8443 = vpop.f32.mrb[0].mxu0
    %8444 = vmatprep.mubr.bf16.mxu0 0
    %8445 = vmatmul.mubr.bf16.gmra.mrb[0].mxu0 %v8121
    %v8446 = vpop.f32.mrb[0].mxu0
    %v8447 = vadd.f32 0.0, %v8446
    %v8448 = vpop.f32.mrb[0].mxu0
    %v8449 = vpop.f32.mrb[0].mxu0
    %v8450 = vadd.f32 0.0, %v8449
    %v8451 = vpop.f32.mrb[0].mxu0
    %8452 = vmatprep.mubr.bf16.mxu0 0
    %8453 = vmatmul.mubr.bf16.gmra.mrb[0].mxu0 %v8124
    %v8454 = vpop.f32.mrb[0].mxu0
    %v8455 = vadd.f32 0.0, %v8454
    %v8456 = vpop.f32.mrb[0].mxu0
    %v8457 = vpop.f32.mrb[0].mxu0
    %v8458 = vadd.f32 0.0, %v8457
    %v8459 = vpop.f32.mrb[0].mxu0
    %8460 = vmatprep.mubr.bf16.mxu0 0
    %8461 = vmatmul.mubr.bf16.gmra.mrb[0].mxu0 %v8127
    %v8462 = vpop.f32.mrb[0].mxu0
    %v8463 = vadd.f32 0.0, %v8462
    %v8464 = vpop.f32.mrb[0].mxu0
    %v8465 = vpop.f32.mrb[0].mxu0
    %v8466 = vadd.f32 0.0, %v8465
    %v8467 = vpop.f32.mrb[0].mxu0
    %8468 = vmatprep.mubr.bf16.mxu0 0
    %8469 = vmatmul.mubr.bf16.gmra.mrb[0].mxu0 %v8130
    %v8470 = vpop.f32.mrb[0].mxu0
    %v8471 = vadd.f32 0.0, %v8470
    %v8472 = vpop.f32.mrb[0].mxu0
    %v8473 = vpop.f32.mrb[0].mxu0
    %v8474 = vadd.f32 0.0, %v8473
    %v8475 = vpop.f32.mrb[0].mxu0
    %8476 = vmatprep.mubr.bf16.mxu0 0
    %8477 = vmatmul.mubr.bf16.gmra.mrb[0].mxu0 %v8133
    %v8478 = vpop.f32.mrb[0].mxu0
    %v8479 = vadd.f32 0.0, %v8478
    %v8480 = vpop.f32.mrb[0].mxu0
    %v8481 = vpop.f32.mrb[0].mxu0
    %v8482 = vadd.f32 0.0, %v8481
    %v8483 = vpop.f32.mrb[0].mxu0
    %8484 = vmatprep.mubr.bf16.mxu0 0
    %8485 = vmatmul.mubr.bf16.gmra.mrb[0].mxu0 %v8136
    %v8486 = vpop.f32.mrb[0].mxu0
    %v8487 = vadd.f32 0.0, %v8486
    %v8488 = vpop.f32.mrb[0].mxu0
    %v8489 = vpop.f32.mrb[0].mxu0
    %v8490 = vadd.f32 0.0, %v8489
    %v8491 = vpop.f32.mrb[0].mxu0
    %8492 = vmatprep.mubr.bf16.mxu0 0
    %8493 = vmatmul.mubr.bf16.gmra.mrb[0].mxu0 %v8139
    %v8494 = vpop.f32.mrb[0].mxu0
    %v8495 = vadd.f32 0.0, %v8494
    %v8496 = vpop.f32.mrb[0].mxu0
    %v8497 = vpop.f32.mrb[0].mxu0
    %v8498 = vadd.f32 0.0, %v8497
    %v8499 = vpop.f32.mrb[0].mxu0
    %8500 = vmatprep.mubr.bf16.mxu0 0
    %8501 = vmatmul.mubr.bf16.gmra.mrb[0].mxu0 %v8142
    %v8502 = vpop.f32.mrb[0].mxu0
    %v8503 = vadd.f32 0.0, %v8502
    %v8504 = vpop.f32.mrb[0].mxu0
    %v8505 = vpop.f32.mrb[0].mxu0
    %v8506 = vadd.f32 0.0, %v8505
    %v8507 = vpop.f32.mrb[0].mxu0
    %8508 = vmatprep.mubr.bf16.mxu0 0
    %8509 = vmatmul.mubr.bf16.gmra.mrb[0].mxu0 %v8145
    %v8510 = vpop.f32.mrb[0].mxu0
    %v8511 = vadd.f32 0.0, %v8510
    %v8512 = vpop.f32.mrb[0].mxu0
    %v8513 = vpop.f32.mrb[0].mxu0
    %v8514 = vadd.f32 0.0, %v8513
    %v8515 = vpop.f32.mrb[0].mxu0
    %8516 = vmatprep.mubr.bf16.mxu0 0
    %8517 = vmatmul.mubr.bf16.gmra.mrb[0].mxu0 %v8148
    %v8518 = vpop.f32.mrb[0].mxu0
    %v8519 = vadd.f32 0.0, %v8518
    %v8520 = vpop.f32.mrb[0].mxu0
    %v8521 = vpop.f32.mrb[0].mxu0
    %v8522 = vadd.f32 0.0, %v8521
    %v8523 = vpop.f32.mrb[0].mxu0
    %8524 = vmatprep.mubr.bf16.mxu0 0
    %8525 = vmatmul.mubr.bf16.gmra.mrb[0].mxu0 %v8151
    %v8526 = vpop.f32.mrb[0].mxu0
    %v8527 = vadd.f32 0.0, %v8526
    %v8528 = vpop.f32.mrb[0].mxu0
    %v8529 = vpop.f32.mrb[0].mxu0
    %v8530 = vadd.f32 0.0, %v8529
    %v8531 = vpop.f32.mrb[0].mxu0
    %8532 = vmatprep.mubr.bf16.mxu0 0
    %8533 = vmatmul.mubr.bf16.gmra.mrb[0].mxu0 %v8154
    %v8534 = vpop.f32.mrb[0].mxu0
    %v8535 = vadd.f32 0.0, %v8534
    %v8536 = vpop.f32.mrb[0].mxu0
    %v8537 = vpop.f32.mrb[0].mxu0
    %v8538 = vadd.f32 0.0, %v8537
    %v8539 = vpop.f32.mrb[0].mxu0
    %8540 = vdwg.mxu0
    %v8541 = vld [vmem:[#allocation2] sm:$0xff]
    %v8542 = vld [vmem:[#allocation2 + $0x8] sm:$0xff]
    %v8543 = vld [vmem:[#allocation2 + $0x10] sm:$0xff]
    %v8544 = vld [vmem:[#allocation2 + $0x18] sm:$0xff]
    %v8545 = vld [vmem:[#allocation2 + $0x20] sm:$0xff]
    %v8546 = vld [vmem:[#allocation2 + $0x28] sm:$0xff]
    %v8547 = vld [vmem:[#allocation2 + $0x30] sm:$0xff]
    %v8548 = vld [vmem:[#allocation2 + $0x38] sm:$0xff]
    %v8549 = vld [vmem:[#allocation2 + $0x40] sm:$0xff]
    %v8550 = vld [vmem:[#allocation2 + $0x48] sm:$0xff]
    %v8551 = vld [vmem:[#allocation2 + $0x50] sm:$0xff]
    %v8552 = vld [vmem:[#allocation2 + $0x58] sm:$0xff]
    %v8553 = vld [vmem:[#allocation2 + $0x60] sm:$0xff]
    %v8554 = vld [vmem:[#allocation2 + $0x68] sm:$0xff]
    %v8555 = vld [vmem:[#allocation2 + $0x70] sm:$0xff]
    %v8556 = vld [vmem:[#allocation2 + $0x78] sm:$0xff]
    %v8557 = vld [vmem:[#allocation2 + $0x80] sm:$0xff]
    %v8558 = vld [vmem:[#allocation2 + $0x88] sm:$0xff]
    %v8559 = vld [vmem:[#allocation2 + $0x90] sm:$0xff]
    %v8560 = vld [vmem:[#allocation2 + $0x98] sm:$0xff]
    %v8561 = vld [vmem:[#allocation2 + $0xa0] sm:$0xff]
    %v8562 = vld [vmem:[#allocation2 + $0xa8] sm:$0xff]
    %v8563 = vld [vmem:[#allocation2 + $0xb0] sm:$0xff]
    %v8564 = vld [vmem:[#allocation2 + $0xb8] sm:$0xff]
    %v8565 = vld [vmem:[#allocation2 + $0xc0] sm:$0xff]
    %v8566 = vld [vmem:[#allocation2 + $0xc8] sm:$0xff]
    %v8567 = vld [vmem:[#allocation2 + $0xd0] sm:$0xff]
    %v8568 = vld [vmem:[#allocation2 + $0xd8] sm:$0xff]
    %v8569 = vld [vmem:[#allocation2 + $0xe0] sm:$0xff]
    %v8570 = vld [vmem:[#allocation2 + $0xe8] sm:$0xff]
    %v8571 = vld [vmem:[#allocation2 + $0xf0] sm:$0xff]
    %v8572 = vld [vmem:[#allocation2 + $0xf8] sm:$0xff]
    %v8573 = vld [vmem:[#allocation2 + $0x100] sm:$0xff]
    %v8574 = vld [vmem:[#allocation2 + $0x108] sm:$0xff]
    %v8575 = vld [vmem:[#allocation2 + $0x110] sm:$0xff]
    %v8576 = vld [vmem:[#allocation2 + $0x118] sm:$0xff]
    %v8577 = vld [vmem:[#allocation2 + $0x120] sm:$0xff]
    %v8578 = vld [vmem:[#allocation2 + $0x128] sm:$0xff]
    %v8579 = vld [vmem:[#allocation2 + $0x130] sm:$0xff]
    %v8580 = vld [vmem:[#allocation2 + $0x138] sm:$0xff]
    %v8581 = vld [vmem:[#allocation2 + $0x140] sm:$0xff]
    %v8582 = vld [vmem:[#allocation2 + $0x148] sm:$0xff]
    %v8583 = vld [vmem:[#allocation2 + $0x150] sm:$0xff]
    %v8584 = vld [vmem:[#allocation2 + $0x158] sm:$0xff]
    %v8585 = vld [vmem:[#allocation2 + $0x160] sm:$0xff]
    %v8586 = vld [vmem:[#allocation2 + $0x168] sm:$0xff]
    %v8587 = vld [vmem:[#allocation2 + $0x170] sm:$0xff]
    %v8588 = vld [vmem:[#allocation2 + $0x178] sm:$0xff]
    %v8589 = vld [vmem:[#allocation2 + $0x180] sm:$0xff]
    %v8590 = vld [vmem:[#allocation2 + $0x188] sm:$0xff]
    %v8591 = vld [vmem:[#allocation2 + $0x190] sm:$0xff]
    %v8592 = vld [vmem:[#allocation2 + $0x198] sm:$0xff]
    %v8593 = vld [vmem:[#allocation2 + $0x1a0] sm:$0xff]
    %v8594 = vld [vmem:[#allocation2 + $0x1a8] sm:$0xff]
    %v8595 = vld [vmem:[#allocation2 + $0x1b0] sm:$0xff]
    %v8596 = vld [vmem:[#allocation2 + $0x1b8] sm:$0xff]
    %v8597 = vld [vmem:[#allocation2 + $0x1c0] sm:$0xff]
    %v8598 = vld [vmem:[#allocation2 + $0x1c8] sm:$0xff]
    %v8599 = vld [vmem:[#allocation2 + $0x1d0] sm:$0xff]
    %v8600 = vld [vmem:[#allocation2 + $0x1d8] sm:$0xff]
    %v8601 = vld [vmem:[#allocation2 + $0x1e0] sm:$0xff]
    %v8602 = vld [vmem:[#allocation2 + $0x1e8] sm:$0xff]
    %v8603 = vld [vmem:[#allocation2 + $0x1f0] sm:$0xff]
    %v8604 = vld [vmem:[#allocation2 + $0x1f8] sm:$0xff]
    %v8605 = vadd.f32 %v8541, %v8287
    %v8606 = vadd.f32 %v8542, %v8290
    %v8607 = vadd.f32 %v8543, %v8295
    %v8608 = vadd.f32 %v8544, %v8298
    %v8609 = vadd.f32 %v8545, %v8303
    %v8610 = vadd.f32 %v8546, %v8306
    %v8611 = vadd.f32 %v8547, %v8311
    %v8612 = vadd.f32 %v8548, %v8314
    %v8613 = vadd.f32 %v8549, %v8319
    %v8614 = vadd.f32 %v8550, %v8322
    %v8615 = vadd.f32 %v8551, %v8327
    %v8616 = vadd.f32 %v8552, %v8330
    %v8617 = vadd.f32 %v8553, %v8335
    %v8618 = vadd.f32 %v8554, %v8338
    %v8619 = vadd.f32 %v8555, %v8343
    %v8620 = vadd.f32 %v8556, %v8346
    %v8621 = vadd.f32 %v8557, %v8351
    %v8622 = vadd.f32 %v8558, %v8354
    %v8623 = vadd.f32 %v8559, %v8359
    %v8624 = vadd.f32 %v8560, %v8362
    %v8625 = vadd.f32 %v8561, %v8367
    %v8626 = vadd.f32 %v8562, %v8370
    %v8627 = vadd.f32 %v8563, %v8375
    %v8628 = vadd.f32 %v8564, %v8378
    %v8629 = vadd.f32 %v8565, %v8383
    %v8630 = vadd.f32 %v8566, %v8386
    %v8631 = vadd.f32 %v8567, %v8391
    %v8632 = vadd.f32 %v8568, %v8394
    %v8633 = vadd.f32 %v8569, %v8399
    %v8634 = vadd.f32 %v8570, %v8402
    %v8635 = vadd.f32 %v8571, %v8407
    %v8636 = vadd.f32 %v8572, %v8410
    %v8637 = vadd.f32 %v8573, %v8415
    %v8638 = vadd.f32 %v8574, %v8418
    %v8639 = vadd.f32 %v8575, %v8423
    %v8640 = vadd.f32 %v8576, %v8426
    %v8641 = vadd.f32 %v8577, %v8431
    %v8642 = vadd.f32 %v8578, %v8434
    %v8643 = vadd.f32 %v8579, %v8439
    %v8644 = vadd.f32 %v8580, %v8442
    %v8645 = vadd.f32 %v8581, %v8447
    %v8646 = vadd.f32 %v8582, %v8450
    %v8647 = vadd.f32 %v8583, %v8455
    %v8648 = vadd.f32 %v8584, %v8458
    %v8649 = vadd.f32 %v8585, %v8463
    %v8650 = vadd.f32 %v8586, %v8466
    %v8651 = vadd.f32 %v8587, %v8471
    %v8652 = vadd.f32 %v8588, %v8474
    %v8653 = vadd.f32 %v8589, %v8479
    %v8654 = vadd.f32 %v8590, %v8482
    %v8655 = vadd.f32 %v8591, %v8487
    %v8656 = vadd.f32 %v8592, %v8490
    %v8657 = vadd.f32 %v8593, %v8495
    %v8658 = vadd.f32 %v8594, %v8498
    %v8659 = vadd.f32 %v8595, %v8503
    %v8660 = vadd.f32 %v8596, %v8506
    %v8661 = vadd.f32 %v8597, %v8511
    %v8662 = vadd.f32 %v8598, %v8514
    %v8663 = vadd.f32 %v8599, %v8519
    %v8664 = vadd.f32 %v8600, %v8522
    %v8665 = vadd.f32 %v8601, %v8527
    %v8666 = vadd.f32 %v8602, %v8530
    %v8667 = vadd.f32 %v8603, %v8535
    %v8668 = vadd.f32 %v8604, %v8538
    %8669 = vst [vmem:[#allocation2] sm:$0xff] %v8605
    %8670 = vst [vmem:[#allocation2 + $0x8] sm:$0xff] %v8606
    %8671 = vst [vmem:[#allocation2 + $0x10] sm:$0xff] %v8607
    %8672 = vst [vmem:[#allocation2 + $0x18] sm:$0xff] %v8608
    %8673 = vst [vmem:[#allocation2 + $0x20] sm:$0xff] %v8609
    %8674 = vst [vmem:[#allocation2 + $0x28] sm:$0xff] %v8610
    %8675 = vst [vmem:[#allocation2 + $0x30] sm:$0xff] %v8611
    %8676 = vst [vmem:[#allocation2 + $0x38] sm:$0xff] %v8612
    %8677 = vst [vmem:[#allocation2 + $0x40] sm:$0xff] %v8613
    %8678 = vst [vmem:[#allocation2 + $0x48] sm:$0xff] %v8614
    %8679 = vst [vmem:[#allocation2 + $0x50] sm:$0xff] %v8615
    %8680 = vst [vmem:[#allocation2 + $0x58] sm:$0xff] %v8616
    %8681 = vst [vmem:[#allocation2 + $0x60] sm:$0xff] %v8617
    %8682 = vst [vmem:[#allocation2 + $0x68] sm:$0xff] %v8618
    %8683 = vst [vmem:[#allocation2 + $0x70] sm:$0xff] %v8619
    %8684 = vst [vmem:[#allocation2 + $0x78] sm:$0xff] %v8620
    %8685 = vst [vmem:[#allocation2 + $0x80] sm:$0xff] %v8621
    %8686 = vst [vmem:[#allocation2 + $0x88] sm:$0xff] %v8622
    %8687 = vst [vmem:[#allocation2 + $0x90] sm:$0xff] %v8623
    %8688 = vst [vmem:[#allocation2 + $0x98] sm:$0xff] %v8624
    %8689 = vst [vmem:[#allocation2 + $0xa0] sm:$0xff] %v8625
    %8690 = vst [vmem:[#allocation2 + $0xa8] sm:$0xff] %v8626
    %8691 = vst [vmem:[#allocation2 + $0xb0] sm:$0xff] %v8627
    %8692 = vst [vmem:[#allocation2 + $0xb8] sm:$0xff] %v8628
    %8693 = vst [vmem:[#allocation2 + $0xc0] sm:$0xff] %v8629
    %8694 = vst [vmem:[#allocation2 + $0xc8] sm:$0xff] %v8630
    %8695 = vst [vmem:[#allocation2 + $0xd0] sm:$0xff] %v8631
    %8696 = vst [vmem:[#allocation2 + $0xd8] sm:$0xff] %v8632
    %8697 = vst [vmem:[#allocation2 + $0xe0] sm:$0xff] %v8633
    %8698 = vst [vmem:[#allocation2 + $0xe8] sm:$0xff] %v8634
    %8699 = vst [vmem:[#allocation2 + $0xf0] sm:$0xff] %v8635
    %8700 = vst [vmem:[#allocation2 + $0xf8] sm:$0xff] %v8636
    %8701 = vst [vmem:[#allocation2 + $0x100] sm:$0xff] %v8637
    %8702 = vst [vmem:[#allocation2 + $0x108] sm:$0xff] %v8638
    %8703 = vst [vmem:[#allocation2 + $0x110] sm:$0xff] %v8639
    %8704 = vst [vmem:[#allocation2 + $0x118] sm:$0xff] %v8640
    %8705 = vst [vmem:[#allocation2 + $0x120] sm:$0xff] %v8641
    %8706 = vst [vmem:[#allocation2 + $0x128] sm:$0xff] %v8642
    %8707 = vst [vmem:[#allocation2 + $0x130] sm:$0xff] %v8643
    %8708 = vst [vmem:[#allocation2 + $0x138] sm:$0xff] %v8644
    %8709 = vst [vmem:[#allocation2 + $0x140] sm:$0xff] %v8645
    %8710 = vst [vmem:[#allocation2 + $0x148] sm:$0xff] %v8646
    %8711 = vst [vmem:[#allocation2 + $0x150] sm:$0xff] %v8647
    %8712 = vst [vmem:[#allocation2 + $0x158] sm:$0xff] %v8648
    %8713 = vst [vmem:[#allocation2 + $0x160] sm:$0xff] %v8649
    %8714 = vst [vmem:[#allocation2 + $0x168] sm:$0xff] %v8650
    %8715 = vst [vmem:[#allocation2 + $0x170] sm:$0xff] %v8651
    %8716 = vst [vmem:[#allocation2 + $0x178] sm:$0xff] %v8652
    %8717 = vst [vmem:[#allocation2 + $0x180] sm:$0xff] %v8653
    %8718 = vst [vmem:[#allocation2 + $0x188] sm:$0xff] %v8654
    %8719 = vst [vmem:[#allocation2 + $0x190] sm:$0xff] %v8655
    %8720 = vst [vmem:[#allocation2 + $0x198] sm:$0xff] %v8656
    %8721 = vst [vmem:[#allocation2 + $0x1a0] sm:$0xff] %v8657
    %8722 = vst [vmem:[#allocation2 + $0x1a8] sm:$0xff] %v8658
    %8723 = vst [vmem:[#allocation2 + $0x1b0] sm:$0xff] %v8659
    %8724 = vst [vmem:[#allocation2 + $0x1b8] sm:$0xff] %v8660
    %8725 = vst [vmem:[#allocation2 + $0x1c0] sm:$0xff] %v8661
    %8726 = vst [vmem:[#allocation2 + $0x1c8] sm:$0xff] %v8662
    %8727 = vst [vmem:[#allocation2 + $0x1d0] sm:$0xff] %v8663
    %8728 = vst [vmem:[#allocation2 + $0x1d8] sm:$0xff] %v8664
    %8729 = vst [vmem:[#allocation2 + $0x1e0] sm:$0xff] %v8665
    %8730 = vst [vmem:[#allocation2 + $0x1e8] sm:$0xff] %v8666
    %8731 = vst [vmem:[#allocation2 + $0x1f0] sm:$0xff] %v8667
    %8732 = vst [vmem:[#allocation2 + $0x1f8] sm:$0xff] %v8668
    %s8733 = scalar_lea.vmem [#allocation5], 32
    %v8734 = vld [vmem:[%s8733] sm:$0xf0]
    %v8735 = vld [vmem:[%s8733 + $0x8] sm:$0xf]
    %v8736 = vld [vmem:[%s8733 + $0x10] sm:$0xf0]
    %v8737 = vld [vmem:[%s8733 + $0x18] sm:$0xf]
    %v8738 = vld [vmem:[%s8733 + $0x20] sm:$0xf0]
    %v8739 = vld [vmem:[%s8733 + $0x28] sm:$0xf]
    %v8740 = vld [vmem:[%s8733 + $0x30] sm:$0xf0]
    %v8741 = vld [vmem:[%s8733 + $0x38] sm:$0xf]
    %v8742 = vld [vmem:[%s8733 + $0x40] sm:$0xf0]
    %v8743 = vld [vmem:[%s8733 + $0x48] sm:$0xf]
    %v8744 = vld [vmem:[%s8733 + $0x50] sm:$0xf0]
    %v8745 = vld [vmem:[%s8733 + $0x58] sm:$0xf]
    %v8746 = vld [vmem:[%s8733 + $0x60] sm:$0xf0]
    %v8747 = vld [vmem:[%s8733 + $0x68] sm:$0xf]
    %v8748 = vld [vmem:[%s8733 + $0x70] sm:$0xf0]
    %v8749 = vld [vmem:[%s8733 + $0x78] sm:$0xf]
    %v8750 = vld [vmem:[%s8733 + $0x80] sm:$0xf0]
    %v8751 = vld [vmem:[%s8733 + $0x88] sm:$0xf]
    %v8752 = vld [vmem:[%s8733 + $0x90] sm:$0xf0]
    %v8753 = vld [vmem:[%s8733 + $0x98] sm:$0xf]
    %v8754 = vld [vmem:[%s8733 + $0xa0] sm:$0xf0]
    %v8755 = vld [vmem:[%s8733 + $0xa8] sm:$0xf]
    %v8756 = vld [vmem:[%s8733 + $0xb0] sm:$0xf0]
    %v8757 = vld [vmem:[%s8733 + $0xb8] sm:$0xf]
    %v8758 = vld [vmem:[%s8733 + $0xc0] sm:$0xf0]
    %v8759 = vld [vmem:[%s8733 + $0xc8] sm:$0xf]
    %v8760 = vld [vmem:[%s8733 + $0xd0] sm:$0xf0]
    %v8761 = vld [vmem:[%s8733 + $0xd8] sm:$0xf]
    %v8762 = vld [vmem:[%s8733 + $0xe0] sm:$0xf0]
    %v8763 = vld [vmem:[%s8733 + $0xe8] sm:$0xf]
    %v8764 = vld [vmem:[%s8733 + $0xf0] sm:$0xf0]
    %v8765 = vld [vmem:[%s8733 + $0xf8] sm:$0xf]
    %v8766 = vld [vmem:[%s8733 + $0x120] sm:$0xf0]
    %v8767 = vld [vmem:[%s8733 + $0x128] sm:$0xf]
    %v8768 = vld [vmem:[%s8733 + $0x130] sm:$0xf0]
    %v8769 = vld [vmem:[%s8733 + $0x138] sm:$0xf]
    %v8770 = vld [vmem:[%s8733 + $0x140] sm:$0xf0]
    %v8771 = vld [vmem:[%s8733 + $0x148] sm:$0xf]
    %v8772 = vld [vmem:[%s8733 + $0x150] sm:$0xf0]
    %v8773 = vld [vmem:[%s8733 + $0x158] sm:$0xf]
    %v8774 = vld [vmem:[%s8733 + $0x160] sm:$0xf0]
    %v8775 = vld [vmem:[%s8733 + $0x168] sm:$0xf]
    %v8776 = vld [vmem:[%s8733 + $0x170] sm:$0xf0]
    %v8777 = vld [vmem:[%s8733 + $0x178] sm:$0xf]
    %v8778 = vld [vmem:[%s8733 + $0x180] sm:$0xf0]
    %v8779 = vld [vmem:[%s8733 + $0x188] sm:$0xf]
    %v8780 = vld [vmem:[%s8733 + $0x190] sm:$0xf0]
    %v8781 = vld [vmem:[%s8733 + $0x198] sm:$0xf]
    %v8782 = vld [vmem:[%s8733 + $0x1a0] sm:$0xf0]
    %v8783 = vld [vmem:[%s8733 + $0x1a8] sm:$0xf]
    %v8784 = vld [vmem:[%s8733 + $0x1b0] sm:$0xf0]
    %v8785 = vld [vmem:[%s8733 + $0x1b8] sm:$0xf]
    %v8786 = vld [vmem:[%s8733 + $0x1c0] sm:$0xf0]
    %v8787 = vld [vmem:[%s8733 + $0x1c8] sm:$0xf]
    %v8788 = vld [vmem:[%s8733 + $0x1d0] sm:$0xf0]
    %v8789 = vld [vmem:[%s8733 + $0x1d8] sm:$0xf]
    %v8790 = vld [vmem:[%s8733 + $0x1e0] sm:$0xf0]
    %v8791 = vld [vmem:[%s8733 + $0x1e8] sm:$0xf]
    %v8792 = vld [vmem:[%s8733 + $0x1f0] sm:$0xf0]
    %v8793 = vld [vmem:[%s8733 + $0x1f8] sm:$0xf]
    %v8794 = vld [vmem:[%s8733 + $0x200] sm:$0xf0]
    %v8795 = vld [vmem:[%s8733 + $0x208] sm:$0xf]
    %v8796 = vld [vmem:[%s8733 + $0x210] sm:$0xf0]
    %v8797 = vld [vmem:[%s8733 + $0x218] sm:$0xf]
    %v8862 = vrot.slane %v8734, 4
    %v8863 = vrot.slane %v8735, 4
    %v8864 = vsel %vm2252, %v8862, %v8863
    %v8865 = vrot.slane %v8736, 4
    %v8866 = vrot.slane %v8737, 4
    %v8867 = vsel %vm2252, %v8865, %v8866
    %v8868 = vrot.slane %v8738, 4
    %v8869 = vrot.slane %v8739, 4
    %v8870 = vsel %vm2252, %v8868, %v8869
    %v8871 = vrot.slane %v8740, 4
    %v8872 = vrot.slane %v8741, 4
    %v8873 = vsel %vm2252, %v8871, %v8872
    %v8874 = vrot.slane %v8742, 4
    %v8875 = vrot.slane %v8743, 4
    %v8876 = vsel %vm2252, %v8874, %v8875
    %v8877 = vrot.slane %v8744, 4
    %v8878 = vrot.slane %v8745, 4
    %v8879 = vsel %vm2252, %v8877, %v8878
    %v8880 = vrot.slane %v8746, 4
    %v8881 = vrot.slane %v8747, 4
    %v8882 = vsel %vm2252, %v8880, %v8881
    %v8883 = vrot.slane %v8748, 4
    %v8884 = vrot.slane %v8749, 4
    %v8885 = vsel %vm2252, %v8883, %v8884
    %v8886 = vrot.slane %v8750, 4
    %v8887 = vrot.slane %v8751, 4
    %v8888 = vsel %vm2252, %v8886, %v8887
    %v8889 = vrot.slane %v8752, 4
    %v8890 = vrot.slane %v8753, 4
    %v8891 = vsel %vm2252, %v8889, %v8890
    %v8892 = vrot.slane %v8754, 4
    %v8893 = vrot.slane %v8755, 4
    %v8894 = vsel %vm2252, %v8892, %v8893
    %v8895 = vrot.slane %v8756, 4
    %v8896 = vrot.slane %v8757, 4
    %v8897 = vsel %vm2252, %v8895, %v8896
    %v8898 = vrot.slane %v8758, 4
    %v8899 = vrot.slane %v8759, 4
    %v8900 = vsel %vm2252, %v8898, %v8899
    %v8901 = vrot.slane %v8760, 4
    %v8902 = vrot.slane %v8761, 4
    %v8903 = vsel %vm2252, %v8901, %v8902
    %v8904 = vrot.slane %v8762, 4
    %v8905 = vrot.slane %v8763, 4
    %v8906 = vsel %vm2252, %v8904, %v8905
    %v8907 = vrot.slane %v8764, 4
    %v8908 = vrot.slane %v8765, 4
    %v8909 = vsel %vm2252, %v8907, %v8908
    %v8910 = vrot.slane %v8766, 4
    %v8911 = vrot.slane %v8767, 4
    %v8912 = vsel %vm2252, %v8910, %v8911
    %v8913 = vrot.slane %v8768, 4
    %v8914 = vrot.slane %v8769, 4
    %v8915 = vsel %vm2252, %v8913, %v8914
    %v8916 = vrot.slane %v8770, 4
    %v8917 = vrot.slane %v8771, 4
    %v8918 = vsel %vm2252, %v8916, %v8917
    %v8919 = vrot.slane %v8772, 4
    %v8920 = vrot.slane %v8773, 4
    %v8921 = vsel %vm2252, %v8919, %v8920
    %v8922 = vrot.slane %v8774, 4
    %v8923 = vrot.slane %v8775, 4
    %v8924 = vsel %vm2252, %v8922, %v8923
    %v8925 = vrot.slane %v8776, 4
    %v8926 = vrot.slane %v8777, 4
    %v8927 = vsel %vm2252, %v8925, %v8926
    %v8928 = vrot.slane %v8778, 4
    %v8929 = vrot.slane %v8779, 4
    %v8930 = vsel %vm2252, %v8928, %v8929
    %v8931 = vrot.slane %v8780, 4
    %v8932 = vrot.slane %v8781, 4
    %v8933 = vsel %vm2252, %v8931, %v8932
    %v8934 = vrot.slane %v8782, 4
    %v8935 = vrot.slane %v8783, 4
    %v8936 = vsel %vm2252, %v8934, %v8935
    %v8937 = vrot.slane %v8784, 4
    %v8938 = vrot.slane %v8785, 4
    %v8939 = vsel %vm2252, %v8937, %v8938
    %v8940 = vrot.slane %v8786, 4
    %v8941 = vrot.slane %v8787, 4
    %v8942 = vsel %vm2252, %v8940, %v8941
    %v8943 = vrot.slane %v8788, 4
    %v8944 = vrot.slane %v8789, 4
    %v8945 = vsel %vm2252, %v8943, %v8944
    %v8946 = vrot.slane %v8790, 4
    %v8947 = vrot.slane %v8791, 4
    %v8948 = vsel %vm2252, %v8946, %v8947
    %v8949 = vrot.slane %v8792, 4
    %v8950 = vrot.slane %v8793, 4
    %v8951 = vsel %vm2252, %v8949, %v8950
    %v8952 = vrot.slane %v8794, 4
    %v8953 = vrot.slane %v8795, 4
    %v8954 = vsel %vm2252, %v8952, %v8953
    %v8955 = vrot.slane %v8796, 4
    %v8956 = vrot.slane %v8797, 4
    %v8957 = vsel %vm2252, %v8955, %v8956
    %s8990 = scalar_lea.vmem [#allocation6], 512
    %v8991 = vld [vmem:[%s8990] sm:$0xf]
    %v8992 = vld [vmem:[%s8990 + $0x4] sm:$0xf]
    %v8993 = vld [vmem:[%s8990 + $0x8] sm:$0xf]
    %v8994 = vld [vmem:[%s8990 + $0xc] sm:$0xf]
    %v8995 = vld [vmem:[%s8990 + $0x10] sm:$0xf]
    %v8996 = vld [vmem:[%s8990 + $0x14] sm:$0xf]
    %v8997 = vld [vmem:[%s8990 + $0x18] sm:$0xf]
    %v8998 = vld [vmem:[%s8990 + $0x1c] sm:$0xf]
    %v8999 = vld [vmem:[%s8990 + $0x20] sm:$0xf]
    %v9000 = vld [vmem:[%s8990 + $0x24] sm:$0xf]
    %v9001 = vld [vmem:[%s8990 + $0x28] sm:$0xf]
    %v9002 = vld [vmem:[%s8990 + $0x2c] sm:$0xf]
    %v9003 = vld [vmem:[%s8990 + $0x30] sm:$0xf]
    %v9004 = vld [vmem:[%s8990 + $0x34] sm:$0xf]
    %v9005 = vld [vmem:[%s8990 + $0x38] sm:$0xf]
    %v9006 = vld [vmem:[%s8990 + $0x3c] sm:$0xf]
    %v9023 = vunpack.c.l.b16 %v8991
    %v9024 = vunpack.c.l.b16 %v8992
    %v9025 = vunpack.c.l.b16 %v8993
    %v9026 = vunpack.c.l.b16 %v8994
    %v9027 = vunpack.c.l.b16 %v8995
    %v9028 = vunpack.c.l.b16 %v8996
    %v9029 = vunpack.c.l.b16 %v8997
    %v9030 = vunpack.c.l.b16 %v8998
    %v9031 = vunpack.c.l.b16 %v8999
    %v9032 = vunpack.c.l.b16 %v9000
    %v9033 = vunpack.c.l.b16 %v9001
    %v9034 = vunpack.c.l.b16 %v9002
    %v9035 = vunpack.c.l.b16 %v9003
    %v9036 = vunpack.c.l.b16 %v9004
    %v9037 = vunpack.c.l.b16 %v9005
    %v9038 = vunpack.c.l.b16 %v9006
    %v9039 = vpack.c.b16 %v9024, %v9023
    %v9040 = vpack.c.b16 %v9026, %v9025
    %v9041 = vpack.c.b16 %v9028, %v9027
    %v9042 = vpack.c.b16 %v9030, %v9029
    %v9043 = vpack.c.b16 %v9032, %v9031
    %v9044 = vpack.c.b16 %v9034, %v9033
    %v9045 = vpack.c.b16 %v9036, %v9035
    %v9046 = vpack.c.b16 %v9038, %v9037
    %9055 = vmatprep.subr.bf16.mxu0 0
    %9056 = vmatpush1.bf16.msra.mxu0 %v9039
    %9057 = vmatprep.subr.bf16.mxu0 0
    %9058 = vmatpush1.bf16.msra.mxu0 %v9040
    %9059 = vmatprep.subr.bf16.mxu0 0
    %9060 = vmatpush1.bf16.msra.mxu0 %v9041
    %9061 = vmatprep.subr.bf16.mxu0 0
    %9062 = vmatpush1.bf16.msra.mxu0 %v9042
    %9063 = vmatprep.subr.bf16.mxu0 0
    %9064 = vmatpush1.bf16.msra.mxu0 %v9043
    %9065 = vmatprep.subr.bf16.mxu0 0
    %9066 = vmatpush1.bf16.msra.mxu0 %v9044
    %9067 = vmatprep.subr.bf16.mxu0 0
    %9068 = vmatpush1.bf16.msra.mxu0 %v9045
    %9069 = vmatprep.subr.bf16.mxu0 0
    %9070 = vmatpush1.bf16.msra.mxu0 %v9046
    %9071 = vmatprep.subr.bf16.mxu0 0
    %9072 = vmatpush1.bf16.msra.mxu0 0
    %9073 = vmatprep.subr.bf16.mxu0 0
    %9074 = vmatpush1.bf16.msra.mxu0 0
    %9075 = vmatprep.subr.bf16.mxu0 0
    %9076 = vmatpush1.bf16.msra.mxu0 0
    %9077 = vmatprep.subr.bf16.mxu0 0
    %9078 = vmatpush1.bf16.msra.mxu0 0
    %9079 = vmatprep.subr.bf16.mxu0 0
    %9080 = vmatpush1.bf16.msra.mxu0 0
    %9081 = vmatprep.subr.bf16.mxu0 0
    %9082 = vmatpush1.bf16.msra.mxu0 0
    %9083 = vmatprep.subr.bf16.mxu0 0
    %9084 = vmatpush1.bf16.msra.mxu0 0
    %9085 = vmatprep.subr.bf16.mxu0 0
    %9086 = vmatpush1.bf16.msra.mxu0 0
    %9087 = vmatprep.mubr.bf16.mxu0 0
    %9088 = vmatmul.mubr.bf16.gmra.mrb[0].mxu0 %v8864
    %v9089 = vpop.f32.mrb[0].mxu0
    %v9090 = vadd.f32 0.0, %v9089
    %v9091 = vpop.f32.mrb[0].mxu0
    %v9092 = vpop.f32.mrb[0].mxu0
    %v9093 = vadd.f32 0.0, %v9092
    %v9094 = vpop.f32.mrb[0].mxu0
    %9095 = vmatprep.mubr.bf16.mxu0 0
    %9096 = vmatmul.mubr.bf16.gmra.mrb[0].mxu0 %v8867
    %v9097 = vpop.f32.mrb[0].mxu0
    %v9098 = vadd.f32 0.0, %v9097
    %v9099 = vpop.f32.mrb[0].mxu0
    %v9100 = vpop.f32.mrb[0].mxu0
    %v9101 = vadd.f32 0.0, %v9100
    %v9102 = vpop.f32.mrb[0].mxu0
    %9103 = vmatprep.mubr.bf16.mxu0 0
    %9104 = vmatmul.mubr.bf16.gmra.mrb[0].mxu0 %v8870
    %v9105 = vpop.f32.mrb[0].mxu0
    %v9106 = vadd.f32 0.0, %v9105
    %v9107 = vpop.f32.mrb[0].mxu0
    %v9108 = vpop.f32.mrb[0].mxu0
    %v9109 = vadd.f32 0.0, %v9108
    %v9110 = vpop.f32.mrb[0].mxu0
    %9111 = vmatprep.mubr.bf16.mxu0 0
    %9112 = vmatmul.mubr.bf16.gmra.mrb[0].mxu0 %v8873
    %v9113 = vpop.f32.mrb[0].mxu0
    %v9114 = vadd.f32 0.0, %v9113
    %v9115 = vpop.f32.mrb[0].mxu0
    %v9116 = vpop.f32.mrb[0].mxu0
    %v9117 = vadd.f32 0.0, %v9116
    %v9118 = vpop.f32.mrb[0].mxu0
    %9119 = vmatprep.mubr.bf16.mxu0 0
    %9120 = vmatmul.mubr.bf16.gmra.mrb[0].mxu0 %v8876
    %v9121 = vpop.f32.mrb[0].mxu0
    %v9122 = vadd.f32 0.0, %v9121
    %v9123 = vpop.f32.mrb[0].mxu0
    %v9124 = vpop.f32.mrb[0].mxu0
    %v9125 = vadd.f32 0.0, %v9124
    %v9126 = vpop.f32.mrb[0].mxu0
    %9127 = vmatprep.mubr.bf16.mxu0 0
    %9128 = vmatmul.mubr.bf16.gmra.mrb[0].mxu0 %v8879
    %v9129 = vpop.f32.mrb[0].mxu0
    %v9130 = vadd.f32 0.0, %v9129
    %v9131 = vpop.f32.mrb[0].mxu0
    %v9132 = vpop.f32.mrb[0].mxu0
    %v9133 = vadd.f32 0.0, %v9132
    %v9134 = vpop.f32.mrb[0].mxu0
    %9135 = vmatprep.mubr.bf16.mxu0 0
    %9136 = vmatmul.mubr.bf16.gmra.mrb[0].mxu0 %v8882
    %v9137 = vpop.f32.mrb[0].mxu0
    %v9138 = vadd.f32 0.0, %v9137
    %v9139 = vpop.f32.mrb[0].mxu0
    %v9140 = vpop.f32.mrb[0].mxu0
    %v9141 = vadd.f32 0.0, %v9140
    %v9142 = vpop.f32.mrb[0].mxu0
    %9143 = vmatprep.mubr.bf16.mxu0 0
    %9144 = vmatmul.mubr.bf16.gmra.mrb[0].mxu0 %v8885
    %v9145 = vpop.f32.mrb[0].mxu0
    %v9146 = vadd.f32 0.0, %v9145
    %v9147 = vpop.f32.mrb[0].mxu0
    %v9148 = vpop.f32.mrb[0].mxu0
    %v9149 = vadd.f32 0.0, %v9148
    %v9150 = vpop.f32.mrb[0].mxu0
    %9151 = vmatprep.mubr.bf16.mxu0 0
    %9152 = vmatmul.mubr.bf16.gmra.mrb[0].mxu0 %v8888
    %v9153 = vpop.f32.mrb[0].mxu0
    %v9154 = vadd.f32 0.0, %v9153
    %v9155 = vpop.f32.mrb[0].mxu0
    %v9156 = vpop.f32.mrb[0].mxu0
    %v9157 = vadd.f32 0.0, %v9156
    %v9158 = vpop.f32.mrb[0].mxu0
    %9159 = vmatprep.mubr.bf16.mxu0 0
    %9160 = vmatmul.mubr.bf16.gmra.mrb[0].mxu0 %v8891
    %v9161 = vpop.f32.mrb[0].mxu0
    %v9162 = vadd.f32 0.0, %v9161
    %v9163 = vpop.f32.mrb[0].mxu0
    %v9164 = vpop.f32.mrb[0].mxu0
    %v9165 = vadd.f32 0.0, %v9164
    %v9166 = vpop.f32.mrb[0].mxu0
    %9167 = vmatprep.mubr.bf16.mxu0 0
    %9168 = vmatmul.mubr.bf16.gmra.mrb[0].mxu0 %v8894
    %v9169 = vpop.f32.mrb[0].mxu0
    %v9170 = vadd.f32 0.0, %v9169
    %v9171 = vpop.f32.mrb[0].mxu0
    %v9172 = vpop.f32.mrb[0].mxu0
    %v9173 = vadd.f32 0.0, %v9172
    %v9174 = vpop.f32.mrb[0].mxu0
    %9175 = vmatprep.mubr.bf16.mxu0 0
    %9176 = vmatmul.mubr.bf16.gmra.mrb[0].mxu0 %v8897
    %v9177 = vpop.f32.mrb[0].mxu0
    %v9178 = vadd.f32 0.0, %v9177
    %v9179 = vpop.f32.mrb[0].mxu0
    %v9180 = vpop.f32.mrb[0].mxu0
    %v9181 = vadd.f32 0.0, %v9180
    %v9182 = vpop.f32.mrb[0].mxu0
    %9183 = vmatprep.mubr.bf16.mxu0 0
    %9184 = vmatmul.mubr.bf16.gmra.mrb[0].mxu0 %v8900
    %v9185 = vpop.f32.mrb[0].mxu0
    %v9186 = vadd.f32 0.0, %v9185
    %v9187 = vpop.f32.mrb[0].mxu0
    %v9188 = vpop.f32.mrb[0].mxu0
    %v9189 = vadd.f32 0.0, %v9188
    %v9190 = vpop.f32.mrb[0].mxu0
    %9191 = vmatprep.mubr.bf16.mxu0 0
    %9192 = vmatmul.mubr.bf16.gmra.mrb[0].mxu0 %v8903
    %v9193 = vpop.f32.mrb[0].mxu0
    %v9194 = vadd.f32 0.0, %v9193
    %v9195 = vpop.f32.mrb[0].mxu0
    %v9196 = vpop.f32.mrb[0].mxu0
    %v9197 = vadd.f32 0.0, %v9196
    %v9198 = vpop.f32.mrb[0].mxu0
    %9199 = vmatprep.mubr.bf16.mxu0 0
    %9200 = vmatmul.mubr.bf16.gmra.mrb[0].mxu0 %v8906
    %v9201 = vpop.f32.mrb[0].mxu0
    %v9202 = vadd.f32 0.0, %v9201
    %v9203 = vpop.f32.mrb[0].mxu0
    %v9204 = vpop.f32.mrb[0].mxu0
    %v9205 = vadd.f32 0.0, %v9204
    %v9206 = vpop.f32.mrb[0].mxu0
    %9207 = vmatprep.mubr.bf16.mxu0 0
    %9208 = vmatmul.mubr.bf16.gmra.mrb[0].mxu0 %v8909
    %v9209 = vpop.f32.mrb[0].mxu0
    %v9210 = vadd.f32 0.0, %v9209
    %v9211 = vpop.f32.mrb[0].mxu0
    %v9212 = vpop.f32.mrb[0].mxu0
    %v9213 = vadd.f32 0.0, %v9212
    %v9214 = vpop.f32.mrb[0].mxu0
    %9215 = vmatprep.mubr.bf16.mxu0 0
    %9216 = vmatmul.mubr.bf16.gmra.mrb[0].mxu0 %v8912
    %v9217 = vpop.f32.mrb[0].mxu0
    %v9218 = vadd.f32 0.0, %v9217
    %v9219 = vpop.f32.mrb[0].mxu0
    %v9220 = vpop.f32.mrb[0].mxu0
    %v9221 = vadd.f32 0.0, %v9220
    %v9222 = vpop.f32.mrb[0].mxu0
    %9223 = vmatprep.mubr.bf16.mxu0 0
    %9224 = vmatmul.mubr.bf16.gmra.mrb[0].mxu0 %v8915
    %v9225 = vpop.f32.mrb[0].mxu0
    %v9226 = vadd.f32 0.0, %v9225
    %v9227 = vpop.f32.mrb[0].mxu0
    %v9228 = vpop.f32.mrb[0].mxu0
    %v9229 = vadd.f32 0.0, %v9228
    %v9230 = vpop.f32.mrb[0].mxu0
    %9231 = vmatprep.mubr.bf16.mxu0 0
    %9232 = vmatmul.mubr.bf16.gmra.mrb[0].mxu0 %v8918
    %v9233 = vpop.f32.mrb[0].mxu0
    %v9234 = vadd.f32 0.0, %v9233
    %v9235 = vpop.f32.mrb[0].mxu0
    %v9236 = vpop.f32.mrb[0].mxu0
    %v9237 = vadd.f32 0.0, %v9236
    %v9238 = vpop.f32.mrb[0].mxu0
    %9239 = vmatprep.mubr.bf16.mxu0 0
    %9240 = vmatmul.mubr.bf16.gmra.mrb[0].mxu0 %v8921
    %v9241 = vpop.f32.mrb[0].mxu0
    %v9242 = vadd.f32 0.0, %v9241
    %v9243 = vpop.f32.mrb[0].mxu0
    %v9244 = vpop.f32.mrb[0].mxu0
    %v9245 = vadd.f32 0.0, %v9244
    %v9246 = vpop.f32.mrb[0].mxu0
    %9247 = vmatprep.mubr.bf16.mxu0 0
    %9248 = vmatmul.mubr.bf16.gmra.mrb[0].mxu0 %v8924
    %v9249 = vpop.f32.mrb[0].mxu0
    %v9250 = vadd.f32 0.0, %v9249
    %v9251 = vpop.f32.mrb[0].mxu0
    %v9252 = vpop.f32.mrb[0].mxu0
    %v9253 = vadd.f32 0.0, %v9252
    %v9254 = vpop.f32.mrb[0].mxu0
    %9255 = vmatprep.mubr.bf16.mxu0 0
    %9256 = vmatmul.mubr.bf16.gmra.mrb[0].mxu0 %v8927
    %v9257 = vpop.f32.mrb[0].mxu0
    %v9258 = vadd.f32 0.0, %v9257
    %v9259 = vpop.f32.mrb[0].mxu0
    %v9260 = vpop.f32.mrb[0].mxu0
    %v9261 = vadd.f32 0.0, %v9260
    %v9262 = vpop.f32.mrb[0].mxu0
    %9263 = vmatprep.mubr.bf16.mxu0 0
    %9264 = vmatmul.mubr.bf16.gmra.mrb[0].mxu0 %v8930
    %v9265 = vpop.f32.mrb[0].mxu0
    %v9266 = vadd.f32 0.0, %v9265
    %v9267 = vpop.f32.mrb[0].mxu0
    %v9268 = vpop.f32.mrb[0].mxu0
    %v9269 = vadd.f32 0.0, %v9268
    %v9270 = vpop.f32.mrb[0].mxu0
    %9271 = vmatprep.mubr.bf16.mxu0 0
    %9272 = vmatmul.mubr.bf16.gmra.mrb[0].mxu0 %v8933
    %v9273 = vpop.f32.mrb[0].mxu0
    %v9274 = vadd.f32 0.0, %v9273
    %v9275 = vpop.f32.mrb[0].mxu0
    %v9276 = vpop.f32.mrb[0].mxu0
    %v9277 = vadd.f32 0.0, %v9276
    %v9278 = vpop.f32.mrb[0].mxu0
    %9279 = vmatprep.mubr.bf16.mxu0 0
    %9280 = vmatmul.mubr.bf16.gmra.mrb[0].mxu0 %v8936
    %v9281 = vpop.f32.mrb[0].mxu0
    %v9282 = vadd.f32 0.0, %v9281
    %v9283 = vpop.f32.mrb[0].mxu0
    %v9284 = vpop.f32.mrb[0].mxu0
    %v9285 = vadd.f32 0.0, %v9284
    %v9286 = vpop.f32.mrb[0].mxu0
    %9287 = vmatprep.mubr.bf16.mxu0 0
    %9288 = vmatmul.mubr.bf16.gmra.mrb[0].mxu0 %v8939
    %v9289 = vpop.f32.mrb[0].mxu0
    %v9290 = vadd.f32 0.0, %v9289
    %v9291 = vpop.f32.mrb[0].mxu0
    %v9292 = vpop.f32.mrb[0].mxu0
    %v9293 = vadd.f32 0.0, %v9292
    %v9294 = vpop.f32.mrb[0].mxu0
    %9295 = vmatprep.mubr.bf16.mxu0 0
    %9296 = vmatmul.mubr.bf16.gmra.mrb[0].mxu0 %v8942
    %v9297 = vpop.f32.mrb[0].mxu0
    %v9298 = vadd.f32 0.0, %v9297
    %v9299 = vpop.f32.mrb[0].mxu0
    %v9300 = vpop.f32.mrb[0].mxu0
    %v9301 = vadd.f32 0.0, %v9300
    %v9302 = vpop.f32.mrb[0].mxu0
    %9303 = vmatprep.mubr.bf16.mxu0 0
    %9304 = vmatmul.mubr.bf16.gmra.mrb[0].mxu0 %v8945
    %v9305 = vpop.f32.mrb[0].mxu0
    %v9306 = vadd.f32 0.0, %v9305
    %v9307 = vpop.f32.mrb[0].mxu0
    %v9308 = vpop.f32.mrb[0].mxu0
    %v9309 = vadd.f32 0.0, %v9308
    %v9310 = vpop.f32.mrb[0].mxu0
    %9311 = vmatprep.mubr.bf16.mxu0 0
    %9312 = vmatmul.mubr.bf16.gmra.mrb[0].mxu0 %v8948
    %v9313 = vpop.f32.mrb[0].mxu0
    %v9314 = vadd.f32 0.0, %v9313
    %v9315 = vpop.f32.mrb[0].mxu0
    %v9316 = vpop.f32.mrb[0].mxu0
    %v9317 = vadd.f32 0.0, %v9316
    %v9318 = vpop.f32.mrb[0].mxu0
    %9319 = vmatprep.mubr.bf16.mxu0 0
    %9320 = vmatmul.mubr.bf16.gmra.mrb[0].mxu0 %v8951
    %v9321 = vpop.f32.mrb[0].mxu0
    %v9322 = vadd.f32 0.0, %v9321
    %v9323 = vpop.f32.mrb[0].mxu0
    %v9324 = vpop.f32.mrb[0].mxu0
    %v9325 = vadd.f32 0.0, %v9324
    %v9326 = vpop.f32.mrb[0].mxu0
    %9327 = vmatprep.mubr.bf16.mxu0 0
    %9328 = vmatmul.mubr.bf16.gmra.mrb[0].mxu0 %v8954
    %v9329 = vpop.f32.mrb[0].mxu0
    %v9330 = vadd.f32 0.0, %v9329
    %v9331 = vpop.f32.mrb[0].mxu0
    %v9332 = vpop.f32.mrb[0].mxu0
    %v9333 = vadd.f32 0.0, %v9332
    %v9334 = vpop.f32.mrb[0].mxu0
    %9335 = vmatprep.mubr.bf16.mxu0 0
    %9336 = vmatmul.mubr.bf16.gmra.mrb[0].mxu0 %v8957
    %v9337 = vpop.f32.mrb[0].mxu0
    %v9338 = vadd.f32 0.0, %v9337
    %v9339 = vpop.f32.mrb[0].mxu0
    %v9340 = vpop.f32.mrb[0].mxu0
    %v9341 = vadd.f32 0.0, %v9340
    %v9342 = vpop.f32.mrb[0].mxu0
    %9343 = vdwg.mxu0
    %v9344 = vld [vmem:[#allocation2] sm:$0xff]
    %v9345 = vld [vmem:[#allocation2 + $0x8] sm:$0xff]
    %v9346 = vld [vmem:[#allocation2 + $0x10] sm:$0xff]
    %v9347 = vld [vmem:[#allocation2 + $0x18] sm:$0xff]
    %v9348 = vld [vmem:[#allocation2 + $0x20] sm:$0xff]
    %v9349 = vld [vmem:[#allocation2 + $0x28] sm:$0xff]
    %v9350 = vld [vmem:[#allocation2 + $0x30] sm:$0xff]
    %v9351 = vld [vmem:[#allocation2 + $0x38] sm:$0xff]
    %v9352 = vld [vmem:[#allocation2 + $0x40] sm:$0xff]
    %v9353 = vld [vmem:[#allocation2 + $0x48] sm:$0xff]
    %v9354 = vld [vmem:[#allocation2 + $0x50] sm:$0xff]
    %v9355 = vld [vmem:[#allocation2 + $0x58] sm:$0xff]
    %v9356 = vld [vmem:[#allocation2 + $0x60] sm:$0xff]
    %v9357 = vld [vmem:[#allocation2 + $0x68] sm:$0xff]
    %v9358 = vld [vmem:[#allocation2 + $0x70] sm:$0xff]
    %v9359 = vld [vmem:[#allocation2 + $0x78] sm:$0xff]
    %v9360 = vld [vmem:[#allocation2 + $0x80] sm:$0xff]
    %v9361 = vld [vmem:[#allocation2 + $0x88] sm:$0xff]
    %v9362 = vld [vmem:[#allocation2 + $0x90] sm:$0xff]
    %v9363 = vld [vmem:[#allocation2 + $0x98] sm:$0xff]
    %v9364 = vld [vmem:[#allocation2 + $0xa0] sm:$0xff]
    %v9365 = vld [vmem:[#allocation2 + $0xa8] sm:$0xff]
    %v9366 = vld [vmem:[#allocation2 + $0xb0] sm:$0xff]
    %v9367 = vld [vmem:[#allocation2 + $0xb8] sm:$0xff]
    %v9368 = vld [vmem:[#allocation2 + $0xc0] sm:$0xff]
    %v9369 = vld [vmem:[#allocation2 + $0xc8] sm:$0xff]
    %v9370 = vld [vmem:[#allocation2 + $0xd0] sm:$0xff]
    %v9371 = vld [vmem:[#allocation2 + $0xd8] sm:$0xff]
    %v9372 = vld [vmem:[#allocation2 + $0xe0] sm:$0xff]
    %v9373 = vld [vmem:[#allocation2 + $0xe8] sm:$0xff]
    %v9374 = vld [vmem:[#allocation2 + $0xf0] sm:$0xff]
    %v9375 = vld [vmem:[#allocation2 + $0xf8] sm:$0xff]
    %v9376 = vld [vmem:[#allocation2 + $0x100] sm:$0xff]
    %v9377 = vld [vmem:[#allocation2 + $0x108] sm:$0xff]
    %v9378 = vld [vmem:[#allocation2 + $0x110] sm:$0xff]
    %v9379 = vld [vmem:[#allocation2 + $0x118] sm:$0xff]
    %v9380 = vld [vmem:[#allocation2 + $0x120] sm:$0xff]
    %v9381 = vld [vmem:[#allocation2 + $0x128] sm:$0xff]
    %v9382 = vld [vmem:[#allocation2 + $0x130] sm:$0xff]
    %v9383 = vld [vmem:[#allocation2 + $0x138] sm:$0xff]
    %v9384 = vld [vmem:[#allocation2 + $0x140] sm:$0xff]
    %v9385 = vld [vmem:[#allocation2 + $0x148] sm:$0xff]
    %v9386 = vld [vmem:[#allocation2 + $0x150] sm:$0xff]
    %v9387 = vld [vmem:[#allocation2 + $0x158] sm:$0xff]
    %v9388 = vld [vmem:[#allocation2 + $0x160] sm:$0xff]
    %v9389 = vld [vmem:[#allocation2 + $0x168] sm:$0xff]
    %v9390 = vld [vmem:[#allocation2 + $0x170] sm:$0xff]
    %v9391 = vld [vmem:[#allocation2 + $0x178] sm:$0xff]
    %v9392 = vld [vmem:[#allocation2 + $0x180] sm:$0xff]
    %v9393 = vld [vmem:[#allocation2 + $0x188] sm:$0xff]
    %v9394 = vld [vmem:[#allocation2 + $0x190] sm:$0xff]
    %v9395 = vld [vmem:[#allocation2 + $0x198] sm:$0xff]
    %v9396 = vld [vmem:[#allocation2 + $0x1a0] sm:$0xff]
    %v9397 = vld [vmem:[#allocation2 + $0x1a8] sm:$0xff]
    %v9398 = vld [vmem:[#allocation2 + $0x1b0] sm:$0xff]
    %v9399 = vld [vmem:[#allocation2 + $0x1b8] sm:$0xff]
    %v9400 = vld [vmem:[#allocation2 + $0x1c0] sm:$0xff]
    %v9401 = vld [vmem:[#allocation2 + $0x1c8] sm:$0xff]
    %v9402 = vld [vmem:[#allocation2 + $0x1d0] sm:$0xff]
    %v9403 = vld [vmem:[#allocation2 + $0x1d8] sm:$0xff]
    %v9404 = vld [vmem:[#allocation2 + $0x1e0] sm:$0xff]
    %v9405 = vld [vmem:[#allocation2 + $0x1e8] sm:$0xff]
    %v9406 = vld [vmem:[#allocation2 + $0x1f0] sm:$0xff]
    %v9407 = vld [vmem:[#allocation2 + $0x1f8] sm:$0xff]
    %v9408 = vadd.f32 %v9344, %v9090
    %v9409 = vadd.f32 %v9345, %v9093
    %v9410 = vadd.f32 %v9346, %v9098
    %v9411 = vadd.f32 %v9347, %v9101
    %v9412 = vadd.f32 %v9348, %v9106
    %v9413 = vadd.f32 %v9349, %v9109
    %v9414 = vadd.f32 %v9350, %v9114
    %v9415 = vadd.f32 %v9351, %v9117
    %v9416 = vadd.f32 %v9352, %v9122
    %v9417 = vadd.f32 %v9353, %v9125
    %v9418 = vadd.f32 %v9354, %v9130
    %v9419 = vadd.f32 %v9355, %v9133
    %v9420 = vadd.f32 %v9356, %v9138
    %v9421 = vadd.f32 %v9357, %v9141
    %v9422 = vadd.f32 %v9358, %v9146
    %v9423 = vadd.f32 %v9359, %v9149
    %v9424 = vadd.f32 %v9360, %v9154
    %v9425 = vadd.f32 %v9361, %v9157
    %v9426 = vadd.f32 %v9362, %v9162
    %v9427 = vadd.f32 %v9363, %v9165
    %v9428 = vadd.f32 %v9364, %v9170
    %v9429 = vadd.f32 %v9365, %v9173
    %v9430 = vadd.f32 %v9366, %v9178
    %v9431 = vadd.f32 %v9367, %v9181
    %v9432 = vadd.f32 %v9368, %v9186
    %v9433 = vadd.f32 %v9369, %v9189
    %v9434 = vadd.f32 %v9370, %v9194
    %v9435 = vadd.f32 %v9371, %v9197
    %v9436 = vadd.f32 %v9372, %v9202
    %v9437 = vadd.f32 %v9373, %v9205
    %v9438 = vadd.f32 %v9374, %v9210
    %v9439 = vadd.f32 %v9375, %v9213
    %v9440 = vadd.f32 %v9376, %v9218
    %v9441 = vadd.f32 %v9377, %v9221
    %v9442 = vadd.f32 %v9378, %v9226
    %v9443 = vadd.f32 %v9379, %v9229
    %v9444 = vadd.f32 %v9380, %v9234
    %v9445 = vadd.f32 %v9381, %v9237
    %v9446 = vadd.f32 %v9382, %v9242
    %v9447 = vadd.f32 %v9383, %v9245
    %v9448 = vadd.f32 %v9384, %v9250
    %v9449 = vadd.f32 %v9385, %v9253
    %v9450 = vadd.f32 %v9386, %v9258
    %v9451 = vadd.f32 %v9387, %v9261
    %v9452 = vadd.f32 %v9388, %v9266
    %v9453 = vadd.f32 %v9389, %v9269
    %v9454 = vadd.f32 %v9390, %v9274
    %v9455 = vadd.f32 %v9391, %v9277
    %v9456 = vadd.f32 %v9392, %v9282
    %v9457 = vadd.f32 %v9393, %v9285
    %v9458 = vadd.f32 %v9394, %v9290
    %v9459 = vadd.f32 %v9395, %v9293
    %v9460 = vadd.f32 %v9396, %v9298
    %v9461 = vadd.f32 %v9397, %v9301
    %v9462 = vadd.f32 %v9398, %v9306
    %v9463 = vadd.f32 %v9399, %v9309
    %v9464 = vadd.f32 %v9400, %v9314
    %v9465 = vadd.f32 %v9401, %v9317
    %v9466 = vadd.f32 %v9402, %v9322
    %v9467 = vadd.f32 %v9403, %v9325
    %v9468 = vadd.f32 %v9404, %v9330
    %v9469 = vadd.f32 %v9405, %v9333
    %v9470 = vadd.f32 %v9406, %v9338
    %v9471 = vadd.f32 %v9407, %v9341
    %9472 = vst [vmem:[#allocation2] sm:$0xff] %v9408
    %9473 = vst [vmem:[#allocation2 + $0x8] sm:$0xff] %v9409
    %9474 = vst [vmem:[#allocation2 + $0x10] sm:$0xff] %v9410
    %9475 = vst [vmem:[#allocation2 + $0x18] sm:$0xff] %v9411
    %9476 = vst [vmem:[#allocation2 + $0x20] sm:$0xff] %v9412
    %9477 = vst [vmem:[#allocation2 + $0x28] sm:$0xff] %v9413
    %9478 = vst [vmem:[#allocation2 + $0x30] sm:$0xff] %v9414
    %9479 = vst [vmem:[#allocation2 + $0x38] sm:$0xff] %v9415
    %9480 = vst [vmem:[#allocation2 + $0x40] sm:$0xff] %v9416
    %9481 = vst [vmem:[#allocation2 + $0x48] sm:$0xff] %v9417
    %9482 = vst [vmem:[#allocation2 + $0x50] sm:$0xff] %v9418
    %9483 = vst [vmem:[#allocation2 + $0x58] sm:$0xff] %v9419
    %9484 = vst [vmem:[#allocation2 + $0x60] sm:$0xff] %v9420
    %9485 = vst [vmem:[#allocation2 + $0x68] sm:$0xff] %v9421
    %9486 = vst [vmem:[#allocation2 + $0x70] sm:$0xff] %v9422
    %9487 = vst [vmem:[#allocation2 + $0x78] sm:$0xff] %v9423
    %9488 = vst [vmem:[#allocation2 + $0x80] sm:$0xff] %v9424
    %9489 = vst [vmem:[#allocation2 + $0x88] sm:$0xff] %v9425
    %9490 = vst [vmem:[#allocation2 + $0x90] sm:$0xff] %v9426
    %9491 = vst [vmem:[#allocation2 + $0x98] sm:$0xff] %v9427
    %9492 = vst [vmem:[#allocation2 + $0xa0] sm:$0xff] %v9428
    %9493 = vst [vmem:[#allocation2 + $0xa8] sm:$0xff] %v9429
    %9494 = vst [vmem:[#allocation2 + $0xb0] sm:$0xff] %v9430
    %9495 = vst [vmem:[#allocation2 + $0xb8] sm:$0xff] %v9431
    %9496 = vst [vmem:[#allocation2 + $0xc0] sm:$0xff] %v9432
    %9497 = vst [vmem:[#allocation2 + $0xc8] sm:$0xff] %v9433
    %9498 = vst [vmem:[#allocation2 + $0xd0] sm:$0xff] %v9434
    %9499 = vst [vmem:[#allocation2 + $0xd8] sm:$0xff] %v9435
    %9500 = vst [vmem:[#allocation2 + $0xe0] sm:$0xff] %v9436
    %9501 = vst [vmem:[#allocation2 + $0xe8] sm:$0xff] %v9437
    %9502 = vst [vmem:[#allocation2 + $0xf0] sm:$0xff] %v9438
    %9503 = vst [vmem:[#allocation2 + $0xf8] sm:$0xff] %v9439
    %9504 = vst [vmem:[#allocation2 + $0x100] sm:$0xff] %v9440
    %9505 = vst [vmem:[#allocation2 + $0x108] sm:$0xff] %v9441
    %9506 = vst [vmem:[#allocation2 + $0x110] sm:$0xff] %v9442
    %9507 = vst [vmem:[#allocation2 + $0x118] sm:$0xff] %v9443
    %9508 = vst [vmem:[#allocation2 + $0x120] sm:$0xff] %v9444
    %9509 = vst [vmem:[#allocation2 + $0x128] sm:$0xff] %v9445
    %9510 = vst [vmem:[#allocation2 + $0x130] sm:$0xff] %v9446
    %9511 = vst [vmem:[#allocation2 + $0x138] sm:$0xff] %v9447
    %9512 = vst [vmem:[#allocation2 + $0x140] sm:$0xff] %v9448
    %9513 = vst [vmem:[#allocation2 + $0x148] sm:$0xff] %v9449
    %9514 = vst [vmem:[#allocation2 + $0x150] sm:$0xff] %v9450
    %9515 = vst [vmem:[#allocation2 + $0x158] sm:$0xff] %v9451
    %9516 = vst [vmem:[#allocation2 + $0x160] sm:$0xff] %v9452
    %9517 = vst [vmem:[#allocation2 + $0x168] sm:$0xff] %v9453
    %9518 = vst [vmem:[#allocation2 + $0x170] sm:$0xff] %v9454
    %9519 = vst [vmem:[#allocation2 + $0x178] sm:$0xff] %v9455
    %9520 = vst [vmem:[#allocation2 + $0x180] sm:$0xff] %v9456
    %9521 = vst [vmem:[#allocation2 + $0x188] sm:$0xff] %v9457
    %9522 = vst [vmem:[#allocation2 + $0x190] sm:$0xff] %v9458
    %9523 = vst [vmem:[#allocation2 + $0x198] sm:$0xff] %v9459
    %9524 = vst [vmem:[#allocation2 + $0x1a0] sm:$0xff] %v9460
    %9525 = vst [vmem:[#allocation2 + $0x1a8] sm:$0xff] %v9461
    %9526 = vst [vmem:[#allocation2 + $0x1b0] sm:$0xff] %v9462
    %9527 = vst [vmem:[#allocation2 + $0x1b8] sm:$0xff] %v9463
    %9528 = vst [vmem:[#allocation2 + $0x1c0] sm:$0xff] %v9464
    %9529 = vst [vmem:[#allocation2 + $0x1c8] sm:$0xff] %v9465
    %9530 = vst [vmem:[#allocation2 + $0x1d0] sm:$0xff] %v9466
    %9531 = vst [vmem:[#allocation2 + $0x1d8] sm:$0xff] %v9467
    %9532 = vst [vmem:[#allocation2 + $0x1e0] sm:$0xff] %v9468
    %9533 = vst [vmem:[#allocation2 + $0x1e8] sm:$0xff] %v9469
    %9534 = vst [vmem:[#allocation2 + $0x1f0] sm:$0xff] %v9470
    %9535 = vst [vmem:[#allocation2 + $0x1f8] sm:$0xff] %v9471
    %v9536 = vld [vmem:[#allocation2] sm:$0xff]
    %v9537 = vld [vmem:[#allocation2 + $0x8] sm:$0xff]
    %v9538 = vld [vmem:[#allocation2 + $0x10] sm:$0xff]
    %v9539 = vld [vmem:[#allocation2 + $0x18] sm:$0xff]
    %v9540 = vld [vmem:[#allocation2 + $0x20] sm:$0xff]
    %v9541 = vld [vmem:[#allocation2 + $0x28] sm:$0xff]
    %v9542 = vld [vmem:[#allocation2 + $0x30] sm:$0xff]
    %v9543 = vld [vmem:[#allocation2 + $0x38] sm:$0xff]
    %v9544 = vld [vmem:[#allocation2 + $0x40] sm:$0xff]
    %v9545 = vld [vmem:[#allocation2 + $0x48] sm:$0xff]
    %v9546 = vld [vmem:[#allocation2 + $0x50] sm:$0xff]
    %v9547 = vld [vmem:[#allocation2 + $0x58] sm:$0xff]
    %v9548 = vld [vmem:[#allocation2 + $0x60] sm:$0xff]
    %v9549 = vld [vmem:[#allocation2 + $0x68] sm:$0xff]
    %v9550 = vld [vmem:[#allocation2 + $0x70] sm:$0xff]
    %v9551 = vld [vmem:[#allocation2 + $0x78] sm:$0xff]
    %v9552 = vld [vmem:[#allocation2 + $0x80] sm:$0xff]
    %v9553 = vld [vmem:[#allocation2 + $0x88] sm:$0xff]
    %v9554 = vld [vmem:[#allocation2 + $0x90] sm:$0xff]
    %v9555 = vld [vmem:[#allocation2 + $0x98] sm:$0xff]
    %v9556 = vld [vmem:[#allocation2 + $0xa0] sm:$0xff]
    %v9557 = vld [vmem:[#allocation2 + $0xa8] sm:$0xff]
    %v9558 = vld [vmem:[#allocation2 + $0xb0] sm:$0xff]
    %v9559 = vld [vmem:[#allocation2 + $0xb8] sm:$0xff]
    %v9560 = vld [vmem:[#allocation2 + $0xc0] sm:$0xff]
    %v9561 = vld [vmem:[#allocation2 + $0xc8] sm:$0xff]
    %v9562 = vld [vmem:[#allocation2 + $0xd0] sm:$0xff]
    %v9563 = vld [vmem:[#allocation2 + $0xd8] sm:$0xff]
    %v9564 = vld [vmem:[#allocation2 + $0xe0] sm:$0xff]
    %v9565 = vld [vmem:[#allocation2 + $0xe8] sm:$0xff]
    %v9566 = vld [vmem:[#allocation2 + $0xf0] sm:$0xff]
    %v9567 = vld [vmem:[#allocation2 + $0xf8] sm:$0xff]
    %v9568 = vld [vmem:[#allocation2 + $0x100] sm:$0xff]
    %v9569 = vld [vmem:[#allocation2 + $0x108] sm:$0xff]
    %v9570 = vld [vmem:[#allocation2 + $0x110] sm:$0xff]
    %v9571 = vld [vmem:[#allocation2 + $0x118] sm:$0xff]
    %v9572 = vld [vmem:[#allocation2 + $0x120] sm:$0xff]
    %v9573 = vld [vmem:[#allocation2 + $0x128] sm:$0xff]
    %v9574 = vld [vmem:[#allocation2 + $0x130] sm:$0xff]
    %v9575 = vld [vmem:[#allocation2 + $0x138] sm:$0xff]
    %v9576 = vld [vmem:[#allocation2 + $0x140] sm:$0xff]
    %v9577 = vld [vmem:[#allocation2 + $0x148] sm:$0xff]
    %v9578 = vld [vmem:[#allocation2 + $0x150] sm:$0xff]
    %v9579 = vld [vmem:[#allocation2 + $0x158] sm:$0xff]
    %v9580 = vld [vmem:[#allocation2 + $0x160] sm:$0xff]
    %v9581 = vld [vmem:[#allocation2 + $0x168] sm:$0xff]
    %v9582 = vld [vmem:[#allocation2 + $0x170] sm:$0xff]
    %v9583 = vld [vmem:[#allocation2 + $0x178] sm:$0xff]
    %v9584 = vld [vmem:[#allocation2 + $0x180] sm:$0xff]
    %v9585 = vld [vmem:[#allocation2 + $0x188] sm:$0xff]
    %v9586 = vld [vmem:[#allocation2 + $0x190] sm:$0xff]
    %v9587 = vld [vmem:[#allocation2 + $0x198] sm:$0xff]
    %v9588 = vld [vmem:[#allocation2 + $0x1a0] sm:$0xff]
    %v9589 = vld [vmem:[#allocation2 + $0x1a8] sm:$0xff]
    %v9590 = vld [vmem:[#allocation2 + $0x1b0] sm:$0xff]
    %v9591 = vld [vmem:[#allocation2 + $0x1b8] sm:$0xff]
    %v9592 = vld [vmem:[#allocation2 + $0x1c0] sm:$0xff]
    %v9593 = vld [vmem:[#allocation2 + $0x1c8] sm:$0xff]
    %v9594 = vld [vmem:[#allocation2 + $0x1d0] sm:$0xff]
    %v9595 = vld [vmem:[#allocation2 + $0x1d8] sm:$0xff]
    %v9596 = vld [vmem:[#allocation2 + $0x1e0] sm:$0xff]
    %v9597 = vld [vmem:[#allocation2 + $0x1e8] sm:$0xff]
    %v9598 = vld [vmem:[#allocation2 + $0x1f0] sm:$0xff]
    %v9599 = vld [vmem:[#allocation2 + $0x1f8] sm:$0xff]
    %v9600 = vld [vmem:[%s5] sm:$0x1]
    %v9601 = vld [vmem:[%s6] sm:$0x1]
    %v9602 = vadd.f32 %v9536, %v9537
    %v9603 = vadd.f32 %v9602, %v9538
    %v9604 = vadd.f32 %v9603, %v9539
    %v9605 = vadd.f32 %v9604, %v9540
    %v9606 = vadd.f32 %v9605, %v9541
    %v9607 = vadd.f32 %v9606, %v9542
    %v9608 = vadd.f32 %v9607, %v9543
    %v9609 = vadd.f32 %v9608, %v9544
    %v9610 = vadd.f32 %v9609, %v9545
    %v9611 = vadd.f32 %v9610, %v9546
    %v9612 = vadd.f32 %v9611, %v9547
    %v9613 = vadd.f32 %v9612, %v9548
    %v9614 = vadd.f32 %v9613, %v9549
    %v9615 = vadd.f32 %v9614, %v9550
    %v9616 = vadd.f32 %v9615, %v9551
    %v9617 = vadd.f32 %v9616, %v9552
    %v9618 = vadd.f32 %v9617, %v9553
    %v9619 = vadd.f32 %v9618, %v9554
    %v9620 = vadd.f32 %v9619, %v9555
    %v9621 = vadd.f32 %v9620, %v9556
    %v9622 = vadd.f32 %v9621, %v9557
    %v9623 = vadd.f32 %v9622, %v9558
    %v9624 = vadd.f32 %v9623, %v9559
    %v9625 = vadd.f32 %v9624, %v9560
    %v9626 = vadd.f32 %v9625, %v9561
    %v9627 = vadd.f32 %v9626, %v9562
    %v9628 = vadd.f32 %v9627, %v9563
    %v9629 = vadd.f32 %v9628, %v9564
    %v9630 = vadd.f32 %v9629, %v9565
    %v9631 = vadd.f32 %v9630, %v9566
    %v9632 = vadd.f32 %v9631, %v9567
    %v9633 = vadd.f32 %v9632, %v9568
    %v9634 = vadd.f32 %v9633, %v9569
    %v9635 = vadd.f32 %v9634, %v9570
    %v9636 = vadd.f32 %v9635, %v9571
    %v9637 = vadd.f32 %v9636, %v9572
    %v9638 = vadd.f32 %v9637, %v9573
    %v9639 = vadd.f32 %v9638, %v9574
    %v9640 = vadd.f32 %v9639, %v9575
    %v9641 = vadd.f32 %v9640, %v9576
    %v9642 = vadd.f32 %v9641, %v9577
    %v9643 = vadd.f32 %v9642, %v9578
    %v9644 = vadd.f32 %v9643, %v9579
    %v9645 = vadd.f32 %v9644, %v9580
    %v9646 = vadd.f32 %v9645, %v9581
    %v9647 = vadd.f32 %v9646, %v9582
    %v9648 = vadd.f32 %v9647, %v9583
    %v9649 = vadd.f32 %v9648, %v9584
    %v9650 = vadd.f32 %v9649, %v9585
    %v9651 = vadd.f32 %v9650, %v9586
    %v9652 = vadd.f32 %v9651, %v9587
    %v9653 = vadd.f32 %v9652, %v9588
    %v9654 = vadd.f32 %v9653, %v9589
    %v9655 = vadd.f32 %v9654, %v9590
    %v9656 = vadd.f32 %v9655, %v9591
    %v9657 = vadd.f32 %v9656, %v9592
    %v9658 = vadd.f32 %v9657, %v9593
    %v9659 = vadd.f32 %v9658, %v9594
    %v9660 = vadd.f32 %v9659, %v9595
    %v9661 = vadd.f32 %v9660, %v9596
    %v9662 = vadd.f32 %v9661, %v9597
    %v9663 = vadd.f32 %v9662, %v9598
    %v9664 = vadd.f32 %v9663, %v9599
    %v9665 = vrot.slane %v9664, 4
    %v9666 = vadd.f32 %v9664, %v9665
    %v9667 = vrot.slane %v9666, 2
    %v9668 = vadd.f32 %v9666, %v9667
    %v9669 = vrot.slane %v9668, 1
    %v9670 = vadd.f32 %v9668, %v9669
    %v9671 = vmul.f32 %v9670, 0.001953125
    %v9672 = vmul.f32 %v9536, %v9536
    %v9673 = vmul.f32 %v9537, %v9537
    %v9674 = vmul.f32 %v9538, %v9538
    %v9675 = vmul.f32 %v9539, %v9539
    %v9676 = vmul.f32 %v9540, %v9540
    %v9677 = vmul.f32 %v9541, %v9541
    %v9678 = vmul.f32 %v9542, %v9542
    %v9679 = vmul.f32 %v9543, %v9543
    %v9680 = vmul.f32 %v9544, %v9544
    %v9681 = vmul.f32 %v9545, %v9545
    %v9682 = vmul.f32 %v9546, %v9546
    %v9683 = vmul.f32 %v9547, %v9547
    %v9684 = vmul.f32 %v9548, %v9548
    %v9685 = vmul.f32 %v9549, %v9549
    %v9686 = vmul.f32 %v9550, %v9550
    %v9687 = vmul.f32 %v9551, %v9551
    %v9688 = vmul.f32 %v9552, %v9552
    %v9689 = vmul.f32 %v9553, %v9553
    %v9690 = vmul.f32 %v9554, %v9554
    %v9691 = vmul.f32 %v9555, %v9555
    %v9692 = vmul.f32 %v9556, %v9556
    %v9693 = vmul.f32 %v9557, %v9557
    %v9694 = vmul.f32 %v9558, %v9558
    %v9695 = vmul.f32 %v9559, %v9559
    %v9696 = vmul.f32 %v9560, %v9560
    %v9697 = vmul.f32 %v9561, %v9561
    %v9698 = vmul.f32 %v9562, %v9562
    %v9699 = vmul.f32 %v9563, %v9563
    %v9700 = vmul.f32 %v9564, %v9564
    %v9701 = vmul.f32 %v9565, %v9565
    %v9702 = vmul.f32 %v9566, %v9566
    %v9703 = vmul.f32 %v9567, %v9567
    %v9704 = vmul.f32 %v9568, %v9568
    %v9705 = vmul.f32 %v9569, %v9569
    %v9706 = vmul.f32 %v9570, %v9570
    %v9707 = vmul.f32 %v9571, %v9571
    %v9708 = vmul.f32 %v9572, %v9572
    %v9709 = vmul.f32 %v9573, %v9573
    %v9710 = vmul.f32 %v9574, %v9574
    %v9711 = vmul.f32 %v9575, %v9575
    %v9712 = vmul.f32 %v9576, %v9576
    %v9713 = vmul.f32 %v9577, %v9577
    %v9714 = vmul.f32 %v9578, %v9578
    %v9715 = vmul.f32 %v9579, %v9579
    %v9716 = vmul.f32 %v9580, %v9580
    %v9717 = vmul.f32 %v9581, %v9581
    %v9718 = vmul.f32 %v9582, %v9582
    %v9719 = vmul.f32 %v9583, %v9583
    %v9720 = vmul.f32 %v9584, %v9584
    %v9721 = vmul.f32 %v9585, %v9585
    %v9722 = vmul.f32 %v9586, %v9586
    %v9723 = vmul.f32 %v9587, %v9587
    %v9724 = vmul.f32 %v9588, %v9588
    %v9725 = vmul.f32 %v9589, %v9589
    %v9726 = vmul.f32 %v9590, %v9590
    %v9727 = vmul.f32 %v9591, %v9591
    %v9728 = vmul.f32 %v9592, %v9592
    %v9729 = vmul.f32 %v9593, %v9593
    %v9730 = vmul.f32 %v9594, %v9594
    %v9731 = vmul.f32 %v9595, %v9595
    %v9732 = vmul.f32 %v9596, %v9596
    %v9733 = vmul.f32 %v9597, %v9597
    %v9734 = vmul.f32 %v9598, %v9598
    %v9735 = vmul.f32 %v9599, %v9599
    %v9736 = vadd.f32 %v9672, %v9673
    %v9737 = vadd.f32 %v9736, %v9674
    %v9738 = vadd.f32 %v9737, %v9675
    %v9739 = vadd.f32 %v9738, %v9676
    %v9740 = vadd.f32 %v9739, %v9677
    %v9741 = vadd.f32 %v9740, %v9678
    %v9742 = vadd.f32 %v9741, %v9679
    %v9743 = vadd.f32 %v9742, %v9680
    %v9744 = vadd.f32 %v9743, %v9681
    %v9745 = vadd.f32 %v9744, %v9682
    %v9746 = vadd.f32 %v9745, %v9683
    %v9747 = vadd.f32 %v9746, %v9684
    %v9748 = vadd.f32 %v9747, %v9685
    %v9749 = vadd.f32 %v9748, %v9686
    %v9750 = vadd.f32 %v9749, %v9687
    %v9751 = vadd.f32 %v9750, %v9688
    %v9752 = vadd.f32 %v9751, %v9689
    %v9753 = vadd.f32 %v9752, %v9690
    %v9754 = vadd.f32 %v9753, %v9691
    %v9755 = vadd.f32 %v9754, %v9692
    %v9756 = vadd.f32 %v9755, %v9693
    %v9757 = vadd.f32 %v9756, %v9694
    %v9758 = vadd.f32 %v9757, %v9695
    %v9759 = vadd.f32 %v9758, %v9696
    %v9760 = vadd.f32 %v9759, %v9697
    %v9761 = vadd.f32 %v9760, %v9698
    %v9762 = vadd.f32 %v9761, %v9699
    %v9763 = vadd.f32 %v9762, %v9700
    %v9764 = vadd.f32 %v9763, %v9701
    %v9765 = vadd.f32 %v9764, %v9702
    %v9766 = vadd.f32 %v9765, %v9703
    %v9767 = vadd.f32 %v9766, %v9704
    %v9768 = vadd.f32 %v9767, %v9705
    %v9769 = vadd.f32 %v9768, %v9706
    %v9770 = vadd.f32 %v9769, %v9707
    %v9771 = vadd.f32 %v9770, %v9708
    %v9772 = vadd.f32 %v9771, %v9709
    %v9773 = vadd.f32 %v9772, %v9710
    %v9774 = vadd.f32 %v9773, %v9711
    %v9775 = vadd.f32 %v9774, %v9712
    %v9776 = vadd.f32 %v9775, %v9713
    %v9777 = vadd.f32 %v9776, %v9714
    %v9778 = vadd.f32 %v9777, %v9715
    %v9779 = vadd.f32 %v9778, %v9716
    %v9780 = vadd.f32 %v9779, %v9717
    %v9781 = vadd.f32 %v9780, %v9718
    %v9782 = vadd.f32 %v9781, %v9719
    %v9783 = vadd.f32 %v9782, %v9720
    %v9784 = vadd.f32 %v9783, %v9721
    %v9785 = vadd.f32 %v9784, %v9722
    %v9786 = vadd.f32 %v9785, %v9723
    %v9787 = vadd.f32 %v9786, %v9724
    %v9788 = vadd.f32 %v9787, %v9725
    %v9789 = vadd.f32 %v9788, %v9726
    %v9790 = vadd.f32 %v9789, %v9727
    %v9791 = vadd.f32 %v9790, %v9728
    %v9792 = vadd.f32 %v9791, %v9729
    %v9793 = vadd.f32 %v9792, %v9730
    %v9794 = vadd.f32 %v9793, %v9731
    %v9795 = vadd.f32 %v9794, %v9732
    %v9796 = vadd.f32 %v9795, %v9733
    %v9797 = vadd.f32 %v9796, %v9734
    %v9798 = vadd.f32 %v9797, %v9735
    %v9799 = vrot.slane %v9798, 4
    %v9800 = vadd.f32 %v9798, %v9799
    %v9801 = vrot.slane %v9800, 2
    %v9802 = vadd.f32 %v9800, %v9801
    %v9803 = vrot.slane %v9802, 1
    %v9804 = vadd.f32 %v9802, %v9803
    %v9805 = vmul.f32 %v9804, 0.001953125
    %v9806 = vmul.f32 %v9671, %v9671
    %v9807 = vsub.f32 %v9805, %v9806
    %v9808 = vadd.f32 %v9807, 1e-05
    %v9809 = vrsqrt.pop %v9808
    %v9810 = vmul.f32 %v9600, %v9809
    %v9811 = vmul.f32 %v9671, %v9810
    %v9812 = vsub.f32 %v9601, %v9811
    %v9814 = vlaneseq
    %v9815 = vshrl.u32 %v9814, 7
    %v9816 = vsub.s32 0, %v9815
    %v9817 = vrot.slane %v9810, %v9816
    %v9819 = vmul.f32 %v9536, %v9817
    %v9820 = vmul.f32 %v9537, %v9817
    %v9821 = vmul.f32 %v9538, %v9817
    %v9822 = vmul.f32 %v9539, %v9817
    %v9823 = vmul.f32 %v9540, %v9817
    %v9824 = vmul.f32 %v9541, %v9817
    %v9825 = vmul.f32 %v9542, %v9817
    %v9826 = vmul.f32 %v9543, %v9817
    %v9827 = vmul.f32 %v9544, %v9817
    %v9828 = vmul.f32 %v9545, %v9817
    %v9829 = vmul.f32 %v9546, %v9817
    %v9830 = vmul.f32 %v9547, %v9817
    %v9831 = vmul.f32 %v9548, %v9817
    %v9832 = vmul.f32 %v9549, %v9817
    %v9833 = vmul.f32 %v9550, %v9817
    %v9834 = vmul.f32 %v9551, %v9817
    %v9835 = vmul.f32 %v9552, %v9817
    %v9836 = vmul.f32 %v9553, %v9817
    %v9837 = vmul.f32 %v9554, %v9817
    %v9838 = vmul.f32 %v9555, %v9817
    %v9839 = vmul.f32 %v9556, %v9817
    %v9840 = vmul.f32 %v9557, %v9817
    %v9841 = vmul.f32 %v9558, %v9817
    %v9842 = vmul.f32 %v9559, %v9817
    %v9843 = vmul.f32 %v9560, %v9817
    %v9844 = vmul.f32 %v9561, %v9817
    %v9845 = vmul.f32 %v9562, %v9817
    %v9846 = vmul.f32 %v9563, %v9817
    %v9847 = vmul.f32 %v9564, %v9817
    %v9848 = vmul.f32 %v9565, %v9817
    %v9849 = vmul.f32 %v9566, %v9817
    %v9850 = vmul.f32 %v9567, %v9817
    %v9851 = vmul.f32 %v9568, %v9817
    %v9852 = vmul.f32 %v9569, %v9817
    %v9853 = vmul.f32 %v9570, %v9817
    %v9854 = vmul.f32 %v9571, %v9817
    %v9855 = vmul.f32 %v9572, %v9817
    %v9856 = vmul.f32 %v9573, %v9817
    %v9857 = vmul.f32 %v9574, %v9817
    %v9858 = vmul.f32 %v9575, %v9817
    %v9859 = vmul.f32 %v9576, %v9817
    %v9860 = vmul.f32 %v9577, %v9817
    %v9861 = vmul.f32 %v9578, %v9817
    %v9862 = vmul.f32 %v9579, %v9817
    %v9863 = vmul.f32 %v9580, %v9817
    %v9864 = vmul.f32 %v9581, %v9817
    %v9865 = vmul.f32 %v9582, %v9817
    %v9866 = vmul.f32 %v9583, %v9817
    %v9867 = vmul.f32 %v9584, %v9817
    %v9868 = vmul.f32 %v9585, %v9817
    %v9869 = vmul.f32 %v9586, %v9817
    %v9870 = vmul.f32 %v9587, %v9817
    %v9871 = vmul.f32 %v9588, %v9817
    %v9872 = vmul.f32 %v9589, %v9817
    %v9873 = vmul.f32 %v9590, %v9817
    %v9874 = vmul.f32 %v9591, %v9817
    %v9875 = vmul.f32 %v9592, %v9817
    %v9876 = vmul.f32 %v9593, %v9817
    %v9877 = vmul.f32 %v9594, %v9817
    %v9878 = vmul.f32 %v9595, %v9817
    %v9879 = vmul.f32 %v9596, %v9817
    %v9880 = vmul.f32 %v9597, %v9817
    %v9881 = vmul.f32 %v9598, %v9817
    %v9882 = vmul.f32 %v9599, %v9817
    %v9884 = vlaneseq
    %v9885 = vshrl.u32 %v9884, 7
    %v9886 = vsub.s32 0, %v9885
    %v9887 = vrot.slane %v9812, %v9886
    %v9889 = vadd.f32 %v9819, %v9887
    %v9890 = vadd.f32 %v9820, %v9887
    %v9891 = vadd.f32 %v9821, %v9887
    %v9892 = vadd.f32 %v9822, %v9887
    %v9893 = vadd.f32 %v9823, %v9887
    %v9894 = vadd.f32 %v9824, %v9887
    %v9895 = vadd.f32 %v9825, %v9887
    %v9896 = vadd.f32 %v9826, %v9887
    %v9897 = vadd.f32 %v9827, %v9887
    %v9898 = vadd.f32 %v9828, %v9887
    %v9899 = vadd.f32 %v9829, %v9887
    %v9900 = vadd.f32 %v9830, %v9887
    %v9901 = vadd.f32 %v9831, %v9887
    %v9902 = vadd.f32 %v9832, %v9887
    %v9903 = vadd.f32 %v9833, %v9887
    %v9904 = vadd.f32 %v9834, %v9887
    %v9905 = vadd.f32 %v9835, %v9887
    %v9906 = vadd.f32 %v9836, %v9887
    %v9907 = vadd.f32 %v9837, %v9887
    %v9908 = vadd.f32 %v9838, %v9887
    %v9909 = vadd.f32 %v9839, %v9887
    %v9910 = vadd.f32 %v9840, %v9887
    %v9911 = vadd.f32 %v9841, %v9887
    %v9912 = vadd.f32 %v9842, %v9887
    %v9913 = vadd.f32 %v9843, %v9887
    %v9914 = vadd.f32 %v9844, %v9887
    %v9915 = vadd.f32 %v9845, %v9887
    %v9916 = vadd.f32 %v9846, %v9887
    %v9917 = vadd.f32 %v9847, %v9887
    %v9918 = vadd.f32 %v9848, %v9887
    %v9919 = vadd.f32 %v9849, %v9887
    %v9920 = vadd.f32 %v9850, %v9887
    %v9921 = vadd.f32 %v9851, %v9887
    %v9922 = vadd.f32 %v9852, %v9887
    %v9923 = vadd.f32 %v9853, %v9887
    %v9924 = vadd.f32 %v9854, %v9887
    %v9925 = vadd.f32 %v9855, %v9887
    %v9926 = vadd.f32 %v9856, %v9887
    %v9927 = vadd.f32 %v9857, %v9887
    %v9928 = vadd.f32 %v9858, %v9887
    %v9929 = vadd.f32 %v9859, %v9887
    %v9930 = vadd.f32 %v9860, %v9887
    %v9931 = vadd.f32 %v9861, %v9887
    %v9932 = vadd.f32 %v9862, %v9887
    %v9933 = vadd.f32 %v9863, %v9887
    %v9934 = vadd.f32 %v9864, %v9887
    %v9935 = vadd.f32 %v9865, %v9887
    %v9936 = vadd.f32 %v9866, %v9887
    %v9937 = vadd.f32 %v9867, %v9887
    %v9938 = vadd.f32 %v9868, %v9887
    %v9939 = vadd.f32 %v9869, %v9887
    %v9940 = vadd.f32 %v9870, %v9887
    %v9941 = vadd.f32 %v9871, %v9887
    %v9942 = vadd.f32 %v9872, %v9887
    %v9943 = vadd.f32 %v9873, %v9887
    %v9944 = vadd.f32 %v9874, %v9887
    %v9945 = vadd.f32 %v9875, %v9887
    %v9946 = vadd.f32 %v9876, %v9887
    %v9947 = vadd.f32 %v9877, %v9887
    %v9948 = vadd.f32 %v9878, %v9887
    %v9949 = vadd.f32 %v9879, %v9887
    %v9950 = vadd.f32 %v9880, %v9887
    %v9951 = vadd.f32 %v9881, %v9887
    %v9952 = vadd.f32 %v9882, %v9887
    %v9953 = vmax.f32 %v9889, 0.0
    %v9954 = vmax.f32 %v9890, 0.0
    %v9955 = vmax.f32 %v9891, 0.0
    %v9956 = vmax.f32 %v9892, 0.0
    %v9957 = vmax.f32 %v9893, 0.0
    %v9958 = vmax.f32 %v9894, 0.0
    %v9959 = vmax.f32 %v9895, 0.0
    %v9960 = vmax.f32 %v9896, 0.0
    %v9961 = vmax.f32 %v9897, 0.0
    %v9962 = vmax.f32 %v9898, 0.0
    %v9963 = vmax.f32 %v9899, 0.0
    %v9964 = vmax.f32 %v9900, 0.0
    %v9965 = vmax.f32 %v9901, 0.0
    %v9966 = vmax.f32 %v9902, 0.0
    %v9967 = vmax.f32 %v9903, 0.0
    %v9968 = vmax.f32 %v9904, 0.0
    %v9969 = vmax.f32 %v9905, 0.0
    %v9970 = vmax.f32 %v9906, 0.0
    %v9971 = vmax.f32 %v9907, 0.0
    %v9972 = vmax.f32 %v9908, 0.0
    %v9973 = vmax.f32 %v9909, 0.0
    %v9974 = vmax.f32 %v9910, 0.0
    %v9975 = vmax.f32 %v9911, 0.0
    %v9976 = vmax.f32 %v9912, 0.0
    %v9977 = vmax.f32 %v9913, 0.0
    %v9978 = vmax.f32 %v9914, 0.0
    %v9979 = vmax.f32 %v9915, 0.0
    %v9980 = vmax.f32 %v9916, 0.0
    %v9981 = vmax.f32 %v9917, 0.0
    %v9982 = vmax.f32 %v9918, 0.0
    %v9983 = vmax.f32 %v9919, 0.0
    %v9984 = vmax.f32 %v9920, 0.0
    %v9985 = vmax.f32 %v9921, 0.0
    %v9986 = vmax.f32 %v9922, 0.0
    %v9987 = vmax.f32 %v9923, 0.0
    %v9988 = vmax.f32 %v9924, 0.0
    %v9989 = vmax.f32 %v9925, 0.0
    %v9990 = vmax.f32 %v9926, 0.0
    %v9991 = vmax.f32 %v9927, 0.0
    %v9992 = vmax.f32 %v9928, 0.0
    %v9993 = vmax.f32 %v9929, 0.0
    %v9994 = vmax.f32 %v9930, 0.0
    %v9995 = vmax.f32 %v9931, 0.0
    %v9996 = vmax.f32 %v9932, 0.0
    %v9997 = vmax.f32 %v9933, 0.0
    %v9998 = vmax.f32 %v9934, 0.0
    %v9999 = vmax.f32 %v9935, 0.0
    %v10000 = vmax.f32 %v9936, 0.0
    %v10001 = vmax.f32 %v9937, 0.0
    %v10002 = vmax.f32 %v9938, 0.0
    %v10003 = vmax.f32 %v9939, 0.0
    %v10004 = vmax.f32 %v9940, 0.0
    %v10005 = vmax.f32 %v9941, 0.0
    %v10006 = vmax.f32 %v9942, 0.0
    %v10007 = vmax.f32 %v9943, 0.0
    %v10008 = vmax.f32 %v9944, 0.0
    %v10009 = vmax.f32 %v9945, 0.0
    %v10010 = vmax.f32 %v9946, 0.0
    %v10011 = vmax.f32 %v9947, 0.0
    %v10012 = vmax.f32 %v9948, 0.0
    %v10013 = vmax.f32 %v9949, 0.0
    %v10014 = vmax.f32 %v9950, 0.0
    %v10015 = vmax.f32 %v9951, 0.0
    %v10016 = vmax.f32 %v9952, 0.0
    %10017 = vst [vmem:[#allocation9] sm:$0xff] %v9953
    %10018 = vst [vmem:[#allocation9 + $0x8] sm:$0xff] %v9954
    %10019 = vst [vmem:[#allocation9 + $0x10] sm:$0xff] %v9955
    %10020 = vst [vmem:[#allocation9 + $0x18] sm:$0xff] %v9956
    %10021 = vst [vmem:[#allocation9 + $0x20] sm:$0xff] %v9957
    %10022 = vst [vmem:[#allocation9 + $0x28] sm:$0xff] %v9958
    %10023 = vst [vmem:[#allocation9 + $0x30] sm:$0xff] %v9959
    %10024 = vst [vmem:[#allocation9 + $0x38] sm:$0xff] %v9960
    %10025 = vst [vmem:[#allocation9 + $0x40] sm:$0xff] %v9961
    %10026 = vst [vmem:[#allocation9 + $0x48] sm:$0xff] %v9962
    %10027 = vst [vmem:[#allocation9 + $0x50] sm:$0xff] %v9963
    %10028 = vst [vmem:[#allocation9 + $0x58] sm:$0xff] %v9964
    %10029 = vst [vmem:[#allocation9 + $0x60] sm:$0xff] %v9965
    %10030 = vst [vmem:[#allocation9 + $0x68] sm:$0xff] %v9966
    %10031 = vst [vmem:[#allocation9 + $0x70] sm:$0xff] %v9967
    %10032 = vst [vmem:[#allocation9 + $0x78] sm:$0xff] %v9968
    %10033 = vst [vmem:[#allocation9 + $0x80] sm:$0xff] %v9969
    %10034 = vst [vmem:[#allocation9 + $0x88] sm:$0xff] %v9970
    %10035 = vst [vmem:[#allocation9 + $0x90] sm:$0xff] %v9971
    %10036 = vst [vmem:[#allocation9 + $0x98] sm:$0xff] %v9972
    %10037 = vst [vmem:[#allocation9 + $0xa0] sm:$0xff] %v9973
    %10038 = vst [vmem:[#allocation9 + $0xa8] sm:$0xff] %v9974
    %10039 = vst [vmem:[#allocation9 + $0xb0] sm:$0xff] %v9975
    %10040 = vst [vmem:[#allocation9 + $0xb8] sm:$0xff] %v9976
    %10041 = vst [vmem:[#allocation9 + $0xc0] sm:$0xff] %v9977
    %10042 = vst [vmem:[#allocation9 + $0xc8] sm:$0xff] %v9978
    %10043 = vst [vmem:[#allocation9 + $0xd0] sm:$0xff] %v9979
    %10044 = vst [vmem:[#allocation9 + $0xd8] sm:$0xff] %v9980
    %10045 = vst [vmem:[#allocation9 + $0xe0] sm:$0xff] %v9981
    %10046 = vst [vmem:[#allocation9 + $0xe8] sm:$0xff] %v9982
    %10047 = vst [vmem:[#allocation9 + $0xf0] sm:$0xff] %v9983
    %10048 = vst [vmem:[#allocation9 + $0xf8] sm:$0xff] %v9984
    %10049 = vst [vmem:[#allocation9 + $0x100] sm:$0xff] %v9985
    %10050 = vst [vmem:[#allocation9 + $0x108] sm:$0xff] %v9986
    %10051 = vst [vmem:[#allocation9 + $0x110] sm:$0xff] %v9987
    %10052 = vst [vmem:[#allocation9 + $0x118] sm:$0xff] %v9988
    %10053 = vst [vmem:[#allocation9 + $0x120] sm:$0xff] %v9989
    %10054 = vst [vmem:[#allocation9 + $0x128] sm:$0xff] %v9990
    %10055 = vst [vmem:[#allocation9 + $0x130] sm:$0xff] %v9991
    %10056 = vst [vmem:[#allocation9 + $0x138] sm:$0xff] %v9992
    %10057 = vst [vmem:[#allocation9 + $0x140] sm:$0xff] %v9993
    %10058 = vst [vmem:[#allocation9 + $0x148] sm:$0xff] %v9994
    %10059 = vst [vmem:[#allocation9 + $0x150] sm:$0xff] %v9995
    %10060 = vst [vmem:[#allocation9 + $0x158] sm:$0xff] %v9996
    %10061 = vst [vmem:[#allocation9 + $0x160] sm:$0xff] %v9997
    %10062 = vst [vmem:[#allocation9 + $0x168] sm:$0xff] %v9998
    %10063 = vst [vmem:[#allocation9 + $0x170] sm:$0xff] %v9999
    %10064 = vst [vmem:[#allocation9 + $0x178] sm:$0xff] %v10000
    %10065 = vst [vmem:[#allocation9 + $0x180] sm:$0xff] %v10001
    %10066 = vst [vmem:[#allocation9 + $0x188] sm:$0xff] %v10002
    %10067 = vst [vmem:[#allocation9 + $0x190] sm:$0xff] %v10003
    %10068 = vst [vmem:[#allocation9 + $0x198] sm:$0xff] %v10004
    %10069 = vst [vmem:[#allocation9 + $0x1a0] sm:$0xff] %v10005
    %10070 = vst [vmem:[#allocation9 + $0x1a8] sm:$0xff] %v10006
    %10071 = vst [vmem:[#allocation9 + $0x1b0] sm:$0xff] %v10007
    %10072 = vst [vmem:[#allocation9 + $0x1b8] sm:$0xff] %v10008
    %10073 = vst [vmem:[#allocation9 + $0x1c0] sm:$0xff] %v10009
    %10074 = vst [vmem:[#allocation9 + $0x1c8] sm:$0xff] %v10010
    %10075 = vst [vmem:[#allocation9 + $0x1d0] sm:$0xff] %v10011
    %10076 = vst [vmem:[#allocation9 + $0x1d8] sm:$0xff] %v10012
    %10077 = vst [vmem:[#allocation9 + $0x1e0] sm:$0xff] %v10013
    %10078 = vst [vmem:[#allocation9 + $0x1e8] sm:$0xff] %v10014
    %10079 = vst [vmem:[#allocation9 + $0x1f0] sm:$0xff] %v10015
    %10080 = vst [vmem:[#allocation9 + $0x1f8] sm:$0xff] %v10016
    // Predicated region
    $region34: #{tpu_custom_call.1} parent=1 // pred_check
      _
    $region35: #{tpu_custom_call.1} parent=1 // pred_check_branch
      %10082 = sbr.rel (0) target = $region37
    $region36: #{tpu_custom_call.1} parent=1 // pred_region
      %s10084 = ssub.s32 8192, 8192
      %10085 = vsyncadd [#allocation8], %s10084
      %s10086 = sshll.u32 [#allocation9], 4
      %s10087 = int_to_ptr.vmem [resolvable:$true] %s10086
      %10092 = dma.vmem_to_hbm [thread:$0]  %s10087, 8192, %s7, [#allocation8], 128, 128, 8
    $region37: #{tpu_custom_call.1} parent=1 // pred_fallthru
      _
    // Predicated region
    $region38: #{tpu_custom_call.1} parent=1 // pred_check
      _
    $region39: #{tpu_custom_call.1} parent=1 // pred_check_branch
      %10094 = sbr.rel (0) target = $region41
    $region40: #{tpu_custom_call.1} parent=1 // pred_region
      %10095 = dma.done [#allocation8], 8192
    $region41: #{tpu_custom_call.1} parent=1 // pred_fallthru
      _
    %10096 = vsyncpa [#allocation7], 1
    %10097 = vsyncpa [#allocation8], 1

</llo_original>
